<compile_context>
chip_gen: v7x
topology: tpu7x:2x2x1
jax: 0.10.0
libtpu: 0.0.40
codegen_flags: <defaults>
</compile_context>

<pallas_src>
import functools
import math

import jax
import jax.numpy as jnp
from jax.experimental import pallas as pl
from jax.experimental.pallas import tpu as pltpu
from jax.scipy.linalg import block_diag

# ----------------------- model hyper-parameters (small) -----------------------
HIDDEN = 32          # hidden_channels
NUM_RBF = 16         # num_rbf
NUM_LAYERS = 2       # num_layers
CUTOFF_LOWER = 0.0
CUTOFF_UPPER = 4.5
MAX_NUM_NEIGHBORS = 64
GROUP = "O(3)"       # equivariance_invariance_group
LN_EPS = 1e-5
ROW_TILE = 1024      # max rows per grid step (elementwise/matmul-light kernels)
ROW_TILE_BACK = 256  # interaction_back keeps many live plane temporaries

_CPARAMS = pltpu.CompilerParams(
    dimension_semantics=("parallel",),
    vmem_limit_bytes=48 * 1024 * 1024,   # < 64 MiB physical on every generation
)


# ------------------------------- small helpers --------------------------------
def _round_up(x, m):
    return ((x + m - 1) // m) * m


def _row_tiles(rows, cap=ROW_TILE):
    rows = max(int(rows), 1)
    tm = min(_round_up(rows, 8), cap)
    return tm, _round_up(rows, tm)


def _pad_rows(x, rows_p):
    if x.shape[0] == rows_p:
        return x
    pad = [(0, 0)] * x.ndim
    pad[0] = (0, rows_p - x.shape[0])
    return jnp.pad(x, pad)


def _silu(y):
    # reciprocal on the EUP (free slot) instead of a VALU divide
    denom = 1.0 + jnp.exp(-y)
    if hasattr(pl, "reciprocal"):
        return y * pl.reciprocal(denom, approx=True)
    return y / denom


def _mm3(x, y):
    # per-(row,channel) 3x3 matmul on planar features: x, y are 9 (tm, H) planes
    out = []
    for a in range(3):
        for b in range(3):
            out.append(x[3 * a + 0] * y[b]
                       + x[3 * a + 1] * y[3 + b]
                       + x[3 * a + 2] * y[6 + b])
    return out


def _decompose_planar(t):
    # 9 planes -> (trace/3, antisym independents, sym independents)
    tr3 = (t[0] + t[4] + t[8]) * (1.0 / 3.0)
    a01 = 0.5 * (t[1] - t[3])
    a02 = 0.5 * (t[2] - t[6])
    a12 = 0.5 * (t[5] - t[7])
    y00 = t[0] - tr3
    y11 = t[4] - tr3
    y22 = t[8] - tr3
    y01 = 0.5 * (t[1] + t[3])
    y02 = 0.5 * (t[2] + t[6])
    y12 = 0.5 * (t[5] + t[7])
    return tr3, (a01, a02, a12), (y00, y01, y02, y11, y12, y22)


def _assemble_planar(i_d, a, s):
    # build the 9 planes of (i_d * eye) + antisym(a) + sym(s)
    a01, a02, a12 = a[0], a[1], a[2]
    y00, y01, y02, y11, y12, y22 = s[0], s[1], s[2], s[3], s[4], s[5]
    return [i_d + y00, a01 + y01, a02 + y02,
            -a01 + y01, i_d + y11, a12 + y12,
            -a02 + y02, -a12 + y12, i_d + y22]


def _compact(tr3, a, s):
    return jnp.concatenate([tr3, a[0], a[1], a[2],
                            s[0], s[1], s[2], s[3], s[4], s[5]], axis=-1)


# ================================ Pallas kernels ===============================
# --- fused edge embedding: (emb∘emb2) + dp1/dp2/dp3 in ONE matmul + geometry ---
def _edge_embed_kernel(lhs_ref, cw_ref, vec_ref, w_ref, b_ref, o_ref, *, H):
    y = jnp.dot(lhs_ref[...], w_ref[...], preferred_element_type=jnp.float32) + b_ref[...]
    C = cw_ref[...] * y[:, 0:H]                      # cutoff * Zij
    d1 = y[:, 1 * H:2 * H] * C
    d2 = y[:, 2 * H:3 * H] * C
    d3 = y[:, 3 * H:4 * H] * C
    v = vec_ref[...]
    v0 = v[:, 0:1]
    v1 = v[:, 1:2]
    v2 = v[:, 2:3]
    vsq3 = (v0 * v0 + v1 * v1 + v2 * v2) * (1.0 / 3.0)
    # compact 10-block edge message: [I, A(01,02,12), S(00,01,02,11,12,22)]
    o_ref[...] = jnp.concatenate(
        [d1,
         d2 * (-v2), d2 * v1, d2 * (-v0),
         d3 * (v0 * v0 - vsq3), d3 * (v0 * v1), d3 * (v0 * v2),
         d3 * (v1 * v1 - vsq3), d3 * (v1 * v2), d3 * (v2 * v2 - vsq3)],
        axis=-1).astype(o_ref.dtype)


def edge_embed(lhs, cw, vec, w, b):
    E, K = lhs.shape
    H = HIDDEN
    tm, Ep = _row_tiles(E)
    out = pl.pallas_call(
        functools.partial(_edge_embed_kernel, H=H),
        out_shape=jax.ShapeDtypeStruct((Ep, 10 * H), lhs.dtype),
        grid=(Ep // tm,),
        in_specs=[
            pl.BlockSpec((tm, K), lambda i: (i, 0)),
            pl.BlockSpec((tm, 1), lambda i: (i, 0)),
            pl.BlockSpec((tm, 3), lambda i: (i, 0)),
            pl.BlockSpec((K, 4 * H), lambda i: (0, 0)),
            pl.BlockSpec((1, 4 * H), lambda i: (0, 0)),
        ],
        out_specs=pl.BlockSpec((tm, 10 * H), lambda i: (i, 0)),
        compiler_params=_CPARAMS,
    )(_pad_rows(lhs, Ep), _pad_rows(cw, Ep), _pad_rows(vec, Ep), w, b.reshape(1, 4 * H))
    return out[:E]


# --- fused node embedding: norm + LayerNorm + MLP + block-diag mixing + scale --
def _node_embed_kernel(s_ref, nw_ref, g_ref, be_ref, w0_ref, b0_ref, w1_ref, b1_ref,
                       wblk_ref, o_ref, *, H, eps):
    s = s_ref[...]                                                    # (tm, 10H)
    # Frobenius norm of assembled tensor via per-block coefficient matmul
    norm = jnp.dot(s * s, nw_ref[...], preferred_element_type=jnp.float32)   # (tm, H)
    mu = jnp.mean(norm, axis=-1, keepdims=True)
    var = jnp.mean((norm - mu) ** 2, axis=-1, keepdims=True)
    ln = (norm - mu) * jax.lax.rsqrt(var + eps) * g_ref[...] + be_ref[...]
    h = _silu(jnp.dot(ln, w0_ref[...], preferred_element_type=jnp.float32) + b0_ref[...])
    h = _silu(jnp.dot(h, w1_ref[...], preferred_element_type=jnp.float32) + b1_ref[...])
    n0 = h[:, 0 * H:1 * H]
    n1 = h[:, 1 * H:2 * H]
    n2 = h[:, 2 * H:3 * H]
    scale = jnp.concatenate([n0, n1, n1, n1, n2, n2, n2, n2, n2, n2], axis=-1)
    mixed = jnp.dot(s, wblk_ref[...], preferred_element_type=jnp.float32)     # (tm, 10H)
    o_ref[...] = (mixed * scale).astype(o_ref.dtype)


def node_embed(scat, norm_w, ln_g, ln_b, w0, b0, w1b, b1b, wblk):
    Np = scat.shape[0]
    H = HIDDEN
    tm, Rp = _row_tiles(Np)
    out = pl.pallas_call(
        functools.partial(_node_embed_kernel, H=H, eps=LN_EPS),
        out_shape=jax.ShapeDtypeStruct((Rp, 10 * H), scat.dtype),
        grid=(Rp // tm,),
        in_specs=[
            pl.BlockSpec((tm, 10 * H), lambda i: (i, 0)),
            pl.BlockSpec((10 * H, H), lambda i: (0, 0)),
            pl.BlockSpec((1, H), lambda i: (0, 0)),
            pl.BlockSpec((1, H), lambda i: (0, 0)),
            pl.BlockSpec((H, 2 * H), lambda i: (0, 0)),
            pl.BlockSpec((1, 2 * H), lambda i: (0, 0)),
            pl.BlockSpec((2 * H, 3 * H), lambda i: (0, 0)),
            pl.BlockSpec((1, 3 * H), lambda i: (0, 0)),
            pl.BlockSpec((10 * H, 10 * H), lambda i: (0, 0)),
        ],
        out_specs=pl.BlockSpec((tm, 10 * H), lambda i: (i, 0)),
        compiler_params=_CPARAMS,
    )(_pad_rows(scat, Rp), norm_w, ln_g.reshape(1, H), ln_b.reshape(1, H),
      w0, b0.reshape(1, 2 * H), w1b, b1b.reshape(1, 3 * H), wblk)
    return out[:Np]


# --- interaction edge MLP, all layers fused (block-diag weights), *cutoff -----
def _edge_mlp_kernel(rbf_ref, cw_ref, w0_ref, b0_ref, w1_ref, b1_ref, w2_ref, b2_ref, o_ref):
    h = _silu(jnp.dot(rbf_ref[...], w0_ref[...], preferred_element_type=jnp.float32) + b0_ref[...])
    h = _silu(jnp.dot(h, w1_ref[...], preferred_element_type=jnp.float32) + b1_ref[...])
    h = _silu(jnp.dot(h, w2_ref[...], preferred_element_type=jnp.float32) + b2_ref[...])
    o_ref[...] = (h * cw_ref[...]).astype(o_ref.dtype)


def edge_mlp_all(rbf, cw, w0, b0, w1, b1, w2, b2):
    E, R = rbf.shape
    C1, C2, C3 = w0.shape[1], w1.shape[1], w2.shape[1]
    tm, Ep = _row_tiles(E)
    out = pl.pallas_call(
        _edge_mlp_kernel,
        out_shape=jax.ShapeDtypeStruct((Ep, C3), rbf.dtype),
        grid=(Ep // tm,),
        in_specs=[
            pl.BlockSpec((tm, R), lambda i: (i, 0)),
            pl.BlockSpec((tm, 1), lambda i: (i, 0)),
            pl.BlockSpec((R, C1), lambda i: (0, 0)),
            pl.BlockSpec((1, C1), lambda i: (0, 0)),
            pl.BlockSpec((C1, C2), lambda i: (0, 0)),
            pl.BlockSpec((1, C2), lambda i: (0, 0)),
            pl.BlockSpec((C2, C3), lambda i: (0, 0)),
            pl.BlockSpec((1, C3), lambda i: (0, 0)),
        ],
        out_specs=pl.BlockSpec((tm, C3), lambda i: (i, 0)),
        compiler_params=_CPARAMS,
    )(_pad_rows(rbf, Ep), _pad_rows(cw, Ep),
      w0, b0.reshape(1, C1), w1, b1.reshape(1, C2), w2, b2.reshape(1, C3))
    return out[:E]


# --- interaction front: normalize + block-diag channel mixing (compact in/out) -
def _inter_front_kernel(x_ref, nw_ref, wblk_ref, c_ref):
    x = x_ref[...]
    norm = jnp.dot(x * x, nw_ref[...], preferred_element_type=jnp.float32)
    inv = 1.0 / (norm + 1.0)
    inv10 = jnp.concatenate([inv] * 10, axis=-1)
    c_ref[...] = jnp.dot(x * inv10, wblk_ref[...],
                         preferred_element_type=jnp.float32).astype(c_ref.dtype)


def interaction_front(X, norm_w, wblk):
    Np = X.shape[0]
    H = HIDDEN
    tm, Rp = _row_tiles(Np)
    out = pl.pallas_call(
        _inter_front_kernel,
        out_shape=jax.ShapeDtypeStruct((Rp, 10 * H), X.dtype),
        grid=(Rp // tm,),
        in_specs=[
            pl.BlockSpec((tm, 10 * H), lambda i: (i, 0)),
            pl.BlockSpec((10 * H, H), lambda i: (0, 0)),
            pl.BlockSpec((10 * H, 10 * H), lambda i: (0, 0)),
        ],
        out_specs=pl.BlockSpec((tm, 10 * H), lambda i: (i, 0)),
        compiler_params=_CPARAMS,
    )(_pad_rows(X, Rp), norm_w, wblk)
    return out[:Np]


# --- interaction back: 3x3 products + decompose + norm + mixing + residual -----
def _inter_back_kernel(x_ref, c_ref, m_ref, q_ref, nw_ref, wblk_ref, o_ref, *, H, group):
    x = x_ref[...]
    c = c_ref[...]
    m = m_ref[...]
    # recompute Xn = X / (|X|^2 + 1) (avoids a full HBM round trip of Xn)
    normx = jnp.dot(x * x, nw_ref[...], preferred_element_type=jnp.float32)
    invx = 1.0 / (normx + 1.0)
    cb = [c[:, k * H:(k + 1) * H] for k in range(10)]
    mb = [m[:, k * H:(k + 1) * H] for k in range(10)]
    Y = _assemble_planar(cb[0], cb[1:4], cb[4:10])       # mixed I + A + S (nodes)
    M = _assemble_planar(mb[0], mb[1:4], mb[4:10])       # aggregated messages
    coef = 1.0 + 0.1 * q_ref[...]                        # (tm, 1)
    if group == "O(3)":
        P = _mm3(M, Y)
        Q = _mm3(Y, M)
        T = [coef * (P[k] + Q[k]) for k in range(9)]
    else:  # SO(3)
        Q = _mm3(Y, M)
        T = [2.0 * Q[k] for k in range(9)]
    tr3, a, s = _decompose_planar(T)
    normp1 = T[0] * T[0]
    for k in range(1, 9):
        normp1 = normp1 + T[k] * T[k]
    invT = 1.0 / (normp1 + 1.0)
    invT10 = jnp.concatenate([invT] * 10, axis=-1)
    compT = _compact(tr3, a, s)                          # (tm, 10H)
    dX = jnp.dot(compT * invT10, wblk_ref[...], preferred_element_type=jnp.float32)
    db = [dX[:, k * H:(k + 1) * H] for k in range(10)]
    dplanes = _assemble_planar(db[0], db[1:4], db[4:10])
    D2 = _mm3(dplanes, dplanes)
    xb = [x[:, k * H:(k + 1) * H] * invx for k in range(10)]
    Xn = _assemble_planar(xb[0], xb[1:4], xb[4:10])
    Xnew = [Xn[k] + dplanes[k] + coef * D2[k] for k in range(9)]
    tr3n, an, sn = _decompose_planar(Xnew)
    o_ref[...] = _compact(tr3n, an, sn).astype(o_ref.dtype)


def interaction_back(X, comp, msg, q, norm_w, wblk, group=GROUP):
    Np = X.shape[0]
    H = HIDDEN
    tm, Rp = _row_tiles(Np, cap=ROW_TILE_BACK)
    out = pl.pallas_call(
        functools.partial(_inter_back_kernel, H=H, group=group),
        out_shape=jax.ShapeDtypeStruct((Rp, 10 * H), X.dtype),
        grid=(Rp // tm,),
        in_specs=[
            pl.BlockSpec((tm, 10 * H), lambda i: (i, 0)),
            pl.BlockSpec((tm, 10 * H), lambda i: (i, 0)),
            pl.BlockSpec((tm, 10 * H), lambda i: (i, 0)),
            pl.BlockSpec((tm, 1), lambda i: (i, 0)),
            pl.BlockSpec((10 * H, H), lambda i: (0, 0)),
            pl.BlockSpec((10 * H, 10 * H), lambda i: (0, 0)),
        ],
        out_specs=pl.BlockSpec((tm, 10 * H), lambda i: (i, 0)),
        compiler_params=_CPARAMS,
    )(_pad_rows(X, Rp), _pad_rows(comp, Rp), _pad_rows(msg, Rp), _pad_rows(q, Rp),
      norm_w, wblk)
    return out[:Np]


# --- output head: block norms (via matmul) + LayerNorm + Linear + SiLU ---------
def _out_head_kernel(x_ref, hw_ref, g_ref, be_ref, w_ref, b_ref, o_ref, *, eps):
    x = x_ref[...]
    feat = jnp.dot(x * x, hw_ref[...], preferred_element_type=jnp.float32)   # (tm, 3H)
    mu = jnp.mean(feat, axis=-1, keepdims=True)
    var = jnp.mean((feat - mu) ** 2, axis=-1, keepdims=True)
    xn = (feat - mu) * jax.lax.rsqrt(var + eps) * g_ref[...] + be_ref[...]
    y = jnp.dot(xn, w_ref[...], preferred_element_type=jnp.float32) + b_ref[...]
    o_ref[...] = _silu(y).astype(o_ref.dtype)


def out_head(X, head_norm_w, g, be, w, b):
    Np = X.shape[0]
    H = HIDDEN
    tm, Rp = _row_tiles(Np)
    out = pl.pallas_call(
        functools.partial(_out_head_kernel, eps=LN_EPS),
        out_shape=jax.ShapeDtypeStruct((Rp, H), X.dtype),
        grid=(Rp // tm,),
        in_specs=[
            pl.BlockSpec((tm, 10 * H), lambda i: (i, 0)),
            pl.BlockSpec((10 * H, 3 * H), lambda i: (0, 0)),
            pl.BlockSpec((1, 3 * H), lambda i: (0, 0)),
            pl.BlockSpec((1, 3 * H), lambda i: (0, 0)),
            pl.BlockSpec((3 * H, H), lambda i: (0, 0)),
            pl.BlockSpec((1, H), lambda i: (0, 0)),
        ],
        out_specs=pl.BlockSpec((tm, H), lambda i: (i, 0)),
        compiler_params=_CPARAMS,
    )(_pad_rows(X, Rp), head_norm_w, g.reshape(1, 3 * H), be.reshape(1, 3 * H),
      w, b.reshape(1, H))
    return out[:Np]


# ============================== plain-JAX helpers ==============================
def cosine_cutoff(d):
    c = 0.5 * (jnp.cos(d * math.pi / CUTOFF_UPPER) + 1.0)
    return c * (d < CUTOFF_UPPER).astype(d.dtype)


def expnorm_rbf(d):
    alpha = 5.0 / (CUTOFF_UPPER - CUTOFF_LOWER)
    means = jnp.linspace(math.exp(-CUTOFF_UPPER + CUTOFF_LOWER), 1.0, NUM_RBF).astype(d.dtype)
    betas = jnp.full(
        (NUM_RBF,),
        (2.0 / NUM_RBF * (1.0 - math.exp(-CUTOFF_UPPER + CUTOFF_LOWER))) ** -2,
        d.dtype)
    dd = d[:, None]
    return cosine_cutoff(dd) * jnp.exp(-betas * (jnp.exp(alpha * (-dd + CUTOFF_LOWER)) - means) ** 2)


# ================================ full forward =================================
@jax.jit
def tensornet_forward(params, z, pos, batch):
    N, H = z.shape

    # TODO(synk): OptimizedDistance neighbor search has no Pallas equivalent;
    # brute-force all-pairs in plain JAX, capped at MAX_NUM_NEIGHBORS*N pairs
    # (valid pairs beyond the cap are silently dropped, like static_shapes).
    diff = pos[:, None, :] - pos[None, :, :]                      # pos[i] - pos[j]
    dist = jnp.sqrt(jnp.sum(diff * diff, axis=-1))
    valid = (dist < CUTOFF_UPPER) & (batch[:, None] == batch[None, :])
    ii, jj = jnp.meshgrid(jnp.arange(N), jnp.arange(N), indexing="ij")
    vflat = valid.reshape(-1)
    order = jnp.argsort(jnp.logical_not(vflat))                   # stable: valid pairs first, row-major
    max_pairs = min(N * N, MAX_NUM_NEIGHBORS * N)
    idx = order[:max_pairs]
    sel = vflat[idx]
    # ghost-atom padding (static shapes): invalid edges point to node N
    e0 = jnp.where(sel, ii.reshape(-1)[idx], N).astype(jnp.int32)   # sorted non-decreasing
    e1 = jnp.where(sel, jj.reshape(-1)[idx], N).astype(jnp.int32)
    edge_weight = jnp.where(sel, dist.reshape(-1)[idx], 0.0)
    edge_vec = jnp.where(sel[:, None], diff.reshape(-1, 3)[idx], 0.0)
    Np = N + 1

    zp = jnp.concatenate([z, jnp.zeros((1, H), z.dtype)], axis=0)
    q = jnp.zeros((Np, 1), z.dtype)

    edge_attr = expnorm_rbf(edge_weight)                          # (E, NUM_RBF)
    cw = cosine_cutoff(edge_weight)[:, None]                      # (E, 1)
    loop_mask = e0 == e1
    edge_vec = edge_vec / jnp.where(loop_mask, 1.0, edge_weight)[:, None]

    # ------------------------------- embedding -------------------------------
    # emb Linear folded into emb2 (exact reparam); one fused edge matmul.
    lhs = jnp.concatenate([zp[e0], zp[e1], edge_attr], axis=-1)   # (E, 2H+R)
    msg10 = edge_embed(lhs, cw, edge_vec, params["edge_w"], params["edge_b"])
    # TODO(synk): per-node aggregation stays in XLA (sorted segment-sum); a
    # scalar-prefetch Pallas accumulation kernel would remove this round trip.
    scat = jax.ops.segment_sum(msg10, e0, num_segments=Np, indices_are_sorted=True)
    X = node_embed(scat, params["norm_w"],
                   params["init_ln"][0], params["init_ln"][1],
                   params["emb_ls0"][0], params["emb_ls0"][1],
                   params["emb_ls1"][0], params["emb_ls1"][1],
                   params["emb_wblk"])                            # (Np, 10H) compact

    # --------------------- layer-invariant edge MLPs (one kernel) -------------
    f_all = edge_mlp_all(edge_attr, cw,
                         params["mlp_w0"], params["mlp_b0"],
                         params["mlp_w1"], params["mlp_b1"],
                         params["mlp_w2"], params["mlp_b2"])      # (E, L*3H)

    # ----------------------------- interactions ------------------------------
    for l, lp in enumerate(params["layers"]):
        comp = interaction_front(X, params["norm_w"], lp["wblk_a"])   # (Np, 10H)
        f = f_all[:, l * 3 * H:(l + 1) * 3 * H]
        f0 = f[:, :H]
        f1 = f[:, H:2 * H]
        f2 = f[:, 2 * H:]
        factor10 = jnp.concatenate([f0, f1, f1, f1, f2, f2, f2, f2, f2, f2], axis=-1)
        msg_e = comp[e1] * factor10                               # gather stays in XLA
        msgC = jax.ops.segment_sum(msg_e, e0, num_segments=Np, indices_are_sorted=True)
        X = interaction_back(X, comp, msgC, q, params["norm_w"], lp["wblk_b"])

    # -------------------------------- output ---------------------------------
    x = out_head(X, params["head_norm_w"],
                 params["out_ln"][0], params["out_ln"][1],
                 params["out_lin"][0], params["out_lin"][1])
    return x[:N]                                                  # drop ghost atom


# ================================= parameters ==================================
def init_params(key):
    keys = iter(jax.random.split(key, 128))

    def lin(fan_in, fan_out, bias=True):
        k1 = next(keys)
        k2 = next(keys)
        bound = 1.0 / math.sqrt(fan_in)
        w = jax.random.uniform(k1, (fan_in, fan_out), jnp.float32, -bound, bound)
        if bias:
            b = jax.random.uniform(k2, (fan_out,), jnp.float32, -bound, bound)
        else:
            b = jnp.zeros((fan_out,), jnp.float32)
        return w, b

    H, R = HIDDEN, NUM_RBF
    p = {}
    p["emb"] = lin(H, H)
    p["emb2"] = lin(2 * H, H)
    p["dp1"] = lin(R, H)
    p["dp2"] = lin(R, H)
    p["dp3"] = lin(R, H)
    p["emb_lt"] = [lin(H, H, bias=False)[0] for _ in range(3)]
    p["emb_ls"] = [lin(H, 2 * H), lin(2 * H, 3 * H)]
    p["init_ln"] = (jnp.ones((H,), jnp.float32), jnp.zeros((H,), jnp.float32))
    p["layers"] = []
    for _ in range(NUM_LAYERS):
        p["layers"].append({
            "ls": [lin(R, H), lin(H, 2 * H), lin(2 * H, 3 * H)],
            "lt": [lin(H, H, bias=False)[0] for _ in range(6)],
        })
    p["out_ln"] = (jnp.ones((3 * H,), jnp.float32), jnp.zeros((3 * H,), jnp.float32))
    p["out_lin"] = lin(3 * H, H)
    return p


def prepare_params(p):
    """Repack PyTorch-layout params into kernel-friendly layouts (exact
    reparameterizations only):
      * emb folded into emb2; emb2' and dp1|dp2|dp3 packed into one block-diag
        edge weight (one fused edge matmul),
      * last layer of each scalar MLP: columns permuted from interleaved
        `reshape(-1, H, 3)` layout to blocked (k*H+h),
      * each stage's three bias-free HxH mixings expanded to one block-diagonal
        (10H,10H) weight over the compact 10-block slab,
      * both interaction layers' edge-MLP weights block-diagonalized (1 kernel),
      * Frobenius-norm block-coefficient matrices built once (kron)."""
    H, R = HIDDEN, NUM_RBF
    perm = jnp.array([h * 3 + k for k in range(3) for h in range(H)], jnp.int32)

    def block_cols(wb):
        w, b = wb
        return w[:, perm], b[perm]

    out = {}
    # ---- fold emb into emb2, fuse with distance projections ----
    We, be = p["emb"]
    Wz, bz = p["emb2"]
    Wz_f = jnp.concatenate([We @ Wz[:H], We @ Wz[H:]], axis=0)          # (2H, H)
    bz_f = be @ (Wz[:H] + Wz[H:]) + bz                                  # (H,)
    Wd = jnp.concatenate([p["dp1"][0], p["dp2"][0], p["dp3"][0]], axis=1)
    bd = jnp.concatenate([p["dp1"][1], p["dp2"][1], p["dp3"][1]], axis=0)
    out["edge_w"] = block_diag(Wz_f, Wd)                                # (2H+R, 4H)
    out["edge_b"] = jnp.concatenate([bz_f, bd])                         # (4H,)

    # ---- Frobenius-norm coefficient matrices (compact 10-block form) ----
    eyeH = jnp.eye(H, dtype=jnp.float32)
    sel = jnp.zeros((10, 3), jnp.float32)
    sel = sel.at[0, 0].set(3.0)
    sel = sel.at[1, 1].set(2.0).at[2, 1].set(2.0).at[3, 1].set(2.0)
    sel = sel.at[4, 2].set(1.0).at[5, 2].set(2.0).at[6, 2].set(2.0)
    sel = sel.at[7, 2].set(1.0).at[8, 2].set(2.0).at[9, 2].set(1.0)
    out["head_norm_w"] = jnp.kron(sel, eyeH)                            # (10H, 3H)
    out["norm_w"] = jnp.kron(jnp.sum(sel, axis=1, keepdims=True), eyeH)  # (10H, H)

    # ---- node embedding ----
    out["init_ln"] = p["init_ln"]
    out["emb_ls0"] = p["emb_ls"][0]
    out["emb_ls1"] = block_cols(p["emb_ls"][1])
    w0, w1, w2 = p["emb_lt"]
    out["emb_wblk"] = block_diag(w0, w1, w1, w1, w2, w2, w2, w2, w2, w2)

    # ---- fused (both-layer) interaction edge MLP ----
    ls0 = [lp["ls"][0] for lp in p["layers"]]
    ls1 = [lp["ls"][1] for lp in p["layers"]]
    ls2 = [block_cols(lp["ls"][2]) for lp in p["layers"]]
    out["mlp_w0"] = jnp.concatenate([w for w, _ in ls0], axis=1)        # (R, L*H)
    out["mlp_b0"] = jnp.concatenate([b for _, b in ls0])
    out["mlp_w1"] = block_diag(*[w for w, _ in ls1])                    # (L*H, L*2H)
    out["mlp_b1"] = jnp.concatenate([b for _, b in ls1])
    out["mlp_w2"] = block_diag(*[w for w, _ in ls2])                    # (L*2H, L*3H)
    out["mlp_b2"] = jnp.concatenate([b for _, b in ls2])

    # ---- per-layer block-diagonal channel mixings ----
    out["layers"] = []
    for lp in p["layers"]:
        lt = lp["lt"]
        out["layers"].append({
            "wblk_a": block_diag(lt[0], lt[1], lt[1], lt[1],
                                 lt[2], lt[2], lt[2], lt[2], lt[2], lt[2]),
            "wblk_b": block_diag(lt[3], lt[4], lt[4], lt[4],
                                 lt[5], lt[5], lt[5], lt[5], lt[5], lt[5]),
        })
    out["out_ln"] = p["out_ln"]
    out["out_lin"] = p["out_lin"]
    return out


# ==================================== main =====================================
if __name__ == "__main__":
    key = jax.random.PRNGKey(0)
    k_p, k_z, k_pos = jax.random.split(key, 3)

    N_ATOMS = 8
    z = jax.random.normal(k_z, (N_ATOMS, HIDDEN), jnp.float32)       # per-atom features (emb is a Linear)
    pos = jax.random.normal(k_pos, (N_ATOMS, 3), jnp.float32) * 1.5  # positions (Angstrom-ish)
    batch = jnp.zeros((N_ATOMS,), jnp.int32)

    params = prepare_params(init_params(k_p))

    x = tensornet_forward(params, z, pos, batch)
    x = jax.block_until_ready(x)
    assert x.shape == (N_ATOMS, HIDDEN)
    assert bool(jnp.all(jnp.isfinite(x)))
    print("KERNEL_OK")
</pallas_src>

<mosaic_0001>
module attributes {stable_mosaic.version = 11 : i64} {
  func.func @_edge_mlp_kernel(%arg0: i32, %arg1: memref<64x16xf32, #tpu.memory_space<vmem>>, %arg2: memref<64x1xf32, #tpu.memory_space<vmem>>, %arg3: memref<16x64xf32, #tpu.memory_space<vmem>>, %arg4: memref<1x64xf32, #tpu.memory_space<vmem>>, %arg5: memref<64x128xf32, #tpu.memory_space<vmem>>, %arg6: memref<1x128xf32, #tpu.memory_space<vmem>>, %arg7: memref<128x192xf32, #tpu.memory_space<vmem>>, %arg8: memref<1x192xf32, #tpu.memory_space<vmem>>, %arg9: memref<64x192xf32, #tpu.memory_space<vmem>>) attributes {dimension_semantics = [#tpu.dimension_semantics<parallel>], iteration_bounds = array<i64: 1>, scalar_prefetch = 0 : i64, scratch_operands = 0 : i64, tpu.core_type = #tpu.core_type<tc>, window_params = [{transform_indices = @transform_0, window_bounds = array<i64: 64, 16>}, {transform_indices = @transform_1, window_bounds = array<i64: 64, 1>}, {pipeline_mode = #tpu.pipeline_mode<synchronous>, transform_indices = @transform_2, window_bounds = array<i64: 16, 64>}, {pipeline_mode = #tpu.pipeline_mode<synchronous>, transform_indices = @transform_3, window_bounds = array<i64: 1, 64>}, {pipeline_mode = #tpu.pipeline_mode<synchronous>, transform_indices = @transform_4, window_bounds = array<i64: 64, 128>}, {pipeline_mode = #tpu.pipeline_mode<synchronous>, transform_indices = @transform_5, window_bounds = array<i64: 1, 128>}, {pipeline_mode = #tpu.pipeline_mode<synchronous>, transform_indices = @transform_6, window_bounds = array<i64: 128, 192>}, {pipeline_mode = #tpu.pipeline_mode<synchronous>, transform_indices = @transform_7, window_bounds = array<i64: 1, 192>}, {transform_indices = @transform_8, window_bounds = array<i64: 64, 192>}]} {
    %c0 = arith.constant 0 : index
    %c0_0 = arith.constant 0 : index
    %0 = vector.load %arg1[%c0, %c0_0] : memref<64x16xf32, #tpu.memory_space<vmem>>, vector<64x16xf32>
    %c0_1 = arith.constant 0 : index
    %c0_2 = arith.constant 0 : index
    %1 = vector.load %arg3[%c0_1, %c0_2] : memref<16x64xf32, #tpu.memory_space<vmem>>, vector<16x64xf32>
    %cst = arith.constant dense<0.000000e+00> : vector<64x64xf32>
    %2 = tpu.matmul %0, %1, %cst {dimension_numbers = #tpu.dot_dimension_numbers<[1], [0], [0], [1], [0, 0, 1, 1], [], []>} : vector<64x16xf32>, vector<16x64xf32>, vector<64x64xf32> -> vector<64x64xf32>
    %c0_3 = arith.constant 0 : index
    %c0_4 = arith.constant 0 : index
    %3 = vector.load %arg4[%c0_3, %c0_4] : memref<1x64xf32, #tpu.memory_space<vmem>>, vector<1x64xf32>
    %4 = vector.broadcast %3 : vector<1x64xf32> to vector<64x64xf32>
    %5 = arith.addf %2, %4 : vector<64x64xf32>
    %cst_5 = arith.constant 0.000000e+00 : f32
    %6 = vector.broadcast %cst_5 : f32 to vector<64x64xf32>
    %7 = arith.subf %6, %5 : vector<64x64xf32>
    %8 = math.exp %7 : vector<64x64xf32>
    %cst_6 = arith.constant 1.000000e+00 : f32
    %9 = vector.broadcast %cst_6 : f32 to vector<64x64xf32>
    %10 = arith.addf %9, %8 : vector<64x64xf32>
    %11 = tpu.reciprocal %10 {approx = true} : vector<64x64xf32> -> vector<64x64xf32>
    %12 = arith.mulf %5, %11 : vector<64x64xf32>
    %c0_7 = arith.constant 0 : index
    %c0_8 = arith.constant 0 : index
    %13 = vector.load %arg5[%c0_7, %c0_8] : memref<64x128xf32, #tpu.memory_space<vmem>>, vector<64x128xf32>
    %cst_9 = arith.constant dense<0.000000e+00> : vector<64x128xf32>
    %14 = tpu.matmul %12, %13, %cst_9 {dimension_numbers = #tpu.dot_dimension_numbers<[1], [0], [0], [1], [0, 0, 1, 1], [], []>} : vector<64x64xf32>, vector<64x128xf32>, vector<64x128xf32> -> vector<64x128xf32>
    %c0_10 = arith.constant 0 : index
    %c0_11 = arith.constant 0 : index
    %15 = vector.load %arg6[%c0_10, %c0_11] : memref<1x128xf32, #tpu.memory_space<vmem>>, vector<1x128xf32>
    %16 = vector.broadcast %15 : vector<1x128xf32> to vector<64x128xf32>
    %17 = arith.addf %14, %16 : vector<64x128xf32>
    %cst_12 = arith.constant 0.000000e+00 : f32
    %18 = vector.broadcast %cst_12 : f32 to vector<64x128xf32>
    %19 = arith.subf %18, %17 : vector<64x128xf32>
    %20 = math.exp %19 : vector<64x128xf32>
    %cst_13 = arith.constant 1.000000e+00 : f32
    %21 = vector.broadcast %cst_13 : f32 to vector<64x128xf32>
    %22 = arith.addf %21, %20 : vector<64x128xf32>
    %23 = tpu.reciprocal %22 {approx = true} : vector<64x128xf32> -> vector<64x128xf32>
    %24 = arith.mulf %17, %23 : vector<64x128xf32>
    %c0_14 = arith.constant 0 : index
    %c0_15 = arith.constant 0 : index
    %25 = vector.load %arg7[%c0_14, %c0_15] : memref<128x192xf32, #tpu.memory_space<vmem>>, vector<128x192xf32>
    %cst_16 = arith.constant dense<0.000000e+00> : vector<64x192xf32>
    %26 = tpu.matmul %24, %25, %cst_16 {dimension_numbers = #tpu.dot_dimension_numbers<[1], [0], [0], [1], [0, 0, 1, 1], [], []>} : vector<64x128xf32>, vector<128x192xf32>, vector<64x192xf32> -> vector<64x192xf32>
    %c0_17 = arith.constant 0 : index
    %c0_18 = arith.constant 0 : index
    %27 = vector.load %arg8[%c0_17, %c0_18] : memref<1x192xf32, #tpu.memory_space<vmem>>, vector<1x192xf32>
    %28 = vector.broadcast %27 : vector<1x192xf32> to vector<64x192xf32>
    %29 = arith.addf %26, %28 : vector<64x192xf32>
    %cst_19 = arith.constant 0.000000e+00 : f32
    %30 = vector.broadcast %cst_19 : f32 to vector<64x192xf32>
    %31 = arith.subf %30, %29 : vector<64x192xf32>
    %32 = math.exp %31 : vector<64x192xf32>
    %cst_20 = arith.constant 1.000000e+00 : f32
    %33 = vector.broadcast %cst_20 : f32 to vector<64x192xf32>
    %34 = arith.addf %33, %32 : vector<64x192xf32>
    %35 = tpu.reciprocal %34 {approx = true} : vector<64x192xf32> -> vector<64x192xf32>
    %36 = arith.mulf %29, %35 : vector<64x192xf32>
    %c0_21 = arith.constant 0 : index
    %c0_22 = arith.constant 0 : index
    %37 = vector.load %arg2[%c0_21, %c0_22] : memref<64x1xf32, #tpu.memory_space<vmem>>, vector<64x1xf32>
    %38 = vector.broadcast %37 : vector<64x1xf32> to vector<64x192xf32>
    %39 = arith.mulf %36, %38 : vector<64x192xf32>
    %c0_23 = arith.constant 0 : index
    %c0_24 = arith.constant 0 : index
    %40 = vector.load %arg9[%c0_23, %c0_24] : memref<64x192xf32, #tpu.memory_space<vmem>>, vector<64x192xf32>
    tpu.vector_store %arg9[%c0_23, %c0_24], %39 {strides = array<i32>} : memref<64x192xf32, #tpu.memory_space<vmem>>, vector<64x192xf32>,
    return
  }
  func.func @transform_0(%arg0: i32) -> (i32, i32) {
    %c0_i32 = arith.constant 0 : i32
    %c0_i32_0 = arith.constant 0 : i32
    return %arg0, %c0_i32 : i32, i32
  }
  func.func @transform_1(%arg0: i32) -> (i32, i32) {
    %c0_i32 = arith.constant 0 : i32
    %c0_i32_0 = arith.constant 0 : i32
    return %arg0, %c0_i32 : i32, i32
  }
  func.func @transform_2(%arg0: i32) -> (i32, i32) {
    %c0_i32 = arith.constant 0 : i32
    %c0_i32_0 = arith.constant 0 : i32
    %c0_i32_1 = arith.constant 0 : i32
    return %c0_i32, %c0_i32_0 : i32, i32
  }
  func.func @transform_3(%arg0: i32) -> (i32, i32) {
    %c0_i32 = arith.constant 0 : i32
    %c0_i32_0 = arith.constant 0 : i32
    %c0_i32_1 = arith.constant 0 : i32
    return %c0_i32, %c0_i32_0 : i32, i32
  }
  func.func @transform_4(%arg0: i32) -> (i32, i32) {
    %c0_i32 = arith.constant 0 : i32
    %c0_i32_0 = arith.constant 0 : i32
    %c0_i32_1 = arith.constant 0 : i32
    return %c0_i32, %c0_i32_0 : i32, i32
  }
  func.func @transform_5(%arg0: i32) -> (i32, i32) {
    %c0_i32 = arith.constant 0 : i32
    %c0_i32_0 = arith.constant 0 : i32
    %c0_i32_1 = arith.constant 0 : i32
    return %c0_i32, %c0_i32_0 : i32, i32
  }
  func.func @transform_6(%arg0: i32) -> (i32, i32) {
    %c0_i32 = arith.constant 0 : i32
    %c0_i32_0 = arith.constant 0 : i32
    %c0_i32_1 = arith.constant 0 : i32
    return %c0_i32, %c0_i32_0 : i32, i32
  }
  func.func @transform_7(%arg0: i32) -> (i32, i32) {
    %c0_i32 = arith.constant 0 : i32
    %c0_i32_0 = arith.constant 0 : i32
    %c0_i32_1 = arith.constant 0 : i32
    return %c0_i32, %c0_i32_0 : i32, i32
  }
  func.func @transform_8(%arg0: i32) -> (i32, i32) {
    %c0_i32 = arith.constant 0 : i32
    %c0_i32_0 = arith.constant 0 : i32
    return %arg0, %c0_i32 : i32, i32
  }
}

module attributes {stable_mosaic.version = 11 : i64} {
  func.func @_edge_embed_kernel(%arg0: i32, %arg1: memref<64x80xf32, #tpu.memory_space<vmem>>, %arg2: memref<64x1xf32, #tpu.memory_space<vmem>>, %arg3: memref<64x3xf32, #tpu.memory_space<vmem>>, %arg4: memref<80x128xf32, #tpu.memory_space<vmem>>, %arg5: memref<1x128xf32, #tpu.memory_space<vmem>>, %arg6: memref<64x320xf32, #tpu.memory_space<vmem>>) attributes {dimension_semantics = [#tpu.dimension_semantics<parallel>], iteration_bounds = array<i64: 1>, scalar_prefetch = 0 : i64, scratch_operands = 0 : i64, tpu.core_type = #tpu.core_type<tc>, window_params = [{transform_indices = @transform_0, window_bounds = array<i64: 64, 80>}, {transform_indices = @transform_1, window_bounds = array<i64: 64, 1>}, {transform_indices = @transform_2, window_bounds = array<i64: 64, 3>}, {pipeline_mode = #tpu.pipeline_mode<synchronous>, transform_indices = @transform_3, window_bounds = array<i64: 80, 128>}, {pipeline_mode = #tpu.pipeline_mode<synchronous>, transform_indices = @transform_4, window_bounds = array<i64: 1, 128>}, {transform_indices = @transform_5, window_bounds = array<i64: 64, 320>}]} {
    %c0 = arith.constant 0 : index
    %c0_0 = arith.constant 0 : index
    %0 = vector.load %arg1[%c0, %c0_0] : memref<64x80xf32, #tpu.memory_space<vmem>>, vector<64x80xf32>
    %c0_1 = arith.constant 0 : index
    %c0_2 = arith.constant 0 : index
    %1 = vector.load %arg4[%c0_1, %c0_2] : memref<80x128xf32, #tpu.memory_space<vmem>>, vector<80x128xf32>
    %cst = arith.constant dense<0.000000e+00> : vector<64x128xf32>
    %2 = tpu.matmul %0, %1, %cst {dimension_numbers = #tpu.dot_dimension_numbers<[1], [0], [0], [1], [0, 0, 1, 1], [], []>} : vector<64x80xf32>, vector<80x128xf32>, vector<64x128xf32> -> vector<64x128xf32>
    %c0_3 = arith.constant 0 : index
    %c0_4 = arith.constant 0 : index
    %3 = vector.load %arg5[%c0_3, %c0_4] : memref<1x128xf32, #tpu.memory_space<vmem>>, vector<1x128xf32>
    %4 = vector.broadcast %3 : vector<1x128xf32> to vector<64x128xf32>
    %5 = arith.addf %2, %4 : vector<64x128xf32>
    %c0_5 = arith.constant 0 : index
    %c0_6 = arith.constant 0 : index
    %6 = vector.load %arg2[%c0_5, %c0_6] : memref<64x1xf32, #tpu.memory_space<vmem>>, vector<64x1xf32>
    %7 = vector.extract_strided_slice %5 {offsets = [0, 0], sizes = [64, 32], strides = [1, 1]} : vector<64x128xf32> to vector<64x32xf32>
    %8 = vector.broadcast %6 : vector<64x1xf32> to vector<64x32xf32>
    %9 = arith.mulf %8, %7 : vector<64x32xf32>
    %10 = vector.extract_strided_slice %5 {offsets = [0, 32], sizes = [64, 32], strides = [1, 1]} : vector<64x128xf32> to vector<64x32xf32>
    %11 = arith.mulf %10, %9 : vector<64x32xf32>
    %12 = vector.extract_strided_slice %5 {offsets = [0, 64], sizes = [64, 32], strides = [1, 1]} : vector<64x128xf32> to vector<64x32xf32>
    %13 = arith.mulf %12, %9 : vector<64x32xf32>
    %14 = vector.extract_strided_slice %5 {offsets = [0, 96], sizes = [64, 32], strides = [1, 1]} : vector<64x128xf32> to vector<64x32xf32>
    %15 = arith.mulf %14, %9 : vector<64x32xf32>
    %c0_7 = arith.constant 0 : index
    %c0_8 = arith.constant 0 : index
    %16 = vector.load %arg3[%c0_7, %c0_8] : memref<64x3xf32, #tpu.memory_space<vmem>>, vector<64x3xf32>
    %17 = vector.extract_strided_slice %16 {offsets = [0, 0], sizes = [64, 1], strides = [1, 1]} : vector<64x3xf32> to vector<64x1xf32>
    %18 = vector.extract_strided_slice %16 {offsets = [0, 1], sizes = [64, 1], strides = [1, 1]} : vector<64x3xf32> to vector<64x1xf32>
    %19 = vector.extract_strided_slice %16 {offsets = [0, 2], sizes = [64, 1], strides = [1, 1]} : vector<64x3xf32> to vector<64x1xf32>
    %20 = arith.mulf %17, %17 : vector<64x1xf32>
    %21 = arith.mulf %18, %18 : vector<64x1xf32>
    %22 = arith.addf %20, %21 : vector<64x1xf32>
    %23 = arith.mulf %19, %19 : vector<64x1xf32>
    %24 = arith.addf %22, %23 : vector<64x1xf32>
    %cst_9 = arith.constant 0.333333343 : f32
    %25 = vector.broadcast %cst_9 : f32 to vector<64x1xf32>
    %26 = arith.mulf %24, %25 : vector<64x1xf32>
    %cst_10 = arith.constant 0.000000e+00 : f32
    %27 = vector.broadcast %cst_10 : f32 to vector<64x1xf32>
    %28 = arith.subf %27, %19 : vector<64x1xf32>
    %29 = vector.broadcast %28 : vector<64x1xf32> to vector<64x32xf32>
    %30 = arith.mulf %13, %29 : vector<64x32xf32>
    %31 = vector.broadcast %18 : vector<64x1xf32> to vector<64x32xf32>
    %32 = arith.mulf %13, %31 : vector<64x32xf32>
    %cst_11 = arith.constant 0.000000e+00 : f32
    %33 = vector.broadcast %cst_11 : f32 to vector<64x1xf32>
    %34 = arith.subf %33, %17 : vector<64x1xf32>
    %35 = vector.broadcast %34 : vector<64x1xf32> to vector<64x32xf32>
    %36 = arith.mulf %13, %35 : vector<64x32xf32>
    %37 = arith.mulf %17, %17 : vector<64x1xf32>
    %38 = arith.subf %37, %26 : vector<64x1xf32>
    %39 = vector.broadcast %38 : vector<64x1xf32> to vector<64x32xf32>
    %40 = arith.mulf %15, %39 : vector<64x32xf32>
    %41 = arith.mulf %17, %18 : vector<64x1xf32>
    %42 = vector.broadcast %41 : vector<64x1xf32> to vector<64x32xf32>
    %43 = arith.mulf %15, %42 : vector<64x32xf32>
    %44 = arith.mulf %17, %19 : vector<64x1xf32>
    %45 = vector.broadcast %44 : vector<64x1xf32> to vector<64x32xf32>
    %46 = arith.mulf %15, %45 : vector<64x32xf32>
    %47 = arith.mulf %18, %18 : vector<64x1xf32>
    %48 = arith.subf %47, %26 : vector<64x1xf32>
    %49 = vector.broadcast %48 : vector<64x1xf32> to vector<64x32xf32>
    %50 = arith.mulf %15, %49 : vector<64x32xf32>
    %51 = arith.mulf %18, %19 : vector<64x1xf32>
    %52 = vector.broadcast %51 : vector<64x1xf32> to vector<64x32xf32>
    %53 = arith.mulf %15, %52 : vector<64x32xf32>
    %54 = arith.mulf %19, %19 : vector<64x1xf32>
    %55 = arith.subf %54, %26 : vector<64x1xf32>
    %56 = vector.broadcast %55 : vector<64x1xf32> to vector<64x32xf32>
    %57 = arith.mulf %15, %56 : vector<64x32xf32>
    %58 = tpu.concatenate %11, %30, %32, %36, %40, %43, %46, %50, %53, %57 in 1 : vector<64x32xf32>, vector<64x32xf32>, vector<64x32xf32>, vector<64x32xf32>, vector<64x32xf32>, vector<64x32xf32>, vector<64x32xf32>, vector<64x32xf32>, vector<64x32xf32>, vector<64x32xf32> -> vector<64x320xf32>
    %c0_12 = arith.constant 0 : index
    %c0_13 = arith.constant 0 : index
    %59 = vector.load %arg6[%c0_12, %c0_13] : memref<64x320xf32, #tpu.memory_space<vmem>>, vector<64x320xf32>
    tpu.vector_store %arg6[%c0_12, %c0_13], %58 {strides = array<i32>} : memref<64x320xf32, #tpu.memory_space<vmem>>, vector<64x320xf32>,
    return
  }
  func.func @transform_0(%arg0: i32) -> (i32, i32) {
    %c0_i32 = arith.constant 0 : i32
    %c0_i32_0 = arith.constant 0 : i32
    return %arg0, %c0_i32 : i32, i32
  }
  func.func @transform_1(%arg0: i32) -> (i32, i32) {
    %c0_i32 = arith.constant 0 : i32
    %c0_i32_0 = arith.constant 0 : i32
    return %arg0, %c0_i32 : i32, i32
  }
  func.func @transform_2(%arg0: i32) -> (i32, i32) {
    %c0_i32 = arith.constant 0 : i32
    %c0_i32_0 = arith.constant 0 : i32
    return %arg0, %c0_i32 : i32, i32
  }
  func.func @transform_3(%arg0: i32) -> (i32, i32) {
    %c0_i32 = arith.constant 0 : i32
    %c0_i32_0 = arith.constant 0 : i32
    %c0_i32_1 = arith.constant 0 : i32
    return %c0_i32, %c0_i32_0 : i32, i32
  }
  func.func @transform_4(%arg0: i32) -> (i32, i32) {
    %c0_i32 = arith.constant 0 : i32
    %c0_i32_0 = arith.constant 0 : i32
    %c0_i32_1 = arith.constant 0 : i32
    return %c0_i32, %c0_i32_0 : i32, i32
  }
  func.func @transform_5(%arg0: i32) -> (i32, i32) {
    %c0_i32 = arith.constant 0 : i32
    %c0_i32_0 = arith.constant 0 : i32
    return %arg0, %c0_i32 : i32, i32
  }
}

module attributes {stable_mosaic.version = 11 : i64} {
  func.func @_node_embed_kernel(%arg0: i32, %arg1: memref<16x320xf32, #tpu.memory_space<vmem>>, %arg2: memref<320x32xf32, #tpu.memory_space<vmem>>, %arg3: memref<1x32xf32, #tpu.memory_space<vmem>>, %arg4: memref<1x32xf32, #tpu.memory_space<vmem>>, %arg5: memref<32x64xf32, #tpu.memory_space<vmem>>, %arg6: memref<1x64xf32, #tpu.memory_space<vmem>>, %arg7: memref<64x96xf32, #tpu.memory_space<vmem>>, %arg8: memref<1x96xf32, #tpu.memory_space<vmem>>, %arg9: memref<320x320xf32, #tpu.memory_space<vmem>>, %arg10: memref<16x320xf32, #tpu.memory_space<vmem>>) attributes {dimension_semantics = [#tpu.dimension_semantics<parallel>], iteration_bounds = array<i64: 1>, scalar_prefetch = 0 : i64, scratch_operands = 0 : i64, tpu.core_type = #tpu.core_type<tc>, window_params = [{transform_indices = @transform_0, window_bounds = array<i64: 16, 320>}, {pipeline_mode = #tpu.pipeline_mode<synchronous>, transform_indices = @transform_1, window_bounds = array<i64: 320, 32>}, {pipeline_mode = #tpu.pipeline_mode<synchronous>, transform_indices = @transform_2, window_bounds = array<i64: 1, 32>}, {pipeline_mode = #tpu.pipeline_mode<synchronous>, transform_indices = @transform_3, window_bounds = array<i64: 1, 32>}, {pipeline_mode = #tpu.pipeline_mode<synchronous>, transform_indices = @transform_4, window_bounds = array<i64: 32, 64>}, {pipeline_mode = #tpu.pipeline_mode<synchronous>, transform_indices = @transform_5, window_bounds = array<i64: 1, 64>}, {pipeline_mode = #tpu.pipeline_mode<synchronous>, transform_indices = @transform_6, window_bounds = array<i64: 64, 96>}, {pipeline_mode = #tpu.pipeline_mode<synchronous>, transform_indices = @transform_7, window_bounds = array<i64: 1, 96>}, {pipeline_mode = #tpu.pipeline_mode<synchronous>, transform_indices = @transform_8, window_bounds = array<i64: 320, 320>}, {transform_indices = @transform_9, window_bounds = array<i64: 16, 320>}]} {
    %c0 = arith.constant 0 : index
    %c0_0 = arith.constant 0 : index
    %0 = vector.load %arg1[%c0, %c0_0] : memref<16x320xf32, #tpu.memory_space<vmem>>, vector<16x320xf32>
    %1 = arith.mulf %0, %0 : vector<16x320xf32>
    %c0_1 = arith.constant 0 : index
    %c0_2 = arith.constant 0 : index
    %2 = vector.load %arg2[%c0_1, %c0_2] : memref<320x32xf32, #tpu.memory_space<vmem>>, vector<320x32xf32>
    %cst = arith.constant dense<0.000000e+00> : vector<16x32xf32>
    %3 = tpu.matmul %1, %2, %cst {dimension_numbers = #tpu.dot_dimension_numbers<[1], [0], [0], [1], [0, 0, 1, 1], [], []>} : vector<16x320xf32>, vector<320x32xf32>, vector<16x32xf32> -> vector<16x32xf32>
    %cst_3 = arith.constant dense<0.000000e+00> : vector<16xf32>
    %4 = vector.multi_reduction <add>, %3, %cst_3 [1] : vector<16x32xf32> to vector<16xf32>
    %5 = vector.shape_cast %4 : vector<16xf32> to vector<16x1xf32>
    %cst_4 = arith.constant 3.200000e+01 : f32
    %6 = vector.broadcast %cst_4 : f32 to vector<16x1xf32>
    %7 = arith.divf %5, %6 : vector<16x1xf32>
    %8 = vector.broadcast %7 : vector<16x1xf32> to vector<16x32xf32>
    %9 = arith.subf %3, %8 : vector<16x32xf32>
    %10 = arith.mulf %9, %9 : vector<16x32xf32>
    %cst_5 = arith.constant dense<0.000000e+00> : vector<16xf32>
    %11 = vector.multi_reduction <add>, %10, %cst_5 [1] : vector<16x32xf32> to vector<16xf32>
    %12 = vector.shape_cast %11 : vector<16xf32> to vector<16x1xf32>
    %cst_6 = arith.constant 3.200000e+01 : f32
    %13 = vector.broadcast %cst_6 : f32 to vector<16x1xf32>
    %14 = arith.divf %12, %13 : vector<16x1xf32>
    %15 = vector.broadcast %7 : vector<16x1xf32> to vector<16x32xf32>
    %16 = arith.subf %3, %15 : vector<16x32xf32>
    %cst_7 = arith.constant 9.99999974E-6 : f32
    %17 = vector.broadcast %cst_7 : f32 to vector<16x1xf32>
    %18 = arith.addf %14, %17 : vector<16x1xf32>
    %19 = math.rsqrt %18 : vector<16x1xf32>
    %20 = vector.broadcast %19 : vector<16x1xf32> to vector<16x32xf32>
    %21 = arith.mulf %16, %20 : vector<16x32xf32>
    %c0_8 = arith.constant 0 : index
    %c0_9 = arith.constant 0 : index
    %22 = vector.load %arg3[%c0_8, %c0_9] : memref<1x32xf32, #tpu.memory_space<vmem>>, vector<1x32xf32>
    %23 = vector.broadcast %22 : vector<1x32xf32> to vector<16x32xf32>
    %24 = arith.mulf %21, %23 : vector<16x32xf32>
    %c0_10 = arith.constant 0 : index
    %c0_11 = arith.constant 0 : index
    %25 = vector.load %arg4[%c0_10, %c0_11] : memref<1x32xf32, #tpu.memory_space<vmem>>, vector<1x32xf32>
    %26 = vector.broadcast %25 : vector<1x32xf32> to vector<16x32xf32>
    %27 = arith.addf %24, %26 : vector<16x32xf32>
    %c0_12 = arith.constant 0 : index
    %c0_13 = arith.constant 0 : index
    %28 = vector.load %arg5[%c0_12, %c0_13] : memref<32x64xf32, #tpu.memory_space<vmem>>, vector<32x64xf32>
    %cst_14 = arith.constant dense<0.000000e+00> : vector<16x64xf32>
    %29 = tpu.matmul %27, %28, %cst_14 {dimension_numbers = #tpu.dot_dimension_numbers<[1], [0], [0], [1], [0, 0, 1, 1], [], []>} : vector<16x32xf32>, vector<32x64xf32>, vector<16x64xf32> -> vector<16x64xf32>
    %c0_15 = arith.constant 0 : index
    %c0_16 = arith.constant 0 : index
    %30 = vector.load %arg6[%c0_15, %c0_16] : memref<1x64xf32, #tpu.memory_space<vmem>>, vector<1x64xf32>
    %31 = vector.broadcast %30 : vector<1x64xf32> to vector<16x64xf32>
    %32 = arith.addf %29, %31 : vector<16x64xf32>
    %cst_17 = arith.constant 0.000000e+00 : f32
    %33 = vector.broadcast %cst_17 : f32 to vector<16x64xf32>
    %34 = arith.subf %33, %32 : vector<16x64xf32>
    %35 = math.exp %34 : vector<16x64xf32>
    %cst_18 = arith.constant 1.000000e+00 : f32
    %36 = vector.broadcast %cst_18 : f32 to vector<16x64xf32>
    %37 = arith.addf %36, %35 : vector<16x64xf32>
    %38 = tpu.reciprocal %37 {approx = true} : vector<16x64xf32> -> vector<16x64xf32>
    %39 = arith.mulf %32, %38 : vector<16x64xf32>
    %c0_19 = arith.constant 0 : index
    %c0_20 = arith.constant 0 : index
    %40 = vector.load %arg7[%c0_19, %c0_20] : memref<64x96xf32, #tpu.memory_space<vmem>>, vector<64x96xf32>
    %cst_21 = arith.constant dense<0.000000e+00> : vector<16x96xf32>
    %41 = tpu.matmul %39, %40, %cst_21 {dimension_numbers = #tpu.dot_dimension_numbers<[1], [0], [0], [1], [0, 0, 1, 1], [], []>} : vector<16x64xf32>, vector<64x96xf32>, vector<16x96xf32> -> vector<16x96xf32>
    %c0_22 = arith.constant 0 : index
    %c0_23 = arith.constant 0 : index
    %42 = vector.load %arg8[%c0_22, %c0_23] : memref<1x96xf32, #tpu.memory_space<vmem>>, vector<1x96xf32>
    %43 = vector.broadcast %42 : vector<1x96xf32> to vector<16x96xf32>
    %44 = arith.addf %41, %43 : vector<16x96xf32>
    %cst_24 = arith.constant 0.000000e+00 : f32
    %45 = vector.broadcast %cst_24 : f32 to vector<16x96xf32>
    %46 = arith.subf %45, %44 : vector<16x96xf32>
    %47 = math.exp %46 : vector<16x96xf32>
    %cst_25 = arith.constant 1.000000e+00 : f32
    %48 = vector.broadcast %cst_25 : f32 to vector<16x96xf32>
    %49 = arith.addf %48, %47 : vector<16x96xf32>
    %50 = tpu.reciprocal %49 {approx = true} : vector<16x96xf32> -> vector<16x96xf32>
    %51 = arith.mulf %44, %50 : vector<16x96xf32>
    %52 = vector.extract_strided_slice %51 {offsets = [0, 0], sizes = [16, 32], strides = [1, 1]} : vector<16x96xf32> to vector<16x32xf32>
    %53 = vector.extract_strided_slice %51 {offsets = [0, 32], sizes = [16, 32], strides = [1, 1]} : vector<16x96xf32> to vector<16x32xf32>
    %54 = vector.extract_strided_slice %51 {offsets = [0, 64], sizes = [16, 32], strides = [1, 1]} : vector<16x96xf32> to vector<16x32xf32>
    %55 = tpu.concatenate %52, %53, %53, %53, %54, %54, %54, %54, %54, %54 in 1 : vector<16x32xf32>, vector<16x32xf32>, vector<16x32xf32>, vector<16x32xf32>, vector<16x32xf32>, vector<16x32xf32>, vector<16x32xf32>, vector<16x32xf32>, vector<16x32xf32>, vector<16x32xf32> -> vector<16x320xf32>
    %c0_26 = arith.constant 0 : index
    %c0_27 = arith.constant 0 : index
    %56 = vector.load %arg9[%c0_26, %c0_27] : memref<320x320xf32, #tpu.memory_space<vmem>>, vector<320x320xf32>
    %cst_28 = arith.constant dense<0.000000e+00> : vector<16x320xf32>
    %57 = tpu.matmul %0, %56, %cst_28 {dimension_numbers = #tpu.dot_dimension_numbers<[1], [0], [0], [1], [0, 0, 1, 1], [], []>} : vector<16x320xf32>, vector<320x320xf32>, vector<16x320xf32> -> vector<16x320xf32>
    %58 = arith.mulf %57, %55 : vector<16x320xf32>
    %c0_29 = arith.constant 0 : index
    %c0_30 = arith.constant 0 : index
    %59 = vector.load %arg10[%c0_29, %c0_30] : memref<16x320xf32, #tpu.memory_space<vmem>>, vector<16x320xf32>
    tpu.vector_store %arg10[%c0_29, %c0_30], %58 {strides = array<i32>} : memref<16x320xf32, #tpu.memory_space<vmem>>, vector<16x320xf32>,
    return
  }
  func.func @transform_0(%arg0: i32) -> (i32, i32) {
    %c0_i32 = arith.constant 0 : i32
    %c0_i32_0 = arith.constant 0 : i32
    return %arg0, %c0_i32 : i32, i32
  }
  func.func @transform_1(%arg0: i32) -> (i32, i32) {
    %c0_i32 = arith.constant 0 : i32
    %c0_i32_0 = arith.constant 0 : i32
    %c0_i32_1 = arith.constant 0 : i32
    return %c0_i32, %c0_i32_0 : i32, i32
  }
  func.func @transform_2(%arg0: i32) -> (i32, i32) {
    %c0_i32 = arith.constant 0 : i32
    %c0_i32_0 = arith.constant 0 : i32
    %c0_i32_1 = arith.constant 0 : i32
    return %c0_i32, %c0_i32_0 : i32, i32
  }
  func.func @transform_3(%arg0: i32) -> (i32, i32) {
    %c0_i32 = arith.constant 0 : i32
    %c0_i32_0 = arith.constant 0 : i32
    %c0_i32_1 = arith.constant 0 : i32
    return %c0_i32, %c0_i32_0 : i32, i32
  }
  func.func @transform_4(%arg0: i32) -> (i32, i32) {
    %c0_i32 = arith.constant 0 : i32
    %c0_i32_0 = arith.constant 0 : i32
    %c0_i32_1 = arith.constant 0 : i32
    return %c0_i32, %c0_i32_0 : i32, i32
  }
  func.func @transform_5(%arg0: i32) -> (i32, i32) {
    %c0_i32 = arith.constant 0 : i32
    %c0_i32_0 = arith.constant 0 : i32
    %c0_i32_1 = arith.constant 0 : i32
    return %c0_i32, %c0_i32_0 : i32, i32
  }
  func.func @transform_6(%arg0: i32) -> (i32, i32) {
    %c0_i32 = arith.constant 0 : i32
    %c0_i32_0 = arith.constant 0 : i32
    %c0_i32_1 = arith.constant 0 : i32
    return %c0_i32, %c0_i32_0 : i32, i32
  }
  func.func @transform_7(%arg0: i32) -> (i32, i32) {
    %c0_i32 = arith.constant 0 : i32
    %c0_i32_0 = arith.constant 0 : i32
    %c0_i32_1 = arith.constant 0 : i32
    return %c0_i32, %c0_i32_0 : i32, i32
  }
  func.func @transform_8(%arg0: i32) -> (i32, i32) {
    %c0_i32 = arith.constant 0 : i32
    %c0_i32_0 = arith.constant 0 : i32
    %c0_i32_1 = arith.constant 0 : i32
    return %c0_i32, %c0_i32_0 : i32, i32
  }
  func.func @transform_9(%arg0: i32) -> (i32, i32) {
    %c0_i32 = arith.constant 0 : i32
    %c0_i32_0 = arith.constant 0 : i32
    return %arg0, %c0_i32 : i32, i32
  }
}

module attributes {stable_mosaic.version = 11 : i64} {
  func.func @_inter_front_kernel(%arg0: i32, %arg1: memref<16x320xf32, #tpu.memory_space<vmem>>, %arg2: memref<320x32xf32, #tpu.memory_space<vmem>>, %arg3: memref<320x320xf32, #tpu.memory_space<vmem>>, %arg4: memref<16x320xf32, #tpu.memory_space<vmem>>) attributes {dimension_semantics = [#tpu.dimension_semantics<parallel>], iteration_bounds = array<i64: 1>, scalar_prefetch = 0 : i64, scratch_operands = 0 : i64, tpu.core_type = #tpu.core_type<tc>, window_params = [{transform_indices = @transform_0, window_bounds = array<i64: 16, 320>}, {pipeline_mode = #tpu.pipeline_mode<synchronous>, transform_indices = @transform_1, window_bounds = array<i64: 320, 32>}, {pipeline_mode = #tpu.pipeline_mode<synchronous>, transform_indices = @transform_2, window_bounds = array<i64: 320, 320>}, {transform_indices = @transform_3, window_bounds = array<i64: 16, 320>}]} {
    %c0 = arith.constant 0 : index
    %c0_0 = arith.constant 0 : index
    %0 = vector.load %arg1[%c0, %c0_0] : memref<16x320xf32, #tpu.memory_space<vmem>>, vector<16x320xf32>
    %1 = arith.mulf %0, %0 : vector<16x320xf32>
    %c0_1 = arith.constant 0 : index
    %c0_2 = arith.constant 0 : index
    %2 = vector.load %arg2[%c0_1, %c0_2] : memref<320x32xf32, #tpu.memory_space<vmem>>, vector<320x32xf32>
    %cst = arith.constant dense<0.000000e+00> : vector<16x32xf32>
    %3 = tpu.matmul %1, %2, %cst {dimension_numbers = #tpu.dot_dimension_numbers<[1], [0], [0], [1], [0, 0, 1, 1], [], []>} : vector<16x320xf32>, vector<320x32xf32>, vector<16x32xf32> -> vector<16x32xf32>
    %cst_3 = arith.constant 1.000000e+00 : f32
    %4 = vector.broadcast %cst_3 : f32 to vector<16x32xf32>
    %5 = arith.addf %3, %4 : vector<16x32xf32>
    %cst_4 = arith.constant 1.000000e+00 : f32
    %6 = vector.broadcast %cst_4 : f32 to vector<16x32xf32>
    %7 = arith.divf %6, %5 : vector<16x32xf32>
    %8 = tpu.concatenate %7, %7, %7, %7, %7, %7, %7, %7, %7, %7 in 1 : vector<16x32xf32>, vector<16x32xf32>, vector<16x32xf32>, vector<16x32xf32>, vector<16x32xf32>, vector<16x32xf32>, vector<16x32xf32>, vector<16x32xf32>, vector<16x32xf32>, vector<16x32xf32> -> vector<16x320xf32>
    %9 = arith.mulf %0, %8 : vector<16x320xf32>
    %c0_5 = arith.constant 0 : index
    %c0_6 = arith.constant 0 : index
    %10 = vector.load %arg3[%c0_5, %c0_6] : memref<320x320xf32, #tpu.memory_space<vmem>>, vector<320x320xf32>
    %cst_7 = arith.constant dense<0.000000e+00> : vector<16x320xf32>
    %11 = tpu.matmul %9, %10, %cst_7 {dimension_numbers = #tpu.dot_dimension_numbers<[1], [0], [0], [1], [0, 0, 1, 1], [], []>} : vector<16x320xf32>, vector<320x320xf32>, vector<16x320xf32> -> vector<16x320xf32>
    %c0_8 = arith.constant 0 : index
    %c0_9 = arith.constant 0 : index
    %12 = vector.load %arg4[%c0_8, %c0_9] : memref<16x320xf32, #tpu.memory_space<vmem>>, vector<16x320xf32>
    tpu.vector_store %arg4[%c0_8, %c0_9], %11 {strides = array<i32>} : memref<16x320xf32, #tpu.memory_space<vmem>>, vector<16x320xf32>,
    return
  }
  func.func @transform_0(%arg0: i32) -> (i32, i32) {
    %c0_i32 = arith.constant 0 : i32
    %c0_i32_0 = arith.constant 0 : i32
    return %arg0, %c0_i32 : i32, i32
  }
  func.func @transform_1(%arg0: i32) -> (i32, i32) {
    %c0_i32 = arith.constant 0 : i32
    %c0_i32_0 = arith.constant 0 : i32
    %c0_i32_1 = arith.constant 0 : i32
    return %c0_i32, %c0_i32_0 : i32, i32
  }
  func.func @transform_2(%arg0: i32) -> (i32, i32) {
    %c0_i32 = arith.constant 0 : i32
    %c0_i32_0 = arith.constant 0 : i32
    %c0_i32_1 = arith.constant 0 : i32
    return %c0_i32, %c0_i32_0 : i32, i32
  }
  func.func @transform_3(%arg0: i32) -> (i32, i32) {
    %c0_i32 = arith.constant 0 : i32
    %c0_i32_0 = arith.constant 0 : i32
    return %arg0, %c0_i32 : i32, i32
  }
}

module attributes {stable_mosaic.version = 11 : i64} {
  func.func @_inter_back_kernel(%arg0: i32, %arg1: memref<16x320xf32, #tpu.memory_space<vmem>>, %arg2: memref<16x320xf32, #tpu.memory_space<vmem>>, %arg3: memref<16x320xf32, #tpu.memory_space<vmem>>, %arg4: memref<16x1xf32, #tpu.memory_space<vmem>>, %arg5: memref<320x32xf32, #tpu.memory_space<vmem>>, %arg6: memref<320x320xf32, #tpu.memory_space<vmem>>, %arg7: memref<16x320xf32, #tpu.memory_space<vmem>>) attributes {dimension_semantics = [#tpu.dimension_semantics<parallel>], iteration_bounds = array<i64: 1>, scalar_prefetch = 0 : i64, scratch_operands = 0 : i64, tpu.core_type = #tpu.core_type<tc>, window_params = [{transform_indices = @transform_0, window_bounds = array<i64: 16, 320>}, {transform_indices = @transform_1, window_bounds = array<i64: 16, 320>}, {transform_indices = @transform_2, window_bounds = array<i64: 16, 320>}, {transform_indices = @transform_3, window_bounds = array<i64: 16, 1>}, {pipeline_mode = #tpu.pipeline_mode<synchronous>, transform_indices = @transform_4, window_bounds = array<i64: 320, 32>}, {pipeline_mode = #tpu.pipeline_mode<synchronous>, transform_indices = @transform_5, window_bounds = array<i64: 320, 320>}, {transform_indices = @transform_6, window_bounds = array<i64: 16, 320>}]} {
    %c0 = arith.constant 0 : index
    %c0_0 = arith.constant 0 : index
    %0 = vector.load %arg1[%c0, %c0_0] : memref<16x320xf32, #tpu.memory_space<vmem>>, vector<16x320xf32>
    %c0_1 = arith.constant 0 : index
    %c0_2 = arith.constant 0 : index
    %1 = vector.load %arg2[%c0_1, %c0_2] : memref<16x320xf32, #tpu.memory_space<vmem>>, vector<16x320xf32>
    %c0_3 = arith.constant 0 : index
    %c0_4 = arith.constant 0 : index
    %2 = vector.load %arg3[%c0_3, %c0_4] : memref<16x320xf32, #tpu.memory_space<vmem>>, vector<16x320xf32>
    %3 = arith.mulf %0, %0 : vector<16x320xf32>
    %c0_5 = arith.constant 0 : index
    %c0_6 = arith.constant 0 : index
    %4 = vector.load %arg5[%c0_5, %c0_6] : memref<320x32xf32, #tpu.memory_space<vmem>>, vector<320x32xf32>
    %cst = arith.constant dense<0.000000e+00> : vector<16x32xf32>
    %5 = tpu.matmul %3, %4, %cst {dimension_numbers = #tpu.dot_dimension_numbers<[1], [0], [0], [1], [0, 0, 1, 1], [], []>} : vector<16x320xf32>, vector<320x32xf32>, vector<16x32xf32> -> vector<16x32xf32>
    %cst_7 = arith.constant 1.000000e+00 : f32
    %6 = vector.broadcast %cst_7 : f32 to vector<16x32xf32>
    %7 = arith.addf %5, %6 : vector<16x32xf32>
    %cst_8 = arith.constant 1.000000e+00 : f32
    %8 = vector.broadcast %cst_8 : f32 to vector<16x32xf32>
    %9 = arith.divf %8, %7 : vector<16x32xf32>
    %10 = vector.extract_strided_slice %1 {offsets = [0, 0], sizes = [16, 32], strides = [1, 1]} : vector<16x320xf32> to vector<16x32xf32>
    %11 = vector.extract_strided_slice %1 {offsets = [0, 32], sizes = [16, 32], strides = [1, 1]} : vector<16x320xf32> to vector<16x32xf32>
    %12 = vector.extract_strided_slice %1 {offsets = [0, 64], sizes = [16, 32], strides = [1, 1]} : vector<16x320xf32> to vector<16x32xf32>
    %13 = vector.extract_strided_slice %1 {offsets = [0, 96], sizes = [16, 32], strides = [1, 1]} : vector<16x320xf32> to vector<16x32xf32>
    %14 = vector.extract_strided_slice %1 {offsets = [0, 128], sizes = [16, 32], strides = [1, 1]} : vector<16x320xf32> to vector<16x32xf32>
    %15 = vector.extract_strided_slice %1 {offsets = [0, 160], sizes = [16, 32], strides = [1, 1]} : vector<16x320xf32> to vector<16x32xf32>
    %16 = vector.extract_strided_slice %1 {offsets = [0, 192], sizes = [16, 32], strides = [1, 1]} : vector<16x320xf32> to vector<16x32xf32>
    %17 = vector.extract_strided_slice %1 {offsets = [0, 224], sizes = [16, 32], strides = [1, 1]} : vector<16x320xf32> to vector<16x32xf32>
    %18 = vector.extract_strided_slice %1 {offsets = [0, 256], sizes = [16, 32], strides = [1, 1]} : vector<16x320xf32> to vector<16x32xf32>
    %19 = vector.extract_strided_slice %1 {offsets = [0, 288], sizes = [16, 32], strides = [1, 1]} : vector<16x320xf32> to vector<16x32xf32>
    %20 = vector.extract_strided_slice %2 {offsets = [0, 0], sizes = [16, 32], strides = [1, 1]} : vector<16x320xf32> to vector<16x32xf32>
    %21 = vector.extract_strided_slice %2 {offsets = [0, 32], sizes = [16, 32], strides = [1, 1]} : vector<16x320xf32> to vector<16x32xf32>
    %22 = vector.extract_strided_slice %2 {offsets = [0, 64], sizes = [16, 32], strides = [1, 1]} : vector<16x320xf32> to vector<16x32xf32>
    %23 = vector.extract_strided_slice %2 {offsets = [0, 96], sizes = [16, 32], strides = [1, 1]} : vector<16x320xf32> to vector<16x32xf32>
    %24 = vector.extract_strided_slice %2 {offsets = [0, 128], sizes = [16, 32], strides = [1, 1]} : vector<16x320xf32> to vector<16x32xf32>
    %25 = vector.extract_strided_slice %2 {offsets = [0, 160], sizes = [16, 32], strides = [1, 1]} : vector<16x320xf32> to vector<16x32xf32>
    %26 = vector.extract_strided_slice %2 {offsets = [0, 192], sizes = [16, 32], strides = [1, 1]} : vector<16x320xf32> to vector<16x32xf32>
    %27 = vector.extract_strided_slice %2 {offsets = [0, 224], sizes = [16, 32], strides = [1, 1]} : vector<16x320xf32> to vector<16x32xf32>
    %28 = vector.extract_strided_slice %2 {offsets = [0, 256], sizes = [16, 32], strides = [1, 1]} : vector<16x320xf32> to vector<16x32xf32>
    %29 = vector.extract_strided_slice %2 {offsets = [0, 288], sizes = [16, 32], strides = [1, 1]} : vector<16x320xf32> to vector<16x32xf32>
    %30 = arith.addf %10, %14 : vector<16x32xf32>
    %31 = arith.addf %11, %15 : vector<16x32xf32>
    %32 = arith.addf %12, %16 : vector<16x32xf32>
    %cst_9 = arith.constant 0.000000e+00 : f32
    %33 = vector.broadcast %cst_9 : f32 to vector<16x32xf32>
    %34 = arith.subf %33, %11 : vector<16x32xf32>
    %35 = arith.addf %34, %15 : vector<16x32xf32>
    %36 = arith.addf %10, %17 : vector<16x32xf32>
    %37 = arith.addf %13, %18 : vector<16x32xf32>
    %cst_10 = arith.constant 0.000000e+00 : f32
    %38 = vector.broadcast %cst_10 : f32 to vector<16x32xf32>
    %39 = arith.subf %38, %12 : vector<16x32xf32>
    %40 = arith.addf %39, %16 : vector<16x32xf32>
    %cst_11 = arith.constant 0.000000e+00 : f32
    %41 = vector.broadcast %cst_11 : f32 to vector<16x32xf32>
    %42 = arith.subf %41, %13 : vector<16x32xf32>
    %43 = arith.addf %42, %18 : vector<16x32xf32>
    %44 = arith.addf %10, %19 : vector<16x32xf32>
    %45 = arith.addf %20, %24 : vector<16x32xf32>
    %46 = arith.addf %21, %25 : vector<16x32xf32>
    %47 = arith.addf %22, %26 : vector<16x32xf32>
    %cst_12 = arith.constant 0.000000e+00 : f32
    %48 = vector.broadcast %cst_12 : f32 to vector<16x32xf32>
    %49 = arith.subf %48, %21 : vector<16x32xf32>
    %50 = arith.addf %49, %25 : vector<16x32xf32>
    %51 = arith.addf %20, %27 : vector<16x32xf32>
    %52 = arith.addf %23, %28 : vector<16x32xf32>
    %cst_13 = arith.constant 0.000000e+00 : f32
    %53 = vector.broadcast %cst_13 : f32 to vector<16x32xf32>
    %54 = arith.subf %53, %22 : vector<16x32xf32>
    %55 = arith.addf %54, %26 : vector<16x32xf32>
    %cst_14 = arith.constant 0.000000e+00 : f32
    %56 = vector.broadcast %cst_14 : f32 to vector<16x32xf32>
    %57 = arith.subf %56, %23 : vector<16x32xf32>
    %58 = arith.addf %57, %28 : vector<16x32xf32>
    %59 = arith.addf %20, %29 : vector<16x32xf32>
    %c0_15 = arith.constant 0 : index
    %c0_16 = arith.constant 0 : index
    %60 = vector.load %arg4[%c0_15, %c0_16] : memref<16x1xf32, #tpu.memory_space<vmem>>, vector<16x1xf32>
    %cst_17 = arith.constant 1.000000e-01 : f32
    %61 = vector.broadcast %cst_17 : f32 to vector<16x1xf32>
    %62 = arith.mulf %61, %60 : vector<16x1xf32>
    %cst_18 = arith.constant 1.000000e+00 : f32
    %63 = vector.broadcast %cst_18 : f32 to vector<16x1xf32>
    %64 = arith.addf %63, %62 : vector<16x1xf32>
    %65 = arith.mulf %45, %30 : vector<16x32xf32>
    %66 = arith.mulf %46, %35 : vector<16x32xf32>
    %67 = arith.addf %65, %66 : vector<16x32xf32>
    %68 = arith.mulf %47, %40 : vector<16x32xf32>
    %69 = arith.addf %67, %68 : vector<16x32xf32>
    %70 = arith.mulf %45, %31 : vector<16x32xf32>
    %71 = arith.mulf %46, %36 : vector<16x32xf32>
    %72 = arith.addf %70, %71 : vector<16x32xf32>
    %73 = arith.mulf %47, %43 : vector<16x32xf32>
    %74 = arith.addf %72, %73 : vector<16x32xf32>
    %75 = arith.mulf %45, %32 : vector<16x32xf32>
    %76 = arith.mulf %46, %37 : vector<16x32xf32>
    %77 = arith.addf %75, %76 : vector<16x32xf32>
    %78 = arith.mulf %47, %44 : vector<16x32xf32>
    %79 = arith.addf %77, %78 : vector<16x32xf32>
    %80 = arith.mulf %50, %30 : vector<16x32xf32>
    %81 = arith.mulf %51, %35 : vector<16x32xf32>
    %82 = arith.addf %80, %81 : vector<16x32xf32>
    %83 = arith.mulf %52, %40 : vector<16x32xf32>
    %84 = arith.addf %82, %83 : vector<16x32xf32>
    %85 = arith.mulf %50, %31 : vector<16x32xf32>
    %86 = arith.mulf %51, %36 : vector<16x32xf32>
    %87 = arith.addf %85, %86 : vector<16x32xf32>
    %88 = arith.mulf %52, %43 : vector<16x32xf32>
    %89 = arith.addf %87, %88 : vector<16x32xf32>
    %90 = arith.mulf %50, %32 : vector<16x32xf32>
    %91 = arith.mulf %51, %37 : vector<16x32xf32>
    %92 = arith.addf %90, %91 : vector<16x32xf32>
    %93 = arith.mulf %52, %44 : vector<16x32xf32>
    %94 = arith.addf %92, %93 : vector<16x32xf32>
    %95 = arith.mulf %55, %30 : vector<16x32xf32>
    %96 = arith.mulf %58, %35 : vector<16x32xf32>
    %97 = arith.addf %95, %96 : vector<16x32xf32>
    %98 = arith.mulf %59, %40 : vector<16x32xf32>
    %99 = arith.addf %97, %98 : vector<16x32xf32>
    %100 = arith.mulf %55, %31 : vector<16x32xf32>
    %101 = arith.mulf %58, %36 : vector<16x32xf32>
    %102 = arith.addf %100, %101 : vector<16x32xf32>
    %103 = arith.mulf %59, %43 : vector<16x32xf32>
    %104 = arith.addf %102, %103 : vector<16x32xf32>
    %105 = arith.mulf %55, %32 : vector<16x32xf32>
    %106 = arith.mulf %58, %37 : vector<16x32xf32>
    %107 = arith.addf %105, %106 : vector<16x32xf32>
    %108 = arith.mulf %59, %44 : vector<16x32xf32>
    %109 = arith.addf %107, %108 : vector<16x32xf32>
    %110 = arith.mulf %30, %45 : vector<16x32xf32>
    %111 = arith.mulf %31, %50 : vector<16x32xf32>
    %112 = arith.addf %110, %111 : vector<16x32xf32>
    %113 = arith.mulf %32, %55 : vector<16x32xf32>
    %114 = arith.addf %112, %113 : vector<16x32xf32>
    %115 = arith.mulf %30, %46 : vector<16x32xf32>
    %116 = arith.mulf %31, %51 : vector<16x32xf32>
    %117 = arith.addf %115, %116 : vector<16x32xf32>
    %118 = arith.mulf %32, %58 : vector<16x32xf32>
    %119 = arith.addf %117, %118 : vector<16x32xf32>
    %120 = arith.mulf %30, %47 : vector<16x32xf32>
    %121 = arith.mulf %31, %52 : vector<16x32xf32>
    %122 = arith.addf %120, %121 : vector<16x32xf32>
    %123 = arith.mulf %32, %59 : vector<16x32xf32>
    %124 = arith.addf %122, %123 : vector<16x32xf32>
    %125 = arith.mulf %35, %45 : vector<16x32xf32>
    %126 = arith.mulf %36, %50 : vector<16x32xf32>
    %127 = arith.addf %125, %126 : vector<16x32xf32>
    %128 = arith.mulf %37, %55 : vector<16x32xf32>
    %129 = arith.addf %127, %128 : vector<16x32xf32>
    %130 = arith.mulf %35, %46 : vector<16x32xf32>
    %131 = arith.mulf %36, %51 : vector<16x32xf32>
    %132 = arith.addf %130, %131 : vector<16x32xf32>
    %133 = arith.mulf %37, %58 : vector<16x32xf32>
    %134 = arith.addf %132, %133 : vector<16x32xf32>
    %135 = arith.mulf %35, %47 : vector<16x32xf32>
    %136 = arith.mulf %36, %52 : vector<16x32xf32>
    %137 = arith.addf %135, %136 : vector<16x32xf32>
    %138 = arith.mulf %37, %59 : vector<16x32xf32>
    %139 = arith.addf %137, %138 : vector<16x32xf32>
    %140 = arith.mulf %40, %45 : vector<16x32xf32>
    %141 = arith.mulf %43, %50 : vector<16x32xf32>
    %142 = arith.addf %140, %141 : vector<16x32xf32>
    %143 = arith.mulf %44, %55 : vector<16x32xf32>
    %144 = arith.addf %142, %143 : vector<16x32xf32>
    %145 = arith.mulf %40, %46 : vector<16x32xf32>
    %146 = arith.mulf %43, %51 : vector<16x32xf32>
    %147 = arith.addf %145, %146 : vector<16x32xf32>
    %148 = arith.mulf %44, %58 : vector<16x32xf32>
    %149 = arith.addf %147, %148 : vector<16x32xf32>
    %150 = arith.mulf %40, %47 : vector<16x32xf32>
    %151 = arith.mulf %43, %52 : vector<16x32xf32>
    %152 = arith.addf %150, %151 : vector<16x32xf32>
    %153 = arith.mulf %44, %59 : vector<16x32xf32>
    %154 = arith.addf %152, %153 : vector<16x32xf32>
    %155 = arith.addf %69, %114 : vector<16x32xf32>
    %156 = vector.broadcast %64 : vector<16x1xf32> to vector<16x32xf32>
    %157 = arith.mulf %156, %155 : vector<16x32xf32>
    %158 = arith.addf %74, %119 : vector<16x32xf32>
    %159 = vector.broadcast %64 : vector<16x1xf32> to vector<16x32xf32>
    %160 = arith.mulf %159, %158 : vector<16x32xf32>
    %161 = arith.addf %79, %124 : vector<16x32xf32>
    %162 = vector.broadcast %64 : vector<16x1xf32> to vector<16x32xf32>
    %163 = arith.mulf %162, %161 : vector<16x32xf32>
    %164 = arith.addf %84, %129 : vector<16x32xf32>
    %165 = vector.broadcast %64 : vector<16x1xf32> to vector<16x32xf32>
    %166 = arith.mulf %165, %164 : vector<16x32xf32>
    %167 = arith.addf %89, %134 : vector<16x32xf32>
    %168 = vector.broadcast %64 : vector<16x1xf32> to vector<16x32xf32>
    %169 = arith.mulf %168, %167 : vector<16x32xf32>
    %170 = arith.addf %94, %139 : vector<16x32xf32>
    %171 = vector.broadcast %64 : vector<16x1xf32> to vector<16x32xf32>
    %172 = arith.mulf %171, %170 : vector<16x32xf32>
    %173 = arith.addf %99, %144 : vector<16x32xf32>
    %174 = vector.broadcast %64 : vector<16x1xf32> to vector<16x32xf32>
    %175 = arith.mulf %174, %173 : vector<16x32xf32>
    %176 = arith.addf %104, %149 : vector<16x32xf32>
    %177 = vector.broadcast %64 : vector<16x1xf32> to vector<16x32xf32>
    %178 = arith.mulf %177, %176 : vector<16x32xf32>
    %179 = arith.addf %109, %154 : vector<16x32xf32>
    %180 = vector.broadcast %64 : vector<16x1xf32> to vector<16x32xf32>
    %181 = arith.mulf %180, %179 : vector<16x32xf32>
    %182 = arith.addf %157, %169 : vector<16x32xf32>
    %183 = arith.addf %182, %181 : vector<16x32xf32>
    %cst_19 = arith.constant 0.333333343 : f32
    %184 = vector.broadcast %cst_19 : f32 to vector<16x32xf32>
    %185 = arith.mulf %183, %184 : vector<16x32xf32>
    %186 = arith.subf %160, %166 : vector<16x32xf32>
    %cst_20 = arith.constant 5.000000e-01 : f32
    %187 = vector.broadcast %cst_20 : f32 to vector<16x32xf32>
    %188 = arith.mulf %187, %186 : vector<16x32xf32>
    %189 = arith.subf %163, %175 : vector<16x32xf32>
    %cst_21 = arith.constant 5.000000e-01 : f32
    %190 = vector.broadcast %cst_21 : f32 to vector<16x32xf32>
    %191 = arith.mulf %190, %189 : vector<16x32xf32>
    %192 = arith.subf %172, %178 : vector<16x32xf32>
    %cst_22 = arith.constant 5.000000e-01 : f32
    %193 = vector.broadcast %cst_22 : f32 to vector<16x32xf32>
    %194 = arith.mulf %193, %192 : vector<16x32xf32>
    %195 = arith.subf %157, %185 : vector<16x32xf32>
    %196 = arith.subf %169, %185 : vector<16x32xf32>
    %197 = arith.subf %181, %185 : vector<16x32xf32>
    %198 = arith.addf %160, %166 : vector<16x32xf32>
    %cst_23 = arith.constant 5.000000e-01 : f32
    %199 = vector.broadcast %cst_23 : f32 to vector<16x32xf32>
    %200 = arith.mulf %199, %198 : vector<16x32xf32>
    %201 = arith.addf %163, %175 : vector<16x32xf32>
    %cst_24 = arith.constant 5.000000e-01 : f32
    %202 = vector.broadcast %cst_24 : f32 to vector<16x32xf32>
    %203 = arith.mulf %202, %201 : vector<16x32xf32>
    %204 = arith.addf %172, %178 : vector<16x32xf32>
    %cst_25 = arith.constant 5.000000e-01 : f32
    %205 = vector.broadcast %cst_25 : f32 to vector<16x32xf32>
    %206 = arith.mulf %205, %204 : vector<16x32xf32>
    %207 = arith.mulf %157, %157 : vector<16x32xf32>
    %208 = arith.mulf %160, %160 : vector<16x32xf32>
    %209 = arith.addf %207, %208 : vector<16x32xf32>
    %210 = arith.mulf %163, %163 : vector<16x32xf32>
    %211 = arith.addf %209, %210 : vector<16x32xf32>
    %212 = arith.mulf %166, %166 : vector<16x32xf32>
    %213 = arith.addf %211, %212 : vector<16x32xf32>
    %214 = arith.mulf %169, %169 : vector<16x32xf32>
    %215 = arith.addf %213, %214 : vector<16x32xf32>
    %216 = arith.mulf %172, %172 : vector<16x32xf32>
    %217 = arith.addf %215, %216 : vector<16x32xf32>
    %218 = arith.mulf %175, %175 : vector<16x32xf32>
    %219 = arith.addf %217, %218 : vector<16x32xf32>
    %220 = arith.mulf %178, %178 : vector<16x32xf32>
    %221 = arith.addf %219, %220 : vector<16x32xf32>
    %222 = arith.mulf %181, %181 : vector<16x32xf32>
    %223 = arith.addf %221, %222 : vector<16x32xf32>
    %cst_26 = arith.constant 1.000000e+00 : f32
    %224 = vector.broadcast %cst_26 : f32 to vector<16x32xf32>
    %225 = arith.addf %223, %224 : vector<16x32xf32>
    %cst_27 = arith.constant 1.000000e+00 : f32
    %226 = vector.broadcast %cst_27 : f32 to vector<16x32xf32>
    %227 = arith.divf %226, %225 : vector<16x32xf32>
    %228 = tpu.concatenate %227, %227, %227, %227, %227, %227, %227, %227, %227, %227 in 1 : vector<16x32xf32>, vector<16x32xf32>, vector<16x32xf32>, vector<16x32xf32>, vector<16x32xf32>, vector<16x32xf32>, vector<16x32xf32>, vector<16x32xf32>, vector<16x32xf32>, vector<16x32xf32> -> vector<16x320xf32>
    %229 = tpu.concatenate %185, %188, %191, %194, %195, %200, %203, %196, %206, %197 in 1 : vector<16x32xf32>, vector<16x32xf32>, vector<16x32xf32>, vector<16x32xf32>, vector<16x32xf32>, vector<16x32xf32>, vector<16x32xf32>, vector<16x32xf32>, vector<16x32xf32>, vector<16x32xf32> -> vector<16x320xf32>
    %230 = arith.mulf %229, %228 : vector<16x320xf32>
    %c0_28 = arith.constant 0 : index
    %c0_29 = arith.constant 0 : index
    %231 = vector.load %arg6[%c0_28, %c0_29] : memref<320x320xf32, #tpu.memory_space<vmem>>, vector<320x320xf32>
    %cst_30 = arith.constant dense<0.000000e+00> : vector<16x320xf32>
    %232 = tpu.matmul %230, %231, %cst_30 {dimension_numbers = #tpu.dot_dimension_numbers<[1], [0], [0], [1], [0, 0, 1, 1], [], []>} : vector<16x320xf32>, vector<320x320xf32>, vector<16x320xf32> -> vector<16x320xf32>
    %233 = vector.extract_strided_slice %232 {offsets = [0, 0], sizes = [16, 32], strides = [1, 1]} : vector<16x320xf32> to vector<16x32xf32>
    %234 = vector.extract_strided_slice %232 {offsets = [0, 32], sizes = [16, 32], strides = [1, 1]} : vector<16x320xf32> to vector<16x32xf32>
    %235 = vector.extract_strided_slice %232 {offsets = [0, 64], sizes = [16, 32], strides = [1, 1]} : vector<16x320xf32> to vector<16x32xf32>
    %236 = vector.extract_strided_slice %232 {offsets = [0, 96], sizes = [16, 32], strides = [1, 1]} : vector<16x320xf32> to vector<16x32xf32>
    %237 = vector.extract_strided_slice %232 {offsets = [0, 128], sizes = [16, 32], strides = [1, 1]} : vector<16x320xf32> to vector<16x32xf32>
    %238 = vector.extract_strided_slice %232 {offsets = [0, 160], sizes = [16, 32], strides = [1, 1]} : vector<16x320xf32> to vector<16x32xf32>
    %239 = vector.extract_strided_slice %232 {offsets = [0, 192], sizes = [16, 32], strides = [1, 1]} : vector<16x320xf32> to vector<16x32xf32>
    %240 = vector.extract_strided_slice %232 {offsets = [0, 224], sizes = [16, 32], strides = [1, 1]} : vector<16x320xf32> to vector<16x32xf32>
    %241 = vector.extract_strided_slice %232 {offsets = [0, 256], sizes = [16, 32], strides = [1, 1]} : vector<16x320xf32> to vector<16x32xf32>
    %242 = vector.extract_strided_slice %232 {offsets = [0, 288], sizes = [16, 32], strides = [1, 1]} : vector<16x320xf32> to vector<16x32xf32>
    %243 = arith.addf %233, %237 : vector<16x32xf32>
    %244 = arith.addf %234, %238 : vector<16x32xf32>
    %245 = arith.addf %235, %239 : vector<16x32xf32>
    %cst_31 = arith.constant 0.000000e+00 : f32
    %246 = vector.broadcast %cst_31 : f32 to vector<16x32xf32>
    %247 = arith.subf %246, %234 : vector<16x32xf32>
    %248 = arith.addf %247, %238 : vector<16x32xf32>
    %249 = arith.addf %233, %240 : vector<16x32xf32>
    %250 = arith.addf %236, %241 : vector<16x32xf32>
    %cst_32 = arith.constant 0.000000e+00 : f32
    %251 = vector.broadcast %cst_32 : f32 to vector<16x32xf32>
    %252 = arith.subf %251, %235 : vector<16x32xf32>
    %253 = arith.addf %252, %239 : vector<16x32xf32>
    %cst_33 = arith.constant 0.000000e+00 : f32
    %254 = vector.broadcast %cst_33 : f32 to vector<16x32xf32>
    %255 = arith.subf %254, %236 : vector<16x32xf32>
    %256 = arith.addf %255, %241 : vector<16x32xf32>
    %257 = arith.addf %233, %242 : vector<16x32xf32>
    %258 = arith.mulf %243, %243 : vector<16x32xf32>
    %259 = arith.mulf %244, %248 : vector<16x32xf32>
    %260 = arith.addf %258, %259 : vector<16x32xf32>
    %261 = arith.mulf %245, %253 : vector<16x32xf32>
    %262 = arith.addf %260, %261 : vector<16x32xf32>
    %263 = arith.mulf %243, %244 : vector<16x32xf32>
    %264 = arith.mulf %244, %249 : vector<16x32xf32>
    %265 = arith.addf %263, %264 : vector<16x32xf32>
    %266 = arith.mulf %245, %256 : vector<16x32xf32>
    %267 = arith.addf %265, %266 : vector<16x32xf32>
    %268 = arith.mulf %243, %245 : vector<16x32xf32>
    %269 = arith.mulf %244, %250 : vector<16x32xf32>
    %270 = arith.addf %268, %269 : vector<16x32xf32>
    %271 = arith.mulf %245, %257 : vector<16x32xf32>
    %272 = arith.addf %270, %271 : vector<16x32xf32>
    %273 = arith.mulf %248, %243 : vector<16x32xf32>
    %274 = arith.mulf %249, %248 : vector<16x32xf32>
    %275 = arith.addf %273, %274 : vector<16x32xf32>
    %276 = arith.mulf %250, %253 : vector<16x32xf32>
    %277 = arith.addf %275, %276 : vector<16x32xf32>
    %278 = arith.mulf %248, %244 : vector<16x32xf32>
    %279 = arith.mulf %249, %249 : vector<16x32xf32>
    %280 = arith.addf %278, %279 : vector<16x32xf32>
    %281 = arith.mulf %250, %256 : vector<16x32xf32>
    %282 = arith.addf %280, %281 : vector<16x32xf32>
    %283 = arith.mulf %248, %245 : vector<16x32xf32>
    %284 = arith.mulf %249, %250 : vector<16x32xf32>
    %285 = arith.addf %283, %284 : vector<16x32xf32>
    %286 = arith.mulf %250, %257 : vector<16x32xf32>
    %287 = arith.addf %285, %286 : vector<16x32xf32>
    %288 = arith.mulf %253, %243 : vector<16x32xf32>
    %289 = arith.mulf %256, %248 : vector<16x32xf32>
    %290 = arith.addf %288, %289 : vector<16x32xf32>
    %291 = arith.mulf %257, %253 : vector<16x32xf32>
    %292 = arith.addf %290, %291 : vector<16x32xf32>
    %293 = arith.mulf %253, %244 : vector<16x32xf32>
    %294 = arith.mulf %256, %249 : vector<16x32xf32>
    %295 = arith.addf %293, %294 : vector<16x32xf32>
    %296 = arith.mulf %257, %256 : vector<16x32xf32>
    %297 = arith.addf %295, %296 : vector<16x32xf32>
    %298 = arith.mulf %253, %245 : vector<16x32xf32>
    %299 = arith.mulf %256, %250 : vector<16x32xf32>
    %300 = arith.addf %298, %299 : vector<16x32xf32>
    %301 = arith.mulf %257, %257 : vector<16x32xf32>
    %302 = arith.addf %300, %301 : vector<16x32xf32>
    %303 = vector.extract_strided_slice %0 {offsets = [0, 0], sizes = [16, 32], strides = [1, 1]} : vector<16x320xf32> to vector<16x32xf32>
    %304 = arith.mulf %303, %9 : vector<16x32xf32>
    %305 = vector.extract_strided_slice %0 {offsets = [0, 32], sizes = [16, 32], strides = [1, 1]} : vector<16x320xf32> to vector<16x32xf32>
    %306 = arith.mulf %305, %9 : vector<16x32xf32>
    %307 = vector.extract_strided_slice %0 {offsets = [0, 64], sizes = [16, 32], strides = [1, 1]} : vector<16x320xf32> to vector<16x32xf32>
    %308 = arith.mulf %307, %9 : vector<16x32xf32>
    %309 = vector.extract_strided_slice %0 {offsets = [0, 96], sizes = [16, 32], strides = [1, 1]} : vector<16x320xf32> to vector<16x32xf32>
    %310 = arith.mulf %309, %9 : vector<16x32xf32>
    %311 = vector.extract_strided_slice %0 {offsets = [0, 128], sizes = [16, 32], strides = [1, 1]} : vector<16x320xf32> to vector<16x32xf32>
    %312 = arith.mulf %311, %9 : vector<16x32xf32>
    %313 = vector.extract_strided_slice %0 {offsets = [0, 160], sizes = [16, 32], strides = [1, 1]} : vector<16x320xf32> to vector<16x32xf32>
    %314 = arith.mulf %313, %9 : vector<16x32xf32>
    %315 = vector.extract_strided_slice %0 {offsets = [0, 192], sizes = [16, 32], strides = [1, 1]} : vector<16x320xf32> to vector<16x32xf32>
    %316 = arith.mulf %315, %9 : vector<16x32xf32>
    %317 = vector.extract_strided_slice %0 {offsets = [0, 224], sizes = [16, 32], strides = [1, 1]} : vector<16x320xf32> to vector<16x32xf32>
    %318 = arith.mulf %317, %9 : vector<16x32xf32>
    %319 = vector.extract_strided_slice %0 {offsets = [0, 256], sizes = [16, 32], strides = [1, 1]} : vector<16x320xf32> to vector<16x32xf32>
    %320 = arith.mulf %319, %9 : vector<16x32xf32>
    %321 = vector.extract_strided_slice %0 {offsets = [0, 288], sizes = [16, 32], strides = [1, 1]} : vector<16x320xf32> to vector<16x32xf32>
    %322 = arith.mulf %321, %9 : vector<16x32xf32>
    %323 = arith.addf %304, %312 : vector<16x32xf32>
    %324 = arith.addf %306, %314 : vector<16x32xf32>
    %325 = arith.addf %308, %316 : vector<16x32xf32>
    %cst_34 = arith.constant 0.000000e+00 : f32
    %326 = vector.broadcast %cst_34 : f32 to vector<16x32xf32>
    %327 = arith.subf %326, %306 : vector<16x32xf32>
    %328 = arith.addf %327, %314 : vector<16x32xf32>
    %329 = arith.addf %304, %318 : vector<16x32xf32>
    %330 = arith.addf %310, %320 : vector<16x32xf32>
    %cst_35 = arith.constant 0.000000e+00 : f32
    %331 = vector.broadcast %cst_35 : f32 to vector<16x32xf32>
    %332 = arith.subf %331, %308 : vector<16x32xf32>
    %333 = arith.addf %332, %316 : vector<16x32xf32>
    %cst_36 = arith.constant 0.000000e+00 : f32
    %334 = vector.broadcast %cst_36 : f32 to vector<16x32xf32>
    %335 = arith.subf %334, %310 : vector<16x32xf32>
    %336 = arith.addf %335, %320 : vector<16x32xf32>
    %337 = arith.addf %304, %322 : vector<16x32xf32>
    %338 = arith.addf %323, %243 : vector<16x32xf32>
    %339 = vector.broadcast %64 : vector<16x1xf32> to vector<16x32xf32>
    %340 = arith.mulf %339, %262 : vector<16x32xf32>
    %341 = arith.addf %338, %340 : vector<16x32xf32>
    %342 = arith.addf %324, %244 : vector<16x32xf32>
    %343 = vector.broadcast %64 : vector<16x1xf32> to vector<16x32xf32>
    %344 = arith.mulf %343, %267 : vector<16x32xf32>
    %345 = arith.addf %342, %344 : vector<16x32xf32>
    %346 = arith.addf %325, %245 : vector<16x32xf32>
    %347 = vector.broadcast %64 : vector<16x1xf32> to vector<16x32xf32>
    %348 = arith.mulf %347, %272 : vector<16x32xf32>
    %349 = arith.addf %346, %348 : vector<16x32xf32>
    %350 = arith.addf %328, %248 : vector<16x32xf32>
    %351 = vector.broadcast %64 : vector<16x1xf32> to vector<16x32xf32>
    %352 = arith.mulf %351, %277 : vector<16x32xf32>
    %353 = arith.addf %350, %352 : vector<16x32xf32>
    %354 = arith.addf %329, %249 : vector<16x32xf32>
    %355 = vector.broadcast %64 : vector<16x1xf32> to vector<16x32xf32>
    %356 = arith.mulf %355, %282 : vector<16x32xf32>
    %357 = arith.addf %354, %356 : vector<16x32xf32>
    %358 = arith.addf %330, %250 : vector<16x32xf32>
    %359 = vector.broadcast %64 : vector<16x1xf32> to vector<16x32xf32>
    %360 = arith.mulf %359, %287 : vector<16x32xf32>
    %361 = arith.addf %358, %360 : vector<16x32xf32>
    %362 = arith.addf %333, %253 : vector<16x32xf32>
    %363 = vector.broadcast %64 : vector<16x1xf32> to vector<16x32xf32>
    %364 = arith.mulf %363, %292 : vector<16x32xf32>
    %365 = arith.addf %362, %364 : vector<16x32xf32>
    %366 = arith.addf %336, %256 : vector<16x32xf32>
    %367 = vector.broadcast %64 : vector<16x1xf32> to vector<16x32xf32>
    %368 = arith.mulf %367, %297 : vector<16x32xf32>
    %369 = arith.addf %366, %368 : vector<16x32xf32>
    %370 = arith.addf %337, %257 : vector<16x32xf32>
    %371 = vector.broadcast %64 : vector<16x1xf32> to vector<16x32xf32>
    %372 = arith.mulf %371, %302 : vector<16x32xf32>
    %373 = arith.addf %370, %372 : vector<16x32xf32>
    %374 = arith.addf %341, %357 : vector<16x32xf32>
    %375 = arith.addf %374, %373 : vector<16x32xf32>
    %cst_37 = arith.constant 0.333333343 : f32
    %376 = vector.broadcast %cst_37 : f32 to vector<16x32xf32>
    %377 = arith.mulf %375, %376 : vector<16x32xf32>
    %378 = arith.subf %345, %353 : vector<16x32xf32>
    %cst_38 = arith.constant 5.000000e-01 : f32
    %379 = vector.broadcast %cst_38 : f32 to vector<16x32xf32>
    %380 = arith.mulf %379, %378 : vector<16x32xf32>
    %381 = arith.subf %349, %365 : vector<16x32xf32>
    %cst_39 = arith.constant 5.000000e-01 : f32
    %382 = vector.broadcast %cst_39 : f32 to vector<16x32xf32>
    %383 = arith.mulf %382, %381 : vector<16x32xf32>
    %384 = arith.subf %361, %369 : vector<16x32xf32>
    %cst_40 = arith.constant 5.000000e-01 : f32
    %385 = vector.broadcast %cst_40 : f32 to vector<16x32xf32>
    %386 = arith.mulf %385, %384 : vector<16x32xf32>
    %387 = arith.subf %341, %377 : vector<16x32xf32>
    %388 = arith.subf %357, %377 : vector<16x32xf32>
    %389 = arith.subf %373, %377 : vector<16x32xf32>
    %390 = arith.addf %345, %353 : vector<16x32xf32>
    %cst_41 = arith.constant 5.000000e-01 : f32
    %391 = vector.broadcast %cst_41 : f32 to vector<16x32xf32>
    %392 = arith.mulf %391, %390 : vector<16x32xf32>
    %393 = arith.addf %349, %365 : vector<16x32xf32>
    %cst_42 = arith.constant 5.000000e-01 : f32
    %394 = vector.broadcast %cst_42 : f32 to vector<16x32xf32>
    %395 = arith.mulf %394, %393 : vector<16x32xf32>
    %396 = arith.addf %361, %369 : vector<16x32xf32>
    %cst_43 = arith.constant 5.000000e-01 : f32
    %397 = vector.broadcast %cst_43 : f32 to vector<16x32xf32>
    %398 = arith.mulf %397, %396 : vector<16x32xf32>
    %399 = tpu.concatenate %377, %380, %383, %386, %387, %392, %395, %388, %398, %389 in 1 : vector<16x32xf32>, vector<16x32xf32>, vector<16x32xf32>, vector<16x32xf32>, vector<16x32xf32>, vector<16x32xf32>, vector<16x32xf32>, vector<16x32xf32>, vector<16x32xf32>, vector<16x32xf32> -> vector<16x320xf32>
    %c0_44 = arith.constant 0 : index
    %c0_45 = arith.constant 0 : index
    %400 = vector.load %arg7[%c0_44, %c0_45] : memref<16x320xf32, #tpu.memory_space<vmem>>, vector<16x320xf32>
    tpu.vector_store %arg7[%c0_44, %c0_45], %399 {strides = array<i32>} : memref<16x320xf32, #tpu.memory_space<vmem>>, vector<16x320xf32>,
    return
  }
  func.func @transform_0(%arg0: i32) -> (i32, i32) {
    %c0_i32 = arith.constant 0 : i32
    %c0_i32_0 = arith.constant 0 : i32
    return %arg0, %c0_i32 : i32, i32
  }
  func.func @transform_1(%arg0: i32) -> (i32, i32) {
    %c0_i32 = arith.constant 0 : i32
    %c0_i32_0 = arith.constant 0 : i32
    return %arg0, %c0_i32 : i32, i32
  }
  func.func @transform_2(%arg0: i32) -> (i32, i32) {
    %c0_i32 = arith.constant 0 : i32
    %c0_i32_0 = arith.constant 0 : i32
    return %arg0, %c0_i32 : i32, i32
  }
  func.func @transform_3(%arg0: i32) -> (i32, i32) {
    %c0_i32 = arith.constant 0 : i32
    %c0_i32_0 = arith.constant 0 : i32
    return %arg0, %c0_i32 : i32, i32
  }
  func.func @transform_4(%arg0: i32) -> (i32, i32) {
    %c0_i32 = arith.constant 0 : i32
    %c0_i32_0 = arith.constant 0 : i32
    %c0_i32_1 = arith.constant 0 : i32
    return %c0_i32, %c0_i32_0 : i32, i32
  }
  func.func @transform_5(%arg0: i32) -> (i32, i32) {
    %c0_i32 = arith.constant 0 : i32
    %c0_i32_0 = arith.constant 0 : i32
    %c0_i32_1 = arith.constant 0 : i32
    return %c0_i32, %c0_i32_0 : i32, i32
  }
  func.func @transform_6(%arg0: i32) -> (i32, i32) {
    %c0_i32 = arith.constant 0 : i32
    %c0_i32_0 = arith.constant 0 : i32
    return %arg0, %c0_i32 : i32, i32
  }
}

module attributes {stable_mosaic.version = 11 : i64} {
  func.func @_out_head_kernel(%arg0: i32, %arg1: memref<16x320xf32, #tpu.memory_space<vmem>>, %arg2: memref<320x96xf32, #tpu.memory_space<vmem>>, %arg3: memref<1x96xf32, #tpu.memory_space<vmem>>, %arg4: memref<1x96xf32, #tpu.memory_space<vmem>>, %arg5: memref<96x32xf32, #tpu.memory_space<vmem>>, %arg6: memref<1x32xf32, #tpu.memory_space<vmem>>, %arg7: memref<16x32xf32, #tpu.memory_space<vmem>>) attributes {dimension_semantics = [#tpu.dimension_semantics<parallel>], iteration_bounds = array<i64: 1>, scalar_prefetch = 0 : i64, scratch_operands = 0 : i64, tpu.core_type = #tpu.core_type<tc>, window_params = [{transform_indices = @transform_0, window_bounds = array<i64: 16, 320>}, {pipeline_mode = #tpu.pipeline_mode<synchronous>, transform_indices = @transform_1, window_bounds = array<i64: 320, 96>}, {pipeline_mode = #tpu.pipeline_mode<synchronous>, transform_indices = @transform_2, window_bounds = array<i64: 1, 96>}, {pipeline_mode = #tpu.pipeline_mode<synchronous>, transform_indices = @transform_3, window_bounds = array<i64: 1, 96>}, {pipeline_mode = #tpu.pipeline_mode<synchronous>, transform_indices = @transform_4, window_bounds = array<i64: 96, 32>}, {pipeline_mode = #tpu.pipeline_mode<synchronous>, transform_indices = @transform_5, window_bounds = array<i64: 1, 32>}, {transform_indices = @transform_6, window_bounds = array<i64: 16, 32>}]} {
    %c0 = arith.constant 0 : index
    %c0_0 = arith.constant 0 : index
    %0 = vector.load %arg1[%c0, %c0_0] : memref<16x320xf32, #tpu.memory_space<vmem>>, vector<16x320xf32>
    %1 = arith.mulf %0, %0 : vector<16x320xf32>
    %c0_1 = arith.constant 0 : index
    %c0_2 = arith.constant 0 : index
    %2 = vector.load %arg2[%c0_1, %c0_2] : memref<320x96xf32, #tpu.memory_space<vmem>>, vector<320x96xf32>
    %cst = arith.constant dense<0.000000e+00> : vector<16x96xf32>
    %3 = tpu.matmul %1, %2, %cst {dimension_numbers = #tpu.dot_dimension_numbers<[1], [0], [0], [1], [0, 0, 1, 1], [], []>} : vector<16x320xf32>, vector<320x96xf32>, vector<16x96xf32> -> vector<16x96xf32>
    %cst_3 = arith.constant dense<0.000000e+00> : vector<16xf32>
    %4 = vector.multi_reduction <add>, %3, %cst_3 [1] : vector<16x96xf32> to vector<16xf32>
    %5 = vector.shape_cast %4 : vector<16xf32> to vector<16x1xf32>
    %cst_4 = arith.constant 9.600000e+01 : f32
    %6 = vector.broadcast %cst_4 : f32 to vector<16x1xf32>
    %7 = arith.divf %5, %6 : vector<16x1xf32>
    %8 = vector.broadcast %7 : vector<16x1xf32> to vector<16x96xf32>
    %9 = arith.subf %3, %8 : vector<16x96xf32>
    %10 = arith.mulf %9, %9 : vector<16x96xf32>
    %cst_5 = arith.constant dense<0.000000e+00> : vector<16xf32>
    %11 = vector.multi_reduction <add>, %10, %cst_5 [1] : vector<16x96xf32> to vector<16xf32>
    %12 = vector.shape_cast %11 : vector<16xf32> to vector<16x1xf32>
    %cst_6 = arith.constant 9.600000e+01 : f32
    %13 = vector.broadcast %cst_6 : f32 to vector<16x1xf32>
    %14 = arith.divf %12, %13 : vector<16x1xf32>
    %15 = vector.broadcast %7 : vector<16x1xf32> to vector<16x96xf32>
    %16 = arith.subf %3, %15 : vector<16x96xf32>
    %cst_7 = arith.constant 9.99999974E-6 : f32
    %17 = vector.broadcast %cst_7 : f32 to vector<16x1xf32>
    %18 = arith.addf %14, %17 : vector<16x1xf32>
    %19 = math.rsqrt %18 : vector<16x1xf32>
    %20 = vector.broadcast %19 : vector<16x1xf32> to vector<16x96xf32>
    %21 = arith.mulf %16, %20 : vector<16x96xf32>
    %c0_8 = arith.constant 0 : index
    %c0_9 = arith.constant 0 : index
    %22 = vector.load %arg3[%c0_8, %c0_9] : memref<1x96xf32, #tpu.memory_space<vmem>>, vector<1x96xf32>
    %23 = vector.broadcast %22 : vector<1x96xf32> to vector<16x96xf32>
    %24 = arith.mulf %21, %23 : vector<16x96xf32>
    %c0_10 = arith.constant 0 : index
    %c0_11 = arith.constant 0 : index
    %25 = vector.load %arg4[%c0_10, %c0_11] : memref<1x96xf32, #tpu.memory_space<vmem>>, vector<1x96xf32>
    %26 = vector.broadcast %25 : vector<1x96xf32> to vector<16x96xf32>
    %27 = arith.addf %24, %26 : vector<16x96xf32>
    %c0_12 = arith.constant 0 : index
    %c0_13 = arith.constant 0 : index
    %28 = vector.load %arg5[%c0_12, %c0_13] : memref<96x32xf32, #tpu.memory_space<vmem>>, vector<96x32xf32>
    %cst_14 = arith.constant dense<0.000000e+00> : vector<16x32xf32>
    %29 = tpu.matmul %27, %28, %cst_14 {dimension_numbers = #tpu.dot_dimension_numbers<[1], [0], [0], [1], [0, 0, 1, 1], [], []>} : vector<16x96xf32>, vector<96x32xf32>, vector<16x32xf32> -> vector<16x32xf32>
    %c0_15 = arith.constant 0 : index
    %c0_16 = arith.constant 0 : index
    %30 = vector.load %arg6[%c0_15, %c0_16] : memref<1x32xf32, #tpu.memory_space<vmem>>, vector<1x32xf32>
    %31 = vector.broadcast %30 : vector<1x32xf32> to vector<16x32xf32>
    %32 = arith.addf %29, %31 : vector<16x32xf32>
    %cst_17 = arith.constant 0.000000e+00 : f32
    %33 = vector.broadcast %cst_17 : f32 to vector<16x32xf32>
    %34 = arith.subf %33, %32 : vector<16x32xf32>
    %35 = math.exp %34 : vector<16x32xf32>
    %cst_18 = arith.constant 1.000000e+00 : f32
    %36 = vector.broadcast %cst_18 : f32 to vector<16x32xf32>
    %37 = arith.addf %36, %35 : vector<16x32xf32>
    %38 = tpu.reciprocal %37 {approx = true} : vector<16x32xf32> -> vector<16x32xf32>
    %39 = arith.mulf %32, %38 : vector<16x32xf32>
    %c0_19 = arith.constant 0 : index
    %c0_20 = arith.constant 0 : index
    %40 = vector.load %arg7[%c0_19, %c0_20] : memref<16x32xf32, #tpu.memory_space<vmem>>, vector<16x32xf32>
    tpu.vector_store %arg7[%c0_19, %c0_20], %39 {strides = array<i32>} : memref<16x32xf32, #tpu.memory_space<vmem>>, vector<16x32xf32>,
    return
  }
  func.func @transform_0(%arg0: i32) -> (i32, i32) {
    %c0_i32 = arith.constant 0 : i32
    %c0_i32_0 = arith.constant 0 : i32
    return %arg0, %c0_i32 : i32, i32
  }
  func.func @transform_1(%arg0: i32) -> (i32, i32) {
    %c0_i32 = arith.constant 0 : i32
    %c0_i32_0 = arith.constant 0 : i32
    %c0_i32_1 = arith.constant 0 : i32
    return %c0_i32, %c0_i32_0 : i32, i32
  }
  func.func @transform_2(%arg0: i32) -> (i32, i32) {
    %c0_i32 = arith.constant 0 : i32
    %c0_i32_0 = arith.constant 0 : i32
    %c0_i32_1 = arith.constant 0 : i32
    return %c0_i32, %c0_i32_0 : i32, i32
  }
  func.func @transform_3(%arg0: i32) -> (i32, i32) {
    %c0_i32 = arith.constant 0 : i32
    %c0_i32_0 = arith.constant 0 : i32
    %c0_i32_1 = arith.constant 0 : i32
    return %c0_i32, %c0_i32_0 : i32, i32
  }
  func.func @transform_4(%arg0: i32) -> (i32, i32) {
    %c0_i32 = arith.constant 0 : i32
    %c0_i32_0 = arith.constant 0 : i32
    %c0_i32_1 = arith.constant 0 : i32
    return %c0_i32, %c0_i32_0 : i32, i32
  }
  func.func @transform_5(%arg0: i32) -> (i32, i32) {
    %c0_i32 = arith.constant 0 : i32
    %c0_i32_0 = arith.constant 0 : i32
    %c0_i32_1 = arith.constant 0 : i32
    return %c0_i32, %c0_i32_0 : i32, i32
  }
  func.func @transform_6(%arg0: i32) -> (i32, i32) {
    %c0_i32 = arith.constant 0 : i32
    %c0_i32_0 = arith.constant 0 : i32
    return %arg0, %c0_i32 : i32, i32
  }
}

</mosaic_0001>

<llo_original>
// kernel: tensornet_forward.10
$region0: #{tensornet_forward.10}
  #allocation0 [shape = 'u32[]', space=smem, size = 0x4, offset = 0x4, fixed_abs, tag = 'smem constant byte address 0x4 - core index']
  #allocation1 [shape = 'u32[144,128]{1,0:T(1,128)}', space=vmem, size = 0x12000, scoped, tag = 'internal scratch']
  %s0 = inlined_call_operand.vmem [shape: f32[64,16], index: 0, kind: input, shape index: {}]
  %s1 = inlined_call_operand.vmem [shape: f32[64,1], index: 1, kind: input, shape index: {}]
  %s2 = inlined_call_operand.vmem [shape: f32[16,64], index: 2, kind: input, shape index: {}]
  %s3 = inlined_call_operand.vmem [shape: f32[1,64], index: 3, kind: input, shape index: {}]
  %s4 = inlined_call_operand.vmem [shape: f32[64,128], index: 4, kind: input, shape index: {}]
  %s5 = inlined_call_operand.vmem [shape: f32[1,128], index: 5, kind: input, shape index: {}]
  %s6 = inlined_call_operand.vmem [shape: f32[128,192], index: 6, kind: input, shape index: {}]
  %s7 = inlined_call_operand.vmem [shape: f32[1,192], index: 7, kind: input, shape index: {}]
  %s8 = inlined_call_operand.vmem [shape: f32[64,192], index: 8, kind: output, shape index: {}]
  %s9 = sld [smem:[#allocation0]]
  $region42: #{tensornet_forward.10} parent=0
    _
  %s11 = ssub.s32 1, %s9
  %s12 = scalar_select 0, %s11, %s9
  // Predicated region
  $region2: #{tensornet_forward.10} parent=0 // pred_check
    _
  $region3: #{tensornet_forward.10} parent=0 // pred_check_branch
    %14 = sbr.rel (0) target = $region5
  $region4: #{tensornet_forward.10} parent=0 // pred_region
    _
  $region5: #{tensornet_forward.10} parent=0 // pred_fallthru
    _
  // Predicated region
  $region6: #{tensornet_forward.10} parent=0 // pred_check
    _
  $region7: #{tensornet_forward.10} parent=0 // pred_check_branch
    %16 = sbr.rel (0) target = $region9
  $region8: #{tensornet_forward.10} parent=0 // pred_region
    _
  $region9: #{tensornet_forward.10} parent=0 // pred_fallthru
    _
  // Predicated region
  $region10: #{tensornet_forward.10} parent=0 // pred_check
    _
  $region11: #{tensornet_forward.10} parent=0 // pred_check_branch
    %18 = sbr.rel (0) target = $region13
  $region12: #{tensornet_forward.10} parent=0 // pred_region
    _
  $region13: #{tensornet_forward.10} parent=0 // pred_fallthru
    _
  // Predicated region
  $region14: #{tensornet_forward.10} parent=0 // pred_check
    _
  $region15: #{tensornet_forward.10} parent=0 // pred_check_branch
    %20 = sbr.rel (0) target = $region17
  $region16: #{tensornet_forward.10} parent=0 // pred_region
    _
  $region17: #{tensornet_forward.10} parent=0 // pred_fallthru
    _
  // Predicated region
  $region18: #{tensornet_forward.10} parent=0 // pred_check
    _
  $region19: #{tensornet_forward.10} parent=0 // pred_check_branch
    %22 = sbr.rel (0) target = $region21
  $region20: #{tensornet_forward.10} parent=0 // pred_region
    _
  $region21: #{tensornet_forward.10} parent=0 // pred_fallthru
    _
  // Predicated region
  $region22: #{tensornet_forward.10} parent=0 // pred_check
    _
  $region23: #{tensornet_forward.10} parent=0 // pred_check_branch
    %24 = sbr.rel (0) target = $region25
  $region24: #{tensornet_forward.10} parent=0 // pred_region
    _
  $region25: #{tensornet_forward.10} parent=0 // pred_fallthru
    _
  // Predicated region
  $region26: #{tensornet_forward.10} parent=0 // pred_check
    _
  $region27: #{tensornet_forward.10} parent=0 // pred_check_branch
    %26 = sbr.rel (0) target = $region29
  $region28: #{tensornet_forward.10} parent=0 // pred_region
    _
  $region29: #{tensornet_forward.10} parent=0 // pred_fallthru
    _
  // Predicated region
  $region30: #{tensornet_forward.10} parent=0 // pred_check
    _
  $region31: #{tensornet_forward.10} parent=0 // pred_check_branch
    %28 = sbr.rel (0) target = $region33
  $region32: #{tensornet_forward.10} parent=0 // pred_region
    _
  $region33: #{tensornet_forward.10} parent=0 // pred_fallthru
    _
  %v29 = vld [vmem:[%s0] sm:$0xff]
  %v30 = vld [vmem:[%s0 + $0x8] sm:$0xff]
  %v31 = vld [vmem:[%s0 + $0x10] sm:$0xff]
  %v32 = vld [vmem:[%s0 + $0x18] sm:$0xff]
  %v33 = vld [vmem:[%s0 + $0x20] sm:$0xff]
  %v34 = vld [vmem:[%s0 + $0x28] sm:$0xff]
  %v35 = vld [vmem:[%s0 + $0x30] sm:$0xff]
  %v36 = vld [vmem:[%s0 + $0x38] sm:$0xff]
  %v37 = vld [vmem:[%s2] sm:$0xff]
  %v38 = vld [vmem:[%s2 + $0x8] sm:$0xff]
  %v39 = vld [vmem:[%s3] sm:$0x1]
  %v41 = vlaneseq
  %v42 = vshrl.u32 %v41, 7
  %v43 = vsub.s32 0, %v42
  %v44 = vrot.slane %v39, %v43
  %vm46 = vcmask 130048
  %v48 = vsel %vm46, %v29, 0
  %v51 = vsel %vm46, %v30, 0
  %v54 = vsel %vm46, %v31, 0
  %v57 = vsel %vm46, %v32, 0
  %v60 = vsel %vm46, %v33, 0
  %v63 = vsel %vm46, %v34, 0
  %v66 = vsel %vm46, %v35, 0
  %v69 = vsel %vm46, %v36, 0
  %71 = vmatprep.subr.mxu0 0.0
  %72 = vmatpush1.msra.mxu0 %v37
  %73 = vmatprep.subr.mxu0 0.0
  %74 = vmatpush1.msra.mxu0 %v38
  %75 = vmatprep.subr.mxu0 0.0
  %76 = vmatpush1.msra.mxu0 0.0
  %77 = vmatprep.subr.mxu0 0.0
  %78 = vmatpush1.msra.mxu0 0.0
  %79 = vmatprep.subr.mxu0 0.0
  %80 = vmatpush1.msra.mxu0 0.0
  %81 = vmatprep.subr.mxu0 0.0
  %82 = vmatpush1.msra.mxu0 0.0
  %83 = vmatprep.subr.mxu0 0.0
  %84 = vmatpush1.msra.mxu0 0.0
  %85 = vmatprep.subr.mxu0 0.0
  %86 = vmatpush1.msra.mxu0 0.0
  %87 = vmatprep.subr.mxu0 0.0
  %88 = vmatpush1.msra.mxu0 0.0
  %89 = vmatprep.subr.mxu0 0.0
  %90 = vmatpush1.msra.mxu0 0.0
  %91 = vmatprep.subr.mxu0 0.0
  %92 = vmatpush1.msra.mxu0 0.0
  %93 = vmatprep.subr.mxu0 0.0
  %94 = vmatpush1.msra.mxu0 0.0
  %95 = vmatprep.subr.mxu0 0.0
  %96 = vmatpush1.msra.mxu0 0.0
  %97 = vmatprep.subr.mxu0 0.0
  %98 = vmatpush1.msra.mxu0 0.0
  %99 = vmatprep.subr.mxu0 0.0
  %100 = vmatpush1.msra.mxu0 0.0
  %101 = vmatprep.subr.mxu0 0.0
  %102 = vmatpush1.msra.mxu0 0.0
  %103 = vmatprep.subr.mxu0 0.0
  %104 = vmatpush1.msra.mxu0 0.0
  %105 = vmatprep.subr.mxu0 0.0
  %106 = vmatpush1.msra.mxu0 0.0
  %107 = vmatprep.subr.mxu0 0.0
  %108 = vmatpush1.msra.mxu0 0.0
  %109 = vmatprep.subr.mxu0 0.0
  %110 = vmatpush1.msra.mxu0 0.0
  %111 = vmatprep.subr.mxu0 0.0
  %112 = vmatpush1.msra.mxu0 0.0
  %113 = vmatprep.subr.mxu0 0.0
  %114 = vmatpush1.msra.mxu0 0.0
  %115 = vmatprep.subr.mxu0 0.0
  %116 = vmatpush1.msra.mxu0 0.0
  %117 = vmatprep.subr.mxu0 0.0
  %118 = vmatpush1.msra.mxu0 0.0
  %119 = vmatprep.subr.mxu0 0.0
  %120 = vmatpush1.msra.mxu0 0.0
  %121 = vmatprep.subr.mxu0 0.0
  %122 = vmatpush1.msra.mxu0 0.0
  %123 = vmatprep.subr.mxu0 0.0
  %124 = vmatpush1.msra.mxu0 0.0
  %125 = vmatprep.subr.mxu0 0.0
  %126 = vmatpush1.msra.mxu0 0.0
  %127 = vmatprep.subr.mxu0 0.0
  %128 = vmatpush1.msra.mxu0 0.0
  %129 = vmatprep.subr.mxu0 0.0
  %130 = vmatpush1.msra.mxu0 0.0
  %131 = vmatprep.subr.mxu0 0.0
  %132 = vmatpush1.msra.mxu0 0.0
  %133 = vmatprep.subr.mxu0 0.0
  %134 = vmatpush1.msra.mxu0 0.0
  %135 = vmatprep.mubr.f32.mxu0 0.0
  %136 = vmatmul.mubr.f32.gmra.mrb[0].mxu0 %v48
  %v137 = vpop.f32.mrb[0].mxu0
  %v138 = vadd.f32 %v44, %v137
  %v139 = vpop.f32.mrb[0].mxu0
  %140 = vmatprep.mubr.f32.mxu0 0.0
  %141 = vmatmul.mubr.f32.gmra.mrb[0].mxu0 %v51
  %v142 = vpop.f32.mrb[0].mxu0
  %v143 = vadd.f32 %v44, %v142
  %v144 = vpop.f32.mrb[0].mxu0
  %145 = vmatprep.mubr.f32.mxu0 0.0
  %146 = vmatmul.mubr.f32.gmra.mrb[0].mxu0 %v54
  %v147 = vpop.f32.mrb[0].mxu0
  %v148 = vadd.f32 %v44, %v147
  %v149 = vpop.f32.mrb[0].mxu0
  %150 = vmatprep.mubr.f32.mxu0 0.0
  %151 = vmatmul.mubr.f32.gmra.mrb[0].mxu0 %v57
  %v152 = vpop.f32.mrb[0].mxu0
  %v153 = vadd.f32 %v44, %v152
  %v154 = vpop.f32.mrb[0].mxu0
  %155 = vmatprep.mubr.f32.mxu0 0.0
  %156 = vmatmul.mubr.f32.gmra.mrb[0].mxu0 %v60
  %v157 = vpop.f32.mrb[0].mxu0
  %v158 = vadd.f32 %v44, %v157
  %v159 = vpop.f32.mrb[0].mxu0
  %160 = vmatprep.mubr.f32.mxu0 0.0
  %161 = vmatmul.mubr.f32.gmra.mrb[0].mxu0 %v63
  %v162 = vpop.f32.mrb[0].mxu0
  %v163 = vadd.f32 %v44, %v162
  %v164 = vpop.f32.mrb[0].mxu0
  %165 = vmatprep.mubr.f32.mxu0 0.0
  %166 = vmatmul.mubr.f32.gmra.mrb[0].mxu0 %v66
  %v167 = vpop.f32.mrb[0].mxu0
  %v168 = vadd.f32 %v44, %v167
  %v169 = vpop.f32.mrb[0].mxu0
  %170 = vmatprep.mubr.f32.mxu0 0.0
  %171 = vmatmul.mubr.f32.gmra.mrb[0].mxu0 %v69
  %v172 = vpop.f32.mrb[0].mxu0
  %v173 = vadd.f32 %v44, %v172
  %v174 = vpop.f32.mrb[0].mxu0
  %175 = vdwg.mxu0
  %v176 = vsub.f32 0.0, %v138
  %v177 = vsub.f32 0.0, %v143
  %v178 = vsub.f32 0.0, %v148
  %v179 = vsub.f32 0.0, %v153
  %v180 = vsub.f32 0.0, %v158
  %v181 = vsub.f32 0.0, %v163
  %v182 = vsub.f32 0.0, %v168
  %v183 = vsub.f32 0.0, %v173
  %v184 = vmul.f32 %v176, 1.442695
  %v185 = vpow.pop %v184
  %v186 = vmul.f32 %v177, 1.442695
  %v187 = vpow.pop %v186
  %v188 = vmul.f32 %v178, 1.442695
  %v189 = vpow.pop %v188
  %v190 = vmul.f32 %v179, 1.442695
  %v191 = vpow.pop %v190
  %v192 = vmul.f32 %v180, 1.442695
  %v193 = vpow.pop %v192
  %v194 = vmul.f32 %v181, 1.442695
  %v195 = vpow.pop %v194
  %v196 = vmul.f32 %v182, 1.442695
  %v197 = vpow.pop %v196
  %v198 = vmul.f32 %v183, 1.442695
  %v199 = vpow.pop %v198
  %v200 = vadd.f32 %v185, 1.0
  %v201 = vadd.f32 %v187, 1.0
  %v202 = vadd.f32 %v189, 1.0
  %v203 = vadd.f32 %v191, 1.0
  %v204 = vadd.f32 %v193, 1.0
  %v205 = vadd.f32 %v195, 1.0
  %v206 = vadd.f32 %v197, 1.0
  %v207 = vadd.f32 %v199, 1.0
  %v208 = vrcp.pop %v200
  %v209 = vrcp.pop %v201
  %v210 = vrcp.pop %v202
  %v211 = vrcp.pop %v203
  %v212 = vrcp.pop %v204
  %v213 = vrcp.pop %v205
  %v214 = vrcp.pop %v206
  %v215 = vrcp.pop %v207
  %v216 = vmul.f32 %v138, %v208
  %v217 = vmul.f32 %v143, %v209
  %v218 = vmul.f32 %v148, %v210
  %v219 = vmul.f32 %v153, %v211
  %v220 = vmul.f32 %v158, %v212
  %v221 = vmul.f32 %v163, %v213
  %v222 = vmul.f32 %v168, %v214
  %v223 = vmul.f32 %v173, %v215
  %v224 = vld [vmem:[%s4] sm:$0xff]
  %v225 = vld [vmem:[%s4 + $0x8] sm:$0xff]
  %v226 = vld [vmem:[%s4 + $0x10] sm:$0xff]
  %v227 = vld [vmem:[%s4 + $0x18] sm:$0xff]
  %v228 = vld [vmem:[%s4 + $0x20] sm:$0xff]
  %v229 = vld [vmem:[%s4 + $0x28] sm:$0xff]
  %v230 = vld [vmem:[%s4 + $0x30] sm:$0xff]
  %v231 = vld [vmem:[%s4 + $0x38] sm:$0xff]
  %v232 = vld [vmem:[%s5] sm:$0x1]
  %v234 = vlaneseq
  %v235 = vshrl.u32 %v234, 7
  %v236 = vsub.s32 0, %v235
  %v237 = vrot.slane %v232, %v236
  %vm239 = vcmask 523264
  %v241 = vsel %vm239, %v216, 0
  %v244 = vsel %vm239, %v217, 0
  %v247 = vsel %vm239, %v218, 0
  %v250 = vsel %vm239, %v219, 0
  %v253 = vsel %vm239, %v220, 0
  %v256 = vsel %vm239, %v221, 0
  %v259 = vsel %vm239, %v222, 0
  %v262 = vsel %vm239, %v223, 0
  %264 = vmatprep.subr.mxu0 0.0
  %265 = vmatpush1.msra.mxu0 %v224
  %266 = vmatprep.subr.mxu0 0.0
  %267 = vmatpush1.msra.mxu0 %v225
  %268 = vmatprep.subr.mxu0 0.0
  %269 = vmatpush1.msra.mxu0 %v226
  %270 = vmatprep.subr.mxu0 0.0
  %271 = vmatpush1.msra.mxu0 %v227
  %272 = vmatprep.subr.mxu0 0.0
  %273 = vmatpush1.msra.mxu0 %v228
  %274 = vmatprep.subr.mxu0 0.0
  %275 = vmatpush1.msra.mxu0 %v229
  %276 = vmatprep.subr.mxu0 0.0
  %277 = vmatpush1.msra.mxu0 %v230
  %278 = vmatprep.subr.mxu0 0.0
  %279 = vmatpush1.msra.mxu0 %v231
  %280 = vmatprep.subr.mxu0 0.0
  %281 = vmatpush1.msra.mxu0 0.0
  %282 = vmatprep.subr.mxu0 0.0
  %283 = vmatpush1.msra.mxu0 0.0
  %284 = vmatprep.subr.mxu0 0.0
  %285 = vmatpush1.msra.mxu0 0.0
  %286 = vmatprep.subr.mxu0 0.0
  %287 = vmatpush1.msra.mxu0 0.0
  %288 = vmatprep.subr.mxu0 0.0
  %289 = vmatpush1.msra.mxu0 0.0
  %290 = vmatprep.subr.mxu0 0.0
  %291 = vmatpush1.msra.mxu0 0.0
  %292 = vmatprep.subr.mxu0 0.0
  %293 = vmatpush1.msra.mxu0 0.0
  %294 = vmatprep.subr.mxu0 0.0
  %295 = vmatpush1.msra.mxu0 0.0
  %296 = vmatprep.subr.mxu0 0.0
  %297 = vmatpush1.msra.mxu0 0.0
  %298 = vmatprep.subr.mxu0 0.0
  %299 = vmatpush1.msra.mxu0 0.0
  %300 = vmatprep.subr.mxu0 0.0
  %301 = vmatpush1.msra.mxu0 0.0
  %302 = vmatprep.subr.mxu0 0.0
  %303 = vmatpush1.msra.mxu0 0.0
  %304 = vmatprep.subr.mxu0 0.0
  %305 = vmatpush1.msra.mxu0 0.0
  %306 = vmatprep.subr.mxu0 0.0
  %307 = vmatpush1.msra.mxu0 0.0
  %308 = vmatprep.subr.mxu0 0.0
  %309 = vmatpush1.msra.mxu0 0.0
  %310 = vmatprep.subr.mxu0 0.0
  %311 = vmatpush1.msra.mxu0 0.0
  %312 = vmatprep.subr.mxu0 0.0
  %313 = vmatpush1.msra.mxu0 0.0
  %314 = vmatprep.subr.mxu0 0.0
  %315 = vmatpush1.msra.mxu0 0.0
  %316 = vmatprep.subr.mxu0 0.0
  %317 = vmatpush1.msra.mxu0 0.0
  %318 = vmatprep.subr.mxu0 0.0
  %319 = vmatpush1.msra.mxu0 0.0
  %320 = vmatprep.subr.mxu0 0.0
  %321 = vmatpush1.msra.mxu0 0.0
  %322 = vmatprep.subr.mxu0 0.0
  %323 = vmatpush1.msra.mxu0 0.0
  %324 = vmatprep.subr.mxu0 0.0
  %325 = vmatpush1.msra.mxu0 0.0
  %326 = vmatprep.subr.mxu0 0.0
  %327 = vmatpush1.msra.mxu0 0.0
  %328 = vmatprep.mubr.f32.mxu0 0.0
  %329 = vmatmul.mubr.f32.gmra.mrb[0].mxu0 %v241
  %v330 = vpop.f32.mrb[0].mxu0
  %v331 = vadd.f32 %v237, %v330
  %v332 = vpop.f32.mrb[0].mxu0
  %333 = vmatprep.mubr.f32.mxu0 0.0
  %334 = vmatmul.mubr.f32.gmra.mrb[0].mxu0 %v244
  %v335 = vpop.f32.mrb[0].mxu0
  %v336 = vadd.f32 %v237, %v335
  %v337 = vpop.f32.mrb[0].mxu0
  %338 = vmatprep.mubr.f32.mxu0 0.0
  %339 = vmatmul.mubr.f32.gmra.mrb[0].mxu0 %v247
  %v340 = vpop.f32.mrb[0].mxu0
  %v341 = vadd.f32 %v237, %v340
  %v342 = vpop.f32.mrb[0].mxu0
  %343 = vmatprep.mubr.f32.mxu0 0.0
  %344 = vmatmul.mubr.f32.gmra.mrb[0].mxu0 %v250
  %v345 = vpop.f32.mrb[0].mxu0
  %v346 = vadd.f32 %v237, %v345
  %v347 = vpop.f32.mrb[0].mxu0
  %348 = vmatprep.mubr.f32.mxu0 0.0
  %349 = vmatmul.mubr.f32.gmra.mrb[0].mxu0 %v253
  %v350 = vpop.f32.mrb[0].mxu0
  %v351 = vadd.f32 %v237, %v350
  %v352 = vpop.f32.mrb[0].mxu0
  %353 = vmatprep.mubr.f32.mxu0 0.0
  %354 = vmatmul.mubr.f32.gmra.mrb[0].mxu0 %v256
  %v355 = vpop.f32.mrb[0].mxu0
  %v356 = vadd.f32 %v237, %v355
  %v357 = vpop.f32.mrb[0].mxu0
  %358 = vmatprep.mubr.f32.mxu0 0.0
  %359 = vmatmul.mubr.f32.gmra.mrb[0].mxu0 %v259
  %v360 = vpop.f32.mrb[0].mxu0
  %v361 = vadd.f32 %v237, %v360
  %v362 = vpop.f32.mrb[0].mxu0
  %363 = vmatprep.mubr.f32.mxu0 0.0
  %364 = vmatmul.mubr.f32.gmra.mrb[0].mxu0 %v262
  %v365 = vpop.f32.mrb[0].mxu0
  %v366 = vadd.f32 %v237, %v365
  %v367 = vpop.f32.mrb[0].mxu0
  %368 = vdwg.mxu0
  %v369 = vsub.f32 0.0, %v331
  %v370 = vsub.f32 0.0, %v336
  %v371 = vsub.f32 0.0, %v341
  %v372 = vsub.f32 0.0, %v346
  %v373 = vsub.f32 0.0, %v351
  %v374 = vsub.f32 0.0, %v356
  %v375 = vsub.f32 0.0, %v361
  %v376 = vsub.f32 0.0, %v366
  %v377 = vmul.f32 %v369, 1.442695
  %v378 = vpow.pop %v377
  %v379 = vmul.f32 %v370, 1.442695
  %v380 = vpow.pop %v379
  %v381 = vmul.f32 %v371, 1.442695
  %v382 = vpow.pop %v381
  %v383 = vmul.f32 %v372, 1.442695
  %v384 = vpow.pop %v383
  %v385 = vmul.f32 %v373, 1.442695
  %v386 = vpow.pop %v385
  %v387 = vmul.f32 %v374, 1.442695
  %v388 = vpow.pop %v387
  %v389 = vmul.f32 %v375, 1.442695
  %v390 = vpow.pop %v389
  %v391 = vmul.f32 %v376, 1.442695
  %v392 = vpow.pop %v391
  %v393 = vadd.f32 %v378, 1.0
  %v394 = vadd.f32 %v380, 1.0
  %v395 = vadd.f32 %v382, 1.0
  %v396 = vadd.f32 %v384, 1.0
  %v397 = vadd.f32 %v386, 1.0
  %v398 = vadd.f32 %v388, 1.0
  %v399 = vadd.f32 %v390, 1.0
  %v400 = vadd.f32 %v392, 1.0
  %v401 = vrcp.pop %v393
  %v402 = vrcp.pop %v394
  %v403 = vrcp.pop %v395
  %v404 = vrcp.pop %v396
  %v405 = vrcp.pop %v397
  %v406 = vrcp.pop %v398
  %v407 = vrcp.pop %v399
  %v408 = vrcp.pop %v400
  %v409 = vmul.f32 %v331, %v401
  %v410 = vmul.f32 %v336, %v402
  %v411 = vmul.f32 %v341, %v403
  %v412 = vmul.f32 %v346, %v404
  %v413 = vmul.f32 %v351, %v405
  %v414 = vmul.f32 %v356, %v406
  %v415 = vmul.f32 %v361, %v407
  %v416 = vmul.f32 %v366, %v408
  %v417 = vld [vmem:[%s6] sm:$0xff]
  %v418 = vld [vmem:[%s6 + $0x8] sm:$0xff]
  %v419 = vld [vmem:[%s6 + $0x10] sm:$0xff]
  %v420 = vld [vmem:[%s6 + $0x18] sm:$0xff]
  %v421 = vld [vmem:[%s6 + $0x20] sm:$0xff]
  %v422 = vld [vmem:[%s6 + $0x28] sm:$0xff]
  %v423 = vld [vmem:[%s6 + $0x30] sm:$0xff]
  %v424 = vld [vmem:[%s6 + $0x38] sm:$0xff]
  %v425 = vld [vmem:[%s6 + $0x40] sm:$0xff]
  %v426 = vld [vmem:[%s6 + $0x48] sm:$0xff]
  %v427 = vld [vmem:[%s6 + $0x50] sm:$0xff]
  %v428 = vld [vmem:[%s6 + $0x58] sm:$0xff]
  %v429 = vld [vmem:[%s6 + $0x60] sm:$0xff]
  %v430 = vld [vmem:[%s6 + $0x68] sm:$0xff]
  %v431 = vld [vmem:[%s6 + $0x70] sm:$0xff]
  %v432 = vld [vmem:[%s6 + $0x78] sm:$0xff]
  %v433 = vld [vmem:[%s6 + $0x80] sm:$0xff]
  %v434 = vld [vmem:[%s6 + $0x88] sm:$0xff]
  %v435 = vld [vmem:[%s6 + $0x90] sm:$0xff]
  %v436 = vld [vmem:[%s6 + $0x98] sm:$0xff]
  %v437 = vld [vmem:[%s6 + $0xa0] sm:$0xff]
  %v438 = vld [vmem:[%s6 + $0xa8] sm:$0xff]
  %v439 = vld [vmem:[%s6 + $0xb0] sm:$0xff]
  %v440 = vld [vmem:[%s6 + $0xb8] sm:$0xff]
  %v441 = vld [vmem:[%s6 + $0xc0] sm:$0xff]
  %v442 = vld [vmem:[%s6 + $0xc8] sm:$0xff]
  %v443 = vld [vmem:[%s6 + $0xd0] sm:$0xff]
  %v444 = vld [vmem:[%s6 + $0xd8] sm:$0xff]
  %v445 = vld [vmem:[%s6 + $0xe0] sm:$0xff]
  %v446 = vld [vmem:[%s6 + $0xe8] sm:$0xff]
  %v447 = vld [vmem:[%s6 + $0xf0] sm:$0xff]
  %v448 = vld [vmem:[%s6 + $0xf8] sm:$0xff]
  %v449 = vld [vmem:[%s7] sm:$0x3]
  %v451 = vlaneseq
  %v452 = vshrl.u32 %v451, 7
  %v453 = vsub.s32 0, %v452
  %v454 = vrot.slane %v449, %v453
  %v455 = vlaneseq
  %v456 = vshrl.u32 %v455, 7
  %v457 = vsub.s32 1, %v456
  %v458 = vrot.slane %v449, %v457
  %461 = vmatprep.subr.mxu0 %v418
  %462 = vmatpush1.msra.mxu0 %v417
  %463 = vmatprep.subr.mxu0 %v420
  %464 = vmatpush1.msra.mxu0 %v419
  %465 = vmatprep.subr.mxu0 %v422
  %466 = vmatpush1.msra.mxu0 %v421
  %467 = vmatprep.subr.mxu0 %v424
  %468 = vmatpush1.msra.mxu0 %v423
  %469 = vmatprep.subr.mxu0 %v426
  %470 = vmatpush1.msra.mxu0 %v425
  %471 = vmatprep.subr.mxu0 %v428
  %472 = vmatpush1.msra.mxu0 %v427
  %473 = vmatprep.subr.mxu0 %v430
  %474 = vmatpush1.msra.mxu0 %v429
  %475 = vmatprep.subr.mxu0 %v432
  %476 = vmatpush1.msra.mxu0 %v431
  %477 = vmatprep.subr.mxu0 %v434
  %478 = vmatpush1.msra.mxu0 %v433
  %479 = vmatprep.subr.mxu0 %v436
  %480 = vmatpush1.msra.mxu0 %v435
  %481 = vmatprep.subr.mxu0 %v438
  %482 = vmatpush1.msra.mxu0 %v437
  %483 = vmatprep.subr.mxu0 %v440
  %484 = vmatpush1.msra.mxu0 %v439
  %485 = vmatprep.subr.mxu0 %v442
  %486 = vmatpush1.msra.mxu0 %v441
  %487 = vmatprep.subr.mxu0 %v444
  %488 = vmatpush1.msra.mxu0 %v443
  %489 = vmatprep.subr.mxu0 %v446
  %490 = vmatpush1.msra.mxu0 %v445
  %491 = vmatprep.subr.mxu0 %v448
  %492 = vmatpush1.msra.mxu0 %v447
  %493 = vmatprep.subr.mxu0 0.0
  %494 = vmatpush1.msra.mxu0 0.0
  %495 = vmatprep.subr.mxu0 0.0
  %496 = vmatpush1.msra.mxu0 0.0
  %497 = vmatprep.subr.mxu0 0.0
  %498 = vmatpush1.msra.mxu0 0.0
  %499 = vmatprep.subr.mxu0 0.0
  %500 = vmatpush1.msra.mxu0 0.0
  %501 = vmatprep.subr.mxu0 0.0
  %502 = vmatpush1.msra.mxu0 0.0
  %503 = vmatprep.subr.mxu0 0.0
  %504 = vmatpush1.msra.mxu0 0.0
  %505 = vmatprep.subr.mxu0 0.0
  %506 = vmatpush1.msra.mxu0 0.0
  %507 = vmatprep.subr.mxu0 0.0
  %508 = vmatpush1.msra.mxu0 0.0
  %509 = vmatprep.subr.mxu0 0.0
  %510 = vmatpush1.msra.mxu0 0.0
  %511 = vmatprep.subr.mxu0 0.0
  %512 = vmatpush1.msra.mxu0 0.0
  %513 = vmatprep.subr.mxu0 0.0
  %514 = vmatpush1.msra.mxu0 0.0
  %515 = vmatprep.subr.mxu0 0.0
  %516 = vmatpush1.msra.mxu0 0.0
  %517 = vmatprep.subr.mxu0 0.0
  %518 = vmatpush1.msra.mxu0 0.0
  %519 = vmatprep.subr.mxu0 0.0
  %520 = vmatpush1.msra.mxu0 0.0
  %521 = vmatprep.subr.mxu0 0.0
  %522 = vmatpush1.msra.mxu0 0.0
  %523 = vmatprep.subr.mxu0 0.0
  %524 = vmatpush1.msra.mxu0 0.0
  %525 = vmatprep.mubr.f32.mxu0 0.0
  %526 = vmatmul.mubr.f32.gmra.mrb[0].mxu0 %v409
  %v527 = vpop.f32.mrb[0].mxu0
  %v528 = vadd.f32 %v454, %v527
  %v529 = vpop.f32.mrb[0].mxu0
  %v530 = vadd.f32 %v458, %v529
  %531 = vmatprep.mubr.f32.mxu0 0.0
  %532 = vmatmul.mubr.f32.gmra.mrb[0].mxu0 %v410
  %v533 = vpop.f32.mrb[0].mxu0
  %v534 = vadd.f32 %v454, %v533
  %v535 = vpop.f32.mrb[0].mxu0
  %v536 = vadd.f32 %v458, %v535
  %537 = vmatprep.mubr.f32.mxu0 0.0
  %538 = vmatmul.mubr.f32.gmra.mrb[0].mxu0 %v411
  %v539 = vpop.f32.mrb[0].mxu0
  %v540 = vadd.f32 %v454, %v539
  %v541 = vpop.f32.mrb[0].mxu0
  %v542 = vadd.f32 %v458, %v541
  %543 = vmatprep.mubr.f32.mxu0 0.0
  %544 = vmatmul.mubr.f32.gmra.mrb[0].mxu0 %v412
  %v545 = vpop.f32.mrb[0].mxu0
  %v546 = vadd.f32 %v454, %v545
  %v547 = vpop.f32.mrb[0].mxu0
  %v548 = vadd.f32 %v458, %v547
  %549 = vmatprep.mubr.f32.mxu0 0.0
  %550 = vmatmul.mubr.f32.gmra.mrb[0].mxu0 %v413
  %v551 = vpop.f32.mrb[0].mxu0
  %v552 = vadd.f32 %v454, %v551
  %v553 = vpop.f32.mrb[0].mxu0
  %v554 = vadd.f32 %v458, %v553
  %555 = vmatprep.mubr.f32.mxu0 0.0
  %556 = vmatmul.mubr.f32.gmra.mrb[0].mxu0 %v414
  %v557 = vpop.f32.mrb[0].mxu0
  %v558 = vadd.f32 %v454, %v557
  %v559 = vpop.f32.mrb[0].mxu0
  %v560 = vadd.f32 %v458, %v559
  %561 = vmatprep.mubr.f32.mxu0 0.0
  %562 = vmatmul.mubr.f32.gmra.mrb[0].mxu0 %v415
  %v563 = vpop.f32.mrb[0].mxu0
  %v564 = vadd.f32 %v454, %v563
  %v565 = vpop.f32.mrb[0].mxu0
  %v566 = vadd.f32 %v458, %v565
  %567 = vmatprep.mubr.f32.mxu0 0.0
  %568 = vmatmul.mubr.f32.gmra.mrb[0].mxu0 %v416
  %v569 = vpop.f32.mrb[0].mxu0
  %v570 = vadd.f32 %v454, %v569
  %v571 = vpop.f32.mrb[0].mxu0
  %v572 = vadd.f32 %v458, %v571
  %573 = vdwg.mxu0
  %v574 = vsub.f32 0.0, %v528
  %v575 = vsub.f32 0.0, %v530
  %v576 = vsub.f32 0.0, %v534
  %v577 = vsub.f32 0.0, %v536
  %v578 = vsub.f32 0.0, %v540
  %v579 = vsub.f32 0.0, %v542
  %v580 = vsub.f32 0.0, %v546
  %v581 = vsub.f32 0.0, %v548
  %v582 = vsub.f32 0.0, %v552
  %v583 = vsub.f32 0.0, %v554
  %v584 = vsub.f32 0.0, %v558
  %v585 = vsub.f32 0.0, %v560
  %v586 = vsub.f32 0.0, %v564
  %v587 = vsub.f32 0.0, %v566
  %v588 = vsub.f32 0.0, %v570
  %v589 = vsub.f32 0.0, %v572
  %v590 = vmul.f32 %v574, 1.442695
  %v591 = vpow.pop %v590
  %v592 = vmul.f32 %v575, 1.442695
  %v593 = vpow.pop %v592
  %v594 = vmul.f32 %v576, 1.442695
  %v595 = vpow.pop %v594
  %v596 = vmul.f32 %v577, 1.442695
  %v597 = vpow.pop %v596
  %v598 = vmul.f32 %v578, 1.442695
  %v599 = vpow.pop %v598
  %v600 = vmul.f32 %v579, 1.442695
  %v601 = vpow.pop %v600
  %v602 = vmul.f32 %v580, 1.442695
  %v603 = vpow.pop %v602
  %v604 = vmul.f32 %v581, 1.442695
  %v605 = vpow.pop %v604
  %v606 = vmul.f32 %v582, 1.442695
  %v607 = vpow.pop %v606
  %v608 = vmul.f32 %v583, 1.442695
  %v609 = vpow.pop %v608
  %v610 = vmul.f32 %v584, 1.442695
  %v611 = vpow.pop %v610
  %v612 = vmul.f32 %v585, 1.442695
  %v613 = vpow.pop %v612
  %v614 = vmul.f32 %v586, 1.442695
  %v615 = vpow.pop %v614
  %v616 = vmul.f32 %v587, 1.442695
  %v617 = vpow.pop %v616
  %v618 = vmul.f32 %v588, 1.442695
  %v619 = vpow.pop %v618
  %v620 = vmul.f32 %v589, 1.442695
  %v621 = vpow.pop %v620
  %v622 = vadd.f32 %v591, 1.0
  %v623 = vadd.f32 %v593, 1.0
  %v624 = vadd.f32 %v595, 1.0
  %v625 = vadd.f32 %v597, 1.0
  %v626 = vadd.f32 %v599, 1.0
  %v627 = vadd.f32 %v601, 1.0
  %v628 = vadd.f32 %v603, 1.0
  %v629 = vadd.f32 %v605, 1.0
  %v630 = vadd.f32 %v607, 1.0
  %v631 = vadd.f32 %v609, 1.0
  %v632 = vadd.f32 %v611, 1.0
  %v633 = vadd.f32 %v613, 1.0
  %v634 = vadd.f32 %v615, 1.0
  %v635 = vadd.f32 %v617, 1.0
  %v636 = vadd.f32 %v619, 1.0
  %v637 = vadd.f32 %v621, 1.0
  %v638 = vrcp.pop %v622
  %v639 = vrcp.pop %v623
  %v640 = vrcp.pop %v624
  %v641 = vrcp.pop %v625
  %v642 = vrcp.pop %v626
  %v643 = vrcp.pop %v627
  %v644 = vrcp.pop %v628
  %v645 = vrcp.pop %v629
  %v646 = vrcp.pop %v630
  %v647 = vrcp.pop %v631
  %v648 = vrcp.pop %v632
  %v649 = vrcp.pop %v633
  %v650 = vrcp.pop %v634
  %v651 = vrcp.pop %v635
  %v652 = vrcp.pop %v636
  %v653 = vrcp.pop %v637
  %v654 = vmul.f32 %v528, %v638
  %v655 = vmul.f32 %v530, %v639
  %v656 = vmul.f32 %v534, %v640
  %v657 = vmul.f32 %v536, %v641
  %v658 = vmul.f32 %v540, %v642
  %v659 = vmul.f32 %v542, %v643
  %v660 = vmul.f32 %v546, %v644
  %v661 = vmul.f32 %v548, %v645
  %v662 = vmul.f32 %v552, %v646
  %v663 = vmul.f32 %v554, %v647
  %v664 = vmul.f32 %v558, %v648
  %v665 = vmul.f32 %v560, %v649
  %v666 = vmul.f32 %v564, %v650
  %v667 = vmul.f32 %v566, %v651
  %v668 = vmul.f32 %v570, %v652
  %v669 = vmul.f32 %v572, %v653
  %v670 = vld [vmem:[%s1] sm:$0xff]
  %v671 = vld [vmem:[%s1 + $0x8] sm:$0xff]
  %v672 = vld [vmem:[%s1 + $0x10] sm:$0xff]
  %v673 = vld [vmem:[%s1 + $0x18] sm:$0xff]
  %v674 = vld [vmem:[%s1 + $0x20] sm:$0xff]
  %v675 = vld [vmem:[%s1 + $0x28] sm:$0xff]
  %v676 = vld [vmem:[%s1 + $0x30] sm:$0xff]
  %v677 = vld [vmem:[%s1 + $0x38] sm:$0xff]
  %679 = vset.pattern.permute.xlu0 0
  %680 = vperm.xlu0 %679, %v670
  %v681 = vpop.permute.xlu0 %680
  %684 = vset.pattern.permute.xlu0 0
  %685 = vperm.xlu0 %684, %v671
  %v686 = vpop.permute.xlu0 %685
  %689 = vset.pattern.permute.xlu0 0
  %690 = vperm.xlu0 %689, %v672
  %v691 = vpop.permute.xlu0 %690
  %694 = vset.pattern.permute.xlu0 0
  %695 = vperm.xlu0 %694, %v673
  %v696 = vpop.permute.xlu0 %695
  %699 = vset.pattern.permute.xlu0 0
  %700 = vperm.xlu0 %699, %v674
  %v701 = vpop.permute.xlu0 %700
  %704 = vset.pattern.permute.xlu0 0
  %705 = vperm.xlu0 %704, %v675
  %v706 = vpop.permute.xlu0 %705
  %709 = vset.pattern.permute.xlu0 0
  %710 = vperm.xlu0 %709, %v676
  %v711 = vpop.permute.xlu0 %710
  %714 = vset.pattern.permute.xlu0 0
  %715 = vperm.xlu0 %714, %v677
  %v716 = vpop.permute.xlu0 %715
  %v718 = vmul.f32 %v654, %v681
  %v719 = vmul.f32 %v655, %v681
  %v720 = vmul.f32 %v656, %v686
  %v721 = vmul.f32 %v657, %v686
  %v722 = vmul.f32 %v658, %v691
  %v723 = vmul.f32 %v659, %v691
  %v724 = vmul.f32 %v660, %v696
  %v725 = vmul.f32 %v661, %v696
  %v726 = vmul.f32 %v662, %v701
  %v727 = vmul.f32 %v663, %v701
  %v728 = vmul.f32 %v664, %v706
  %v729 = vmul.f32 %v665, %v706
  %v730 = vmul.f32 %v666, %v711
  %v731 = vmul.f32 %v667, %v711
  %v732 = vmul.f32 %v668, %v716
  %v733 = vmul.f32 %v669, %v716
  %734 = vst [vmem:[%s8] sm:$0xff] %v718
  %735 = vst.msk [vmem:[%s8 + $0x8] sm:$0xff] %vm239, %v719
  %736 = vst [vmem:[%s8 + $0x10] sm:$0xff] %v720
  %737 = vst.msk [vmem:[%s8 + $0x18] sm:$0xff] %vm239, %v721
  %738 = vst [vmem:[%s8 + $0x20] sm:$0xff] %v722
  %739 = vst.msk [vmem:[%s8 + $0x28] sm:$0xff] %vm239, %v723
  %740 = vst [vmem:[%s8 + $0x30] sm:$0xff] %v724
  %741 = vst.msk [vmem:[%s8 + $0x38] sm:$0xff] %vm239, %v725
  %742 = vst [vmem:[%s8 + $0x40] sm:$0xff] %v726
  %743 = vst.msk [vmem:[%s8 + $0x48] sm:$0xff] %vm239, %v727
  %744 = vst [vmem:[%s8 + $0x50] sm:$0xff] %v728
  %745 = vst.msk [vmem:[%s8 + $0x58] sm:$0xff] %vm239, %v729
  %746 = vst [vmem:[%s8 + $0x60] sm:$0xff] %v730
  %747 = vst.msk [vmem:[%s8 + $0x68] sm:$0xff] %vm239, %v731
  %748 = vst [vmem:[%s8 + $0x70] sm:$0xff] %v732
  %749 = vst.msk [vmem:[%s8 + $0x78] sm:$0xff] %vm239, %v733
  // Predicated region
  $region34: #{tensornet_forward.10} parent=0 // pred_check
    _
  $region35: #{tensornet_forward.10} parent=0 // pred_check_branch
    %751 = sbr.rel (0) target = $region37
  $region36: #{tensornet_forward.10} parent=0 // pred_region
    _
  $region37: #{tensornet_forward.10} parent=0 // pred_fallthru
    _
  // Predicated region
  $region38: #{tensornet_forward.10} parent=0 // pred_check
    _
  $region39: #{tensornet_forward.10} parent=0 // pred_check_branch
    %753 = sbr.rel (0) target = $region41
  $region40: #{tensornet_forward.10} parent=0 // pred_region
    _
  $region41: #{tensornet_forward.10} parent=0 // pred_fallthru
    _

// kernel: tensornet_forward.8
$region0: #{tensornet_forward.8}
  #allocation0 [shape = 'u32[]', space=smem, size = 0x4, offset = 0x4, fixed_abs, tag = 'smem constant byte address 0x4 - core index']
  #allocation1 [shape = 'u32[144,128]{1,0:T(1,128)}', space=vmem, size = 0x12000, scoped, tag = 'internal scratch']
  %s0 = inlined_call_operand.vmem [shape: f32[64,80], index: 0, kind: input, shape index: {}]
  %s1 = inlined_call_operand.vmem [shape: f32[64,1], index: 1, kind: input, shape index: {}]
  %s2 = inlined_call_operand.vmem [shape: f32[64,3], index: 2, kind: input, shape index: {}]
  %s3 = inlined_call_operand.vmem [shape: f32[80,128], index: 3, kind: input, shape index: {}]
  %s4 = inlined_call_operand.vmem [shape: f32[1,128], index: 4, kind: input, shape index: {}]
  %s5 = inlined_call_operand.vmem [shape: f32[64,320], index: 5, kind: output, shape index: {}]
  %s6 = sld [smem:[#allocation0]]
  $region30: #{tensornet_forward.8} parent=0
    _
  %s8 = ssub.s32 1, %s6
  %s9 = scalar_select 0, %s8, %s6
  // Predicated region
  $region2: #{tensornet_forward.8} parent=0 // pred_check
    _
  $region3: #{tensornet_forward.8} parent=0 // pred_check_branch
    %11 = sbr.rel (0) target = $region5
  $region4: #{tensornet_forward.8} parent=0 // pred_region
    _
  $region5: #{tensornet_forward.8} parent=0 // pred_fallthru
    _
  // Predicated region
  $region6: #{tensornet_forward.8} parent=0 // pred_check
    _
  $region7: #{tensornet_forward.8} parent=0 // pred_check_branch
    %13 = sbr.rel (0) target = $region9
  $region8: #{tensornet_forward.8} parent=0 // pred_region
    _
  $region9: #{tensornet_forward.8} parent=0 // pred_fallthru
    _
  // Predicated region
  $region10: #{tensornet_forward.8} parent=0 // pred_check
    _
  $region11: #{tensornet_forward.8} parent=0 // pred_check_branch
    %15 = sbr.rel (0) target = $region13
  $region12: #{tensornet_forward.8} parent=0 // pred_region
    _
  $region13: #{tensornet_forward.8} parent=0 // pred_fallthru
    _
  // Predicated region
  $region14: #{tensornet_forward.8} parent=0 // pred_check
    _
  $region15: #{tensornet_forward.8} parent=0 // pred_check_branch
    %17 = sbr.rel (0) target = $region17
  $region16: #{tensornet_forward.8} parent=0 // pred_region
    _
  $region17: #{tensornet_forward.8} parent=0 // pred_fallthru
    _
  // Predicated region
  $region18: #{tensornet_forward.8} parent=0 // pred_check
    _
  $region19: #{tensornet_forward.8} parent=0 // pred_check_branch
    %19 = sbr.rel (0) target = $region21
  $region20: #{tensornet_forward.8} parent=0 // pred_region
    _
  $region21: #{tensornet_forward.8} parent=0 // pred_fallthru
    _
  %v20 = vld [vmem:[%s0] sm:$0xff]
  %v21 = vld [vmem:[%s0 + $0x8] sm:$0xff]
  %v22 = vld [vmem:[%s0 + $0x10] sm:$0xff]
  %v23 = vld [vmem:[%s0 + $0x18] sm:$0xff]
  %v24 = vld [vmem:[%s0 + $0x20] sm:$0xff]
  %v25 = vld [vmem:[%s0 + $0x28] sm:$0xff]
  %v26 = vld [vmem:[%s0 + $0x30] sm:$0xff]
  %v27 = vld [vmem:[%s0 + $0x38] sm:$0xff]
  %v28 = vld [vmem:[%s3] sm:$0xff]
  %v29 = vld [vmem:[%s3 + $0x8] sm:$0xff]
  %v30 = vld [vmem:[%s3 + $0x10] sm:$0xff]
  %v31 = vld [vmem:[%s3 + $0x18] sm:$0xff]
  %v32 = vld [vmem:[%s3 + $0x20] sm:$0xff]
  %v33 = vld [vmem:[%s3 + $0x28] sm:$0xff]
  %v34 = vld [vmem:[%s3 + $0x30] sm:$0xff]
  %v35 = vld [vmem:[%s3 + $0x38] sm:$0xff]
  %v36 = vld [vmem:[%s3 + $0x40] sm:$0xff]
  %v37 = vld [vmem:[%s3 + $0x48] sm:$0xff]
  %v38 = vld [vmem:[%s4] sm:$0x1]
  %v40 = vlaneseq
  %v41 = vshrl.u32 %v40, 7
  %v42 = vsub.s32 0, %v41
  %v43 = vrot.slane %v38, %v42
  %vm45 = vcmask 654336
  %v47 = vsel %vm45, %v20, 0
  %v50 = vsel %vm45, %v21, 0
  %v53 = vsel %vm45, %v22, 0
  %v56 = vsel %vm45, %v23, 0
  %v59 = vsel %vm45, %v24, 0
  %v62 = vsel %vm45, %v25, 0
  %v65 = vsel %vm45, %v26, 0
  %v68 = vsel %vm45, %v27, 0
  %70 = vmatprep.subr.mxu0 0.0
  %71 = vmatpush1.msra.mxu0 %v28
  %72 = vmatprep.subr.mxu0 0.0
  %73 = vmatpush1.msra.mxu0 %v29
  %74 = vmatprep.subr.mxu0 0.0
  %75 = vmatpush1.msra.mxu0 %v30
  %76 = vmatprep.subr.mxu0 0.0
  %77 = vmatpush1.msra.mxu0 %v31
  %78 = vmatprep.subr.mxu0 0.0
  %79 = vmatpush1.msra.mxu0 %v32
  %80 = vmatprep.subr.mxu0 0.0
  %81 = vmatpush1.msra.mxu0 %v33
  %82 = vmatprep.subr.mxu0 0.0
  %83 = vmatpush1.msra.mxu0 %v34
  %84 = vmatprep.subr.mxu0 0.0
  %85 = vmatpush1.msra.mxu0 %v35
  %86 = vmatprep.subr.mxu0 0.0
  %87 = vmatpush1.msra.mxu0 %v36
  %88 = vmatprep.subr.mxu0 0.0
  %89 = vmatpush1.msra.mxu0 %v37
  %90 = vmatprep.subr.mxu0 0.0
  %91 = vmatpush1.msra.mxu0 0.0
  %92 = vmatprep.subr.mxu0 0.0
  %93 = vmatpush1.msra.mxu0 0.0
  %94 = vmatprep.subr.mxu0 0.0
  %95 = vmatpush1.msra.mxu0 0.0
  %96 = vmatprep.subr.mxu0 0.0
  %97 = vmatpush1.msra.mxu0 0.0
  %98 = vmatprep.subr.mxu0 0.0
  %99 = vmatpush1.msra.mxu0 0.0
  %100 = vmatprep.subr.mxu0 0.0
  %101 = vmatpush1.msra.mxu0 0.0
  %102 = vmatprep.subr.mxu0 0.0
  %103 = vmatpush1.msra.mxu0 0.0
  %104 = vmatprep.subr.mxu0 0.0
  %105 = vmatpush1.msra.mxu0 0.0
  %106 = vmatprep.subr.mxu0 0.0
  %107 = vmatpush1.msra.mxu0 0.0
  %108 = vmatprep.subr.mxu0 0.0
  %109 = vmatpush1.msra.mxu0 0.0
  %110 = vmatprep.subr.mxu0 0.0
  %111 = vmatpush1.msra.mxu0 0.0
  %112 = vmatprep.subr.mxu0 0.0
  %113 = vmatpush1.msra.mxu0 0.0
  %114 = vmatprep.subr.mxu0 0.0
  %115 = vmatpush1.msra.mxu0 0.0
  %116 = vmatprep.subr.mxu0 0.0
  %117 = vmatpush1.msra.mxu0 0.0
  %118 = vmatprep.subr.mxu0 0.0
  %119 = vmatpush1.msra.mxu0 0.0
  %120 = vmatprep.subr.mxu0 0.0
  %121 = vmatpush1.msra.mxu0 0.0
  %122 = vmatprep.subr.mxu0 0.0
  %123 = vmatpush1.msra.mxu0 0.0
  %124 = vmatprep.subr.mxu0 0.0
  %125 = vmatpush1.msra.mxu0 0.0
  %126 = vmatprep.subr.mxu0 0.0
  %127 = vmatpush1.msra.mxu0 0.0
  %128 = vmatprep.subr.mxu0 0.0
  %129 = vmatpush1.msra.mxu0 0.0
  %130 = vmatprep.subr.mxu0 0.0
  %131 = vmatpush1.msra.mxu0 0.0
  %132 = vmatprep.subr.mxu0 0.0
  %133 = vmatpush1.msra.mxu0 0.0
  %134 = vmatprep.mubr.f32.mxu0 0.0
  %135 = vmatmul.mubr.f32.gmra.mrb[0].mxu0 %v47
  %v136 = vpop.f32.mrb[0].mxu0
  %v137 = vadd.f32 %v43, %v136
  %v138 = vpop.f32.mrb[0].mxu0
  %139 = vmatprep.mubr.f32.mxu0 0.0
  %140 = vmatmul.mubr.f32.gmra.mrb[0].mxu0 %v50
  %v141 = vpop.f32.mrb[0].mxu0
  %v142 = vadd.f32 %v43, %v141
  %v143 = vpop.f32.mrb[0].mxu0
  %144 = vmatprep.mubr.f32.mxu0 0.0
  %145 = vmatmul.mubr.f32.gmra.mrb[0].mxu0 %v53
  %v146 = vpop.f32.mrb[0].mxu0
  %v147 = vadd.f32 %v43, %v146
  %v148 = vpop.f32.mrb[0].mxu0
  %149 = vmatprep.mubr.f32.mxu0 0.0
  %150 = vmatmul.mubr.f32.gmra.mrb[0].mxu0 %v56
  %v151 = vpop.f32.mrb[0].mxu0
  %v152 = vadd.f32 %v43, %v151
  %v153 = vpop.f32.mrb[0].mxu0
  %154 = vmatprep.mubr.f32.mxu0 0.0
  %155 = vmatmul.mubr.f32.gmra.mrb[0].mxu0 %v59
  %v156 = vpop.f32.mrb[0].mxu0
  %v157 = vadd.f32 %v43, %v156
  %v158 = vpop.f32.mrb[0].mxu0
  %159 = vmatprep.mubr.f32.mxu0 0.0
  %160 = vmatmul.mubr.f32.gmra.mrb[0].mxu0 %v62
  %v161 = vpop.f32.mrb[0].mxu0
  %v162 = vadd.f32 %v43, %v161
  %v163 = vpop.f32.mrb[0].mxu0
  %164 = vmatprep.mubr.f32.mxu0 0.0
  %165 = vmatmul.mubr.f32.gmra.mrb[0].mxu0 %v65
  %v166 = vpop.f32.mrb[0].mxu0
  %v167 = vadd.f32 %v43, %v166
  %v168 = vpop.f32.mrb[0].mxu0
  %169 = vmatprep.mubr.f32.mxu0 0.0
  %170 = vmatmul.mubr.f32.gmra.mrb[0].mxu0 %v68
  %v171 = vpop.f32.mrb[0].mxu0
  %v172 = vadd.f32 %v43, %v171
  %v173 = vpop.f32.mrb[0].mxu0
  %174 = vdwg.mxu0
  %v175 = vld [vmem:[%s1] sm:$0xff]
  %v176 = vld [vmem:[%s1 + $0x8] sm:$0xff]
  %v177 = vld [vmem:[%s1 + $0x10] sm:$0xff]
  %v178 = vld [vmem:[%s1 + $0x18] sm:$0xff]
  %v179 = vld [vmem:[%s1 + $0x20] sm:$0xff]
  %v180 = vld [vmem:[%s1 + $0x28] sm:$0xff]
  %v181 = vld [vmem:[%s1 + $0x30] sm:$0xff]
  %v182 = vld [vmem:[%s1 + $0x38] sm:$0xff]
  %184 = vset.pattern.permute.xlu0 0
  %185 = vperm.xlu0 %184, %v175
  %v186 = vpop.permute.xlu0 %185
  %189 = vset.pattern.permute.xlu0 0
  %190 = vperm.xlu0 %189, %v176
  %v191 = vpop.permute.xlu0 %190
  %194 = vset.pattern.permute.xlu0 0
  %195 = vperm.xlu0 %194, %v177
  %v196 = vpop.permute.xlu0 %195
  %199 = vset.pattern.permute.xlu0 0
  %200 = vperm.xlu0 %199, %v178
  %v201 = vpop.permute.xlu0 %200
  %204 = vset.pattern.permute.xlu0 0
  %205 = vperm.xlu0 %204, %v179
  %v206 = vpop.permute.xlu0 %205
  %209 = vset.pattern.permute.xlu0 0
  %210 = vperm.xlu0 %209, %v180
  %v211 = vpop.permute.xlu0 %210
  %214 = vset.pattern.permute.xlu0 0
  %215 = vperm.xlu0 %214, %v181
  %v216 = vpop.permute.xlu0 %215
  %219 = vset.pattern.permute.xlu0 0
  %220 = vperm.xlu0 %219, %v182
  %v221 = vpop.permute.xlu0 %220
  %v223 = vmul.f32 %v186, %v137
  %v224 = vmul.f32 %v191, %v142
  %v225 = vmul.f32 %v196, %v147
  %v226 = vmul.f32 %v201, %v152
  %v227 = vmul.f32 %v206, %v157
  %v228 = vmul.f32 %v211, %v162
  %v229 = vmul.f32 %v216, %v167
  %v230 = vmul.f32 %v221, %v172
  %239 = vrot.lane.b32.xlu0 %v223, 32
  %v240 = vpop.permute.xlu0 %239
  %241 = vrot.lane.b32.xlu0 %v224, 32
  %v242 = vpop.permute.xlu0 %241
  %243 = vrot.lane.b32.xlu0 %v225, 32
  %v244 = vpop.permute.xlu0 %243
  %245 = vrot.lane.b32.xlu0 %v226, 32
  %v246 = vpop.permute.xlu0 %245
  %247 = vrot.lane.b32.xlu0 %v227, 32
  %v248 = vpop.permute.xlu0 %247
  %249 = vrot.lane.b32.xlu0 %v228, 32
  %v250 = vpop.permute.xlu0 %249
  %251 = vrot.lane.b32.xlu0 %v229, 32
  %v252 = vpop.permute.xlu0 %251
  %253 = vrot.lane.b32.xlu0 %v230, 32
  %v254 = vpop.permute.xlu0 %253
  %v263 = vmul.f32 %v137, %v240
  %v264 = vmul.f32 %v142, %v242
  %v265 = vmul.f32 %v147, %v244
  %v266 = vmul.f32 %v152, %v246
  %v267 = vmul.f32 %v157, %v248
  %v268 = vmul.f32 %v162, %v250
  %v269 = vmul.f32 %v167, %v252
  %v270 = vmul.f32 %v172, %v254
  %271 = vrot.lane.b32.xlu0 %v223, 64
  %v272 = vpop.permute.xlu0 %271
  %273 = vrot.lane.b32.xlu0 %v224, 64
  %v274 = vpop.permute.xlu0 %273
  %275 = vrot.lane.b32.xlu0 %v225, 64
  %v276 = vpop.permute.xlu0 %275
  %277 = vrot.lane.b32.xlu0 %v226, 64
  %v278 = vpop.permute.xlu0 %277
  %279 = vrot.lane.b32.xlu0 %v227, 64
  %v280 = vpop.permute.xlu0 %279
  %281 = vrot.lane.b32.xlu0 %v228, 64
  %v282 = vpop.permute.xlu0 %281
  %283 = vrot.lane.b32.xlu0 %v229, 64
  %v284 = vpop.permute.xlu0 %283
  %285 = vrot.lane.b32.xlu0 %v230, 64
  %v286 = vpop.permute.xlu0 %285
  %v295 = vmul.f32 %v137, %v272
  %v296 = vmul.f32 %v142, %v274
  %v297 = vmul.f32 %v147, %v276
  %v298 = vmul.f32 %v152, %v278
  %v299 = vmul.f32 %v157, %v280
  %v300 = vmul.f32 %v162, %v282
  %v301 = vmul.f32 %v167, %v284
  %v302 = vmul.f32 %v172, %v286
  %303 = vrot.lane.b32.xlu0 %v223, 96
  %v304 = vpop.permute.xlu0 %303
  %305 = vrot.lane.b32.xlu0 %v224, 96
  %v306 = vpop.permute.xlu0 %305
  %307 = vrot.lane.b32.xlu0 %v225, 96
  %v308 = vpop.permute.xlu0 %307
  %309 = vrot.lane.b32.xlu0 %v226, 96
  %v310 = vpop.permute.xlu0 %309
  %311 = vrot.lane.b32.xlu0 %v227, 96
  %v312 = vpop.permute.xlu0 %311
  %313 = vrot.lane.b32.xlu0 %v228, 96
  %v314 = vpop.permute.xlu0 %313
  %315 = vrot.lane.b32.xlu0 %v229, 96
  %v316 = vpop.permute.xlu0 %315
  %317 = vrot.lane.b32.xlu0 %v230, 96
  %v318 = vpop.permute.xlu0 %317
  %v327 = vmul.f32 %v137, %v304
  %v328 = vmul.f32 %v142, %v306
  %v329 = vmul.f32 %v147, %v308
  %v330 = vmul.f32 %v152, %v310
  %v331 = vmul.f32 %v157, %v312
  %v332 = vmul.f32 %v162, %v314
  %v333 = vmul.f32 %v167, %v316
  %v334 = vmul.f32 %v172, %v318
  %v335 = vld [vmem:[%s2] sm:$0xff]
  %v336 = vld [vmem:[%s2 + $0x8] sm:$0xff]
  %v337 = vld [vmem:[%s2 + $0x10] sm:$0xff]
  %v338 = vld [vmem:[%s2 + $0x18] sm:$0xff]
  %v339 = vld [vmem:[%s2 + $0x20] sm:$0xff]
  %v340 = vld [vmem:[%s2 + $0x28] sm:$0xff]
  %v341 = vld [vmem:[%s2 + $0x30] sm:$0xff]
  %v342 = vld [vmem:[%s2 + $0x38] sm:$0xff]
  %v343 = vmul.f32 %v335, %v335
  %v344 = vmul.f32 %v336, %v336
  %v345 = vmul.f32 %v337, %v337
  %v346 = vmul.f32 %v338, %v338
  %v347 = vmul.f32 %v339, %v339
  %v348 = vmul.f32 %v340, %v340
  %v349 = vmul.f32 %v341, %v341
  %v350 = vmul.f32 %v342, %v342
  %359 = vrot.lane.b32.xlu0 %v343, 127
  %v360 = vpop.permute.xlu0 %359
  %361 = vrot.lane.b32.xlu0 %v344, 127
  %v362 = vpop.permute.xlu0 %361
  %363 = vrot.lane.b32.xlu0 %v345, 127
  %v364 = vpop.permute.xlu0 %363
  %365 = vrot.lane.b32.xlu0 %v346, 127
  %v366 = vpop.permute.xlu0 %365
  %367 = vrot.lane.b32.xlu0 %v347, 127
  %v368 = vpop.permute.xlu0 %367
  %369 = vrot.lane.b32.xlu0 %v348, 127
  %v370 = vpop.permute.xlu0 %369
  %371 = vrot.lane.b32.xlu0 %v349, 127
  %v372 = vpop.permute.xlu0 %371
  %373 = vrot.lane.b32.xlu0 %v350, 127
  %v374 = vpop.permute.xlu0 %373
  %v383 = vadd.f32 %v343, %v360
  %v384 = vadd.f32 %v344, %v362
  %v385 = vadd.f32 %v345, %v364
  %v386 = vadd.f32 %v346, %v366
  %v387 = vadd.f32 %v347, %v368
  %v388 = vadd.f32 %v348, %v370
  %v389 = vadd.f32 %v349, %v372
  %v390 = vadd.f32 %v350, %v374
  %391 = vrot.lane.b32.xlu0 %v343, 126
  %v392 = vpop.permute.xlu0 %391
  %393 = vrot.lane.b32.xlu0 %v344, 126
  %v394 = vpop.permute.xlu0 %393
  %395 = vrot.lane.b32.xlu0 %v345, 126
  %v396 = vpop.permute.xlu0 %395
  %397 = vrot.lane.b32.xlu0 %v346, 126
  %v398 = vpop.permute.xlu0 %397
  %399 = vrot.lane.b32.xlu0 %v347, 126
  %v400 = vpop.permute.xlu0 %399
  %401 = vrot.lane.b32.xlu0 %v348, 126
  %v402 = vpop.permute.xlu0 %401
  %403 = vrot.lane.b32.xlu0 %v349, 126
  %v404 = vpop.permute.xlu0 %403
  %405 = vrot.lane.b32.xlu0 %v350, 126
  %v406 = vpop.permute.xlu0 %405
  %v415 = vadd.f32 %v383, %v392
  %v416 = vadd.f32 %v384, %v394
  %v417 = vadd.f32 %v385, %v396
  %v418 = vadd.f32 %v386, %v398
  %v419 = vadd.f32 %v387, %v400
  %v420 = vadd.f32 %v388, %v402
  %v421 = vadd.f32 %v389, %v404
  %v422 = vadd.f32 %v390, %v406
  %v423 = vmul.f32 %v415, 0.33333334
  %v424 = vmul.f32 %v416, 0.33333334
  %v425 = vmul.f32 %v417, 0.33333334
  %v426 = vmul.f32 %v418, 0.33333334
  %v427 = vmul.f32 %v419, 0.33333334
  %v428 = vmul.f32 %v420, 0.33333334
  %v429 = vmul.f32 %v421, 0.33333334
  %v430 = vmul.f32 %v422, 0.33333334
  %v431 = vsub.f32 0.0, %v335
  %v432 = vsub.f32 0.0, %v336
  %v433 = vsub.f32 0.0, %v337
  %v434 = vsub.f32 0.0, %v338
  %v435 = vsub.f32 0.0, %v339
  %v436 = vsub.f32 0.0, %v340
  %v437 = vsub.f32 0.0, %v341
  %v438 = vsub.f32 0.0, %v342
  %440 = vset.pattern.permute.xlu0 2
  %441 = vperm.xlu0 %440, %v431
  %v442 = vpop.permute.xlu0 %441
  %445 = vset.pattern.permute.xlu0 2
  %446 = vperm.xlu0 %445, %v432
  %v447 = vpop.permute.xlu0 %446
  %450 = vset.pattern.permute.xlu0 2
  %451 = vperm.xlu0 %450, %v433
  %v452 = vpop.permute.xlu0 %451
  %455 = vset.pattern.permute.xlu0 2
  %456 = vperm.xlu0 %455, %v434
  %v457 = vpop.permute.xlu0 %456
  %460 = vset.pattern.permute.xlu0 2
  %461 = vperm.xlu0 %460, %v435
  %v462 = vpop.permute.xlu0 %461
  %465 = vset.pattern.permute.xlu0 2
  %466 = vperm.xlu0 %465, %v436
  %v467 = vpop.permute.xlu0 %466
  %470 = vset.pattern.permute.xlu0 2
  %471 = vperm.xlu0 %470, %v437
  %v472 = vpop.permute.xlu0 %471
  %475 = vset.pattern.permute.xlu0 2
  %476 = vperm.xlu0 %475, %v438
  %v477 = vpop.permute.xlu0 %476
  %v479 = vmul.f32 %v295, %v442
  %v480 = vmul.f32 %v296, %v447
  %v481 = vmul.f32 %v297, %v452
  %v482 = vmul.f32 %v298, %v457
  %v483 = vmul.f32 %v299, %v462
  %v484 = vmul.f32 %v300, %v467
  %v485 = vmul.f32 %v301, %v472
  %v486 = vmul.f32 %v302, %v477
  %488 = vset.pattern.permute.xlu0 1
  %489 = vperm.xlu0 %488, %v335
  %v490 = vpop.permute.xlu0 %489
  %493 = vset.pattern.permute.xlu0 1
  %494 = vperm.xlu0 %493, %v336
  %v495 = vpop.permute.xlu0 %494
  %498 = vset.pattern.permute.xlu0 1
  %499 = vperm.xlu0 %498, %v337
  %v500 = vpop.permute.xlu0 %499
  %503 = vset.pattern.permute.xlu0 1
  %504 = vperm.xlu0 %503, %v338
  %v505 = vpop.permute.xlu0 %504
  %508 = vset.pattern.permute.xlu0 1
  %509 = vperm.xlu0 %508, %v339
  %v510 = vpop.permute.xlu0 %509
  %513 = vset.pattern.permute.xlu0 1
  %514 = vperm.xlu0 %513, %v340
  %v515 = vpop.permute.xlu0 %514
  %518 = vset.pattern.permute.xlu0 1
  %519 = vperm.xlu0 %518, %v341
  %v520 = vpop.permute.xlu0 %519
  %523 = vset.pattern.permute.xlu0 1
  %524 = vperm.xlu0 %523, %v342
  %v525 = vpop.permute.xlu0 %524
  %v527 = vmul.f32 %v295, %v490
  %v528 = vmul.f32 %v296, %v495
  %v529 = vmul.f32 %v297, %v500
  %v530 = vmul.f32 %v298, %v505
  %v531 = vmul.f32 %v299, %v510
  %v532 = vmul.f32 %v300, %v515
  %v533 = vmul.f32 %v301, %v520
  %v534 = vmul.f32 %v302, %v525
  %535 = vset.pattern.permute.xlu0 0
  %536 = vperm.xlu0 %535, %v431
  %v537 = vpop.permute.xlu0 %536
  %539 = vset.pattern.permute.xlu0 0
  %540 = vperm.xlu0 %539, %v432
  %v541 = vpop.permute.xlu0 %540
  %543 = vset.pattern.permute.xlu0 0
  %544 = vperm.xlu0 %543, %v433
  %v545 = vpop.permute.xlu0 %544
  %547 = vset.pattern.permute.xlu0 0
  %548 = vperm.xlu0 %547, %v434
  %v549 = vpop.permute.xlu0 %548
  %551 = vset.pattern.permute.xlu0 0
  %552 = vperm.xlu0 %551, %v435
  %v553 = vpop.permute.xlu0 %552
  %555 = vset.pattern.permute.xlu0 0
  %556 = vperm.xlu0 %555, %v436
  %v557 = vpop.permute.xlu0 %556
  %559 = vset.pattern.permute.xlu0 0
  %560 = vperm.xlu0 %559, %v437
  %v561 = vpop.permute.xlu0 %560
  %563 = vset.pattern.permute.xlu0 0
  %564 = vperm.xlu0 %563, %v438
  %v565 = vpop.permute.xlu0 %564
  %v567 = vmul.f32 %v295, %v537
  %v568 = vmul.f32 %v296, %v541
  %v569 = vmul.f32 %v297, %v545
  %v570 = vmul.f32 %v298, %v549
  %v571 = vmul.f32 %v299, %v553
  %v572 = vmul.f32 %v300, %v557
  %v573 = vmul.f32 %v301, %v561
  %v574 = vmul.f32 %v302, %v565
  %v575 = vsub.f32 %v343, %v423
  %v576 = vsub.f32 %v344, %v424
  %v577 = vsub.f32 %v345, %v425
  %v578 = vsub.f32 %v346, %v426
  %v579 = vsub.f32 %v347, %v427
  %v580 = vsub.f32 %v348, %v428
  %v581 = vsub.f32 %v349, %v429
  %v582 = vsub.f32 %v350, %v430
  %584 = vset.pattern.permute.xlu0 0
  %585 = vperm.xlu0 %584, %v575
  %v586 = vpop.permute.xlu0 %585
  %589 = vset.pattern.permute.xlu0 0
  %590 = vperm.xlu0 %589, %v576
  %v591 = vpop.permute.xlu0 %590
  %594 = vset.pattern.permute.xlu0 0
  %595 = vperm.xlu0 %594, %v577
  %v596 = vpop.permute.xlu0 %595
  %599 = vset.pattern.permute.xlu0 0
  %600 = vperm.xlu0 %599, %v578
  %v601 = vpop.permute.xlu0 %600
  %604 = vset.pattern.permute.xlu0 0
  %605 = vperm.xlu0 %604, %v579
  %v606 = vpop.permute.xlu0 %605
  %609 = vset.pattern.permute.xlu0 0
  %610 = vperm.xlu0 %609, %v580
  %v611 = vpop.permute.xlu0 %610
  %614 = vset.pattern.permute.xlu0 0
  %615 = vperm.xlu0 %614, %v581
  %v616 = vpop.permute.xlu0 %615
  %619 = vset.pattern.permute.xlu0 0
  %620 = vperm.xlu0 %619, %v582
  %v621 = vpop.permute.xlu0 %620
  %v623 = vmul.f32 %v327, %v586
  %v624 = vmul.f32 %v328, %v591
  %v625 = vmul.f32 %v329, %v596
  %v626 = vmul.f32 %v330, %v601
  %v627 = vmul.f32 %v331, %v606
  %v628 = vmul.f32 %v332, %v611
  %v629 = vmul.f32 %v333, %v616
  %v630 = vmul.f32 %v334, %v621
  %631 = vrot.lane.b32.xlu0 %v335, 127
  %v632 = vpop.permute.xlu0 %631
  %633 = vrot.lane.b32.xlu0 %v336, 127
  %v634 = vpop.permute.xlu0 %633
  %635 = vrot.lane.b32.xlu0 %v337, 127
  %v636 = vpop.permute.xlu0 %635
  %637 = vrot.lane.b32.xlu0 %v338, 127
  %v638 = vpop.permute.xlu0 %637
  %639 = vrot.lane.b32.xlu0 %v339, 127
  %v640 = vpop.permute.xlu0 %639
  %641 = vrot.lane.b32.xlu0 %v340, 127
  %v642 = vpop.permute.xlu0 %641
  %643 = vrot.lane.b32.xlu0 %v341, 127
  %v644 = vpop.permute.xlu0 %643
  %645 = vrot.lane.b32.xlu0 %v342, 127
  %v646 = vpop.permute.xlu0 %645
  %v655 = vmul.f32 %v335, %v632
  %v656 = vmul.f32 %v336, %v634
  %v657 = vmul.f32 %v337, %v636
  %v658 = vmul.f32 %v338, %v638
  %v659 = vmul.f32 %v339, %v640
  %v660 = vmul.f32 %v340, %v642
  %v661 = vmul.f32 %v341, %v644
  %v662 = vmul.f32 %v342, %v646
  %664 = vset.pattern.permute.xlu0 0
  %665 = vperm.xlu0 %664, %v655
  %v666 = vpop.permute.xlu0 %665
  %669 = vset.pattern.permute.xlu0 0
  %670 = vperm.xlu0 %669, %v656
  %v671 = vpop.permute.xlu0 %670
  %674 = vset.pattern.permute.xlu0 0
  %675 = vperm.xlu0 %674, %v657
  %v676 = vpop.permute.xlu0 %675
  %679 = vset.pattern.permute.xlu0 0
  %680 = vperm.xlu0 %679, %v658
  %v681 = vpop.permute.xlu0 %680
  %684 = vset.pattern.permute.xlu0 0
  %685 = vperm.xlu0 %684, %v659
  %v686 = vpop.permute.xlu0 %685
  %689 = vset.pattern.permute.xlu0 0
  %690 = vperm.xlu0 %689, %v660
  %v691 = vpop.permute.xlu0 %690
  %694 = vset.pattern.permute.xlu0 0
  %695 = vperm.xlu0 %694, %v661
  %v696 = vpop.permute.xlu0 %695
  %699 = vset.pattern.permute.xlu0 0
  %700 = vperm.xlu0 %699, %v662
  %v701 = vpop.permute.xlu0 %700
  %v703 = vmul.f32 %v327, %v666
  %v704 = vmul.f32 %v328, %v671
  %v705 = vmul.f32 %v329, %v676
  %v706 = vmul.f32 %v330, %v681
  %v707 = vmul.f32 %v331, %v686
  %v708 = vmul.f32 %v332, %v691
  %v709 = vmul.f32 %v333, %v696
  %v710 = vmul.f32 %v334, %v701
  %711 = vrot.lane.b32.xlu0 %v335, 126
  %v712 = vpop.permute.xlu0 %711
  %713 = vrot.lane.b32.xlu0 %v336, 126
  %v714 = vpop.permute.xlu0 %713
  %715 = vrot.lane.b32.xlu0 %v337, 126
  %v716 = vpop.permute.xlu0 %715
  %717 = vrot.lane.b32.xlu0 %v338, 126
  %v718 = vpop.permute.xlu0 %717
  %719 = vrot.lane.b32.xlu0 %v339, 126
  %v720 = vpop.permute.xlu0 %719
  %721 = vrot.lane.b32.xlu0 %v340, 126
  %v722 = vpop.permute.xlu0 %721
  %723 = vrot.lane.b32.xlu0 %v341, 126
  %v724 = vpop.permute.xlu0 %723
  %725 = vrot.lane.b32.xlu0 %v342, 126
  %v726 = vpop.permute.xlu0 %725
  %v735 = vmul.f32 %v335, %v712
  %v736 = vmul.f32 %v336, %v714
  %v737 = vmul.f32 %v337, %v716
  %v738 = vmul.f32 %v338, %v718
  %v739 = vmul.f32 %v339, %v720
  %v740 = vmul.f32 %v340, %v722
  %v741 = vmul.f32 %v341, %v724
  %v742 = vmul.f32 %v342, %v726
  %744 = vset.pattern.permute.xlu0 0
  %745 = vperm.xlu0 %744, %v735
  %v746 = vpop.permute.xlu0 %745
  %749 = vset.pattern.permute.xlu0 0
  %750 = vperm.xlu0 %749, %v736
  %v751 = vpop.permute.xlu0 %750
  %754 = vset.pattern.permute.xlu0 0
  %755 = vperm.xlu0 %754, %v737
  %v756 = vpop.permute.xlu0 %755
  %759 = vset.pattern.permute.xlu0 0
  %760 = vperm.xlu0 %759, %v738
  %v761 = vpop.permute.xlu0 %760
  %764 = vset.pattern.permute.xlu0 0
  %765 = vperm.xlu0 %764, %v739
  %v766 = vpop.permute.xlu0 %765
  %769 = vset.pattern.permute.xlu0 0
  %770 = vperm.xlu0 %769, %v740
  %v771 = vpop.permute.xlu0 %770
  %774 = vset.pattern.permute.xlu0 0
  %775 = vperm.xlu0 %774, %v741
  %v776 = vpop.permute.xlu0 %775
  %779 = vset.pattern.permute.xlu0 0
  %780 = vperm.xlu0 %779, %v742
  %v781 = vpop.permute.xlu0 %780
  %v783 = vmul.f32 %v327, %v746
  %v784 = vmul.f32 %v328, %v751
  %v785 = vmul.f32 %v329, %v756
  %v786 = vmul.f32 %v330, %v761
  %v787 = vmul.f32 %v331, %v766
  %v788 = vmul.f32 %v332, %v771
  %v789 = vmul.f32 %v333, %v776
  %v790 = vmul.f32 %v334, %v781
  %799 = vrot.lane.b32.xlu0 %v423, 1
  %v800 = vpop.permute.xlu0 %799
  %801 = vrot.lane.b32.xlu0 %v424, 1
  %v802 = vpop.permute.xlu0 %801
  %803 = vrot.lane.b32.xlu0 %v425, 1
  %v804 = vpop.permute.xlu0 %803
  %805 = vrot.lane.b32.xlu0 %v426, 1
  %v806 = vpop.permute.xlu0 %805
  %807 = vrot.lane.b32.xlu0 %v427, 1
  %v808 = vpop.permute.xlu0 %807
  %809 = vrot.lane.b32.xlu0 %v428, 1
  %v810 = vpop.permute.xlu0 %809
  %811 = vrot.lane.b32.xlu0 %v429, 1
  %v812 = vpop.permute.xlu0 %811
  %813 = vrot.lane.b32.xlu0 %v430, 1
  %v814 = vpop.permute.xlu0 %813
  %v823 = vsub.f32 %v343, %v800
  %v824 = vsub.f32 %v344, %v802
  %v825 = vsub.f32 %v345, %v804
  %v826 = vsub.f32 %v346, %v806
  %v827 = vsub.f32 %v347, %v808
  %v828 = vsub.f32 %v348, %v810
  %v829 = vsub.f32 %v349, %v812
  %v830 = vsub.f32 %v350, %v814
  %832 = vset.pattern.permute.xlu0 1
  %833 = vperm.xlu0 %832, %v823
  %v834 = vpop.permute.xlu0 %833
  %837 = vset.pattern.permute.xlu0 1
  %838 = vperm.xlu0 %837, %v824
  %v839 = vpop.permute.xlu0 %838
  %842 = vset.pattern.permute.xlu0 1
  %843 = vperm.xlu0 %842, %v825
  %v844 = vpop.permute.xlu0 %843
  %847 = vset.pattern.permute.xlu0 1
  %848 = vperm.xlu0 %847, %v826
  %v849 = vpop.permute.xlu0 %848
  %852 = vset.pattern.permute.xlu0 1
  %853 = vperm.xlu0 %852, %v827
  %v854 = vpop.permute.xlu0 %853
  %857 = vset.pattern.permute.xlu0 1
  %858 = vperm.xlu0 %857, %v828
  %v859 = vpop.permute.xlu0 %858
  %862 = vset.pattern.permute.xlu0 1
  %863 = vperm.xlu0 %862, %v829
  %v864 = vpop.permute.xlu0 %863
  %867 = vset.pattern.permute.xlu0 1
  %868 = vperm.xlu0 %867, %v830
  %v869 = vpop.permute.xlu0 %868
  %v871 = vmul.f32 %v327, %v834
  %v872 = vmul.f32 %v328, %v839
  %v873 = vmul.f32 %v329, %v844
  %v874 = vmul.f32 %v330, %v849
  %v875 = vmul.f32 %v331, %v854
  %v876 = vmul.f32 %v332, %v859
  %v877 = vmul.f32 %v333, %v864
  %v878 = vmul.f32 %v334, %v869
  %879 = vset.pattern.permute.xlu0 1
  %880 = vperm.xlu0 %879, %v655
  %v881 = vpop.permute.xlu0 %880
  %883 = vset.pattern.permute.xlu0 1
  %884 = vperm.xlu0 %883, %v656
  %v885 = vpop.permute.xlu0 %884
  %887 = vset.pattern.permute.xlu0 1
  %888 = vperm.xlu0 %887, %v657
  %v889 = vpop.permute.xlu0 %888
  %891 = vset.pattern.permute.xlu0 1
  %892 = vperm.xlu0 %891, %v658
  %v893 = vpop.permute.xlu0 %892
  %895 = vset.pattern.permute.xlu0 1
  %896 = vperm.xlu0 %895, %v659
  %v897 = vpop.permute.xlu0 %896
  %899 = vset.pattern.permute.xlu0 1
  %900 = vperm.xlu0 %899, %v660
  %v901 = vpop.permute.xlu0 %900
  %903 = vset.pattern.permute.xlu0 1
  %904 = vperm.xlu0 %903, %v661
  %v905 = vpop.permute.xlu0 %904
  %907 = vset.pattern.permute.xlu0 1
  %908 = vperm.xlu0 %907, %v662
  %v909 = vpop.permute.xlu0 %908
  %v911 = vmul.f32 %v327, %v881
  %v912 = vmul.f32 %v328, %v885
  %v913 = vmul.f32 %v329, %v889
  %v914 = vmul.f32 %v330, %v893
  %v915 = vmul.f32 %v331, %v897
  %v916 = vmul.f32 %v332, %v901
  %v917 = vmul.f32 %v333, %v905
  %v918 = vmul.f32 %v334, %v909
  %919 = vrot.lane.b32.xlu0 %v423, 2
  %v920 = vpop.permute.xlu0 %919
  %921 = vrot.lane.b32.xlu0 %v424, 2
  %v922 = vpop.permute.xlu0 %921
  %923 = vrot.lane.b32.xlu0 %v425, 2
  %v924 = vpop.permute.xlu0 %923
  %925 = vrot.lane.b32.xlu0 %v426, 2
  %v926 = vpop.permute.xlu0 %925
  %927 = vrot.lane.b32.xlu0 %v427, 2
  %v928 = vpop.permute.xlu0 %927
  %929 = vrot.lane.b32.xlu0 %v428, 2
  %v930 = vpop.permute.xlu0 %929
  %931 = vrot.lane.b32.xlu0 %v429, 2
  %v932 = vpop.permute.xlu0 %931
  %933 = vrot.lane.b32.xlu0 %v430, 2
  %v934 = vpop.permute.xlu0 %933
  %v943 = vsub.f32 %v343, %v920
  %v944 = vsub.f32 %v344, %v922
  %v945 = vsub.f32 %v345, %v924
  %v946 = vsub.f32 %v346, %v926
  %v947 = vsub.f32 %v347, %v928
  %v948 = vsub.f32 %v348, %v930
  %v949 = vsub.f32 %v349, %v932
  %v950 = vsub.f32 %v350, %v934
  %952 = vset.pattern.permute.xlu0 2
  %953 = vperm.xlu0 %952, %v943
  %v954 = vpop.permute.xlu0 %953
  %957 = vset.pattern.permute.xlu0 2
  %958 = vperm.xlu0 %957, %v944
  %v959 = vpop.permute.xlu0 %958
  %962 = vset.pattern.permute.xlu0 2
  %963 = vperm.xlu0 %962, %v945
  %v964 = vpop.permute.xlu0 %963
  %967 = vset.pattern.permute.xlu0 2
  %968 = vperm.xlu0 %967, %v946
  %v969 = vpop.permute.xlu0 %968
  %972 = vset.pattern.permute.xlu0 2
  %973 = vperm.xlu0 %972, %v947
  %v974 = vpop.permute.xlu0 %973
  %977 = vset.pattern.permute.xlu0 2
  %978 = vperm.xlu0 %977, %v948
  %v979 = vpop.permute.xlu0 %978
  %982 = vset.pattern.permute.xlu0 2
  %983 = vperm.xlu0 %982, %v949
  %v984 = vpop.permute.xlu0 %983
  %987 = vset.pattern.permute.xlu0 2
  %988 = vperm.xlu0 %987, %v950
  %v989 = vpop.permute.xlu0 %988
  %v991 = vmul.f32 %v327, %v954
  %v992 = vmul.f32 %v328, %v959
  %v993 = vmul.f32 %v329, %v964
  %v994 = vmul.f32 %v330, %v969
  %v995 = vmul.f32 %v331, %v974
  %v996 = vmul.f32 %v332, %v979
  %v997 = vmul.f32 %v333, %v984
  %v998 = vmul.f32 %v334, %v989
  %1007 = vrot.lane.b32.xlu0 %v263, 96
  %v1008 = vpop.permute.xlu0 %1007
  %1009 = vrot.lane.b32.xlu0 %v264, 96
  %v1010 = vpop.permute.xlu0 %1009
  %1011 = vrot.lane.b32.xlu0 %v265, 96
  %v1012 = vpop.permute.xlu0 %1011
  %1013 = vrot.lane.b32.xlu0 %v266, 96
  %v1014 = vpop.permute.xlu0 %1013
  %1015 = vrot.lane.b32.xlu0 %v267, 96
  %v1016 = vpop.permute.xlu0 %1015
  %1017 = vrot.lane.b32.xlu0 %v268, 96
  %v1018 = vpop.permute.xlu0 %1017
  %1019 = vrot.lane.b32.xlu0 %v269, 96
  %v1020 = vpop.permute.xlu0 %1019
  %1021 = vrot.lane.b32.xlu0 %v270, 96
  %v1022 = vpop.permute.xlu0 %1021
  %1039 = vrot.lane.b32.xlu0 %v479, 96
  %v1040 = vpop.permute.xlu0 %1039
  %1041 = vrot.lane.b32.xlu0 %v480, 96
  %v1042 = vpop.permute.xlu0 %1041
  %1043 = vrot.lane.b32.xlu0 %v481, 96
  %v1044 = vpop.permute.xlu0 %1043
  %1045 = vrot.lane.b32.xlu0 %v482, 96
  %v1046 = vpop.permute.xlu0 %1045
  %1047 = vrot.lane.b32.xlu0 %v483, 96
  %v1048 = vpop.permute.xlu0 %1047
  %1049 = vrot.lane.b32.xlu0 %v484, 96
  %v1050 = vpop.permute.xlu0 %1049
  %1051 = vrot.lane.b32.xlu0 %v485, 96
  %v1052 = vpop.permute.xlu0 %1051
  %1053 = vrot.lane.b32.xlu0 %v486, 96
  %v1054 = vpop.permute.xlu0 %1053
  %1071 = vrot.lane.b32.xlu0 %v567, 32
  %v1072 = vpop.permute.xlu0 %1071
  %1073 = vrot.lane.b32.xlu0 %v568, 32
  %v1074 = vpop.permute.xlu0 %1073
  %1075 = vrot.lane.b32.xlu0 %v569, 32
  %v1076 = vpop.permute.xlu0 %1075
  %1077 = vrot.lane.b32.xlu0 %v570, 32
  %v1078 = vpop.permute.xlu0 %1077
  %1079 = vrot.lane.b32.xlu0 %v571, 32
  %v1080 = vpop.permute.xlu0 %1079
  %1081 = vrot.lane.b32.xlu0 %v572, 32
  %v1082 = vpop.permute.xlu0 %1081
  %1083 = vrot.lane.b32.xlu0 %v573, 32
  %v1084 = vpop.permute.xlu0 %1083
  %1085 = vrot.lane.b32.xlu0 %v574, 32
  %v1086 = vpop.permute.xlu0 %1085
  %1103 = vrot.lane.b32.xlu0 %v623, 32
  %v1104 = vpop.permute.xlu0 %1103
  %1105 = vrot.lane.b32.xlu0 %v624, 32
  %v1106 = vpop.permute.xlu0 %1105
  %1107 = vrot.lane.b32.xlu0 %v625, 32
  %v1108 = vpop.permute.xlu0 %1107
  %1109 = vrot.lane.b32.xlu0 %v626, 32
  %v1110 = vpop.permute.xlu0 %1109
  %1111 = vrot.lane.b32.xlu0 %v627, 32
  %v1112 = vpop.permute.xlu0 %1111
  %1113 = vrot.lane.b32.xlu0 %v628, 32
  %v1114 = vpop.permute.xlu0 %1113
  %1115 = vrot.lane.b32.xlu0 %v629, 32
  %v1116 = vpop.permute.xlu0 %1115
  %1117 = vrot.lane.b32.xlu0 %v630, 32
  %v1118 = vpop.permute.xlu0 %1117
  %1135 = vrot.lane.b32.xlu0 %v703, 64
  %v1136 = vpop.permute.xlu0 %1135
  %1137 = vrot.lane.b32.xlu0 %v704, 64
  %v1138 = vpop.permute.xlu0 %1137
  %1139 = vrot.lane.b32.xlu0 %v705, 64
  %v1140 = vpop.permute.xlu0 %1139
  %1141 = vrot.lane.b32.xlu0 %v706, 64
  %v1142 = vpop.permute.xlu0 %1141
  %1143 = vrot.lane.b32.xlu0 %v707, 64
  %v1144 = vpop.permute.xlu0 %1143
  %1145 = vrot.lane.b32.xlu0 %v708, 64
  %v1146 = vpop.permute.xlu0 %1145
  %1147 = vrot.lane.b32.xlu0 %v709, 64
  %v1148 = vpop.permute.xlu0 %1147
  %1149 = vrot.lane.b32.xlu0 %v710, 64
  %v1150 = vpop.permute.xlu0 %1149
  %1167 = vrot.lane.b32.xlu0 %v783, 96
  %v1168 = vpop.permute.xlu0 %1167
  %1169 = vrot.lane.b32.xlu0 %v784, 96
  %v1170 = vpop.permute.xlu0 %1169
  %1171 = vrot.lane.b32.xlu0 %v785, 96
  %v1172 = vpop.permute.xlu0 %1171
  %1173 = vrot.lane.b32.xlu0 %v786, 96
  %v1174 = vpop.permute.xlu0 %1173
  %1175 = vrot.lane.b32.xlu0 %v787, 96
  %v1176 = vpop.permute.xlu0 %1175
  %1177 = vrot.lane.b32.xlu0 %v788, 96
  %v1178 = vpop.permute.xlu0 %1177
  %1179 = vrot.lane.b32.xlu0 %v789, 96
  %v1180 = vpop.permute.xlu0 %1179
  %1181 = vrot.lane.b32.xlu0 %v790, 96
  %v1182 = vpop.permute.xlu0 %1181
  %1199 = vrot.lane.b32.xlu0 %v911, 32
  %v1200 = vpop.permute.xlu0 %1199
  %1201 = vrot.lane.b32.xlu0 %v912, 32
  %v1202 = vpop.permute.xlu0 %1201
  %1203 = vrot.lane.b32.xlu0 %v913, 32
  %v1204 = vpop.permute.xlu0 %1203
  %1205 = vrot.lane.b32.xlu0 %v914, 32
  %v1206 = vpop.permute.xlu0 %1205
  %1207 = vrot.lane.b32.xlu0 %v915, 32
  %v1208 = vpop.permute.xlu0 %1207
  %1209 = vrot.lane.b32.xlu0 %v916, 32
  %v1210 = vpop.permute.xlu0 %1209
  %1211 = vrot.lane.b32.xlu0 %v917, 32
  %v1212 = vpop.permute.xlu0 %1211
  %1213 = vrot.lane.b32.xlu0 %v918, 32
  %v1214 = vpop.permute.xlu0 %1213
  %1231 = vrot.lane.b32.xlu0 %v991, 64
  %v1232 = vpop.permute.xlu0 %1231
  %1233 = vrot.lane.b32.xlu0 %v992, 64
  %v1234 = vpop.permute.xlu0 %1233
  %1235 = vrot.lane.b32.xlu0 %v993, 64
  %v1236 = vpop.permute.xlu0 %1235
  %1237 = vrot.lane.b32.xlu0 %v994, 64
  %v1238 = vpop.permute.xlu0 %1237
  %1239 = vrot.lane.b32.xlu0 %v995, 64
  %v1240 = vpop.permute.xlu0 %1239
  %1241 = vrot.lane.b32.xlu0 %v996, 64
  %v1242 = vpop.permute.xlu0 %1241
  %1243 = vrot.lane.b32.xlu0 %v997, 64
  %v1244 = vpop.permute.xlu0 %1243
  %1245 = vrot.lane.b32.xlu0 %v998, 64
  %v1246 = vpop.permute.xlu0 %1245
  %vm1255 = vcmask 261120
  %v1256 = vsel %vm1255, %v1008, %v1040
  %v1257 = vsel %vm1255, %v1010, %v1042
  %v1258 = vsel %vm1255, %v1012, %v1044
  %v1259 = vsel %vm1255, %v1014, %v1046
  %v1260 = vsel %vm1255, %v1016, %v1048
  %v1261 = vsel %vm1255, %v1018, %v1050
  %v1262 = vsel %vm1255, %v1020, %v1052
  %v1263 = vsel %vm1255, %v1022, %v1054
  %vm1264 = vcmask 523264
  %v1265 = vsel %vm1264, %v1256, %v527
  %v1266 = vsel %vm1264, %v1257, %v528
  %v1267 = vsel %vm1264, %v1258, %v529
  %v1268 = vsel %vm1264, %v1259, %v530
  %v1269 = vsel %vm1264, %v1260, %v531
  %v1270 = vsel %vm1264, %v1261, %v532
  %v1271 = vsel %vm1264, %v1262, %v533
  %v1272 = vsel %vm1264, %v1263, %v534
  %vm1273 = vcmask 785408
  %v1274 = vsel %vm1273, %v1265, %v1072
  %v1275 = vsel %vm1273, %v1266, %v1074
  %v1276 = vsel %vm1273, %v1267, %v1076
  %v1277 = vsel %vm1273, %v1268, %v1078
  %v1278 = vsel %vm1273, %v1269, %v1080
  %v1279 = vsel %vm1273, %v1270, %v1082
  %v1280 = vsel %vm1273, %v1271, %v1084
  %v1281 = vsel %vm1273, %v1272, %v1086
  %v1282 = vsel %vm1255, %v1104, %v1136
  %v1283 = vsel %vm1255, %v1106, %v1138
  %v1284 = vsel %vm1255, %v1108, %v1140
  %v1285 = vsel %vm1255, %v1110, %v1142
  %v1286 = vsel %vm1255, %v1112, %v1144
  %v1287 = vsel %vm1255, %v1114, %v1146
  %v1288 = vsel %vm1255, %v1116, %v1148
  %v1289 = vsel %vm1255, %v1118, %v1150
  %v1290 = vsel %vm1264, %v1282, %v1168
  %v1291 = vsel %vm1264, %v1283, %v1170
  %v1292 = vsel %vm1264, %v1284, %v1172
  %v1293 = vsel %vm1264, %v1285, %v1174
  %v1294 = vsel %vm1264, %v1286, %v1176
  %v1295 = vsel %vm1264, %v1287, %v1178
  %v1296 = vsel %vm1264, %v1288, %v1180
  %v1297 = vsel %vm1264, %v1289, %v1182
  %v1298 = vsel %vm1273, %v1290, %v871
  %v1299 = vsel %vm1273, %v1291, %v872
  %v1300 = vsel %vm1273, %v1292, %v873
  %v1301 = vsel %vm1273, %v1293, %v874
  %v1302 = vsel %vm1273, %v1294, %v875
  %v1303 = vsel %vm1273, %v1295, %v876
  %v1304 = vsel %vm1273, %v1296, %v877
  %v1305 = vsel %vm1273, %v1297, %v878
  %v1306 = vsel %vm1255, %v1200, %v1232
  %v1307 = vsel %vm1255, %v1202, %v1234
  %v1308 = vsel %vm1255, %v1204, %v1236
  %v1309 = vsel %vm1255, %v1206, %v1238
  %v1310 = vsel %vm1255, %v1208, %v1240
  %v1311 = vsel %vm1255, %v1210, %v1242
  %v1312 = vsel %vm1255, %v1212, %v1244
  %v1313 = vsel %vm1255, %v1214, %v1246
  %1314 = vst [vmem:[%s5] sm:$0xff] %v1274
  %1315 = vst [vmem:[%s5 + $0x8] sm:$0xff] %v1298
  %1316 = vst.msk [vmem:[%s5 + $0x10] sm:$0xff] %vm1264, %v1306
  %1317 = vst [vmem:[%s5 + $0x18] sm:$0xff] %v1275
  %1318 = vst [vmem:[%s5 + $0x20] sm:$0xff] %v1299
  %1319 = vst.msk [vmem:[%s5 + $0x28] sm:$0xff] %vm1264, %v1307
  %1320 = vst [vmem:[%s5 + $0x30] sm:$0xff] %v1276
  %1321 = vst [vmem:[%s5 + $0x38] sm:$0xff] %v1300
  %1322 = vst.msk [vmem:[%s5 + $0x40] sm:$0xff] %vm1264, %v1308
  %1323 = vst [vmem:[%s5 + $0x48] sm:$0xff] %v1277
  %1324 = vst [vmem:[%s5 + $0x50] sm:$0xff] %v1301
  %1325 = vst.msk [vmem:[%s5 + $0x58] sm:$0xff] %vm1264, %v1309
  %1326 = vst [vmem:[%s5 + $0x60] sm:$0xff] %v1278
  %1327 = vst [vmem:[%s5 + $0x68] sm:$0xff] %v1302
  %1328 = vst.msk [vmem:[%s5 + $0x70] sm:$0xff] %vm1264, %v1310
  %1329 = vst [vmem:[%s5 + $0x78] sm:$0xff] %v1279
  %1330 = vst [vmem:[%s5 + $0x80] sm:$0xff] %v1303
  %1331 = vst.msk [vmem:[%s5 + $0x88] sm:$0xff] %vm1264, %v1311
  %1332 = vst [vmem:[%s5 + $0x90] sm:$0xff] %v1280
  %1333 = vst [vmem:[%s5 + $0x98] sm:$0xff] %v1304
  %1334 = vst.msk [vmem:[%s5 + $0xa0] sm:$0xff] %vm1264, %v1312
  %1335 = vst [vmem:[%s5 + $0xa8] sm:$0xff] %v1281
  %1336 = vst [vmem:[%s5 + $0xb0] sm:$0xff] %v1305
  %1337 = vst.msk [vmem:[%s5 + $0xb8] sm:$0xff] %vm1264, %v1313
  // Predicated region
  $region22: #{tensornet_forward.8} parent=0 // pred_check
    _
  $region23: #{tensornet_forward.8} parent=0 // pred_check_branch
    %1339 = sbr.rel (0) target = $region25
  $region24: #{tensornet_forward.8} parent=0 // pred_region
    _
  $region25: #{tensornet_forward.8} parent=0 // pred_fallthru
    _
  // Predicated region
  $region26: #{tensornet_forward.8} parent=0 // pred_check
    _
  $region27: #{tensornet_forward.8} parent=0 // pred_check_branch
    %1341 = sbr.rel (0) target = $region29
  $region28: #{tensornet_forward.8} parent=0 // pred_region
    _
  $region29: #{tensornet_forward.8} parent=0 // pred_fallthru
    _

// kernel: tensornet_forward.9
$region0: #{tensornet_forward.9}
  #allocation0 [shape = 'u32[]', space=smem, size = 0x4, offset = 0x4, fixed_abs, tag = 'smem constant byte address 0x4 - core index']
  #allocation1 [shape = 'u32[144,128]{1,0:T(1,128)}', space=vmem, size = 0x12000, scoped, tag = 'internal scratch']
  %s0 = inlined_call_operand.vmem [shape: f32[16,320], index: 0, kind: input, shape index: {}]
  %s1 = inlined_call_operand.vmem [shape: f32[320,32], index: 1, kind: input, shape index: {}]
  %s2 = inlined_call_operand.vmem [shape: f32[1,32], index: 2, kind: input, shape index: {}]
  %s3 = inlined_call_operand.vmem [shape: f32[1,32], index: 3, kind: input, shape index: {}]
  %s4 = inlined_call_operand.vmem [shape: f32[32,64], index: 4, kind: input, shape index: {}]
  %s5 = inlined_call_operand.vmem [shape: f32[1,64], index: 5, kind: input, shape index: {}]
  %s6 = inlined_call_operand.vmem [shape: f32[64,96], index: 6, kind: input, shape index: {}]
  %s7 = inlined_call_operand.vmem [shape: f32[1,96], index: 7, kind: input, shape index: {}]
  %s8 = inlined_call_operand.vmem [shape: f32[320,320], index: 8, kind: input, shape index: {}]
  %s9 = inlined_call_operand.vmem [shape: f32[16,320], index: 9, kind: output, shape index: {}]
  %s10 = sld [smem:[#allocation0]]
  $region46: #{tensornet_forward.9} parent=0
    _
  %s12 = ssub.s32 1, %s10
  %s13 = scalar_select 0, %s12, %s10
  // Predicated region
  $region2: #{tensornet_forward.9} parent=0 // pred_check
    _
  $region3: #{tensornet_forward.9} parent=0 // pred_check_branch
    %15 = sbr.rel (0) target = $region5
  $region4: #{tensornet_forward.9} parent=0 // pred_region
    _
  $region5: #{tensornet_forward.9} parent=0 // pred_fallthru
    _
  // Predicated region
  $region6: #{tensornet_forward.9} parent=0 // pred_check
    _
  $region7: #{tensornet_forward.9} parent=0 // pred_check_branch
    %17 = sbr.rel (0) target = $region9
  $region8: #{tensornet_forward.9} parent=0 // pred_region
    _
  $region9: #{tensornet_forward.9} parent=0 // pred_fallthru
    _
  // Predicated region
  $region10: #{tensornet_forward.9} parent=0 // pred_check
    _
  $region11: #{tensornet_forward.9} parent=0 // pred_check_branch
    %19 = sbr.rel (0) target = $region13
  $region12: #{tensornet_forward.9} parent=0 // pred_region
    _
  $region13: #{tensornet_forward.9} parent=0 // pred_fallthru
    _
  // Predicated region
  $region14: #{tensornet_forward.9} parent=0 // pred_check
    _
  $region15: #{tensornet_forward.9} parent=0 // pred_check_branch
    %21 = sbr.rel (0) target = $region17
  $region16: #{tensornet_forward.9} parent=0 // pred_region
    _
  $region17: #{tensornet_forward.9} parent=0 // pred_fallthru
    _
  // Predicated region
  $region18: #{tensornet_forward.9} parent=0 // pred_check
    _
  $region19: #{tensornet_forward.9} parent=0 // pred_check_branch
    %23 = sbr.rel (0) target = $region21
  $region20: #{tensornet_forward.9} parent=0 // pred_region
    _
  $region21: #{tensornet_forward.9} parent=0 // pred_fallthru
    _
  // Predicated region
  $region22: #{tensornet_forward.9} parent=0 // pred_check
    _
  $region23: #{tensornet_forward.9} parent=0 // pred_check_branch
    %25 = sbr.rel (0) target = $region25
  $region24: #{tensornet_forward.9} parent=0 // pred_region
    _
  $region25: #{tensornet_forward.9} parent=0 // pred_fallthru
    _
  // Predicated region
  $region26: #{tensornet_forward.9} parent=0 // pred_check
    _
  $region27: #{tensornet_forward.9} parent=0 // pred_check_branch
    %27 = sbr.rel (0) target = $region29
  $region28: #{tensornet_forward.9} parent=0 // pred_region
    _
  $region29: #{tensornet_forward.9} parent=0 // pred_fallthru
    _
  // Predicated region
  $region30: #{tensornet_forward.9} parent=0 // pred_check
    _
  $region31: #{tensornet_forward.9} parent=0 // pred_check_branch
    %29 = sbr.rel (0) target = $region33
  $region32: #{tensornet_forward.9} parent=0 // pred_region
    _
  $region33: #{tensornet_forward.9} parent=0 // pred_fallthru
    _
  // Predicated region
  $region34: #{tensornet_forward.9} parent=0 // pred_check
    _
  $region35: #{tensornet_forward.9} parent=0 // pred_check_branch
    %31 = sbr.rel (0) target = $region37
  $region36: #{tensornet_forward.9} parent=0 // pred_region
    _
  $region37: #{tensornet_forward.9} parent=0 // pred_fallthru
    _
  %v32 = vld [vmem:[%s0] sm:$0xff]
  %v33 = vld [vmem:[%s0 + $0x8] sm:$0xff]
  %v34 = vld [vmem:[%s0 + $0x10] sm:$0xff]
  %v35 = vld [vmem:[%s0 + $0x18] sm:$0xff]
  %v36 = vld [vmem:[%s0 + $0x20] sm:$0xff]
  %v37 = vld [vmem:[%s0 + $0x28] sm:$0xff]
  %v38 = vmul.f32 %v32, %v32
  %v39 = vmul.f32 %v33, %v33
  %v40 = vmul.f32 %v34, %v34
  %v41 = vmul.f32 %v35, %v35
  %v42 = vmul.f32 %v36, %v36
  %v43 = vmul.f32 %v37, %v37
  %v44 = vld [vmem:[%s1] sm:$0xff]
  %v45 = vld [vmem:[%s1 + $0x8] sm:$0xff]
  %v46 = vld [vmem:[%s1 + $0x10] sm:$0xff]
  %v47 = vld [vmem:[%s1 + $0x18] sm:$0xff]
  %v48 = vld [vmem:[%s1 + $0x20] sm:$0xff]
  %v49 = vld [vmem:[%s1 + $0x28] sm:$0xff]
  %v50 = vld [vmem:[%s1 + $0x30] sm:$0xff]
  %v51 = vld [vmem:[%s1 + $0x38] sm:$0xff]
  %v52 = vld [vmem:[%s1 + $0x40] sm:$0xff]
  %v53 = vld [vmem:[%s1 + $0x48] sm:$0xff]
  %v54 = vld [vmem:[%s1 + $0x50] sm:$0xff]
  %v55 = vld [vmem:[%s1 + $0x58] sm:$0xff]
  %v56 = vld [vmem:[%s1 + $0x60] sm:$0xff]
  %v57 = vld [vmem:[%s1 + $0x68] sm:$0xff]
  %v58 = vld [vmem:[%s1 + $0x70] sm:$0xff]
  %v59 = vld [vmem:[%s1 + $0x78] sm:$0xff]
  %v60 = vld [vmem:[%s1 + $0x80] sm:$0xff]
  %v61 = vld [vmem:[%s1 + $0x88] sm:$0xff]
  %v62 = vld [vmem:[%s1 + $0x90] sm:$0xff]
  %v63 = vld [vmem:[%s1 + $0x98] sm:$0xff]
  %v64 = vld [vmem:[%s1 + $0xa0] sm:$0xff]
  %v65 = vld [vmem:[%s1 + $0xa8] sm:$0xff]
  %v66 = vld [vmem:[%s1 + $0xb0] sm:$0xff]
  %v67 = vld [vmem:[%s1 + $0xb8] sm:$0xff]
  %v68 = vld [vmem:[%s1 + $0xc0] sm:$0xff]
  %v69 = vld [vmem:[%s1 + $0xc8] sm:$0xff]
  %v70 = vld [vmem:[%s1 + $0xd0] sm:$0xff]
  %v71 = vld [vmem:[%s1 + $0xd8] sm:$0xff]
  %v72 = vld [vmem:[%s1 + $0xe0] sm:$0xff]
  %v73 = vld [vmem:[%s1 + $0xe8] sm:$0xff]
  %v74 = vld [vmem:[%s1 + $0xf0] sm:$0xff]
  %v75 = vld [vmem:[%s1 + $0xf8] sm:$0xff]
  %v76 = vld [vmem:[%s1 + $0x100] sm:$0xff]
  %v77 = vld [vmem:[%s1 + $0x108] sm:$0xff]
  %v78 = vld [vmem:[%s1 + $0x110] sm:$0xff]
  %v79 = vld [vmem:[%s1 + $0x118] sm:$0xff]
  %v80 = vld [vmem:[%s1 + $0x120] sm:$0xff]
  %v81 = vld [vmem:[%s1 + $0x128] sm:$0xff]
  %v82 = vld [vmem:[%s1 + $0x130] sm:$0xff]
  %v83 = vld [vmem:[%s1 + $0x138] sm:$0xff]
  %vm84 = vcmask 523264
  %v86 = vsel %vm84, %v40, 0
  %v89 = vsel %vm84, %v43, 0
  %91 = vmatprep.subr.mxu0 0.0
  %92 = vmatpush1.msra.mxu0 %v44
  %93 = vmatprep.subr.mxu0 0.0
  %94 = vmatpush1.msra.mxu0 %v45
  %95 = vmatprep.subr.mxu0 0.0
  %96 = vmatpush1.msra.mxu0 %v46
  %97 = vmatprep.subr.mxu0 0.0
  %98 = vmatpush1.msra.mxu0 %v47
  %99 = vmatprep.subr.mxu0 0.0
  %100 = vmatpush1.msra.mxu0 %v48
  %101 = vmatprep.subr.mxu0 0.0
  %102 = vmatpush1.msra.mxu0 %v49
  %103 = vmatprep.subr.mxu0 0.0
  %104 = vmatpush1.msra.mxu0 %v50
  %105 = vmatprep.subr.mxu0 0.0
  %106 = vmatpush1.msra.mxu0 %v51
  %107 = vmatprep.subr.mxu0 0.0
  %108 = vmatpush1.msra.mxu0 %v52
  %109 = vmatprep.subr.mxu0 0.0
  %110 = vmatpush1.msra.mxu0 %v53
  %111 = vmatprep.subr.mxu0 0.0
  %112 = vmatpush1.msra.mxu0 %v54
  %113 = vmatprep.subr.mxu0 0.0
  %114 = vmatpush1.msra.mxu0 %v55
  %115 = vmatprep.subr.mxu0 0.0
  %116 = vmatpush1.msra.mxu0 %v56
  %117 = vmatprep.subr.mxu0 0.0
  %118 = vmatpush1.msra.mxu0 %v57
  %119 = vmatprep.subr.mxu0 0.0
  %120 = vmatpush1.msra.mxu0 %v58
  %121 = vmatprep.subr.mxu0 0.0
  %122 = vmatpush1.msra.mxu0 %v59
  %123 = vmatprep.subr.mxu0 0.0
  %124 = vmatpush1.msra.mxu0 %v60
  %125 = vmatprep.subr.mxu0 0.0
  %126 = vmatpush1.msra.mxu0 %v61
  %127 = vmatprep.subr.mxu0 0.0
  %128 = vmatpush1.msra.mxu0 %v62
  %129 = vmatprep.subr.mxu0 0.0
  %130 = vmatpush1.msra.mxu0 %v63
  %131 = vmatprep.subr.mxu0 0.0
  %132 = vmatpush1.msra.mxu0 %v64
  %133 = vmatprep.subr.mxu0 0.0
  %134 = vmatpush1.msra.mxu0 %v65
  %135 = vmatprep.subr.mxu0 0.0
  %136 = vmatpush1.msra.mxu0 %v66
  %137 = vmatprep.subr.mxu0 0.0
  %138 = vmatpush1.msra.mxu0 %v67
  %139 = vmatprep.subr.mxu0 0.0
  %140 = vmatpush1.msra.mxu0 %v68
  %141 = vmatprep.subr.mxu0 0.0
  %142 = vmatpush1.msra.mxu0 %v69
  %143 = vmatprep.subr.mxu0 0.0
  %144 = vmatpush1.msra.mxu0 %v70
  %145 = vmatprep.subr.mxu0 0.0
  %146 = vmatpush1.msra.mxu0 %v71
  %147 = vmatprep.subr.mxu0 0.0
  %148 = vmatpush1.msra.mxu0 %v72
  %149 = vmatprep.subr.mxu0 0.0
  %150 = vmatpush1.msra.mxu0 %v73
  %151 = vmatprep.subr.mxu0 0.0
  %152 = vmatpush1.msra.mxu0 %v74
  %153 = vmatprep.subr.mxu0 0.0
  %154 = vmatpush1.msra.mxu0 %v75
  %155 = vmatprep.mubr.f32.mxu0 %v39
  %156 = vmatmul.mubr.f32.gmra.mrb[0].mxu0 %v38
  %v157 = vpop.f32.mrb[0].mxu0
  %v158 = vadd.f32 0.0, %v157
  %v159 = vpop.f32.mrb[0].mxu0
  %160 = vmatprep.mubr.f32.mxu0 %v42
  %161 = vmatmul.mubr.f32.gmra.mrb[0].mxu0 %v41
  %v162 = vpop.f32.mrb[0].mxu0
  %v163 = vadd.f32 0.0, %v162
  %v164 = vpop.f32.mrb[0].mxu0
  %165 = vdwg.mxu0
  %166 = vmatprep.subr.mxu0 0.0
  %167 = vmatpush1.msra.mxu0 %v76
  %168 = vmatprep.subr.mxu0 0.0
  %169 = vmatpush1.msra.mxu0 %v77
  %170 = vmatprep.subr.mxu0 0.0
  %171 = vmatpush1.msra.mxu0 %v78
  %172 = vmatprep.subr.mxu0 0.0
  %173 = vmatpush1.msra.mxu0 %v79
  %174 = vmatprep.subr.mxu0 0.0
  %175 = vmatpush1.msra.mxu0 %v80
  %176 = vmatprep.subr.mxu0 0.0
  %177 = vmatpush1.msra.mxu0 %v81
  %178 = vmatprep.subr.mxu0 0.0
  %179 = vmatpush1.msra.mxu0 %v82
  %180 = vmatprep.subr.mxu0 0.0
  %181 = vmatpush1.msra.mxu0 %v83
  %182 = vmatprep.subr.mxu0 0.0
  %183 = vmatpush1.msra.mxu0 0.0
  %184 = vmatprep.subr.mxu0 0.0
  %185 = vmatpush1.msra.mxu0 0.0
  %186 = vmatprep.subr.mxu0 0.0
  %187 = vmatpush1.msra.mxu0 0.0
  %188 = vmatprep.subr.mxu0 0.0
  %189 = vmatpush1.msra.mxu0 0.0
  %190 = vmatprep.subr.mxu0 0.0
  %191 = vmatpush1.msra.mxu0 0.0
  %192 = vmatprep.subr.mxu0 0.0
  %193 = vmatpush1.msra.mxu0 0.0
  %194 = vmatprep.subr.mxu0 0.0
  %195 = vmatpush1.msra.mxu0 0.0
  %196 = vmatprep.subr.mxu0 0.0
  %197 = vmatpush1.msra.mxu0 0.0
  %198 = vmatprep.subr.mxu0 0.0
  %199 = vmatpush1.msra.mxu0 0.0
  %200 = vmatprep.subr.mxu0 0.0
  %201 = vmatpush1.msra.mxu0 0.0
  %202 = vmatprep.subr.mxu0 0.0
  %203 = vmatpush1.msra.mxu0 0.0
  %204 = vmatprep.subr.mxu0 0.0
  %205 = vmatpush1.msra.mxu0 0.0
  %206 = vmatprep.subr.mxu0 0.0
  %207 = vmatpush1.msra.mxu0 0.0
  %208 = vmatprep.subr.mxu0 0.0
  %209 = vmatpush1.msra.mxu0 0.0
  %210 = vmatprep.subr.mxu0 0.0
  %211 = vmatpush1.msra.mxu0 0.0
  %212 = vmatprep.subr.mxu0 0.0
  %213 = vmatpush1.msra.mxu0 0.0
  %214 = vmatprep.subr.mxu0 0.0
  %215 = vmatpush1.msra.mxu0 0.0
  %216 = vmatprep.subr.mxu0 0.0
  %217 = vmatpush1.msra.mxu0 0.0
  %218 = vmatprep.subr.mxu0 0.0
  %219 = vmatpush1.msra.mxu0 0.0
  %220 = vmatprep.subr.mxu0 0.0
  %221 = vmatpush1.msra.mxu0 0.0
  %222 = vmatprep.subr.mxu0 0.0
  %223 = vmatpush1.msra.mxu0 0.0
  %224 = vmatprep.subr.mxu0 0.0
  %225 = vmatpush1.msra.mxu0 0.0
  %226 = vmatprep.subr.mxu0 0.0
  %227 = vmatpush1.msra.mxu0 0.0
  %228 = vmatprep.subr.mxu0 0.0
  %229 = vmatpush1.msra.mxu0 0.0
  %230 = vmatprep.mubr.f32.mxu0 0.0
  %231 = vmatmul.mubr.f32.gmra.mrb[0].mxu0 %v86
  %v232 = vpop.f32.mrb[0].mxu0
  %v233 = vadd.f32 %v158, %v232
  %v234 = vpop.f32.mrb[0].mxu0
  %235 = vmatprep.mubr.f32.mxu0 0.0
  %236 = vmatmul.mubr.f32.gmra.mrb[0].mxu0 %v89
  %v237 = vpop.f32.mrb[0].mxu0
  %v238 = vadd.f32 %v163, %v237
  %v239 = vpop.f32.mrb[0].mxu0
  %240 = vdwg.mxu0
  %vm241 = vcmask 261120
  %v242 = vsel %vm241, %v233, 0.0
  %243 = vadd.xlane.f32.xlu0 %v242
  %v244 = vpop.xlane.xlu0 %243
  %v245 = vsel %vm241, %v238, 0.0
  %246 = vadd.xlane.f32.xlu0 %v245
  %v247 = vpop.xlane.xlu0 %246
  %v248 = vrcp.pop 32.0
  %v249 = vmul.f32 %v244, %v248
  %v250 = vmul.f32 %v247, %v248
  %v251 = vsub.f32 %v233, %v249
  %v252 = vsub.f32 %v238, %v250
  %v253 = vmul.f32 %v251, %v251
  %v254 = vmul.f32 %v252, %v252
  %v255 = vsel %vm241, %v253, 0.0
  %256 = vadd.xlane.f32.xlu0 %v255
  %v257 = vpop.xlane.xlu0 %256
  %v258 = vsel %vm241, %v254, 0.0
  %259 = vadd.xlane.f32.xlu0 %v258
  %v260 = vpop.xlane.xlu0 %259
  %v261 = vmul.f32 %v257, %v248
  %v262 = vmul.f32 %v260, %v248
  %v263 = vadd.f32 %v261, 1e-05
  %v264 = vadd.f32 %v262, 1e-05
  %v265 = vrsqrt.pop %v263
  %v266 = vrsqrt.pop %v264
  %v267 = vmul.f32 %v251, %v265
  %v268 = vmul.f32 %v252, %v266
  %v269 = vld [vmem:[%s2] sm:$0x1]
  %v271 = vlaneseq
  %v272 = vshrl.u32 %v271, 7
  %v273 = vsub.s32 0, %v272
  %v274 = vrot.slane %v269, %v273
  %v276 = vmul.f32 %v267, %v274
  %v277 = vmul.f32 %v268, %v274
  %v278 = vld [vmem:[%s3] sm:$0x1]
  %v280 = vlaneseq
  %v281 = vshrl.u32 %v280, 7
  %v282 = vsub.s32 0, %v281
  %v283 = vrot.slane %v278, %v282
  %v285 = vadd.f32 %v276, %v283
  %v286 = vadd.f32 %v277, %v283
  %v287 = vld [vmem:[%s4] sm:$0xff]
  %v288 = vld [vmem:[%s4 + $0x8] sm:$0xff]
  %v289 = vld [vmem:[%s4 + $0x10] sm:$0xff]
  %v290 = vld [vmem:[%s4 + $0x18] sm:$0xff]
  %v291 = vld [vmem:[%s5] sm:$0x1]
  %v293 = vlaneseq
  %v294 = vshrl.u32 %v293, 7
  %v295 = vsub.s32 0, %v294
  %v296 = vrot.slane %v291, %v295
  %v299 = vsel %vm241, %v285, 0
  %v302 = vsel %vm241, %v286, 0
  %304 = vmatprep.subr.mxu0 0.0
  %305 = vmatpush1.msra.mxu0 %v287
  %306 = vmatprep.subr.mxu0 0.0
  %307 = vmatpush1.msra.mxu0 %v288
  %308 = vmatprep.subr.mxu0 0.0
  %309 = vmatpush1.msra.mxu0 %v289
  %310 = vmatprep.subr.mxu0 0.0
  %311 = vmatpush1.msra.mxu0 %v290
  %312 = vmatprep.subr.mxu0 0.0
  %313 = vmatpush1.msra.mxu0 0.0
  %314 = vmatprep.subr.mxu0 0.0
  %315 = vmatpush1.msra.mxu0 0.0
  %316 = vmatprep.subr.mxu0 0.0
  %317 = vmatpush1.msra.mxu0 0.0
  %318 = vmatprep.subr.mxu0 0.0
  %319 = vmatpush1.msra.mxu0 0.0
  %320 = vmatprep.subr.mxu0 0.0
  %321 = vmatpush1.msra.mxu0 0.0
  %322 = vmatprep.subr.mxu0 0.0
  %323 = vmatpush1.msra.mxu0 0.0
  %324 = vmatprep.subr.mxu0 0.0
  %325 = vmatpush1.msra.mxu0 0.0
  %326 = vmatprep.subr.mxu0 0.0
  %327 = vmatpush1.msra.mxu0 0.0
  %328 = vmatprep.subr.mxu0 0.0
  %329 = vmatpush1.msra.mxu0 0.0
  %330 = vmatprep.subr.mxu0 0.0
  %331 = vmatpush1.msra.mxu0 0.0
  %332 = vmatprep.subr.mxu0 0.0
  %333 = vmatpush1.msra.mxu0 0.0
  %334 = vmatprep.subr.mxu0 0.0
  %335 = vmatpush1.msra.mxu0 0.0
  %336 = vmatprep.subr.mxu0 0.0
  %337 = vmatpush1.msra.mxu0 0.0
  %338 = vmatprep.subr.mxu0 0.0
  %339 = vmatpush1.msra.mxu0 0.0
  %340 = vmatprep.subr.mxu0 0.0
  %341 = vmatpush1.msra.mxu0 0.0
  %342 = vmatprep.subr.mxu0 0.0
  %343 = vmatpush1.msra.mxu0 0.0
  %344 = vmatprep.subr.mxu0 0.0
  %345 = vmatpush1.msra.mxu0 0.0
  %346 = vmatprep.subr.mxu0 0.0
  %347 = vmatpush1.msra.mxu0 0.0
  %348 = vmatprep.subr.mxu0 0.0
  %349 = vmatpush1.msra.mxu0 0.0
  %350 = vmatprep.subr.mxu0 0.0
  %351 = vmatpush1.msra.mxu0 0.0
  %352 = vmatprep.subr.mxu0 0.0
  %353 = vmatpush1.msra.mxu0 0.0
  %354 = vmatprep.subr.mxu0 0.0
  %355 = vmatpush1.msra.mxu0 0.0
  %356 = vmatprep.subr.mxu0 0.0
  %357 = vmatpush1.msra.mxu0 0.0
  %358 = vmatprep.subr.mxu0 0.0
  %359 = vmatpush1.msra.mxu0 0.0
  %360 = vmatprep.subr.mxu0 0.0
  %361 = vmatpush1.msra.mxu0 0.0
  %362 = vmatprep.subr.mxu0 0.0
  %363 = vmatpush1.msra.mxu0 0.0
  %364 = vmatprep.subr.mxu0 0.0
  %365 = vmatpush1.msra.mxu0 0.0
  %366 = vmatprep.subr.mxu0 0.0
  %367 = vmatpush1.msra.mxu0 0.0
  %368 = vmatprep.mubr.f32.mxu0 0.0
  %369 = vmatmul.mubr.f32.gmra.mrb[0].mxu0 %v299
  %v370 = vpop.f32.mrb[0].mxu0
  %v371 = vadd.f32 %v296, %v370
  %v372 = vpop.f32.mrb[0].mxu0
  %373 = vmatprep.mubr.f32.mxu0 0.0
  %374 = vmatmul.mubr.f32.gmra.mrb[0].mxu0 %v302
  %v375 = vpop.f32.mrb[0].mxu0
  %v376 = vadd.f32 %v296, %v375
  %v377 = vpop.f32.mrb[0].mxu0
  %378 = vdwg.mxu0
  %v379 = vsub.f32 0.0, %v371
  %v380 = vsub.f32 0.0, %v376
  %v381 = vmul.f32 %v379, 1.442695
  %v382 = vpow.pop %v381
  %v383 = vmul.f32 %v380, 1.442695
  %v384 = vpow.pop %v383
  %v385 = vadd.f32 %v382, 1.0
  %v386 = vadd.f32 %v384, 1.0
  %v387 = vrcp.pop %v385
  %v388 = vrcp.pop %v386
  %v389 = vmul.f32 %v371, %v387
  %v390 = vmul.f32 %v376, %v388
  %v391 = vld [vmem:[%s6] sm:$0xff]
  %v392 = vld [vmem:[%s6 + $0x8] sm:$0xff]
  %v393 = vld [vmem:[%s6 + $0x10] sm:$0xff]
  %v394 = vld [vmem:[%s6 + $0x18] sm:$0xff]
  %v395 = vld [vmem:[%s6 + $0x20] sm:$0xff]
  %v396 = vld [vmem:[%s6 + $0x28] sm:$0xff]
  %v397 = vld [vmem:[%s6 + $0x30] sm:$0xff]
  %v398 = vld [vmem:[%s6 + $0x38] sm:$0xff]
  %v399 = vld [vmem:[%s7] sm:$0x1]
  %v401 = vlaneseq
  %v402 = vshrl.u32 %v401, 7
  %v403 = vsub.s32 0, %v402
  %v404 = vrot.slane %v399, %v403
  %v407 = vsel %vm84, %v389, 0
  %v410 = vsel %vm84, %v390, 0
  %412 = vmatprep.subr.mxu0 0.0
  %413 = vmatpush1.msra.mxu0 %v391
  %414 = vmatprep.subr.mxu0 0.0
  %415 = vmatpush1.msra.mxu0 %v392
  %416 = vmatprep.subr.mxu0 0.0
  %417 = vmatpush1.msra.mxu0 %v393
  %418 = vmatprep.subr.mxu0 0.0
  %419 = vmatpush1.msra.mxu0 %v394
  %420 = vmatprep.subr.mxu0 0.0
  %421 = vmatpush1.msra.mxu0 %v395
  %422 = vmatprep.subr.mxu0 0.0
  %423 = vmatpush1.msra.mxu0 %v396
  %424 = vmatprep.subr.mxu0 0.0
  %425 = vmatpush1.msra.mxu0 %v397
  %426 = vmatprep.subr.mxu0 0.0
  %427 = vmatpush1.msra.mxu0 %v398
  %428 = vmatprep.subr.mxu0 0.0
  %429 = vmatpush1.msra.mxu0 0.0
  %430 = vmatprep.subr.mxu0 0.0
  %431 = vmatpush1.msra.mxu0 0.0
  %432 = vmatprep.subr.mxu0 0.0
  %433 = vmatpush1.msra.mxu0 0.0
  %434 = vmatprep.subr.mxu0 0.0
  %435 = vmatpush1.msra.mxu0 0.0
  %436 = vmatprep.subr.mxu0 0.0
  %437 = vmatpush1.msra.mxu0 0.0
  %438 = vmatprep.subr.mxu0 0.0
  %439 = vmatpush1.msra.mxu0 0.0
  %440 = vmatprep.subr.mxu0 0.0
  %441 = vmatpush1.msra.mxu0 0.0
  %442 = vmatprep.subr.mxu0 0.0
  %443 = vmatpush1.msra.mxu0 0.0
  %444 = vmatprep.subr.mxu0 0.0
  %445 = vmatpush1.msra.mxu0 0.0
  %446 = vmatprep.subr.mxu0 0.0
  %447 = vmatpush1.msra.mxu0 0.0
  %448 = vmatprep.subr.mxu0 0.0
  %449 = vmatpush1.msra.mxu0 0.0
  %450 = vmatprep.subr.mxu0 0.0
  %451 = vmatpush1.msra.mxu0 0.0
  %452 = vmatprep.subr.mxu0 0.0
  %453 = vmatpush1.msra.mxu0 0.0
  %454 = vmatprep.subr.mxu0 0.0
  %455 = vmatpush1.msra.mxu0 0.0
  %456 = vmatprep.subr.mxu0 0.0
  %457 = vmatpush1.msra.mxu0 0.0
  %458 = vmatprep.subr.mxu0 0.0
  %459 = vmatpush1.msra.mxu0 0.0
  %460 = vmatprep.subr.mxu0 0.0
  %461 = vmatpush1.msra.mxu0 0.0
  %462 = vmatprep.subr.mxu0 0.0
  %463 = vmatpush1.msra.mxu0 0.0
  %464 = vmatprep.subr.mxu0 0.0
  %465 = vmatpush1.msra.mxu0 0.0
  %466 = vmatprep.subr.mxu0 0.0
  %467 = vmatpush1.msra.mxu0 0.0
  %468 = vmatprep.subr.mxu0 0.0
  %469 = vmatpush1.msra.mxu0 0.0
  %470 = vmatprep.subr.mxu0 0.0
  %471 = vmatpush1.msra.mxu0 0.0
  %472 = vmatprep.subr.mxu0 0.0
  %473 = vmatpush1.msra.mxu0 0.0
  %474 = vmatprep.subr.mxu0 0.0
  %475 = vmatpush1.msra.mxu0 0.0
  %476 = vmatprep.mubr.f32.mxu0 0.0
  %477 = vmatmul.mubr.f32.gmra.mrb[0].mxu0 %v407
  %v478 = vpop.f32.mrb[0].mxu0
  %v479 = vadd.f32 %v404, %v478
  %v480 = vpop.f32.mrb[0].mxu0
  %481 = vmatprep.mubr.f32.mxu0 0.0
  %482 = vmatmul.mubr.f32.gmra.mrb[0].mxu0 %v410
  %v483 = vpop.f32.mrb[0].mxu0
  %v484 = vadd.f32 %v404, %v483
  %v485 = vpop.f32.mrb[0].mxu0
  %486 = vdwg.mxu0
  %v487 = vsub.f32 0.0, %v479
  %v488 = vsub.f32 0.0, %v484
  %v489 = vmul.f32 %v487, 1.442695
  %v490 = vpow.pop %v489
  %v491 = vmul.f32 %v488, 1.442695
  %v492 = vpow.pop %v491
  %v493 = vadd.f32 %v490, 1.0
  %v494 = vadd.f32 %v492, 1.0
  %v495 = vrcp.pop %v493
  %v496 = vrcp.pop %v494
  %v497 = vmul.f32 %v479, %v495
  %v498 = vmul.f32 %v484, %v496
  %501 = vrot.lane.b32.xlu0 %v497, 32
  %v502 = vpop.permute.xlu0 %501
  %503 = vrot.lane.b32.xlu0 %v498, 32
  %v504 = vpop.permute.xlu0 %503
  %507 = vrot.lane.b32.xlu0 %v497, 64
  %v508 = vpop.permute.xlu0 %507
  %509 = vrot.lane.b32.xlu0 %v498, 64
  %v510 = vpop.permute.xlu0 %509
  %513 = vrot.lane.b32.xlu0 %v497, 96
  %v514 = vpop.permute.xlu0 %513
  %515 = vrot.lane.b32.xlu0 %v498, 96
  %v516 = vpop.permute.xlu0 %515
  %v519 = vsel %vm84, %v497, %v502
  %v520 = vsel %vm84, %v498, %v504
  %vm521 = vcmask 785408
  %v522 = vsel %vm521, %v519, %v508
  %v523 = vsel %vm521, %v520, %v510
  %v524 = vsel %vm241, %v508, %v514
  %v525 = vsel %vm241, %v510, %v516
  %v526 = vsel %vm84, %v524, %v497
  %v527 = vsel %vm84, %v525, %v498
  %v528 = vsel %vm521, %v526, %v502
  %v529 = vsel %vm521, %v527, %v504
  %v530 = vld [vmem:[%s8] sm:$0xff]
  %v531 = vld [vmem:[%s8 + $0x8] sm:$0xff]
  %v532 = vld [vmem:[%s8 + $0x10] sm:$0xff]
  %v533 = vld [vmem:[%s8 + $0x18] sm:$0xff]
  %v534 = vld [vmem:[%s8 + $0x20] sm:$0xff]
  %v535 = vld [vmem:[%s8 + $0x28] sm:$0xff]
  %v536 = vld [vmem:[%s8 + $0x30] sm:$0xff]
  %v537 = vld [vmem:[%s8 + $0x38] sm:$0xff]
  %v538 = vld [vmem:[%s8 + $0x40] sm:$0xff]
  %v539 = vld [vmem:[%s8 + $0x48] sm:$0xff]
  %v540 = vld [vmem:[%s8 + $0x50] sm:$0xff]
  %v541 = vld [vmem:[%s8 + $0x58] sm:$0xff]
  %v542 = vld [vmem:[%s8 + $0x60] sm:$0xff]
  %v543 = vld [vmem:[%s8 + $0x68] sm:$0xff]
  %v544 = vld [vmem:[%s8 + $0x70] sm:$0xff]
  %v545 = vld [vmem:[%s8 + $0x78] sm:$0xff]
  %v546 = vld [vmem:[%s8 + $0x80] sm:$0xff]
  %v547 = vld [vmem:[%s8 + $0x88] sm:$0xff]
  %v548 = vld [vmem:[%s8 + $0x90] sm:$0xff]
  %v549 = vld [vmem:[%s8 + $0x98] sm:$0xff]
  %v550 = vld [vmem:[%s8 + $0xa0] sm:$0xff]
  %v551 = vld [vmem:[%s8 + $0xa8] sm:$0xff]
  %v552 = vld [vmem:[%s8 + $0xb0] sm:$0xff]
  %v553 = vld [vmem:[%s8 + $0xb8] sm:$0xff]
  %v554 = vld [vmem:[%s8 + $0xc0] sm:$0xff]
  %v555 = vld [vmem:[%s8 + $0xc8] sm:$0xff]
  %v556 = vld [vmem:[%s8 + $0xd0] sm:$0xff]
  %v557 = vld [vmem:[%s8 + $0xd8] sm:$0xff]
  %v558 = vld [vmem:[%s8 + $0xe0] sm:$0xff]
  %v559 = vld [vmem:[%s8 + $0xe8] sm:$0xff]
  %v560 = vld [vmem:[%s8 + $0xf0] sm:$0xff]
  %v561 = vld [vmem:[%s8 + $0xf8] sm:$0xff]
  %v562 = vld [vmem:[%s8 + $0x100] sm:$0xff]
  %v563 = vld [vmem:[%s8 + $0x108] sm:$0xff]
  %v564 = vld [vmem:[%s8 + $0x110] sm:$0xff]
  %v565 = vld [vmem:[%s8 + $0x118] sm:$0xff]
  %v566 = vld [vmem:[%s8 + $0x120] sm:$0xff]
  %v567 = vld [vmem:[%s8 + $0x128] sm:$0xff]
  %v568 = vld [vmem:[%s8 + $0x130] sm:$0xff]
  %v569 = vld [vmem:[%s8 + $0x138] sm:$0xff]
  %v570 = vld [vmem:[%s8 + $0x140] sm:$0xff]
  %v571 = vld [vmem:[%s8 + $0x148] sm:$0xff]
  %v572 = vld [vmem:[%s8 + $0x150] sm:$0xff]
  %v573 = vld [vmem:[%s8 + $0x158] sm:$0xff]
  %v574 = vld [vmem:[%s8 + $0x160] sm:$0xff]
  %v575 = vld [vmem:[%s8 + $0x168] sm:$0xff]
  %v576 = vld [vmem:[%s8 + $0x170] sm:$0xff]
  %v577 = vld [vmem:[%s8 + $0x178] sm:$0xff]
  %v578 = vld [vmem:[%s8 + $0x180] sm:$0xff]
  %v579 = vld [vmem:[%s8 + $0x188] sm:$0xff]
  %v580 = vld [vmem:[%s8 + $0x190] sm:$0xff]
  %v581 = vld [vmem:[%s8 + $0x198] sm:$0xff]
  %v582 = vld [vmem:[%s8 + $0x1a0] sm:$0xff]
  %v583 = vld [vmem:[%s8 + $0x1a8] sm:$0xff]
  %v584 = vld [vmem:[%s8 + $0x1b0] sm:$0xff]
  %v585 = vld [vmem:[%s8 + $0x1b8] sm:$0xff]
  %v586 = vld [vmem:[%s8 + $0x1c0] sm:$0xff]
  %v587 = vld [vmem:[%s8 + $0x1c8] sm:$0xff]
  %v588 = vld [vmem:[%s8 + $0x1d0] sm:$0xff]
  %v589 = vld [vmem:[%s8 + $0x1d8] sm:$0xff]
  %v590 = vld [vmem:[%s8 + $0x1e0] sm:$0xff]
  %v591 = vld [vmem:[%s8 + $0x1e8] sm:$0xff]
  %v592 = vld [vmem:[%s8 + $0x1f0] sm:$0xff]
  %v593 = vld [vmem:[%s8 + $0x1f8] sm:$0xff]
  %v594 = vld [vmem:[%s8 + $0x200] sm:$0xff]
  %v595 = vld [vmem:[%s8 + $0x208] sm:$0xff]
  %v596 = vld [vmem:[%s8 + $0x210] sm:$0xff]
  %v597 = vld [vmem:[%s8 + $0x218] sm:$0xff]
  %v598 = vld [vmem:[%s8 + $0x220] sm:$0xff]
  %v599 = vld [vmem:[%s8 + $0x228] sm:$0xff]
  %v600 = vld [vmem:[%s8 + $0x230] sm:$0xff]
  %v601 = vld [vmem:[%s8 + $0x238] sm:$0xff]
  %v602 = vld [vmem:[%s8 + $0x240] sm:$0xff]
  %v603 = vld [vmem:[%s8 + $0x248] sm:$0xff]
  %v604 = vld [vmem:[%s8 + $0x250] sm:$0xff]
  %v605 = vld [vmem:[%s8 + $0x258] sm:$0xff]
  %v606 = vld [vmem:[%s8 + $0x260] sm:$0xff]
  %v607 = vld [vmem:[%s8 + $0x268] sm:$0xff]
  %v608 = vld [vmem:[%s8 + $0x270] sm:$0xff]
  %v609 = vld [vmem:[%s8 + $0x278] sm:$0xff]
  %v610 = vld [vmem:[%s8 + $0x280] sm:$0xff]
  %v611 = vld [vmem:[%s8 + $0x288] sm:$0xff]
  %v612 = vld [vmem:[%s8 + $0x290] sm:$0xff]
  %v613 = vld [vmem:[%s8 + $0x298] sm:$0xff]
  %v614 = vld [vmem:[%s8 + $0x2a0] sm:$0xff]
  %v615 = vld [vmem:[%s8 + $0x2a8] sm:$0xff]
  %v616 = vld [vmem:[%s8 + $0x2b0] sm:$0xff]
  %v617 = vld [vmem:[%s8 + $0x2b8] sm:$0xff]
  %v618 = vld [vmem:[%s8 + $0x2c0] sm:$0xff]
  %v619 = vld [vmem:[%s8 + $0x2c8] sm:$0xff]
  %v620 = vld [vmem:[%s8 + $0x2d0] sm:$0xff]
  %v621 = vld [vmem:[%s8 + $0x2d8] sm:$0xff]
  %v622 = vld [vmem:[%s8 + $0x2e0] sm:$0xff]
  %v623 = vld [vmem:[%s8 + $0x2e8] sm:$0xff]
  %v624 = vld [vmem:[%s8 + $0x2f0] sm:$0xff]
  %v625 = vld [vmem:[%s8 + $0x2f8] sm:$0xff]
  %v626 = vld [vmem:[%s8 + $0x300] sm:$0xff]
  %v627 = vld [vmem:[%s8 + $0x308] sm:$0xff]
  %v628 = vld [vmem:[%s8 + $0x310] sm:$0xff]
  %v629 = vld [vmem:[%s8 + $0x318] sm:$0xff]
  %v630 = vld [vmem:[%s8 + $0x320] sm:$0xff]
  %v631 = vld [vmem:[%s8 + $0x328] sm:$0xff]
  %v632 = vld [vmem:[%s8 + $0x330] sm:$0xff]
  %v633 = vld [vmem:[%s8 + $0x338] sm:$0xff]
  %v634 = vld [vmem:[%s8 + $0x340] sm:$0xff]
  %v635 = vld [vmem:[%s8 + $0x348] sm:$0xff]
  %v636 = vld [vmem:[%s8 + $0x350] sm:$0xff]
  %v637 = vld [vmem:[%s8 + $0x358] sm:$0xff]
  %v638 = vld [vmem:[%s8 + $0x360] sm:$0xff]
  %v639 = vld [vmem:[%s8 + $0x368] sm:$0xff]
  %v640 = vld [vmem:[%s8 + $0x370] sm:$0xff]
  %v641 = vld [vmem:[%s8 + $0x378] sm:$0xff]
  %v642 = vld [vmem:[%s8 + $0x380] sm:$0xff]
  %v643 = vld [vmem:[%s8 + $0x388] sm:$0xff]
  %v644 = vld [vmem:[%s8 + $0x390] sm:$0xff]
  %v645 = vld [vmem:[%s8 + $0x398] sm:$0xff]
  %v646 = vld [vmem:[%s8 + $0x3a0] sm:$0xff]
  %v647 = vld [vmem:[%s8 + $0x3a8] sm:$0xff]
  %v648 = vld [vmem:[%s8 + $0x3b0] sm:$0xff]
  %v649 = vld [vmem:[%s8 + $0x3b8] sm:$0xff]
  %v651 = vsel %vm84, %v34, 0
  %v654 = vsel %vm84, %v37, 0
  %656 = vmatprep.subr.mxu0 %v531
  %657 = vmatpush1.msra.mxu0 %v530
  %658 = vmatprep.subr.mxu0 %v534
  %659 = vmatpush1.msra.mxu0 %v533
  %660 = vmatprep.subr.mxu0 %v537
  %661 = vmatpush1.msra.mxu0 %v536
  %662 = vmatprep.subr.mxu0 %v540
  %663 = vmatpush1.msra.mxu0 %v539
  %664 = vmatprep.subr.mxu0 %v543
  %665 = vmatpush1.msra.mxu0 %v542
  %666 = vmatprep.subr.mxu0 %v546
  %667 = vmatpush1.msra.mxu0 %v545
  %668 = vmatprep.subr.mxu0 %v549
  %669 = vmatpush1.msra.mxu0 %v548
  %670 = vmatprep.subr.mxu0 %v552
  %671 = vmatpush1.msra.mxu0 %v551
  %672 = vmatprep.subr.mxu0 %v555
  %673 = vmatpush1.msra.mxu0 %v554
  %674 = vmatprep.subr.mxu0 %v558
  %675 = vmatpush1.msra.mxu0 %v557
  %676 = vmatprep.subr.mxu0 %v561
  %677 = vmatpush1.msra.mxu0 %v560
  %678 = vmatprep.subr.mxu0 %v564
  %679 = vmatpush1.msra.mxu0 %v563
  %680 = vmatprep.subr.mxu0 %v567
  %681 = vmatpush1.msra.mxu0 %v566
  %682 = vmatprep.subr.mxu0 %v570
  %683 = vmatpush1.msra.mxu0 %v569
  %684 = vmatprep.subr.mxu0 %v573
  %685 = vmatpush1.msra.mxu0 %v572
  %686 = vmatprep.subr.mxu0 %v576
  %687 = vmatpush1.msra.mxu0 %v575
  %688 = vmatprep.subr.mxu0 %v579
  %689 = vmatpush1.msra.mxu0 %v578
  %690 = vmatprep.subr.mxu0 %v582
  %691 = vmatpush1.msra.mxu0 %v581
  %692 = vmatprep.subr.mxu0 %v585
  %693 = vmatpush1.msra.mxu0 %v584
  %694 = vmatprep.subr.mxu0 %v588
  %695 = vmatpush1.msra.mxu0 %v587
  %696 = vmatprep.subr.mxu0 %v591
  %697 = vmatpush1.msra.mxu0 %v590
  %698 = vmatprep.subr.mxu0 %v594
  %699 = vmatpush1.msra.mxu0 %v593
  %700 = vmatprep.subr.mxu0 %v597
  %701 = vmatpush1.msra.mxu0 %v596
  %702 = vmatprep.subr.mxu0 %v600
  %703 = vmatpush1.msra.mxu0 %v599
  %704 = vmatprep.subr.mxu0 %v603
  %705 = vmatpush1.msra.mxu0 %v602
  %706 = vmatprep.subr.mxu0 %v606
  %707 = vmatpush1.msra.mxu0 %v605
  %708 = vmatprep.subr.mxu0 %v609
  %709 = vmatpush1.msra.mxu0 %v608
  %710 = vmatprep.subr.mxu0 %v612
  %711 = vmatpush1.msra.mxu0 %v611
  %712 = vmatprep.subr.mxu0 %v615
  %713 = vmatpush1.msra.mxu0 %v614
  %714 = vmatprep.subr.mxu0 %v618
  %715 = vmatpush1.msra.mxu0 %v617
  %716 = vmatprep.subr.mxu0 %v621
  %717 = vmatpush1.msra.mxu0 %v620
  %718 = vmatprep.subr.mxu0 %v624
  %719 = vmatpush1.msra.mxu0 %v623
  %720 = vmatprep.mubr.f32.mxu0 %v33
  %721 = vmatmul.mubr.f32.gmra.mrb[0].mxu0 %v32
  %v722 = vpop.f32.mrb[0].mxu0
  %v723 = vadd.f32 0.0, %v722
  %v724 = vpop.f32.mrb[0].mxu0
  %v725 = vadd.f32 0.0, %v724
  %726 = vmatprep.mubr.f32.mxu0 %v36
  %727 = vmatmul.mubr.f32.gmra.mrb[0].mxu0 %v35
  %v728 = vpop.f32.mrb[0].mxu0
  %v729 = vadd.f32 0.0, %v728
  %v730 = vpop.f32.mrb[0].mxu0
  %v731 = vadd.f32 0.0, %v730
  %732 = vdwg.mxu0
  %733 = vmatprep.subr.mxu0 %v627
  %734 = vmatpush1.msra.mxu0 %v626
  %735 = vmatprep.subr.mxu0 %v630
  %736 = vmatpush1.msra.mxu0 %v629
  %737 = vmatprep.subr.mxu0 %v633
  %738 = vmatpush1.msra.mxu0 %v632
  %739 = vmatprep.subr.mxu0 %v636
  %740 = vmatpush1.msra.mxu0 %v635
  %741 = vmatprep.subr.mxu0 %v639
  %742 = vmatpush1.msra.mxu0 %v638
  %743 = vmatprep.subr.mxu0 %v642
  %744 = vmatpush1.msra.mxu0 %v641
  %745 = vmatprep.subr.mxu0 %v645
  %746 = vmatpush1.msra.mxu0 %v644
  %747 = vmatprep.subr.mxu0 %v648
  %748 = vmatpush1.msra.mxu0 %v647
  %749 = vmatprep.subr.mxu0 0.0
  %750 = vmatpush1.msra.mxu0 0.0
  %751 = vmatprep.subr.mxu0 0.0
  %752 = vmatpush1.msra.mxu0 0.0
  %753 = vmatprep.subr.mxu0 0.0
  %754 = vmatpush1.msra.mxu0 0.0
  %755 = vmatprep.subr.mxu0 0.0
  %756 = vmatpush1.msra.mxu0 0.0
  %757 = vmatprep.subr.mxu0 0.0
  %758 = vmatpush1.msra.mxu0 0.0
  %759 = vmatprep.subr.mxu0 0.0
  %760 = vmatpush1.msra.mxu0 0.0
  %761 = vmatprep.subr.mxu0 0.0
  %762 = vmatpush1.msra.mxu0 0.0
  %763 = vmatprep.subr.mxu0 0.0
  %764 = vmatpush1.msra.mxu0 0.0
  %765 = vmatprep.subr.mxu0 0.0
  %766 = vmatpush1.msra.mxu0 0.0
  %767 = vmatprep.subr.mxu0 0.0
  %768 = vmatpush1.msra.mxu0 0.0
  %769 = vmatprep.subr.mxu0 0.0
  %770 = vmatpush1.msra.mxu0 0.0
  %771 = vmatprep.subr.mxu0 0.0
  %772 = vmatpush1.msra.mxu0 0.0
  %773 = vmatprep.subr.mxu0 0.0
  %774 = vmatpush1.msra.mxu0 0.0
  %775 = vmatprep.subr.mxu0 0.0
  %776 = vmatpush1.msra.mxu0 0.0
  %777 = vmatprep.subr.mxu0 0.0
  %778 = vmatpush1.msra.mxu0 0.0
  %779 = vmatprep.subr.mxu0 0.0
  %780 = vmatpush1.msra.mxu0 0.0
  %781 = vmatprep.subr.mxu0 0.0
  %782 = vmatpush1.msra.mxu0 0.0
  %783 = vmatprep.subr.mxu0 0.0
  %784 = vmatpush1.msra.mxu0 0.0
  %785 = vmatprep.subr.mxu0 0.0
  %786 = vmatpush1.msra.mxu0 0.0
  %787 = vmatprep.subr.mxu0 0.0
  %788 = vmatpush1.msra.mxu0 0.0
  %789 = vmatprep.subr.mxu0 0.0
  %790 = vmatpush1.msra.mxu0 0.0
  %791 = vmatprep.subr.mxu0 0.0
  %792 = vmatpush1.msra.mxu0 0.0
  %793 = vmatprep.subr.mxu0 0.0
  %794 = vmatpush1.msra.mxu0 0.0
  %795 = vmatprep.subr.mxu0 0.0
  %796 = vmatpush1.msra.mxu0 0.0
  %797 = vmatprep.mubr.f32.mxu0 0.0
  %798 = vmatmul.mubr.f32.gmra.mrb[0].mxu0 %v651
  %v799 = vpop.f32.mrb[0].mxu0
  %v800 = vadd.f32 %v723, %v799
  %v801 = vpop.f32.mrb[0].mxu0
  %v802 = vadd.f32 %v725, %v801
  %803 = vmatprep.mubr.f32.mxu0 0.0
  %804 = vmatmul.mubr.f32.gmra.mrb[0].mxu0 %v654
  %v805 = vpop.f32.mrb[0].mxu0
  %v806 = vadd.f32 %v729, %v805
  %v807 = vpop.f32.mrb[0].mxu0
  %v808 = vadd.f32 %v731, %v807
  %809 = vdwg.mxu0
  %810 = vmatprep.subr.mxu0 0.0
  %811 = vmatpush1.msra.mxu0 %v532
  %812 = vmatprep.subr.mxu0 0.0
  %813 = vmatpush1.msra.mxu0 %v535
  %814 = vmatprep.subr.mxu0 0.0
  %815 = vmatpush1.msra.mxu0 %v538
  %816 = vmatprep.subr.mxu0 0.0
  %817 = vmatpush1.msra.mxu0 %v541
  %818 = vmatprep.subr.mxu0 0.0
  %819 = vmatpush1.msra.mxu0 %v544
  %820 = vmatprep.subr.mxu0 0.0
  %821 = vmatpush1.msra.mxu0 %v547
  %822 = vmatprep.subr.mxu0 0.0
  %823 = vmatpush1.msra.mxu0 %v550
  %824 = vmatprep.subr.mxu0 0.0
  %825 = vmatpush1.msra.mxu0 %v553
  %826 = vmatprep.subr.mxu0 0.0
  %827 = vmatpush1.msra.mxu0 %v556
  %828 = vmatprep.subr.mxu0 0.0
  %829 = vmatpush1.msra.mxu0 %v559
  %830 = vmatprep.subr.mxu0 0.0
  %831 = vmatpush1.msra.mxu0 %v562
  %832 = vmatprep.subr.mxu0 0.0
  %833 = vmatpush1.msra.mxu0 %v565
  %834 = vmatprep.subr.mxu0 0.0
  %835 = vmatpush1.msra.mxu0 %v568
  %836 = vmatprep.subr.mxu0 0.0
  %837 = vmatpush1.msra.mxu0 %v571
  %838 = vmatprep.subr.mxu0 0.0
  %839 = vmatpush1.msra.mxu0 %v574
  %840 = vmatprep.subr.mxu0 0.0
  %841 = vmatpush1.msra.mxu0 %v577
  %842 = vmatprep.subr.mxu0 0.0
  %843 = vmatpush1.msra.mxu0 %v580
  %844 = vmatprep.subr.mxu0 0.0
  %845 = vmatpush1.msra.mxu0 %v583
  %846 = vmatprep.subr.mxu0 0.0
  %847 = vmatpush1.msra.mxu0 %v586
  %848 = vmatprep.subr.mxu0 0.0
  %849 = vmatpush1.msra.mxu0 %v589
  %850 = vmatprep.subr.mxu0 0.0
  %851 = vmatpush1.msra.mxu0 %v592
  %852 = vmatprep.subr.mxu0 0.0
  %853 = vmatpush1.msra.mxu0 %v595
  %854 = vmatprep.subr.mxu0 0.0
  %855 = vmatpush1.msra.mxu0 %v598
  %856 = vmatprep.subr.mxu0 0.0
  %857 = vmatpush1.msra.mxu0 %v601
  %858 = vmatprep.subr.mxu0 0.0
  %859 = vmatpush1.msra.mxu0 %v604
  %860 = vmatprep.subr.mxu0 0.0
  %861 = vmatpush1.msra.mxu0 %v607
  %862 = vmatprep.subr.mxu0 0.0
  %863 = vmatpush1.msra.mxu0 %v610
  %864 = vmatprep.subr.mxu0 0.0
  %865 = vmatpush1.msra.mxu0 %v613
  %866 = vmatprep.subr.mxu0 0.0
  %867 = vmatpush1.msra.mxu0 %v616
  %868 = vmatprep.subr.mxu0 0.0
  %869 = vmatpush1.msra.mxu0 %v619
  %870 = vmatprep.subr.mxu0 0.0
  %871 = vmatpush1.msra.mxu0 %v622
  %872 = vmatprep.subr.mxu0 0.0
  %873 = vmatpush1.msra.mxu0 %v625
  %874 = vmatprep.mubr.f32.mxu0 %v33
  %875 = vmatmul.mubr.f32.gmra.mrb[0].mxu0 %v32
  %v876 = vpop.f32.mrb[0].mxu0
  %v877 = vadd.f32 0.0, %v876
  %v878 = vpop.f32.mrb[0].mxu0
  %879 = vmatprep.mubr.f32.mxu0 %v36
  %880 = vmatmul.mubr.f32.gmra.mrb[0].mxu0 %v35
  %v881 = vpop.f32.mrb[0].mxu0
  %v882 = vadd.f32 0.0, %v881
  %v883 = vpop.f32.mrb[0].mxu0
  %884 = vdwg.mxu0
  %885 = vmatprep.subr.mxu0 0.0
  %886 = vmatpush1.msra.mxu0 %v628
  %887 = vmatprep.subr.mxu0 0.0
  %888 = vmatpush1.msra.mxu0 %v631
  %889 = vmatprep.subr.mxu0 0.0
  %890 = vmatpush1.msra.mxu0 %v634
  %891 = vmatprep.subr.mxu0 0.0
  %892 = vmatpush1.msra.mxu0 %v637
  %893 = vmatprep.subr.mxu0 0.0
  %894 = vmatpush1.msra.mxu0 %v640
  %895 = vmatprep.subr.mxu0 0.0
  %896 = vmatpush1.msra.mxu0 %v643
  %897 = vmatprep.subr.mxu0 0.0
  %898 = vmatpush1.msra.mxu0 %v646
  %899 = vmatprep.subr.mxu0 0.0
  %900 = vmatpush1.msra.mxu0 %v649
  %901 = vmatprep.subr.mxu0 0.0
  %902 = vmatpush1.msra.mxu0 0.0
  %903 = vmatprep.subr.mxu0 0.0
  %904 = vmatpush1.msra.mxu0 0.0
  %905 = vmatprep.subr.mxu0 0.0
  %906 = vmatpush1.msra.mxu0 0.0
  %907 = vmatprep.subr.mxu0 0.0
  %908 = vmatpush1.msra.mxu0 0.0
  %909 = vmatprep.subr.mxu0 0.0
  %910 = vmatpush1.msra.mxu0 0.0
  %911 = vmatprep.subr.mxu0 0.0
  %912 = vmatpush1.msra.mxu0 0.0
  %913 = vmatprep.subr.mxu0 0.0
  %914 = vmatpush1.msra.mxu0 0.0
  %915 = vmatprep.subr.mxu0 0.0
  %916 = vmatpush1.msra.mxu0 0.0
  %917 = vmatprep.subr.mxu0 0.0
  %918 = vmatpush1.msra.mxu0 0.0
  %919 = vmatprep.subr.mxu0 0.0
  %920 = vmatpush1.msra.mxu0 0.0
  %921 = vmatprep.subr.mxu0 0.0
  %922 = vmatpush1.msra.mxu0 0.0
  %923 = vmatprep.subr.mxu0 0.0
  %924 = vmatpush1.msra.mxu0 0.0
  %925 = vmatprep.subr.mxu0 0.0
  %926 = vmatpush1.msra.mxu0 0.0
  %927 = vmatprep.subr.mxu0 0.0
  %928 = vmatpush1.msra.mxu0 0.0
  %929 = vmatprep.subr.mxu0 0.0
  %930 = vmatpush1.msra.mxu0 0.0
  %931 = vmatprep.subr.mxu0 0.0
  %932 = vmatpush1.msra.mxu0 0.0
  %933 = vmatprep.subr.mxu0 0.0
  %934 = vmatpush1.msra.mxu0 0.0
  %935 = vmatprep.subr.mxu0 0.0
  %936 = vmatpush1.msra.mxu0 0.0
  %937 = vmatprep.subr.mxu0 0.0
  %938 = vmatpush1.msra.mxu0 0.0
  %939 = vmatprep.subr.mxu0 0.0
  %940 = vmatpush1.msra.mxu0 0.0
  %941 = vmatprep.subr.mxu0 0.0
  %942 = vmatpush1.msra.mxu0 0.0
  %943 = vmatprep.subr.mxu0 0.0
  %944 = vmatpush1.msra.mxu0 0.0
  %945 = vmatprep.subr.mxu0 0.0
  %946 = vmatpush1.msra.mxu0 0.0
  %947 = vmatprep.subr.mxu0 0.0
  %948 = vmatpush1.msra.mxu0 0.0
  %949 = vmatprep.mubr.f32.mxu0 0.0
  %950 = vmatmul.mubr.f32.gmra.mrb[0].mxu0 %v651
  %v951 = vpop.f32.mrb[0].mxu0
  %v952 = vadd.f32 %v877, %v951
  %v953 = vpop.f32.mrb[0].mxu0
  %954 = vmatprep.mubr.f32.mxu0 0.0
  %955 = vmatmul.mubr.f32.gmra.mrb[0].mxu0 %v654
  %v956 = vpop.f32.mrb[0].mxu0
  %v957 = vadd.f32 %v882, %v956
  %v958 = vpop.f32.mrb[0].mxu0
  %959 = vdwg.mxu0
  %v960 = vmul.f32 %v800, %v522
  %v961 = vmul.f32 %v802, %v528
  %v962 = vmul.f32 %v952, %v524
  %v963 = vmul.f32 %v806, %v523
  %v964 = vmul.f32 %v808, %v529
  %v965 = vmul.f32 %v957, %v525
  %966 = vst [vmem:[%s9] sm:$0xff] %v960
  %967 = vst [vmem:[%s9 + $0x8] sm:$0xff] %v961
  %968 = vst.msk [vmem:[%s9 + $0x10] sm:$0xff] %vm84, %v962
  %969 = vst [vmem:[%s9 + $0x18] sm:$0xff] %v963
  %970 = vst [vmem:[%s9 + $0x20] sm:$0xff] %v964
  %971 = vst.msk [vmem:[%s9 + $0x28] sm:$0xff] %vm84, %v965
  // Predicated region
  $region38: #{tensornet_forward.9} parent=0 // pred_check
    _
  $region39: #{tensornet_forward.9} parent=0 // pred_check_branch
    %973 = sbr.rel (0) target = $region41
  $region40: #{tensornet_forward.9} parent=0 // pred_region
    _
  $region41: #{tensornet_forward.9} parent=0 // pred_fallthru
    _
  // Predicated region
  $region42: #{tensornet_forward.9} parent=0 // pred_check
    _
  $region43: #{tensornet_forward.9} parent=0 // pred_check_branch
    %975 = sbr.rel (0) target = $region45
  $region44: #{tensornet_forward.9} parent=0 // pred_region
    _
  $region45: #{tensornet_forward.9} parent=0 // pred_fallthru
    _

// kernel: tensornet_forward.11
$region0: #{tensornet_forward.11}
  #allocation0 [shape = 'u32[]', space=smem, size = 0x4, offset = 0x4, fixed_abs, tag = 'smem constant byte address 0x4 - core index']
  #allocation1 [shape = 'u32[144,128]{1,0:T(1,128)}', space=vmem, size = 0x12000, scoped, tag = 'internal scratch']
  %s0 = inlined_call_operand.vmem [shape: f32[16,320], index: 0, kind: input, shape index: {}]
  %s1 = inlined_call_operand.vmem [shape: f32[320,32], index: 1, kind: input, shape index: {}]
  %s2 = inlined_call_operand.vmem [shape: f32[320,320], index: 2, kind: input, shape index: {}]
  %s3 = inlined_call_operand.vmem [shape: f32[16,320], index: 3, kind: output, shape index: {}]
  %s4 = sld [smem:[#allocation0]]
  $region22: #{tensornet_forward.11} parent=0
    _
  %s6 = ssub.s32 1, %s4
  %s7 = scalar_select 0, %s6, %s4
  // Predicated region
  $region2: #{tensornet_forward.11} parent=0 // pred_check
    _
  $region3: #{tensornet_forward.11} parent=0 // pred_check_branch
    %9 = sbr.rel (0) target = $region5
  $region4: #{tensornet_forward.11} parent=0 // pred_region
    _
  $region5: #{tensornet_forward.11} parent=0 // pred_fallthru
    _
  // Predicated region
  $region6: #{tensornet_forward.11} parent=0 // pred_check
    _
  $region7: #{tensornet_forward.11} parent=0 // pred_check_branch
    %11 = sbr.rel (0) target = $region9
  $region8: #{tensornet_forward.11} parent=0 // pred_region
    _
  $region9: #{tensornet_forward.11} parent=0 // pred_fallthru
    _
  // Predicated region
  $region10: #{tensornet_forward.11} parent=0 // pred_check
    _
  $region11: #{tensornet_forward.11} parent=0 // pred_check_branch
    %13 = sbr.rel (0) target = $region13
  $region12: #{tensornet_forward.11} parent=0 // pred_region
    _
  $region13: #{tensornet_forward.11} parent=0 // pred_fallthru
    _
  %v14 = vld [vmem:[%s0] sm:$0xff]
  %v15 = vld [vmem:[%s0 + $0x8] sm:$0xff]
  %v16 = vld [vmem:[%s0 + $0x10] sm:$0xff]
  %v17 = vld [vmem:[%s0 + $0x18] sm:$0xff]
  %v18 = vld [vmem:[%s0 + $0x20] sm:$0xff]
  %v19 = vld [vmem:[%s0 + $0x28] sm:$0xff]
  %v20 = vmul.f32 %v14, %v14
  %v21 = vmul.f32 %v15, %v15
  %v22 = vmul.f32 %v16, %v16
  %v23 = vmul.f32 %v17, %v17
  %v24 = vmul.f32 %v18, %v18
  %v25 = vmul.f32 %v19, %v19
  %v26 = vld [vmem:[%s1] sm:$0xff]
  %v27 = vld [vmem:[%s1 + $0x8] sm:$0xff]
  %v28 = vld [vmem:[%s1 + $0x10] sm:$0xff]
  %v29 = vld [vmem:[%s1 + $0x18] sm:$0xff]
  %v30 = vld [vmem:[%s1 + $0x20] sm:$0xff]
  %v31 = vld [vmem:[%s1 + $0x28] sm:$0xff]
  %v32 = vld [vmem:[%s1 + $0x30] sm:$0xff]
  %v33 = vld [vmem:[%s1 + $0x38] sm:$0xff]
  %v34 = vld [vmem:[%s1 + $0x40] sm:$0xff]
  %v35 = vld [vmem:[%s1 + $0x48] sm:$0xff]
  %v36 = vld [vmem:[%s1 + $0x50] sm:$0xff]
  %v37 = vld [vmem:[%s1 + $0x58] sm:$0xff]
  %v38 = vld [vmem:[%s1 + $0x60] sm:$0xff]
  %v39 = vld [vmem:[%s1 + $0x68] sm:$0xff]
  %v40 = vld [vmem:[%s1 + $0x70] sm:$0xff]
  %v41 = vld [vmem:[%s1 + $0x78] sm:$0xff]
  %v42 = vld [vmem:[%s1 + $0x80] sm:$0xff]
  %v43 = vld [vmem:[%s1 + $0x88] sm:$0xff]
  %v44 = vld [vmem:[%s1 + $0x90] sm:$0xff]
  %v45 = vld [vmem:[%s1 + $0x98] sm:$0xff]
  %v46 = vld [vmem:[%s1 + $0xa0] sm:$0xff]
  %v47 = vld [vmem:[%s1 + $0xa8] sm:$0xff]
  %v48 = vld [vmem:[%s1 + $0xb0] sm:$0xff]
  %v49 = vld [vmem:[%s1 + $0xb8] sm:$0xff]
  %v50 = vld [vmem:[%s1 + $0xc0] sm:$0xff]
  %v51 = vld [vmem:[%s1 + $0xc8] sm:$0xff]
  %v52 = vld [vmem:[%s1 + $0xd0] sm:$0xff]
  %v53 = vld [vmem:[%s1 + $0xd8] sm:$0xff]
  %v54 = vld [vmem:[%s1 + $0xe0] sm:$0xff]
  %v55 = vld [vmem:[%s1 + $0xe8] sm:$0xff]
  %v56 = vld [vmem:[%s1 + $0xf0] sm:$0xff]
  %v57 = vld [vmem:[%s1 + $0xf8] sm:$0xff]
  %v58 = vld [vmem:[%s1 + $0x100] sm:$0xff]
  %v59 = vld [vmem:[%s1 + $0x108] sm:$0xff]
  %v60 = vld [vmem:[%s1 + $0x110] sm:$0xff]
  %v61 = vld [vmem:[%s1 + $0x118] sm:$0xff]
  %v62 = vld [vmem:[%s1 + $0x120] sm:$0xff]
  %v63 = vld [vmem:[%s1 + $0x128] sm:$0xff]
  %v64 = vld [vmem:[%s1 + $0x130] sm:$0xff]
  %v65 = vld [vmem:[%s1 + $0x138] sm:$0xff]
  %vm66 = vcmask 523264
  %v68 = vsel %vm66, %v22, 0
  %v71 = vsel %vm66, %v25, 0
  %73 = vmatprep.subr.mxu0 0.0
  %74 = vmatpush1.msra.mxu0 %v26
  %75 = vmatprep.subr.mxu0 0.0
  %76 = vmatpush1.msra.mxu0 %v27
  %77 = vmatprep.subr.mxu0 0.0
  %78 = vmatpush1.msra.mxu0 %v28
  %79 = vmatprep.subr.mxu0 0.0
  %80 = vmatpush1.msra.mxu0 %v29
  %81 = vmatprep.subr.mxu0 0.0
  %82 = vmatpush1.msra.mxu0 %v30
  %83 = vmatprep.subr.mxu0 0.0
  %84 = vmatpush1.msra.mxu0 %v31
  %85 = vmatprep.subr.mxu0 0.0
  %86 = vmatpush1.msra.mxu0 %v32
  %87 = vmatprep.subr.mxu0 0.0
  %88 = vmatpush1.msra.mxu0 %v33
  %89 = vmatprep.subr.mxu0 0.0
  %90 = vmatpush1.msra.mxu0 %v34
  %91 = vmatprep.subr.mxu0 0.0
  %92 = vmatpush1.msra.mxu0 %v35
  %93 = vmatprep.subr.mxu0 0.0
  %94 = vmatpush1.msra.mxu0 %v36
  %95 = vmatprep.subr.mxu0 0.0
  %96 = vmatpush1.msra.mxu0 %v37
  %97 = vmatprep.subr.mxu0 0.0
  %98 = vmatpush1.msra.mxu0 %v38
  %99 = vmatprep.subr.mxu0 0.0
  %100 = vmatpush1.msra.mxu0 %v39
  %101 = vmatprep.subr.mxu0 0.0
  %102 = vmatpush1.msra.mxu0 %v40
  %103 = vmatprep.subr.mxu0 0.0
  %104 = vmatpush1.msra.mxu0 %v41
  %105 = vmatprep.subr.mxu0 0.0
  %106 = vmatpush1.msra.mxu0 %v42
  %107 = vmatprep.subr.mxu0 0.0
  %108 = vmatpush1.msra.mxu0 %v43
  %109 = vmatprep.subr.mxu0 0.0
  %110 = vmatpush1.msra.mxu0 %v44
  %111 = vmatprep.subr.mxu0 0.0
  %112 = vmatpush1.msra.mxu0 %v45
  %113 = vmatprep.subr.mxu0 0.0
  %114 = vmatpush1.msra.mxu0 %v46
  %115 = vmatprep.subr.mxu0 0.0
  %116 = vmatpush1.msra.mxu0 %v47
  %117 = vmatprep.subr.mxu0 0.0
  %118 = vmatpush1.msra.mxu0 %v48
  %119 = vmatprep.subr.mxu0 0.0
  %120 = vmatpush1.msra.mxu0 %v49
  %121 = vmatprep.subr.mxu0 0.0
  %122 = vmatpush1.msra.mxu0 %v50
  %123 = vmatprep.subr.mxu0 0.0
  %124 = vmatpush1.msra.mxu0 %v51
  %125 = vmatprep.subr.mxu0 0.0
  %126 = vmatpush1.msra.mxu0 %v52
  %127 = vmatprep.subr.mxu0 0.0
  %128 = vmatpush1.msra.mxu0 %v53
  %129 = vmatprep.subr.mxu0 0.0
  %130 = vmatpush1.msra.mxu0 %v54
  %131 = vmatprep.subr.mxu0 0.0
  %132 = vmatpush1.msra.mxu0 %v55
  %133 = vmatprep.subr.mxu0 0.0
  %134 = vmatpush1.msra.mxu0 %v56
  %135 = vmatprep.subr.mxu0 0.0
  %136 = vmatpush1.msra.mxu0 %v57
  %137 = vmatprep.mubr.f32.mxu0 %v21
  %138 = vmatmul.mubr.f32.gmra.mrb[0].mxu0 %v20
  %v139 = vpop.f32.mrb[0].mxu0
  %v140 = vadd.f32 1.0, %v139
  %v141 = vpop.f32.mrb[0].mxu0
  %142 = vmatprep.mubr.f32.mxu0 %v24
  %143 = vmatmul.mubr.f32.gmra.mrb[0].mxu0 %v23
  %v144 = vpop.f32.mrb[0].mxu0
  %v145 = vadd.f32 1.0, %v144
  %v146 = vpop.f32.mrb[0].mxu0
  %147 = vdwg.mxu0
  %148 = vmatprep.subr.mxu0 0.0
  %149 = vmatpush1.msra.mxu0 %v58
  %150 = vmatprep.subr.mxu0 0.0
  %151 = vmatpush1.msra.mxu0 %v59
  %152 = vmatprep.subr.mxu0 0.0
  %153 = vmatpush1.msra.mxu0 %v60
  %154 = vmatprep.subr.mxu0 0.0
  %155 = vmatpush1.msra.mxu0 %v61
  %156 = vmatprep.subr.mxu0 0.0
  %157 = vmatpush1.msra.mxu0 %v62
  %158 = vmatprep.subr.mxu0 0.0
  %159 = vmatpush1.msra.mxu0 %v63
  %160 = vmatprep.subr.mxu0 0.0
  %161 = vmatpush1.msra.mxu0 %v64
  %162 = vmatprep.subr.mxu0 0.0
  %163 = vmatpush1.msra.mxu0 %v65
  %164 = vmatprep.subr.mxu0 0.0
  %165 = vmatpush1.msra.mxu0 0.0
  %166 = vmatprep.subr.mxu0 0.0
  %167 = vmatpush1.msra.mxu0 0.0
  %168 = vmatprep.subr.mxu0 0.0
  %169 = vmatpush1.msra.mxu0 0.0
  %170 = vmatprep.subr.mxu0 0.0
  %171 = vmatpush1.msra.mxu0 0.0
  %172 = vmatprep.subr.mxu0 0.0
  %173 = vmatpush1.msra.mxu0 0.0
  %174 = vmatprep.subr.mxu0 0.0
  %175 = vmatpush1.msra.mxu0 0.0
  %176 = vmatprep.subr.mxu0 0.0
  %177 = vmatpush1.msra.mxu0 0.0
  %178 = vmatprep.subr.mxu0 0.0
  %179 = vmatpush1.msra.mxu0 0.0
  %180 = vmatprep.subr.mxu0 0.0
  %181 = vmatpush1.msra.mxu0 0.0
  %182 = vmatprep.subr.mxu0 0.0
  %183 = vmatpush1.msra.mxu0 0.0
  %184 = vmatprep.subr.mxu0 0.0
  %185 = vmatpush1.msra.mxu0 0.0
  %186 = vmatprep.subr.mxu0 0.0
  %187 = vmatpush1.msra.mxu0 0.0
  %188 = vmatprep.subr.mxu0 0.0
  %189 = vmatpush1.msra.mxu0 0.0
  %190 = vmatprep.subr.mxu0 0.0
  %191 = vmatpush1.msra.mxu0 0.0
  %192 = vmatprep.subr.mxu0 0.0
  %193 = vmatpush1.msra.mxu0 0.0
  %194 = vmatprep.subr.mxu0 0.0
  %195 = vmatpush1.msra.mxu0 0.0
  %196 = vmatprep.subr.mxu0 0.0
  %197 = vmatpush1.msra.mxu0 0.0
  %198 = vmatprep.subr.mxu0 0.0
  %199 = vmatpush1.msra.mxu0 0.0
  %200 = vmatprep.subr.mxu0 0.0
  %201 = vmatpush1.msra.mxu0 0.0
  %202 = vmatprep.subr.mxu0 0.0
  %203 = vmatpush1.msra.mxu0 0.0
  %204 = vmatprep.subr.mxu0 0.0
  %205 = vmatpush1.msra.mxu0 0.0
  %206 = vmatprep.subr.mxu0 0.0
  %207 = vmatpush1.msra.mxu0 0.0
  %208 = vmatprep.subr.mxu0 0.0
  %209 = vmatpush1.msra.mxu0 0.0
  %210 = vmatprep.subr.mxu0 0.0
  %211 = vmatpush1.msra.mxu0 0.0
  %212 = vmatprep.mubr.f32.mxu0 0.0
  %213 = vmatmul.mubr.f32.gmra.mrb[0].mxu0 %v68
  %v214 = vpop.f32.mrb[0].mxu0
  %v215 = vadd.f32 %v140, %v214
  %v216 = vpop.f32.mrb[0].mxu0
  %217 = vmatprep.mubr.f32.mxu0 0.0
  %218 = vmatmul.mubr.f32.gmra.mrb[0].mxu0 %v71
  %v219 = vpop.f32.mrb[0].mxu0
  %v220 = vadd.f32 %v145, %v219
  %v221 = vpop.f32.mrb[0].mxu0
  %222 = vdwg.mxu0
  %v223 = vrcp.pop %v215
  %v224 = vmul.f32 1.0, %v223
  %v225 = vrcp.pop %v220
  %v226 = vmul.f32 1.0, %v225
  %229 = vrot.lane.b32.xlu0 %v224, 32
  %v230 = vpop.permute.xlu0 %229
  %231 = vrot.lane.b32.xlu0 %v226, 32
  %v232 = vpop.permute.xlu0 %231
  %235 = vrot.lane.b32.xlu0 %v224, 64
  %v236 = vpop.permute.xlu0 %235
  %237 = vrot.lane.b32.xlu0 %v226, 64
  %v238 = vpop.permute.xlu0 %237
  %241 = vrot.lane.b32.xlu0 %v224, 96
  %v242 = vpop.permute.xlu0 %241
  %243 = vrot.lane.b32.xlu0 %v226, 96
  %v244 = vpop.permute.xlu0 %243
  %vm247 = vcmask 261120
  %v248 = vsel %vm247, %v224, %v230
  %v249 = vsel %vm247, %v226, %v232
  %v250 = vsel %vm66, %v248, %v236
  %v251 = vsel %vm66, %v249, %v238
  %vm252 = vcmask 785408
  %v253 = vsel %vm252, %v250, %v242
  %v254 = vsel %vm252, %v251, %v244
  %v255 = vmul.f32 %v14, %v253
  %v256 = vmul.f32 %v15, %v253
  %v257 = vmul.f32 %v16, %v248
  %v258 = vmul.f32 %v17, %v254
  %v259 = vmul.f32 %v18, %v254
  %v260 = vmul.f32 %v19, %v249
  %v261 = vld [vmem:[%s2] sm:$0xff]
  %v262 = vld [vmem:[%s2 + $0x8] sm:$0xff]
  %v263 = vld [vmem:[%s2 + $0x10] sm:$0xff]
  %v264 = vld [vmem:[%s2 + $0x18] sm:$0xff]
  %v265 = vld [vmem:[%s2 + $0x20] sm:$0xff]
  %v266 = vld [vmem:[%s2 + $0x28] sm:$0xff]
  %v267 = vld [vmem:[%s2 + $0x30] sm:$0xff]
  %v268 = vld [vmem:[%s2 + $0x38] sm:$0xff]
  %v269 = vld [vmem:[%s2 + $0x40] sm:$0xff]
  %v270 = vld [vmem:[%s2 + $0x48] sm:$0xff]
  %v271 = vld [vmem:[%s2 + $0x50] sm:$0xff]
  %v272 = vld [vmem:[%s2 + $0x58] sm:$0xff]
  %v273 = vld [vmem:[%s2 + $0x60] sm:$0xff]
  %v274 = vld [vmem:[%s2 + $0x68] sm:$0xff]
  %v275 = vld [vmem:[%s2 + $0x70] sm:$0xff]
  %v276 = vld [vmem:[%s2 + $0x78] sm:$0xff]
  %v277 = vld [vmem:[%s2 + $0x80] sm:$0xff]
  %v278 = vld [vmem:[%s2 + $0x88] sm:$0xff]
  %v279 = vld [vmem:[%s2 + $0x90] sm:$0xff]
  %v280 = vld [vmem:[%s2 + $0x98] sm:$0xff]
  %v281 = vld [vmem:[%s2 + $0xa0] sm:$0xff]
  %v282 = vld [vmem:[%s2 + $0xa8] sm:$0xff]
  %v283 = vld [vmem:[%s2 + $0xb0] sm:$0xff]
  %v284 = vld [vmem:[%s2 + $0xb8] sm:$0xff]
  %v285 = vld [vmem:[%s2 + $0xc0] sm:$0xff]
  %v286 = vld [vmem:[%s2 + $0xc8] sm:$0xff]
  %v287 = vld [vmem:[%s2 + $0xd0] sm:$0xff]
  %v288 = vld [vmem:[%s2 + $0xd8] sm:$0xff]
  %v289 = vld [vmem:[%s2 + $0xe0] sm:$0xff]
  %v290 = vld [vmem:[%s2 + $0xe8] sm:$0xff]
  %v291 = vld [vmem:[%s2 + $0xf0] sm:$0xff]
  %v292 = vld [vmem:[%s2 + $0xf8] sm:$0xff]
  %v293 = vld [vmem:[%s2 + $0x100] sm:$0xff]
  %v294 = vld [vmem:[%s2 + $0x108] sm:$0xff]
  %v295 = vld [vmem:[%s2 + $0x110] sm:$0xff]
  %v296 = vld [vmem:[%s2 + $0x118] sm:$0xff]
  %v297 = vld [vmem:[%s2 + $0x120] sm:$0xff]
  %v298 = vld [vmem:[%s2 + $0x128] sm:$0xff]
  %v299 = vld [vmem:[%s2 + $0x130] sm:$0xff]
  %v300 = vld [vmem:[%s2 + $0x138] sm:$0xff]
  %v301 = vld [vmem:[%s2 + $0x140] sm:$0xff]
  %v302 = vld [vmem:[%s2 + $0x148] sm:$0xff]
  %v303 = vld [vmem:[%s2 + $0x150] sm:$0xff]
  %v304 = vld [vmem:[%s2 + $0x158] sm:$0xff]
  %v305 = vld [vmem:[%s2 + $0x160] sm:$0xff]
  %v306 = vld [vmem:[%s2 + $0x168] sm:$0xff]
  %v307 = vld [vmem:[%s2 + $0x170] sm:$0xff]
  %v308 = vld [vmem:[%s2 + $0x178] sm:$0xff]
  %v309 = vld [vmem:[%s2 + $0x180] sm:$0xff]
  %v310 = vld [vmem:[%s2 + $0x188] sm:$0xff]
  %v311 = vld [vmem:[%s2 + $0x190] sm:$0xff]
  %v312 = vld [vmem:[%s2 + $0x198] sm:$0xff]
  %v313 = vld [vmem:[%s2 + $0x1a0] sm:$0xff]
  %v314 = vld [vmem:[%s2 + $0x1a8] sm:$0xff]
  %v315 = vld [vmem:[%s2 + $0x1b0] sm:$0xff]
  %v316 = vld [vmem:[%s2 + $0x1b8] sm:$0xff]
  %v317 = vld [vmem:[%s2 + $0x1c0] sm:$0xff]
  %v318 = vld [vmem:[%s2 + $0x1c8] sm:$0xff]
  %v319 = vld [vmem:[%s2 + $0x1d0] sm:$0xff]
  %v320 = vld [vmem:[%s2 + $0x1d8] sm:$0xff]
  %v321 = vld [vmem:[%s2 + $0x1e0] sm:$0xff]
  %v322 = vld [vmem:[%s2 + $0x1e8] sm:$0xff]
  %v323 = vld [vmem:[%s2 + $0x1f0] sm:$0xff]
  %v324 = vld [vmem:[%s2 + $0x1f8] sm:$0xff]
  %v325 = vld [vmem:[%s2 + $0x200] sm:$0xff]
  %v326 = vld [vmem:[%s2 + $0x208] sm:$0xff]
  %v327 = vld [vmem:[%s2 + $0x210] sm:$0xff]
  %v328 = vld [vmem:[%s2 + $0x218] sm:$0xff]
  %v329 = vld [vmem:[%s2 + $0x220] sm:$0xff]
  %v330 = vld [vmem:[%s2 + $0x228] sm:$0xff]
  %v331 = vld [vmem:[%s2 + $0x230] sm:$0xff]
  %v332 = vld [vmem:[%s2 + $0x238] sm:$0xff]
  %v333 = vld [vmem:[%s2 + $0x240] sm:$0xff]
  %v334 = vld [vmem:[%s2 + $0x248] sm:$0xff]
  %v335 = vld [vmem:[%s2 + $0x250] sm:$0xff]
  %v336 = vld [vmem:[%s2 + $0x258] sm:$0xff]
  %v337 = vld [vmem:[%s2 + $0x260] sm:$0xff]
  %v338 = vld [vmem:[%s2 + $0x268] sm:$0xff]
  %v339 = vld [vmem:[%s2 + $0x270] sm:$0xff]
  %v340 = vld [vmem:[%s2 + $0x278] sm:$0xff]
  %v341 = vld [vmem:[%s2 + $0x280] sm:$0xff]
  %v342 = vld [vmem:[%s2 + $0x288] sm:$0xff]
  %v343 = vld [vmem:[%s2 + $0x290] sm:$0xff]
  %v344 = vld [vmem:[%s2 + $0x298] sm:$0xff]
  %v345 = vld [vmem:[%s2 + $0x2a0] sm:$0xff]
  %v346 = vld [vmem:[%s2 + $0x2a8] sm:$0xff]
  %v347 = vld [vmem:[%s2 + $0x2b0] sm:$0xff]
  %v348 = vld [vmem:[%s2 + $0x2b8] sm:$0xff]
  %v349 = vld [vmem:[%s2 + $0x2c0] sm:$0xff]
  %v350 = vld [vmem:[%s2 + $0x2c8] sm:$0xff]
  %v351 = vld [vmem:[%s2 + $0x2d0] sm:$0xff]
  %v352 = vld [vmem:[%s2 + $0x2d8] sm:$0xff]
  %v353 = vld [vmem:[%s2 + $0x2e0] sm:$0xff]
  %v354 = vld [vmem:[%s2 + $0x2e8] sm:$0xff]
  %v355 = vld [vmem:[%s2 + $0x2f0] sm:$0xff]
  %v356 = vld [vmem:[%s2 + $0x2f8] sm:$0xff]
  %v357 = vld [vmem:[%s2 + $0x300] sm:$0xff]
  %v358 = vld [vmem:[%s2 + $0x308] sm:$0xff]
  %v359 = vld [vmem:[%s2 + $0x310] sm:$0xff]
  %v360 = vld [vmem:[%s2 + $0x318] sm:$0xff]
  %v361 = vld [vmem:[%s2 + $0x320] sm:$0xff]
  %v362 = vld [vmem:[%s2 + $0x328] sm:$0xff]
  %v363 = vld [vmem:[%s2 + $0x330] sm:$0xff]
  %v364 = vld [vmem:[%s2 + $0x338] sm:$0xff]
  %v365 = vld [vmem:[%s2 + $0x340] sm:$0xff]
  %v366 = vld [vmem:[%s2 + $0x348] sm:$0xff]
  %v367 = vld [vmem:[%s2 + $0x350] sm:$0xff]
  %v368 = vld [vmem:[%s2 + $0x358] sm:$0xff]
  %v369 = vld [vmem:[%s2 + $0x360] sm:$0xff]
  %v370 = vld [vmem:[%s2 + $0x368] sm:$0xff]
  %v371 = vld [vmem:[%s2 + $0x370] sm:$0xff]
  %v372 = vld [vmem:[%s2 + $0x378] sm:$0xff]
  %v373 = vld [vmem:[%s2 + $0x380] sm:$0xff]
  %v374 = vld [vmem:[%s2 + $0x388] sm:$0xff]
  %v375 = vld [vmem:[%s2 + $0x390] sm:$0xff]
  %v376 = vld [vmem:[%s2 + $0x398] sm:$0xff]
  %v377 = vld [vmem:[%s2 + $0x3a0] sm:$0xff]
  %v378 = vld [vmem:[%s2 + $0x3a8] sm:$0xff]
  %v379 = vld [vmem:[%s2 + $0x3b0] sm:$0xff]
  %v380 = vld [vmem:[%s2 + $0x3b8] sm:$0xff]
  %v382 = vsel %vm66, %v257, 0
  %v385 = vsel %vm66, %v260, 0
  %387 = vmatprep.subr.mxu0 %v262
  %388 = vmatpush1.msra.mxu0 %v261
  %389 = vmatprep.subr.mxu0 %v265
  %390 = vmatpush1.msra.mxu0 %v264
  %391 = vmatprep.subr.mxu0 %v268
  %392 = vmatpush1.msra.mxu0 %v267
  %393 = vmatprep.subr.mxu0 %v271
  %394 = vmatpush1.msra.mxu0 %v270
  %395 = vmatprep.subr.mxu0 %v274
  %396 = vmatpush1.msra.mxu0 %v273
  %397 = vmatprep.subr.mxu0 %v277
  %398 = vmatpush1.msra.mxu0 %v276
  %399 = vmatprep.subr.mxu0 %v280
  %400 = vmatpush1.msra.mxu0 %v279
  %401 = vmatprep.subr.mxu0 %v283
  %402 = vmatpush1.msra.mxu0 %v282
  %403 = vmatprep.subr.mxu0 %v286
  %404 = vmatpush1.msra.mxu0 %v285
  %405 = vmatprep.subr.mxu0 %v289
  %406 = vmatpush1.msra.mxu0 %v288
  %407 = vmatprep.subr.mxu0 %v292
  %408 = vmatpush1.msra.mxu0 %v291
  %409 = vmatprep.subr.mxu0 %v295
  %410 = vmatpush1.msra.mxu0 %v294
  %411 = vmatprep.subr.mxu0 %v298
  %412 = vmatpush1.msra.mxu0 %v297
  %413 = vmatprep.subr.mxu0 %v301
  %414 = vmatpush1.msra.mxu0 %v300
  %415 = vmatprep.subr.mxu0 %v304
  %416 = vmatpush1.msra.mxu0 %v303
  %417 = vmatprep.subr.mxu0 %v307
  %418 = vmatpush1.msra.mxu0 %v306
  %419 = vmatprep.subr.mxu0 %v310
  %420 = vmatpush1.msra.mxu0 %v309
  %421 = vmatprep.subr.mxu0 %v313
  %422 = vmatpush1.msra.mxu0 %v312
  %423 = vmatprep.subr.mxu0 %v316
  %424 = vmatpush1.msra.mxu0 %v315
  %425 = vmatprep.subr.mxu0 %v319
  %426 = vmatpush1.msra.mxu0 %v318
  %427 = vmatprep.subr.mxu0 %v322
  %428 = vmatpush1.msra.mxu0 %v321
  %429 = vmatprep.subr.mxu0 %v325
  %430 = vmatpush1.msra.mxu0 %v324
  %431 = vmatprep.subr.mxu0 %v328
  %432 = vmatpush1.msra.mxu0 %v327
  %433 = vmatprep.subr.mxu0 %v331
  %434 = vmatpush1.msra.mxu0 %v330
  %435 = vmatprep.subr.mxu0 %v334
  %436 = vmatpush1.msra.mxu0 %v333
  %437 = vmatprep.subr.mxu0 %v337
  %438 = vmatpush1.msra.mxu0 %v336
  %439 = vmatprep.subr.mxu0 %v340
  %440 = vmatpush1.msra.mxu0 %v339
  %441 = vmatprep.subr.mxu0 %v343
  %442 = vmatpush1.msra.mxu0 %v342
  %443 = vmatprep.subr.mxu0 %v346
  %444 = vmatpush1.msra.mxu0 %v345
  %445 = vmatprep.subr.mxu0 %v349
  %446 = vmatpush1.msra.mxu0 %v348
  %447 = vmatprep.subr.mxu0 %v352
  %448 = vmatpush1.msra.mxu0 %v351
  %449 = vmatprep.subr.mxu0 %v355
  %450 = vmatpush1.msra.mxu0 %v354
  %451 = vmatprep.mubr.f32.mxu0 %v256
  %452 = vmatmul.mubr.f32.gmra.mrb[0].mxu0 %v255
  %v453 = vpop.f32.mrb[0].mxu0
  %v454 = vadd.f32 0.0, %v453
  %v455 = vpop.f32.mrb[0].mxu0
  %v456 = vadd.f32 0.0, %v455
  %457 = vmatprep.mubr.f32.mxu0 %v259
  %458 = vmatmul.mubr.f32.gmra.mrb[0].mxu0 %v258
  %v459 = vpop.f32.mrb[0].mxu0
  %v460 = vadd.f32 0.0, %v459
  %v461 = vpop.f32.mrb[0].mxu0
  %v462 = vadd.f32 0.0, %v461
  %463 = vdwg.mxu0
  %464 = vmatprep.subr.mxu0 %v358
  %465 = vmatpush1.msra.mxu0 %v357
  %466 = vmatprep.subr.mxu0 %v361
  %467 = vmatpush1.msra.mxu0 %v360
  %468 = vmatprep.subr.mxu0 %v364
  %469 = vmatpush1.msra.mxu0 %v363
  %470 = vmatprep.subr.mxu0 %v367
  %471 = vmatpush1.msra.mxu0 %v366
  %472 = vmatprep.subr.mxu0 %v370
  %473 = vmatpush1.msra.mxu0 %v369
  %474 = vmatprep.subr.mxu0 %v373
  %475 = vmatpush1.msra.mxu0 %v372
  %476 = vmatprep.subr.mxu0 %v376
  %477 = vmatpush1.msra.mxu0 %v375
  %478 = vmatprep.subr.mxu0 %v379
  %479 = vmatpush1.msra.mxu0 %v378
  %480 = vmatprep.subr.mxu0 0.0
  %481 = vmatpush1.msra.mxu0 0.0
  %482 = vmatprep.subr.mxu0 0.0
  %483 = vmatpush1.msra.mxu0 0.0
  %484 = vmatprep.subr.mxu0 0.0
  %485 = vmatpush1.msra.mxu0 0.0
  %486 = vmatprep.subr.mxu0 0.0
  %487 = vmatpush1.msra.mxu0 0.0
  %488 = vmatprep.subr.mxu0 0.0
  %489 = vmatpush1.msra.mxu0 0.0
  %490 = vmatprep.subr.mxu0 0.0
  %491 = vmatpush1.msra.mxu0 0.0
  %492 = vmatprep.subr.mxu0 0.0
  %493 = vmatpush1.msra.mxu0 0.0
  %494 = vmatprep.subr.mxu0 0.0
  %495 = vmatpush1.msra.mxu0 0.0
  %496 = vmatprep.subr.mxu0 0.0
  %497 = vmatpush1.msra.mxu0 0.0
  %498 = vmatprep.subr.mxu0 0.0
  %499 = vmatpush1.msra.mxu0 0.0
  %500 = vmatprep.subr.mxu0 0.0
  %501 = vmatpush1.msra.mxu0 0.0
  %502 = vmatprep.subr.mxu0 0.0
  %503 = vmatpush1.msra.mxu0 0.0
  %504 = vmatprep.subr.mxu0 0.0
  %505 = vmatpush1.msra.mxu0 0.0
  %506 = vmatprep.subr.mxu0 0.0
  %507 = vmatpush1.msra.mxu0 0.0
  %508 = vmatprep.subr.mxu0 0.0
  %509 = vmatpush1.msra.mxu0 0.0
  %510 = vmatprep.subr.mxu0 0.0
  %511 = vmatpush1.msra.mxu0 0.0
  %512 = vmatprep.subr.mxu0 0.0
  %513 = vmatpush1.msra.mxu0 0.0
  %514 = vmatprep.subr.mxu0 0.0
  %515 = vmatpush1.msra.mxu0 0.0
  %516 = vmatprep.subr.mxu0 0.0
  %517 = vmatpush1.msra.mxu0 0.0
  %518 = vmatprep.subr.mxu0 0.0
  %519 = vmatpush1.msra.mxu0 0.0
  %520 = vmatprep.subr.mxu0 0.0
  %521 = vmatpush1.msra.mxu0 0.0
  %522 = vmatprep.subr.mxu0 0.0
  %523 = vmatpush1.msra.mxu0 0.0
  %524 = vmatprep.subr.mxu0 0.0
  %525 = vmatpush1.msra.mxu0 0.0
  %526 = vmatprep.subr.mxu0 0.0
  %527 = vmatpush1.msra.mxu0 0.0
  %528 = vmatprep.mubr.f32.mxu0 0.0
  %529 = vmatmul.mubr.f32.gmra.mrb[0].mxu0 %v382
  %v530 = vpop.f32.mrb[0].mxu0
  %v531 = vadd.f32 %v454, %v530
  %v532 = vpop.f32.mrb[0].mxu0
  %v533 = vadd.f32 %v456, %v532
  %534 = vmatprep.mubr.f32.mxu0 0.0
  %535 = vmatmul.mubr.f32.gmra.mrb[0].mxu0 %v385
  %v536 = vpop.f32.mrb[0].mxu0
  %v537 = vadd.f32 %v460, %v536
  %v538 = vpop.f32.mrb[0].mxu0
  %v539 = vadd.f32 %v462, %v538
  %540 = vdwg.mxu0
  %541 = vmatprep.subr.mxu0 0.0
  %542 = vmatpush1.msra.mxu0 %v263
  %543 = vmatprep.subr.mxu0 0.0
  %544 = vmatpush1.msra.mxu0 %v266
  %545 = vmatprep.subr.mxu0 0.0
  %546 = vmatpush1.msra.mxu0 %v269
  %547 = vmatprep.subr.mxu0 0.0
  %548 = vmatpush1.msra.mxu0 %v272
  %549 = vmatprep.subr.mxu0 0.0
  %550 = vmatpush1.msra.mxu0 %v275
  %551 = vmatprep.subr.mxu0 0.0
  %552 = vmatpush1.msra.mxu0 %v278
  %553 = vmatprep.subr.mxu0 0.0
  %554 = vmatpush1.msra.mxu0 %v281
  %555 = vmatprep.subr.mxu0 0.0
  %556 = vmatpush1.msra.mxu0 %v284
  %557 = vmatprep.subr.mxu0 0.0
  %558 = vmatpush1.msra.mxu0 %v287
  %559 = vmatprep.subr.mxu0 0.0
  %560 = vmatpush1.msra.mxu0 %v290
  %561 = vmatprep.subr.mxu0 0.0
  %562 = vmatpush1.msra.mxu0 %v293
  %563 = vmatprep.subr.mxu0 0.0
  %564 = vmatpush1.msra.mxu0 %v296
  %565 = vmatprep.subr.mxu0 0.0
  %566 = vmatpush1.msra.mxu0 %v299
  %567 = vmatprep.subr.mxu0 0.0
  %568 = vmatpush1.msra.mxu0 %v302
  %569 = vmatprep.subr.mxu0 0.0
  %570 = vmatpush1.msra.mxu0 %v305
  %571 = vmatprep.subr.mxu0 0.0
  %572 = vmatpush1.msra.mxu0 %v308
  %573 = vmatprep.subr.mxu0 0.0
  %574 = vmatpush1.msra.mxu0 %v311
  %575 = vmatprep.subr.mxu0 0.0
  %576 = vmatpush1.msra.mxu0 %v314
  %577 = vmatprep.subr.mxu0 0.0
  %578 = vmatpush1.msra.mxu0 %v317
  %579 = vmatprep.subr.mxu0 0.0
  %580 = vmatpush1.msra.mxu0 %v320
  %581 = vmatprep.subr.mxu0 0.0
  %582 = vmatpush1.msra.mxu0 %v323
  %583 = vmatprep.subr.mxu0 0.0
  %584 = vmatpush1.msra.mxu0 %v326
  %585 = vmatprep.subr.mxu0 0.0
  %586 = vmatpush1.msra.mxu0 %v329
  %587 = vmatprep.subr.mxu0 0.0
  %588 = vmatpush1.msra.mxu0 %v332
  %589 = vmatprep.subr.mxu0 0.0
  %590 = vmatpush1.msra.mxu0 %v335
  %591 = vmatprep.subr.mxu0 0.0
  %592 = vmatpush1.msra.mxu0 %v338
  %593 = vmatprep.subr.mxu0 0.0
  %594 = vmatpush1.msra.mxu0 %v341
  %595 = vmatprep.subr.mxu0 0.0
  %596 = vmatpush1.msra.mxu0 %v344
  %597 = vmatprep.subr.mxu0 0.0
  %598 = vmatpush1.msra.mxu0 %v347
  %599 = vmatprep.subr.mxu0 0.0
  %600 = vmatpush1.msra.mxu0 %v350
  %601 = vmatprep.subr.mxu0 0.0
  %602 = vmatpush1.msra.mxu0 %v353
  %603 = vmatprep.subr.mxu0 0.0
  %604 = vmatpush1.msra.mxu0 %v356
  %605 = vmatprep.mubr.f32.mxu0 %v256
  %606 = vmatmul.mubr.f32.gmra.mrb[0].mxu0 %v255
  %v607 = vpop.f32.mrb[0].mxu0
  %v608 = vadd.f32 0.0, %v607
  %v609 = vpop.f32.mrb[0].mxu0
  %610 = vmatprep.mubr.f32.mxu0 %v259
  %611 = vmatmul.mubr.f32.gmra.mrb[0].mxu0 %v258
  %v612 = vpop.f32.mrb[0].mxu0
  %v613 = vadd.f32 0.0, %v612
  %v614 = vpop.f32.mrb[0].mxu0
  %615 = vdwg.mxu0
  %616 = vmatprep.subr.mxu0 0.0
  %617 = vmatpush1.msra.mxu0 %v359
  %618 = vmatprep.subr.mxu0 0.0
  %619 = vmatpush1.msra.mxu0 %v362
  %620 = vmatprep.subr.mxu0 0.0
  %621 = vmatpush1.msra.mxu0 %v365
  %622 = vmatprep.subr.mxu0 0.0
  %623 = vmatpush1.msra.mxu0 %v368
  %624 = vmatprep.subr.mxu0 0.0
  %625 = vmatpush1.msra.mxu0 %v371
  %626 = vmatprep.subr.mxu0 0.0
  %627 = vmatpush1.msra.mxu0 %v374
  %628 = vmatprep.subr.mxu0 0.0
  %629 = vmatpush1.msra.mxu0 %v377
  %630 = vmatprep.subr.mxu0 0.0
  %631 = vmatpush1.msra.mxu0 %v380
  %632 = vmatprep.subr.mxu0 0.0
  %633 = vmatpush1.msra.mxu0 0.0
  %634 = vmatprep.subr.mxu0 0.0
  %635 = vmatpush1.msra.mxu0 0.0
  %636 = vmatprep.subr.mxu0 0.0
  %637 = vmatpush1.msra.mxu0 0.0
  %638 = vmatprep.subr.mxu0 0.0
  %639 = vmatpush1.msra.mxu0 0.0
  %640 = vmatprep.subr.mxu0 0.0
  %641 = vmatpush1.msra.mxu0 0.0
  %642 = vmatprep.subr.mxu0 0.0
  %643 = vmatpush1.msra.mxu0 0.0
  %644 = vmatprep.subr.mxu0 0.0
  %645 = vmatpush1.msra.mxu0 0.0
  %646 = vmatprep.subr.mxu0 0.0
  %647 = vmatpush1.msra.mxu0 0.0
  %648 = vmatprep.subr.mxu0 0.0
  %649 = vmatpush1.msra.mxu0 0.0
  %650 = vmatprep.subr.mxu0 0.0
  %651 = vmatpush1.msra.mxu0 0.0
  %652 = vmatprep.subr.mxu0 0.0
  %653 = vmatpush1.msra.mxu0 0.0
  %654 = vmatprep.subr.mxu0 0.0
  %655 = vmatpush1.msra.mxu0 0.0
  %656 = vmatprep.subr.mxu0 0.0
  %657 = vmatpush1.msra.mxu0 0.0
  %658 = vmatprep.subr.mxu0 0.0
  %659 = vmatpush1.msra.mxu0 0.0
  %660 = vmatprep.subr.mxu0 0.0
  %661 = vmatpush1.msra.mxu0 0.0
  %662 = vmatprep.subr.mxu0 0.0
  %663 = vmatpush1.msra.mxu0 0.0
  %664 = vmatprep.subr.mxu0 0.0
  %665 = vmatpush1.msra.mxu0 0.0
  %666 = vmatprep.subr.mxu0 0.0
  %667 = vmatpush1.msra.mxu0 0.0
  %668 = vmatprep.subr.mxu0 0.0
  %669 = vmatpush1.msra.mxu0 0.0
  %670 = vmatprep.subr.mxu0 0.0
  %671 = vmatpush1.msra.mxu0 0.0
  %672 = vmatprep.subr.mxu0 0.0
  %673 = vmatpush1.msra.mxu0 0.0
  %674 = vmatprep.subr.mxu0 0.0
  %675 = vmatpush1.msra.mxu0 0.0
  %676 = vmatprep.subr.mxu0 0.0
  %677 = vmatpush1.msra.mxu0 0.0
  %678 = vmatprep.subr.mxu0 0.0
  %679 = vmatpush1.msra.mxu0 0.0
  %680 = vmatprep.mubr.f32.mxu0 0.0
  %681 = vmatmul.mubr.f32.gmra.mrb[0].mxu0 %v382
  %v682 = vpop.f32.mrb[0].mxu0
  %v683 = vadd.f32 %v608, %v682
  %v684 = vpop.f32.mrb[0].mxu0
  %685 = vmatprep.mubr.f32.mxu0 0.0
  %686 = vmatmul.mubr.f32.gmra.mrb[0].mxu0 %v385
  %v687 = vpop.f32.mrb[0].mxu0
  %v688 = vadd.f32 %v613, %v687
  %v689 = vpop.f32.mrb[0].mxu0
  %690 = vdwg.mxu0
  %691 = vst [vmem:[%s3] sm:$0xff] %v531
  %692 = vst [vmem:[%s3 + $0x8] sm:$0xff] %v533
  %693 = vst.msk [vmem:[%s3 + $0x10] sm:$0xff] %vm66, %v683
  %694 = vst [vmem:[%s3 + $0x18] sm:$0xff] %v537
  %695 = vst [vmem:[%s3 + $0x20] sm:$0xff] %v539
  %696 = vst.msk [vmem:[%s3 + $0x28] sm:$0xff] %vm66, %v688
  // Predicated region
  $region14: #{tensornet_forward.11} parent=0 // pred_check
    _
  $region15: #{tensornet_forward.11} parent=0 // pred_check_branch
    %698 = sbr.rel (0) target = $region17
  $region16: #{tensornet_forward.11} parent=0 // pred_region
    _
  $region17: #{tensornet_forward.11} parent=0 // pred_fallthru
    _
  // Predicated region
  $region18: #{tensornet_forward.11} parent=0 // pred_check
    _
  $region19: #{tensornet_forward.11} parent=0 // pred_check_branch
    %700 = sbr.rel (0) target = $region21
  $region20: #{tensornet_forward.11} parent=0 // pred_region
    _
  $region21: #{tensornet_forward.11} parent=0 // pred_fallthru
    _

// kernel: tensornet_forward.15
$region0: #{tensornet_forward.15}
  #allocation0 [shape = 'u32[]', space=smem, size = 0x4, offset = 0x4, fixed_abs, tag = 'smem constant byte address 0x4 - core index']
  #allocation1 [shape = 'u32[144,128]{1,0:T(1,128)}', space=vmem, size = 0x12000, scoped, tag = 'internal scratch']
  %s0 = inlined_call_operand.vmem [shape: f32[16,320], index: 0, kind: input, shape index: {}]
  %s1 = inlined_call_operand.vmem [shape: f32[320,96], index: 1, kind: input, shape index: {}]
  %s2 = inlined_call_operand.vmem [shape: f32[1,96], index: 2, kind: input, shape index: {}]
  %s3 = inlined_call_operand.vmem [shape: f32[1,96], index: 3, kind: input, shape index: {}]
  %s4 = inlined_call_operand.vmem [shape: f32[96,32], index: 4, kind: input, shape index: {}]
  %s5 = inlined_call_operand.vmem [shape: f32[1,32], index: 5, kind: input, shape index: {}]
  %s6 = inlined_call_operand.vmem [shape: f32[16,32], index: 6, kind: output, shape index: {}]
  %s7 = sld [smem:[#allocation0]]
  $region34: #{tensornet_forward.15} parent=0
    _
  %s9 = ssub.s32 1, %s7
  %s10 = scalar_select 0, %s9, %s7
  // Predicated region
  $region2: #{tensornet_forward.15} parent=0 // pred_check
    _
  $region3: #{tensornet_forward.15} parent=0 // pred_check_branch
    %12 = sbr.rel (0) target = $region5
  $region4: #{tensornet_forward.15} parent=0 // pred_region
    _
  $region5: #{tensornet_forward.15} parent=0 // pred_fallthru
    _
  // Predicated region
  $region6: #{tensornet_forward.15} parent=0 // pred_check
    _
  $region7: #{tensornet_forward.15} parent=0 // pred_check_branch
    %14 = sbr.rel (0) target = $region9
  $region8: #{tensornet_forward.15} parent=0 // pred_region
    _
  $region9: #{tensornet_forward.15} parent=0 // pred_fallthru
    _
  // Predicated region
  $region10: #{tensornet_forward.15} parent=0 // pred_check
    _
  $region11: #{tensornet_forward.15} parent=0 // pred_check_branch
    %16 = sbr.rel (0) target = $region13
  $region12: #{tensornet_forward.15} parent=0 // pred_region
    _
  $region13: #{tensornet_forward.15} parent=0 // pred_fallthru
    _
  // Predicated region
  $region14: #{tensornet_forward.15} parent=0 // pred_check
    _
  $region15: #{tensornet_forward.15} parent=0 // pred_check_branch
    %18 = sbr.rel (0) target = $region17
  $region16: #{tensornet_forward.15} parent=0 // pred_region
    _
  $region17: #{tensornet_forward.15} parent=0 // pred_fallthru
    _
  // Predicated region
  $region18: #{tensornet_forward.15} parent=0 // pred_check
    _
  $region19: #{tensornet_forward.15} parent=0 // pred_check_branch
    %20 = sbr.rel (0) target = $region21
  $region20: #{tensornet_forward.15} parent=0 // pred_region
    _
  $region21: #{tensornet_forward.15} parent=0 // pred_fallthru
    _
  // Predicated region
  $region22: #{tensornet_forward.15} parent=0 // pred_check
    _
  $region23: #{tensornet_forward.15} parent=0 // pred_check_branch
    %22 = sbr.rel (0) target = $region25
  $region24: #{tensornet_forward.15} parent=0 // pred_region
    _
  $region25: #{tensornet_forward.15} parent=0 // pred_fallthru
    _
  %v23 = vld [vmem:[%s0] sm:$0xff]
  %v24 = vld [vmem:[%s0 + $0x8] sm:$0xff]
  %v25 = vld [vmem:[%s0 + $0x10] sm:$0xff]
  %v26 = vld [vmem:[%s0 + $0x18] sm:$0xff]
  %v27 = vld [vmem:[%s0 + $0x20] sm:$0xff]
  %v28 = vld [vmem:[%s0 + $0x28] sm:$0xff]
  %v29 = vmul.f32 %v23, %v23
  %v30 = vmul.f32 %v24, %v24
  %v31 = vmul.f32 %v25, %v25
  %v32 = vmul.f32 %v26, %v26
  %v33 = vmul.f32 %v27, %v27
  %v34 = vmul.f32 %v28, %v28
  %v35 = vld [vmem:[%s1] sm:$0xff]
  %v36 = vld [vmem:[%s1 + $0x8] sm:$0xff]
  %v37 = vld [vmem:[%s1 + $0x10] sm:$0xff]
  %v38 = vld [vmem:[%s1 + $0x18] sm:$0xff]
  %v39 = vld [vmem:[%s1 + $0x20] sm:$0xff]
  %v40 = vld [vmem:[%s1 + $0x28] sm:$0xff]
  %v41 = vld [vmem:[%s1 + $0x30] sm:$0xff]
  %v42 = vld [vmem:[%s1 + $0x38] sm:$0xff]
  %v43 = vld [vmem:[%s1 + $0x40] sm:$0xff]
  %v44 = vld [vmem:[%s1 + $0x48] sm:$0xff]
  %v45 = vld [vmem:[%s1 + $0x50] sm:$0xff]
  %v46 = vld [vmem:[%s1 + $0x58] sm:$0xff]
  %v47 = vld [vmem:[%s1 + $0x60] sm:$0xff]
  %v48 = vld [vmem:[%s1 + $0x68] sm:$0xff]
  %v49 = vld [vmem:[%s1 + $0x70] sm:$0xff]
  %v50 = vld [vmem:[%s1 + $0x78] sm:$0xff]
  %v51 = vld [vmem:[%s1 + $0x80] sm:$0xff]
  %v52 = vld [vmem:[%s1 + $0x88] sm:$0xff]
  %v53 = vld [vmem:[%s1 + $0x90] sm:$0xff]
  %v54 = vld [vmem:[%s1 + $0x98] sm:$0xff]
  %v55 = vld [vmem:[%s1 + $0xa0] sm:$0xff]
  %v56 = vld [vmem:[%s1 + $0xa8] sm:$0xff]
  %v57 = vld [vmem:[%s1 + $0xb0] sm:$0xff]
  %v58 = vld [vmem:[%s1 + $0xb8] sm:$0xff]
  %v59 = vld [vmem:[%s1 + $0xc0] sm:$0xff]
  %v60 = vld [vmem:[%s1 + $0xc8] sm:$0xff]
  %v61 = vld [vmem:[%s1 + $0xd0] sm:$0xff]
  %v62 = vld [vmem:[%s1 + $0xd8] sm:$0xff]
  %v63 = vld [vmem:[%s1 + $0xe0] sm:$0xff]
  %v64 = vld [vmem:[%s1 + $0xe8] sm:$0xff]
  %v65 = vld [vmem:[%s1 + $0xf0] sm:$0xff]
  %v66 = vld [vmem:[%s1 + $0xf8] sm:$0xff]
  %v67 = vld [vmem:[%s1 + $0x100] sm:$0xff]
  %v68 = vld [vmem:[%s1 + $0x108] sm:$0xff]
  %v69 = vld [vmem:[%s1 + $0x110] sm:$0xff]
  %v70 = vld [vmem:[%s1 + $0x118] sm:$0xff]
  %v71 = vld [vmem:[%s1 + $0x120] sm:$0xff]
  %v72 = vld [vmem:[%s1 + $0x128] sm:$0xff]
  %v73 = vld [vmem:[%s1 + $0x130] sm:$0xff]
  %v74 = vld [vmem:[%s1 + $0x138] sm:$0xff]
  %vm75 = vcmask 523264
  %v77 = vsel %vm75, %v31, 0
  %v80 = vsel %vm75, %v34, 0
  %82 = vmatprep.subr.mxu0 0.0
  %83 = vmatpush1.msra.mxu0 %v35
  %84 = vmatprep.subr.mxu0 0.0
  %85 = vmatpush1.msra.mxu0 %v36
  %86 = vmatprep.subr.mxu0 0.0
  %87 = vmatpush1.msra.mxu0 %v37
  %88 = vmatprep.subr.mxu0 0.0
  %89 = vmatpush1.msra.mxu0 %v38
  %90 = vmatprep.subr.mxu0 0.0
  %91 = vmatpush1.msra.mxu0 %v39
  %92 = vmatprep.subr.mxu0 0.0
  %93 = vmatpush1.msra.mxu0 %v40
  %94 = vmatprep.subr.mxu0 0.0
  %95 = vmatpush1.msra.mxu0 %v41
  %96 = vmatprep.subr.mxu0 0.0
  %97 = vmatpush1.msra.mxu0 %v42
  %98 = vmatprep.subr.mxu0 0.0
  %99 = vmatpush1.msra.mxu0 %v43
  %100 = vmatprep.subr.mxu0 0.0
  %101 = vmatpush1.msra.mxu0 %v44
  %102 = vmatprep.subr.mxu0 0.0
  %103 = vmatpush1.msra.mxu0 %v45
  %104 = vmatprep.subr.mxu0 0.0
  %105 = vmatpush1.msra.mxu0 %v46
  %106 = vmatprep.subr.mxu0 0.0
  %107 = vmatpush1.msra.mxu0 %v47
  %108 = vmatprep.subr.mxu0 0.0
  %109 = vmatpush1.msra.mxu0 %v48
  %110 = vmatprep.subr.mxu0 0.0
  %111 = vmatpush1.msra.mxu0 %v49
  %112 = vmatprep.subr.mxu0 0.0
  %113 = vmatpush1.msra.mxu0 %v50
  %114 = vmatprep.subr.mxu0 0.0
  %115 = vmatpush1.msra.mxu0 %v51
  %116 = vmatprep.subr.mxu0 0.0
  %117 = vmatpush1.msra.mxu0 %v52
  %118 = vmatprep.subr.mxu0 0.0
  %119 = vmatpush1.msra.mxu0 %v53
  %120 = vmatprep.subr.mxu0 0.0
  %121 = vmatpush1.msra.mxu0 %v54
  %122 = vmatprep.subr.mxu0 0.0
  %123 = vmatpush1.msra.mxu0 %v55
  %124 = vmatprep.subr.mxu0 0.0
  %125 = vmatpush1.msra.mxu0 %v56
  %126 = vmatprep.subr.mxu0 0.0
  %127 = vmatpush1.msra.mxu0 %v57
  %128 = vmatprep.subr.mxu0 0.0
  %129 = vmatpush1.msra.mxu0 %v58
  %130 = vmatprep.subr.mxu0 0.0
  %131 = vmatpush1.msra.mxu0 %v59
  %132 = vmatprep.subr.mxu0 0.0
  %133 = vmatpush1.msra.mxu0 %v60
  %134 = vmatprep.subr.mxu0 0.0
  %135 = vmatpush1.msra.mxu0 %v61
  %136 = vmatprep.subr.mxu0 0.0
  %137 = vmatpush1.msra.mxu0 %v62
  %138 = vmatprep.subr.mxu0 0.0
  %139 = vmatpush1.msra.mxu0 %v63
  %140 = vmatprep.subr.mxu0 0.0
  %141 = vmatpush1.msra.mxu0 %v64
  %142 = vmatprep.subr.mxu0 0.0
  %143 = vmatpush1.msra.mxu0 %v65
  %144 = vmatprep.subr.mxu0 0.0
  %145 = vmatpush1.msra.mxu0 %v66
  %146 = vmatprep.mubr.f32.mxu0 %v30
  %147 = vmatmul.mubr.f32.gmra.mrb[0].mxu0 %v29
  %v148 = vpop.f32.mrb[0].mxu0
  %v149 = vadd.f32 0.0, %v148
  %v150 = vpop.f32.mrb[0].mxu0
  %151 = vmatprep.mubr.f32.mxu0 %v33
  %152 = vmatmul.mubr.f32.gmra.mrb[0].mxu0 %v32
  %v153 = vpop.f32.mrb[0].mxu0
  %v154 = vadd.f32 0.0, %v153
  %v155 = vpop.f32.mrb[0].mxu0
  %156 = vdwg.mxu0
  %157 = vmatprep.subr.mxu0 0.0
  %158 = vmatpush1.msra.mxu0 %v67
  %159 = vmatprep.subr.mxu0 0.0
  %160 = vmatpush1.msra.mxu0 %v68
  %161 = vmatprep.subr.mxu0 0.0
  %162 = vmatpush1.msra.mxu0 %v69
  %163 = vmatprep.subr.mxu0 0.0
  %164 = vmatpush1.msra.mxu0 %v70
  %165 = vmatprep.subr.mxu0 0.0
  %166 = vmatpush1.msra.mxu0 %v71
  %167 = vmatprep.subr.mxu0 0.0
  %168 = vmatpush1.msra.mxu0 %v72
  %169 = vmatprep.subr.mxu0 0.0
  %170 = vmatpush1.msra.mxu0 %v73
  %171 = vmatprep.subr.mxu0 0.0
  %172 = vmatpush1.msra.mxu0 %v74
  %173 = vmatprep.subr.mxu0 0.0
  %174 = vmatpush1.msra.mxu0 0.0
  %175 = vmatprep.subr.mxu0 0.0
  %176 = vmatpush1.msra.mxu0 0.0
  %177 = vmatprep.subr.mxu0 0.0
  %178 = vmatpush1.msra.mxu0 0.0
  %179 = vmatprep.subr.mxu0 0.0
  %180 = vmatpush1.msra.mxu0 0.0
  %181 = vmatprep.subr.mxu0 0.0
  %182 = vmatpush1.msra.mxu0 0.0
  %183 = vmatprep.subr.mxu0 0.0
  %184 = vmatpush1.msra.mxu0 0.0
  %185 = vmatprep.subr.mxu0 0.0
  %186 = vmatpush1.msra.mxu0 0.0
  %187 = vmatprep.subr.mxu0 0.0
  %188 = vmatpush1.msra.mxu0 0.0
  %189 = vmatprep.subr.mxu0 0.0
  %190 = vmatpush1.msra.mxu0 0.0
  %191 = vmatprep.subr.mxu0 0.0
  %192 = vmatpush1.msra.mxu0 0.0
  %193 = vmatprep.subr.mxu0 0.0
  %194 = vmatpush1.msra.mxu0 0.0
  %195 = vmatprep.subr.mxu0 0.0
  %196 = vmatpush1.msra.mxu0 0.0
  %197 = vmatprep.subr.mxu0 0.0
  %198 = vmatpush1.msra.mxu0 0.0
  %199 = vmatprep.subr.mxu0 0.0
  %200 = vmatpush1.msra.mxu0 0.0
  %201 = vmatprep.subr.mxu0 0.0
  %202 = vmatpush1.msra.mxu0 0.0
  %203 = vmatprep.subr.mxu0 0.0
  %204 = vmatpush1.msra.mxu0 0.0
  %205 = vmatprep.subr.mxu0 0.0
  %206 = vmatpush1.msra.mxu0 0.0
  %207 = vmatprep.subr.mxu0 0.0
  %208 = vmatpush1.msra.mxu0 0.0
  %209 = vmatprep.subr.mxu0 0.0
  %210 = vmatpush1.msra.mxu0 0.0
  %211 = vmatprep.subr.mxu0 0.0
  %212 = vmatpush1.msra.mxu0 0.0
  %213 = vmatprep.subr.mxu0 0.0
  %214 = vmatpush1.msra.mxu0 0.0
  %215 = vmatprep.subr.mxu0 0.0
  %216 = vmatpush1.msra.mxu0 0.0
  %217 = vmatprep.subr.mxu0 0.0
  %218 = vmatpush1.msra.mxu0 0.0
  %219 = vmatprep.subr.mxu0 0.0
  %220 = vmatpush1.msra.mxu0 0.0
  %221 = vmatprep.mubr.f32.mxu0 0.0
  %222 = vmatmul.mubr.f32.gmra.mrb[0].mxu0 %v77
  %v223 = vpop.f32.mrb[0].mxu0
  %v224 = vadd.f32 %v149, %v223
  %v225 = vpop.f32.mrb[0].mxu0
  %226 = vmatprep.mubr.f32.mxu0 0.0
  %227 = vmatmul.mubr.f32.gmra.mrb[0].mxu0 %v80
  %v228 = vpop.f32.mrb[0].mxu0
  %v229 = vadd.f32 %v154, %v228
  %v230 = vpop.f32.mrb[0].mxu0
  %231 = vdwg.mxu0
  %vm232 = vcmask 785408
  %v233 = vsel %vm232, %v224, 0.0
  %234 = vadd.xlane.f32.xlu0 %v233
  %v235 = vpop.xlane.xlu0 %234
  %v236 = vsel %vm232, %v229, 0.0
  %237 = vadd.xlane.f32.xlu0 %v236
  %v238 = vpop.xlane.xlu0 %237
  %v239 = vrcp.pop 96.0
  %v240 = vmul.f32 %v235, %v239
  %v241 = vmul.f32 %v238, %v239
  %v242 = vsub.f32 %v224, %v240
  %v243 = vsub.f32 %v229, %v241
  %v244 = vmul.f32 %v242, %v242
  %v245 = vmul.f32 %v243, %v243
  %v246 = vsel %vm232, %v244, 0.0
  %247 = vadd.xlane.f32.xlu0 %v246
  %v248 = vpop.xlane.xlu0 %247
  %v249 = vsel %vm232, %v245, 0.0
  %250 = vadd.xlane.f32.xlu0 %v249
  %v251 = vpop.xlane.xlu0 %250
  %v252 = vmul.f32 %v248, %v239
  %v253 = vmul.f32 %v251, %v239
  %v254 = vadd.f32 %v252, 1e-05
  %v255 = vadd.f32 %v253, 1e-05
  %v256 = vrsqrt.pop %v254
  %v257 = vrsqrt.pop %v255
  %v258 = vmul.f32 %v242, %v256
  %v259 = vmul.f32 %v243, %v257
  %v260 = vld [vmem:[%s2] sm:$0x1]
  %v262 = vlaneseq
  %v263 = vshrl.u32 %v262, 7
  %v264 = vsub.s32 0, %v263
  %v265 = vrot.slane %v260, %v264
  %v267 = vmul.f32 %v258, %v265
  %v268 = vmul.f32 %v259, %v265
  %v269 = vld [vmem:[%s3] sm:$0x1]
  %v271 = vlaneseq
  %v272 = vshrl.u32 %v271, 7
  %v273 = vsub.s32 0, %v272
  %v274 = vrot.slane %v269, %v273
  %v276 = vadd.f32 %v267, %v274
  %v277 = vadd.f32 %v268, %v274
  %v278 = vld [vmem:[%s4] sm:$0xff]
  %v279 = vld [vmem:[%s4 + $0x8] sm:$0xff]
  %v280 = vld [vmem:[%s4 + $0x10] sm:$0xff]
  %v281 = vld [vmem:[%s4 + $0x18] sm:$0xff]
  %v282 = vld [vmem:[%s4 + $0x20] sm:$0xff]
  %v283 = vld [vmem:[%s4 + $0x28] sm:$0xff]
  %v284 = vld [vmem:[%s4 + $0x30] sm:$0xff]
  %v285 = vld [vmem:[%s4 + $0x38] sm:$0xff]
  %v286 = vld [vmem:[%s4 + $0x40] sm:$0xff]
  %v287 = vld [vmem:[%s4 + $0x48] sm:$0xff]
  %v288 = vld [vmem:[%s4 + $0x50] sm:$0xff]
  %v289 = vld [vmem:[%s4 + $0x58] sm:$0xff]
  %v290 = vld [vmem:[%s5] sm:$0x1]
  %v292 = vlaneseq
  %v293 = vshrl.u32 %v292, 7
  %v294 = vsub.s32 0, %v293
  %v295 = vrot.slane %v290, %v294
  %v298 = vsel %vm232, %v276, 0
  %v301 = vsel %vm232, %v277, 0
  %303 = vmatprep.subr.mxu0 0.0
  %304 = vmatpush1.msra.mxu0 %v278
  %305 = vmatprep.subr.mxu0 0.0
  %306 = vmatpush1.msra.mxu0 %v279
  %307 = vmatprep.subr.mxu0 0.0
  %308 = vmatpush1.msra.mxu0 %v280
  %309 = vmatprep.subr.mxu0 0.0
  %310 = vmatpush1.msra.mxu0 %v281
  %311 = vmatprep.subr.mxu0 0.0
  %312 = vmatpush1.msra.mxu0 %v282
  %313 = vmatprep.subr.mxu0 0.0
  %314 = vmatpush1.msra.mxu0 %v283
  %315 = vmatprep.subr.mxu0 0.0
  %316 = vmatpush1.msra.mxu0 %v284
  %317 = vmatprep.subr.mxu0 0.0
  %318 = vmatpush1.msra.mxu0 %v285
  %319 = vmatprep.subr.mxu0 0.0
  %320 = vmatpush1.msra.mxu0 %v286
  %321 = vmatprep.subr.mxu0 0.0
  %322 = vmatpush1.msra.mxu0 %v287
  %323 = vmatprep.subr.mxu0 0.0
  %324 = vmatpush1.msra.mxu0 %v288
  %325 = vmatprep.subr.mxu0 0.0
  %326 = vmatpush1.msra.mxu0 %v289
  %327 = vmatprep.subr.mxu0 0.0
  %328 = vmatpush1.msra.mxu0 0.0
  %329 = vmatprep.subr.mxu0 0.0
  %330 = vmatpush1.msra.mxu0 0.0
  %331 = vmatprep.subr.mxu0 0.0
  %332 = vmatpush1.msra.mxu0 0.0
  %333 = vmatprep.subr.mxu0 0.0
  %334 = vmatpush1.msra.mxu0 0.0
  %335 = vmatprep.subr.mxu0 0.0
  %336 = vmatpush1.msra.mxu0 0.0
  %337 = vmatprep.subr.mxu0 0.0
  %338 = vmatpush1.msra.mxu0 0.0
  %339 = vmatprep.subr.mxu0 0.0
  %340 = vmatpush1.msra.mxu0 0.0
  %341 = vmatprep.subr.mxu0 0.0
  %342 = vmatpush1.msra.mxu0 0.0
  %343 = vmatprep.subr.mxu0 0.0
  %344 = vmatpush1.msra.mxu0 0.0
  %345 = vmatprep.subr.mxu0 0.0
  %346 = vmatpush1.msra.mxu0 0.0
  %347 = vmatprep.subr.mxu0 0.0
  %348 = vmatpush1.msra.mxu0 0.0
  %349 = vmatprep.subr.mxu0 0.0
  %350 = vmatpush1.msra.mxu0 0.0
  %351 = vmatprep.subr.mxu0 0.0
  %352 = vmatpush1.msra.mxu0 0.0
  %353 = vmatprep.subr.mxu0 0.0
  %354 = vmatpush1.msra.mxu0 0.0
  %355 = vmatprep.subr.mxu0 0.0
  %356 = vmatpush1.msra.mxu0 0.0
  %357 = vmatprep.subr.mxu0 0.0
  %358 = vmatpush1.msra.mxu0 0.0
  %359 = vmatprep.subr.mxu0 0.0
  %360 = vmatpush1.msra.mxu0 0.0
  %361 = vmatprep.subr.mxu0 0.0
  %362 = vmatpush1.msra.mxu0 0.0
  %363 = vmatprep.subr.mxu0 0.0
  %364 = vmatpush1.msra.mxu0 0.0
  %365 = vmatprep.subr.mxu0 0.0
  %366 = vmatpush1.msra.mxu0 0.0
  %367 = vmatprep.mubr.f32.mxu0 0.0
  %368 = vmatmul.mubr.f32.gmra.mrb[0].mxu0 %v298
  %v369 = vpop.f32.mrb[0].mxu0
  %v370 = vadd.f32 %v295, %v369
  %v371 = vpop.f32.mrb[0].mxu0
  %372 = vmatprep.mubr.f32.mxu0 0.0
  %373 = vmatmul.mubr.f32.gmra.mrb[0].mxu0 %v301
  %v374 = vpop.f32.mrb[0].mxu0
  %v375 = vadd.f32 %v295, %v374
  %v376 = vpop.f32.mrb[0].mxu0
  %377 = vdwg.mxu0
  %v378 = vsub.f32 0.0, %v370
  %v379 = vsub.f32 0.0, %v375
  %v380 = vmul.f32 %v378, 1.442695
  %v381 = vpow.pop %v380
  %v382 = vmul.f32 %v379, 1.442695
  %v383 = vpow.pop %v382
  %v384 = vadd.f32 %v381, 1.0
  %v385 = vadd.f32 %v383, 1.0
  %v386 = vrcp.pop %v384
  %v387 = vrcp.pop %v385
  %v388 = vmul.f32 %v370, %v386
  %v389 = vmul.f32 %v375, %v387
  %vm390 = vcmask 261120
  %391 = vst.msk [vmem:[%s6] sm:$0xff] %vm390, %v388
  %392 = vst.msk [vmem:[%s6 + $0x8] sm:$0xff] %vm390, %v389
  // Predicated region
  $region26: #{tensornet_forward.15} parent=0 // pred_check
    _
  $region27: #{tensornet_forward.15} parent=0 // pred_check_branch
    %394 = sbr.rel (0) target = $region29
  $region28: #{tensornet_forward.15} parent=0 // pred_region
    _
  $region29: #{tensornet_forward.15} parent=0 // pred_fallthru
    _
  // Predicated region
  $region30: #{tensornet_forward.15} parent=0 // pred_check
    _
  $region31: #{tensornet_forward.15} parent=0 // pred_check_branch
    %396 = sbr.rel (0) target = $region33
  $region32: #{tensornet_forward.15} parent=0 // pred_region
    _
  $region33: #{tensornet_forward.15} parent=0 // pred_fallthru
    _

// kernel: tensornet_forward.12
$region0: #{tensornet_forward.12}
  #allocation0 [shape = 'u32[]', space=smem, size = 0x4, offset = 0x4, fixed_abs, tag = 'smem constant byte address 0x4 - core index']
  #allocation1 [shape = 'u32[144,128]{1,0:T(1,128)}', space=vmem, size = 0x12000, scoped, tag = 'internal scratch']
  %s0 = inlined_call_operand.vmem [shape: f32[16,320], index: 0, kind: input, shape index: {}]
  %s1 = inlined_call_operand.vmem [shape: f32[16,320], index: 1, kind: input, shape index: {}]
  %s2 = inlined_call_operand.vmem [shape: f32[16,320], index: 2, kind: input, shape index: {}]
  %s3 = inlined_call_operand.vmem [shape: f32[16,1], index: 3, kind: input, shape index: {}]
  %s4 = inlined_call_operand.vmem [shape: f32[320,32], index: 4, kind: input, shape index: {}]
  %s5 = inlined_call_operand.vmem [shape: f32[320,320], index: 5, kind: input, shape index: {}]
  %s6 = inlined_call_operand.vmem [shape: f32[16,320], index: 6, kind: output, shape index: {}]
  %s7 = sld [smem:[#allocation0]]
  $region34: #{tensornet_forward.12} parent=0
    _
  %s9 = ssub.s32 1, %s7
  %s10 = scalar_select 0, %s9, %s7
  // Predicated region
  $region2: #{tensornet_forward.12} parent=0 // pred_check
    _
  $region3: #{tensornet_forward.12} parent=0 // pred_check_branch
    %12 = sbr.rel (0) target = $region5
  $region4: #{tensornet_forward.12} parent=0 // pred_region
    _
  $region5: #{tensornet_forward.12} parent=0 // pred_fallthru
    _
  // Predicated region
  $region6: #{tensornet_forward.12} parent=0 // pred_check
    _
  $region7: #{tensornet_forward.12} parent=0 // pred_check_branch
    %14 = sbr.rel (0) target = $region9
  $region8: #{tensornet_forward.12} parent=0 // pred_region
    _
  $region9: #{tensornet_forward.12} parent=0 // pred_fallthru
    _
  // Predicated region
  $region10: #{tensornet_forward.12} parent=0 // pred_check
    _
  $region11: #{tensornet_forward.12} parent=0 // pred_check_branch
    %16 = sbr.rel (0) target = $region13
  $region12: #{tensornet_forward.12} parent=0 // pred_region
    _
  $region13: #{tensornet_forward.12} parent=0 // pred_fallthru
    _
  // Predicated region
  $region14: #{tensornet_forward.12} parent=0 // pred_check
    _
  $region15: #{tensornet_forward.12} parent=0 // pred_check_branch
    %18 = sbr.rel (0) target = $region17
  $region16: #{tensornet_forward.12} parent=0 // pred_region
    _
  $region17: #{tensornet_forward.12} parent=0 // pred_fallthru
    _
  // Predicated region
  $region18: #{tensornet_forward.12} parent=0 // pred_check
    _
  $region19: #{tensornet_forward.12} parent=0 // pred_check_branch
    %20 = sbr.rel (0) target = $region21
  $region20: #{tensornet_forward.12} parent=0 // pred_region
    _
  $region21: #{tensornet_forward.12} parent=0 // pred_fallthru
    _
  // Predicated region
  $region22: #{tensornet_forward.12} parent=0 // pred_check
    _
  $region23: #{tensornet_forward.12} parent=0 // pred_check_branch
    %22 = sbr.rel (0) target = $region25
  $region24: #{tensornet_forward.12} parent=0 // pred_region
    _
  $region25: #{tensornet_forward.12} parent=0 // pred_fallthru
    _
  %v23 = vld [vmem:[%s0] sm:$0xff]
  %v24 = vld [vmem:[%s0 + $0x8] sm:$0xff]
  %v25 = vld [vmem:[%s0 + $0x10] sm:$0xff]
  %v26 = vld [vmem:[%s0 + $0x18] sm:$0xff]
  %v27 = vld [vmem:[%s0 + $0x20] sm:$0xff]
  %v28 = vld [vmem:[%s0 + $0x28] sm:$0xff]
  %v29 = vld [vmem:[%s1] sm:$0xff]
  %v30 = vld [vmem:[%s1 + $0x8] sm:$0xff]
  %v31 = vld [vmem:[%s1 + $0x10] sm:$0xff]
  %v32 = vld [vmem:[%s1 + $0x18] sm:$0xff]
  %v33 = vld [vmem:[%s1 + $0x20] sm:$0xff]
  %v34 = vld [vmem:[%s1 + $0x28] sm:$0xff]
  %v35 = vld [vmem:[%s2] sm:$0xff]
  %v36 = vld [vmem:[%s2 + $0x8] sm:$0xff]
  %v37 = vld [vmem:[%s2 + $0x10] sm:$0xff]
  %v38 = vld [vmem:[%s2 + $0x18] sm:$0xff]
  %v39 = vld [vmem:[%s2 + $0x20] sm:$0xff]
  %v40 = vld [vmem:[%s2 + $0x28] sm:$0xff]
  %v41 = vmul.f32 %v23, %v23
  %v42 = vmul.f32 %v24, %v24
  %v43 = vmul.f32 %v25, %v25
  %v44 = vmul.f32 %v26, %v26
  %v45 = vmul.f32 %v27, %v27
  %v46 = vmul.f32 %v28, %v28
  %v47 = vld [vmem:[%s4] sm:$0xff]
  %v48 = vld [vmem:[%s4 + $0x8] sm:$0xff]
  %v49 = vld [vmem:[%s4 + $0x10] sm:$0xff]
  %v50 = vld [vmem:[%s4 + $0x18] sm:$0xff]
  %v51 = vld [vmem:[%s4 + $0x20] sm:$0xff]
  %v52 = vld [vmem:[%s4 + $0x28] sm:$0xff]
  %v53 = vld [vmem:[%s4 + $0x30] sm:$0xff]
  %v54 = vld [vmem:[%s4 + $0x38] sm:$0xff]
  %v55 = vld [vmem:[%s4 + $0x40] sm:$0xff]
  %v56 = vld [vmem:[%s4 + $0x48] sm:$0xff]
  %v57 = vld [vmem:[%s4 + $0x50] sm:$0xff]
  %v58 = vld [vmem:[%s4 + $0x58] sm:$0xff]
  %v59 = vld [vmem:[%s4 + $0x60] sm:$0xff]
  %v60 = vld [vmem:[%s4 + $0x68] sm:$0xff]
  %v61 = vld [vmem:[%s4 + $0x70] sm:$0xff]
  %v62 = vld [vmem:[%s4 + $0x78] sm:$0xff]
  %v63 = vld [vmem:[%s4 + $0x80] sm:$0xff]
  %v64 = vld [vmem:[%s4 + $0x88] sm:$0xff]
  %v65 = vld [vmem:[%s4 + $0x90] sm:$0xff]
  %v66 = vld [vmem:[%s4 + $0x98] sm:$0xff]
  %v67 = vld [vmem:[%s4 + $0xa0] sm:$0xff]
  %v68 = vld [vmem:[%s4 + $0xa8] sm:$0xff]
  %v69 = vld [vmem:[%s4 + $0xb0] sm:$0xff]
  %v70 = vld [vmem:[%s4 + $0xb8] sm:$0xff]
  %v71 = vld [vmem:[%s4 + $0xc0] sm:$0xff]
  %v72 = vld [vmem:[%s4 + $0xc8] sm:$0xff]
  %v73 = vld [vmem:[%s4 + $0xd0] sm:$0xff]
  %v74 = vld [vmem:[%s4 + $0xd8] sm:$0xff]
  %v75 = vld [vmem:[%s4 + $0xe0] sm:$0xff]
  %v76 = vld [vmem:[%s4 + $0xe8] sm:$0xff]
  %v77 = vld [vmem:[%s4 + $0xf0] sm:$0xff]
  %v78 = vld [vmem:[%s4 + $0xf8] sm:$0xff]
  %v79 = vld [vmem:[%s4 + $0x100] sm:$0xff]
  %v80 = vld [vmem:[%s4 + $0x108] sm:$0xff]
  %v81 = vld [vmem:[%s4 + $0x110] sm:$0xff]
  %v82 = vld [vmem:[%s4 + $0x118] sm:$0xff]
  %v83 = vld [vmem:[%s4 + $0x120] sm:$0xff]
  %v84 = vld [vmem:[%s4 + $0x128] sm:$0xff]
  %v85 = vld [vmem:[%s4 + $0x130] sm:$0xff]
  %v86 = vld [vmem:[%s4 + $0x138] sm:$0xff]
  %vm87 = vcmask 523264
  %v89 = vsel %vm87, %v43, 0
  %v92 = vsel %vm87, %v46, 0
  %94 = vmatprep.subr.mxu0 0.0
  %95 = vmatpush1.msra.mxu0 %v47
  %96 = vmatprep.subr.mxu0 0.0
  %97 = vmatpush1.msra.mxu0 %v48
  %98 = vmatprep.subr.mxu0 0.0
  %99 = vmatpush1.msra.mxu0 %v49
  %100 = vmatprep.subr.mxu0 0.0
  %101 = vmatpush1.msra.mxu0 %v50
  %102 = vmatprep.subr.mxu0 0.0
  %103 = vmatpush1.msra.mxu0 %v51
  %104 = vmatprep.subr.mxu0 0.0
  %105 = vmatpush1.msra.mxu0 %v52
  %106 = vmatprep.subr.mxu0 0.0
  %107 = vmatpush1.msra.mxu0 %v53
  %108 = vmatprep.subr.mxu0 0.0
  %109 = vmatpush1.msra.mxu0 %v54
  %110 = vmatprep.subr.mxu0 0.0
  %111 = vmatpush1.msra.mxu0 %v55
  %112 = vmatprep.subr.mxu0 0.0
  %113 = vmatpush1.msra.mxu0 %v56
  %114 = vmatprep.subr.mxu0 0.0
  %115 = vmatpush1.msra.mxu0 %v57
  %116 = vmatprep.subr.mxu0 0.0
  %117 = vmatpush1.msra.mxu0 %v58
  %118 = vmatprep.subr.mxu0 0.0
  %119 = vmatpush1.msra.mxu0 %v59
  %120 = vmatprep.subr.mxu0 0.0
  %121 = vmatpush1.msra.mxu0 %v60
  %122 = vmatprep.subr.mxu0 0.0
  %123 = vmatpush1.msra.mxu0 %v61
  %124 = vmatprep.subr.mxu0 0.0
  %125 = vmatpush1.msra.mxu0 %v62
  %126 = vmatprep.subr.mxu0 0.0
  %127 = vmatpush1.msra.mxu0 %v63
  %128 = vmatprep.subr.mxu0 0.0
  %129 = vmatpush1.msra.mxu0 %v64
  %130 = vmatprep.subr.mxu0 0.0
  %131 = vmatpush1.msra.mxu0 %v65
  %132 = vmatprep.subr.mxu0 0.0
  %133 = vmatpush1.msra.mxu0 %v66
  %134 = vmatprep.subr.mxu0 0.0
  %135 = vmatpush1.msra.mxu0 %v67
  %136 = vmatprep.subr.mxu0 0.0
  %137 = vmatpush1.msra.mxu0 %v68
  %138 = vmatprep.subr.mxu0 0.0
  %139 = vmatpush1.msra.mxu0 %v69
  %140 = vmatprep.subr.mxu0 0.0
  %141 = vmatpush1.msra.mxu0 %v70
  %142 = vmatprep.subr.mxu0 0.0
  %143 = vmatpush1.msra.mxu0 %v71
  %144 = vmatprep.subr.mxu0 0.0
  %145 = vmatpush1.msra.mxu0 %v72
  %146 = vmatprep.subr.mxu0 0.0
  %147 = vmatpush1.msra.mxu0 %v73
  %148 = vmatprep.subr.mxu0 0.0
  %149 = vmatpush1.msra.mxu0 %v74
  %150 = vmatprep.subr.mxu0 0.0
  %151 = vmatpush1.msra.mxu0 %v75
  %152 = vmatprep.subr.mxu0 0.0
  %153 = vmatpush1.msra.mxu0 %v76
  %154 = vmatprep.subr.mxu0 0.0
  %155 = vmatpush1.msra.mxu0 %v77
  %156 = vmatprep.subr.mxu0 0.0
  %157 = vmatpush1.msra.mxu0 %v78
  %158 = vmatprep.mubr.f32.mxu0 %v42
  %159 = vmatmul.mubr.f32.gmra.mrb[0].mxu0 %v41
  %v160 = vpop.f32.mrb[0].mxu0
  %v161 = vadd.f32 1.0, %v160
  %v162 = vpop.f32.mrb[0].mxu0
  %163 = vmatprep.mubr.f32.mxu0 %v45
  %164 = vmatmul.mubr.f32.gmra.mrb[0].mxu0 %v44
  %v165 = vpop.f32.mrb[0].mxu0
  %v166 = vadd.f32 1.0, %v165
  %v167 = vpop.f32.mrb[0].mxu0
  %168 = vdwg.mxu0
  %169 = vmatprep.subr.mxu0 0.0
  %170 = vmatpush1.msra.mxu0 %v79
  %171 = vmatprep.subr.mxu0 0.0
  %172 = vmatpush1.msra.mxu0 %v80
  %173 = vmatprep.subr.mxu0 0.0
  %174 = vmatpush1.msra.mxu0 %v81
  %175 = vmatprep.subr.mxu0 0.0
  %176 = vmatpush1.msra.mxu0 %v82
  %177 = vmatprep.subr.mxu0 0.0
  %178 = vmatpush1.msra.mxu0 %v83
  %179 = vmatprep.subr.mxu0 0.0
  %180 = vmatpush1.msra.mxu0 %v84
  %181 = vmatprep.subr.mxu0 0.0
  %182 = vmatpush1.msra.mxu0 %v85
  %183 = vmatprep.subr.mxu0 0.0
  %184 = vmatpush1.msra.mxu0 %v86
  %185 = vmatprep.subr.mxu0 0.0
  %186 = vmatpush1.msra.mxu0 0.0
  %187 = vmatprep.subr.mxu0 0.0
  %188 = vmatpush1.msra.mxu0 0.0
  %189 = vmatprep.subr.mxu0 0.0
  %190 = vmatpush1.msra.mxu0 0.0
  %191 = vmatprep.subr.mxu0 0.0
  %192 = vmatpush1.msra.mxu0 0.0
  %193 = vmatprep.subr.mxu0 0.0
  %194 = vmatpush1.msra.mxu0 0.0
  %195 = vmatprep.subr.mxu0 0.0
  %196 = vmatpush1.msra.mxu0 0.0
  %197 = vmatprep.subr.mxu0 0.0
  %198 = vmatpush1.msra.mxu0 0.0
  %199 = vmatprep.subr.mxu0 0.0
  %200 = vmatpush1.msra.mxu0 0.0
  %201 = vmatprep.subr.mxu0 0.0
  %202 = vmatpush1.msra.mxu0 0.0
  %203 = vmatprep.subr.mxu0 0.0
  %204 = vmatpush1.msra.mxu0 0.0
  %205 = vmatprep.subr.mxu0 0.0
  %206 = vmatpush1.msra.mxu0 0.0
  %207 = vmatprep.subr.mxu0 0.0
  %208 = vmatpush1.msra.mxu0 0.0
  %209 = vmatprep.subr.mxu0 0.0
  %210 = vmatpush1.msra.mxu0 0.0
  %211 = vmatprep.subr.mxu0 0.0
  %212 = vmatpush1.msra.mxu0 0.0
  %213 = vmatprep.subr.mxu0 0.0
  %214 = vmatpush1.msra.mxu0 0.0
  %215 = vmatprep.subr.mxu0 0.0
  %216 = vmatpush1.msra.mxu0 0.0
  %217 = vmatprep.subr.mxu0 0.0
  %218 = vmatpush1.msra.mxu0 0.0
  %219 = vmatprep.subr.mxu0 0.0
  %220 = vmatpush1.msra.mxu0 0.0
  %221 = vmatprep.subr.mxu0 0.0
  %222 = vmatpush1.msra.mxu0 0.0
  %223 = vmatprep.subr.mxu0 0.0
  %224 = vmatpush1.msra.mxu0 0.0
  %225 = vmatprep.subr.mxu0 0.0
  %226 = vmatpush1.msra.mxu0 0.0
  %227 = vmatprep.subr.mxu0 0.0
  %228 = vmatpush1.msra.mxu0 0.0
  %229 = vmatprep.subr.mxu0 0.0
  %230 = vmatpush1.msra.mxu0 0.0
  %231 = vmatprep.subr.mxu0 0.0
  %232 = vmatpush1.msra.mxu0 0.0
  %233 = vmatprep.mubr.f32.mxu0 0.0
  %234 = vmatmul.mubr.f32.gmra.mrb[0].mxu0 %v89
  %v235 = vpop.f32.mrb[0].mxu0
  %v236 = vadd.f32 %v161, %v235
  %v237 = vpop.f32.mrb[0].mxu0
  %238 = vmatprep.mubr.f32.mxu0 0.0
  %239 = vmatmul.mubr.f32.gmra.mrb[0].mxu0 %v92
  %v240 = vpop.f32.mrb[0].mxu0
  %v241 = vadd.f32 %v166, %v240
  %v242 = vpop.f32.mrb[0].mxu0
  %243 = vdwg.mxu0
  %v244 = vrcp.pop %v236
  %v245 = vmul.f32 1.0, %v244
  %v246 = vrcp.pop %v241
  %v247 = vmul.f32 1.0, %v246
  %v248 = vadd.f32 %v29, %v30
  %v249 = vadd.f32 %v32, %v33
  %v250 = vsub.f32 0.0, %v29
  %v251 = vsub.f32 0.0, %v32
  %v252 = vadd.f32 %v250, %v30
  %v253 = vadd.f32 %v251, %v33
  %256 = vrot.lane.b32.xlu0 %v30, 32
  %v257 = vpop.permute.xlu0 %256
  %258 = vrot.lane.b32.xlu0 %v33, 32
  %v259 = vpop.permute.xlu0 %258
  %v262 = vadd.f32 %v29, %v257
  %v263 = vadd.f32 %v32, %v259
  %266 = vrot.lane.b32.xlu0 %v31, 96
  %v267 = vpop.permute.xlu0 %266
  %268 = vrot.lane.b32.xlu0 %v34, 96
  %v269 = vpop.permute.xlu0 %268
  %v272 = vadd.f32 %v29, %v267
  %v273 = vadd.f32 %v32, %v269
  %v274 = vadd.f32 %v250, %v267
  %v275 = vadd.f32 %v251, %v269
  %v276 = vadd.f32 %v35, %v36
  %v277 = vadd.f32 %v38, %v39
  %v278 = vsub.f32 0.0, %v35
  %v279 = vsub.f32 0.0, %v38
  %v280 = vadd.f32 %v278, %v36
  %v281 = vadd.f32 %v279, %v39
  %284 = vrot.lane.b32.xlu0 %v36, 32
  %v285 = vpop.permute.xlu0 %284
  %286 = vrot.lane.b32.xlu0 %v39, 32
  %v287 = vpop.permute.xlu0 %286
  %v290 = vadd.f32 %v35, %v285
  %v291 = vadd.f32 %v38, %v287
  %294 = vrot.lane.b32.xlu0 %v37, 96
  %v295 = vpop.permute.xlu0 %294
  %296 = vrot.lane.b32.xlu0 %v40, 96
  %v297 = vpop.permute.xlu0 %296
  %v300 = vadd.f32 %v35, %v295
  %v301 = vadd.f32 %v38, %v297
  %v302 = vadd.f32 %v278, %v295
  %v303 = vadd.f32 %v279, %v297
  %v304 = vld [vmem:[%s3] sm:$0xff]
  %v305 = vld [vmem:[%s3 + $0x8] sm:$0xff]
  %v306 = vmul.f32 %v304, 0.1
  %v307 = vmul.f32 %v305, 0.1
  %v308 = vadd.f32 %v306, 1.0
  %v309 = vadd.f32 %v307, 1.0
  %v310 = vmul.f32 %v276, %v248
  %v311 = vmul.f32 %v277, %v249
  %v312 = vmul.f32 %v276, %v252
  %v313 = vmul.f32 %v277, %v253
  %316 = vrot.lane.b32.xlu0 %v312, 96
  %v317 = vpop.permute.xlu0 %316
  %318 = vrot.lane.b32.xlu0 %v313, 96
  %v319 = vpop.permute.xlu0 %318
  %v322 = vadd.f32 %v310, %v317
  %v323 = vadd.f32 %v311, %v319
  %324 = vrot.lane.b32.xlu0 %v312, 64
  %v325 = vpop.permute.xlu0 %324
  %326 = vrot.lane.b32.xlu0 %v313, 64
  %v327 = vpop.permute.xlu0 %326
  %v330 = vadd.f32 %v322, %v325
  %v331 = vadd.f32 %v323, %v327
  %334 = vrot.lane.b32.xlu0 %v248, 96
  %v335 = vpop.permute.xlu0 %334
  %336 = vrot.lane.b32.xlu0 %v249, 96
  %v337 = vpop.permute.xlu0 %336
  %v340 = vmul.f32 %v276, %v335
  %v341 = vmul.f32 %v277, %v337
  %344 = vrot.lane.b32.xlu0 %v262, 32
  %v345 = vpop.permute.xlu0 %344
  %346 = vrot.lane.b32.xlu0 %v263, 32
  %v347 = vpop.permute.xlu0 %346
  %v350 = vmul.f32 %v276, %v345
  %v351 = vmul.f32 %v277, %v347
  %354 = vrot.lane.b32.xlu0 %v350, 96
  %v355 = vpop.permute.xlu0 %354
  %356 = vrot.lane.b32.xlu0 %v351, 96
  %v357 = vpop.permute.xlu0 %356
  %v360 = vadd.f32 %v340, %v355
  %v361 = vadd.f32 %v341, %v357
  %364 = vrot.lane.b32.xlu0 %v274, 96
  %v365 = vpop.permute.xlu0 %364
  %366 = vrot.lane.b32.xlu0 %v275, 96
  %v367 = vpop.permute.xlu0 %366
  %v370 = vmul.f32 %v276, %v365
  %v371 = vmul.f32 %v277, %v367
  %374 = vrot.lane.b32.xlu0 %v370, 64
  %v375 = vpop.permute.xlu0 %374
  %376 = vrot.lane.b32.xlu0 %v371, 64
  %v377 = vpop.permute.xlu0 %376
  %v380 = vadd.f32 %v360, %v375
  %v381 = vadd.f32 %v361, %v377
  %382 = vrot.lane.b32.xlu0 %v248, 64
  %v383 = vpop.permute.xlu0 %382
  %384 = vrot.lane.b32.xlu0 %v249, 64
  %v385 = vpop.permute.xlu0 %384
  %v388 = vmul.f32 %v276, %v383
  %v389 = vmul.f32 %v277, %v385
  %392 = vrot.lane.b32.xlu0 %v272, 64
  %v393 = vpop.permute.xlu0 %392
  %394 = vrot.lane.b32.xlu0 %v273, 64
  %v395 = vpop.permute.xlu0 %394
  %v398 = vmul.f32 %v276, %v393
  %v399 = vmul.f32 %v277, %v395
  %402 = vrot.lane.b32.xlu0 %v398, 96
  %v403 = vpop.permute.xlu0 %402
  %404 = vrot.lane.b32.xlu0 %v399, 96
  %v405 = vpop.permute.xlu0 %404
  %v408 = vadd.f32 %v388, %v403
  %v409 = vadd.f32 %v389, %v405
  %410 = vrot.lane.b32.xlu0 %v398, 64
  %v411 = vpop.permute.xlu0 %410
  %412 = vrot.lane.b32.xlu0 %v399, 64
  %v413 = vpop.permute.xlu0 %412
  %v416 = vadd.f32 %v408, %v411
  %v417 = vadd.f32 %v409, %v413
  %418 = vrot.lane.b32.xlu0 %v248, 32
  %v419 = vpop.permute.xlu0 %418
  %420 = vrot.lane.b32.xlu0 %v249, 32
  %v421 = vpop.permute.xlu0 %420
  %v424 = vmul.f32 %v280, %v419
  %v425 = vmul.f32 %v281, %v421
  %428 = vrot.lane.b32.xlu0 %v252, 96
  %v429 = vpop.permute.xlu0 %428
  %430 = vrot.lane.b32.xlu0 %v253, 96
  %v431 = vpop.permute.xlu0 %430
  %v434 = vmul.f32 %v290, %v429
  %v435 = vmul.f32 %v291, %v431
  %438 = vrot.lane.b32.xlu0 %v434, 32
  %v439 = vpop.permute.xlu0 %438
  %440 = vrot.lane.b32.xlu0 %v435, 32
  %v441 = vpop.permute.xlu0 %440
  %v444 = vadd.f32 %v424, %v439
  %v445 = vadd.f32 %v425, %v441
  %446 = vrot.lane.b32.xlu0 %v252, 32
  %v447 = vpop.permute.xlu0 %446
  %448 = vrot.lane.b32.xlu0 %v253, 32
  %v449 = vpop.permute.xlu0 %448
  %v452 = vmul.f32 %v300, %v447
  %v453 = vmul.f32 %v301, %v449
  %456 = vrot.lane.b32.xlu0 %v452, 64
  %v457 = vpop.permute.xlu0 %456
  %458 = vrot.lane.b32.xlu0 %v453, 64
  %v459 = vpop.permute.xlu0 %458
  %v462 = vadd.f32 %v444, %v457
  %v463 = vadd.f32 %v445, %v459
  %v464 = vmul.f32 %v280, %v248
  %v465 = vmul.f32 %v281, %v249
  %v466 = vmul.f32 %v290, %v262
  %v467 = vmul.f32 %v291, %v263
  %470 = vrot.lane.b32.xlu0 %v466, 32
  %v471 = vpop.permute.xlu0 %470
  %472 = vrot.lane.b32.xlu0 %v467, 32
  %v473 = vpop.permute.xlu0 %472
  %v476 = vadd.f32 %v464, %v471
  %v477 = vadd.f32 %v465, %v473
  %v478 = vmul.f32 %v300, %v274
  %v479 = vmul.f32 %v301, %v275
  %482 = vrot.lane.b32.xlu0 %v478, 64
  %v483 = vpop.permute.xlu0 %482
  %484 = vrot.lane.b32.xlu0 %v479, 64
  %v485 = vpop.permute.xlu0 %484
  %v488 = vadd.f32 %v476, %v483
  %v489 = vadd.f32 %v477, %v485
  %v490 = vmul.f32 %v280, %v335
  %v491 = vmul.f32 %v281, %v337
  %492 = vrot.lane.b32.xlu0 %v272, 32
  %v493 = vpop.permute.xlu0 %492
  %494 = vrot.lane.b32.xlu0 %v273, 32
  %v495 = vpop.permute.xlu0 %494
  %v498 = vmul.f32 %v290, %v493
  %v499 = vmul.f32 %v291, %v495
  %502 = vrot.lane.b32.xlu0 %v498, 32
  %v503 = vpop.permute.xlu0 %502
  %504 = vrot.lane.b32.xlu0 %v499, 32
  %v505 = vpop.permute.xlu0 %504
  %v508 = vadd.f32 %v490, %v503
  %v509 = vadd.f32 %v491, %v505
  %510 = vrot.lane.b32.xlu0 %v272, 96
  %v511 = vpop.permute.xlu0 %510
  %512 = vrot.lane.b32.xlu0 %v273, 96
  %v513 = vpop.permute.xlu0 %512
  %v516 = vmul.f32 %v300, %v511
  %v517 = vmul.f32 %v301, %v513
  %520 = vrot.lane.b32.xlu0 %v516, 64
  %v521 = vpop.permute.xlu0 %520
  %522 = vrot.lane.b32.xlu0 %v517, 64
  %v523 = vpop.permute.xlu0 %522
  %v526 = vadd.f32 %v508, %v521
  %v527 = vadd.f32 %v509, %v523
  %v528 = vmul.f32 %v280, %v383
  %v529 = vmul.f32 %v281, %v385
  %530 = vrot.lane.b32.xlu0 %v252, 64
  %v531 = vpop.permute.xlu0 %530
  %532 = vrot.lane.b32.xlu0 %v253, 64
  %v533 = vpop.permute.xlu0 %532
  %v536 = vmul.f32 %v302, %v531
  %v537 = vmul.f32 %v303, %v533
  %540 = vrot.lane.b32.xlu0 %v536, 96
  %v541 = vpop.permute.xlu0 %540
  %542 = vrot.lane.b32.xlu0 %v537, 96
  %v543 = vpop.permute.xlu0 %542
  %v546 = vadd.f32 %v528, %v541
  %v547 = vadd.f32 %v529, %v543
  %v548 = vmul.f32 %v300, %v531
  %v549 = vmul.f32 %v301, %v533
  %552 = vrot.lane.b32.xlu0 %v548, 64
  %v553 = vpop.permute.xlu0 %552
  %554 = vrot.lane.b32.xlu0 %v549, 64
  %v555 = vpop.permute.xlu0 %554
  %v558 = vadd.f32 %v546, %v553
  %v559 = vadd.f32 %v547, %v555
  %560 = vrot.lane.b32.xlu0 %v262, 96
  %v561 = vpop.permute.xlu0 %560
  %562 = vrot.lane.b32.xlu0 %v263, 96
  %v563 = vpop.permute.xlu0 %562
  %v566 = vmul.f32 %v302, %v561
  %v567 = vmul.f32 %v303, %v563
  %570 = vrot.lane.b32.xlu0 %v566, 96
  %v571 = vpop.permute.xlu0 %570
  %572 = vrot.lane.b32.xlu0 %v567, 96
  %v573 = vpop.permute.xlu0 %572
  %v576 = vadd.f32 %v424, %v571
  %v577 = vadd.f32 %v425, %v573
  %578 = vrot.lane.b32.xlu0 %v274, 32
  %v579 = vpop.permute.xlu0 %578
  %580 = vrot.lane.b32.xlu0 %v275, 32
  %v581 = vpop.permute.xlu0 %580
  %v584 = vmul.f32 %v300, %v579
  %v585 = vmul.f32 %v301, %v581
  %588 = vrot.lane.b32.xlu0 %v584, 64
  %v589 = vpop.permute.xlu0 %588
  %590 = vrot.lane.b32.xlu0 %v585, 64
  %v591 = vpop.permute.xlu0 %590
  %v594 = vadd.f32 %v576, %v589
  %v595 = vadd.f32 %v577, %v591
  %v596 = vmul.f32 %v302, %v272
  %v597 = vmul.f32 %v303, %v273
  %600 = vrot.lane.b32.xlu0 %v596, 96
  %v601 = vpop.permute.xlu0 %600
  %602 = vrot.lane.b32.xlu0 %v597, 96
  %v603 = vpop.permute.xlu0 %602
  %v606 = vadd.f32 %v464, %v601
  %v607 = vadd.f32 %v465, %v603
  %v608 = vmul.f32 %v300, %v272
  %v609 = vmul.f32 %v301, %v273
  %612 = vrot.lane.b32.xlu0 %v608, 64
  %v613 = vpop.permute.xlu0 %612
  %614 = vrot.lane.b32.xlu0 %v609, 64
  %v615 = vpop.permute.xlu0 %614
  %v618 = vadd.f32 %v606, %v613
  %v619 = vadd.f32 %v607, %v615
  %622 = vrot.lane.b32.xlu0 %v464, 96
  %v623 = vpop.permute.xlu0 %622
  %624 = vrot.lane.b32.xlu0 %v465, 96
  %v625 = vpop.permute.xlu0 %624
  %v628 = vadd.f32 %v310, %v623
  %v629 = vadd.f32 %v311, %v625
  %630 = vrot.lane.b32.xlu0 %v464, 64
  %v631 = vpop.permute.xlu0 %630
  %632 = vrot.lane.b32.xlu0 %v465, 64
  %v633 = vpop.permute.xlu0 %632
  %v636 = vadd.f32 %v628, %v631
  %v637 = vadd.f32 %v629, %v633
  %640 = vrot.lane.b32.xlu0 %v276, 96
  %v641 = vpop.permute.xlu0 %640
  %642 = vrot.lane.b32.xlu0 %v277, 96
  %v643 = vpop.permute.xlu0 %642
  %v646 = vmul.f32 %v248, %v641
  %v647 = vmul.f32 %v249, %v643
  %650 = vrot.lane.b32.xlu0 %v290, 32
  %v651 = vpop.permute.xlu0 %650
  %652 = vrot.lane.b32.xlu0 %v291, 32
  %v653 = vpop.permute.xlu0 %652
  %v656 = vmul.f32 %v248, %v651
  %v657 = vmul.f32 %v249, %v653
  %660 = vrot.lane.b32.xlu0 %v656, 96
  %v661 = vpop.permute.xlu0 %660
  %662 = vrot.lane.b32.xlu0 %v657, 96
  %v663 = vpop.permute.xlu0 %662
  %v666 = vadd.f32 %v646, %v661
  %v667 = vadd.f32 %v647, %v663
  %670 = vrot.lane.b32.xlu0 %v302, 96
  %v671 = vpop.permute.xlu0 %670
  %672 = vrot.lane.b32.xlu0 %v303, 96
  %v673 = vpop.permute.xlu0 %672
  %v676 = vmul.f32 %v248, %v671
  %v677 = vmul.f32 %v249, %v673
  %680 = vrot.lane.b32.xlu0 %v676, 64
  %v681 = vpop.permute.xlu0 %680
  %682 = vrot.lane.b32.xlu0 %v677, 64
  %v683 = vpop.permute.xlu0 %682
  %v686 = vadd.f32 %v666, %v681
  %v687 = vadd.f32 %v667, %v683
  %688 = vrot.lane.b32.xlu0 %v276, 64
  %v689 = vpop.permute.xlu0 %688
  %690 = vrot.lane.b32.xlu0 %v277, 64
  %v691 = vpop.permute.xlu0 %690
  %v694 = vmul.f32 %v248, %v689
  %v695 = vmul.f32 %v249, %v691
  %698 = vrot.lane.b32.xlu0 %v300, 64
  %v699 = vpop.permute.xlu0 %698
  %700 = vrot.lane.b32.xlu0 %v301, 64
  %v701 = vpop.permute.xlu0 %700
  %v704 = vmul.f32 %v248, %v699
  %v705 = vmul.f32 %v249, %v701
  %708 = vrot.lane.b32.xlu0 %v704, 96
  %v709 = vpop.permute.xlu0 %708
  %710 = vrot.lane.b32.xlu0 %v705, 96
  %v711 = vpop.permute.xlu0 %710
  %v714 = vadd.f32 %v694, %v709
  %v715 = vadd.f32 %v695, %v711
  %716 = vrot.lane.b32.xlu0 %v704, 64
  %v717 = vpop.permute.xlu0 %716
  %718 = vrot.lane.b32.xlu0 %v705, 64
  %v719 = vpop.permute.xlu0 %718
  %v722 = vadd.f32 %v714, %v717
  %v723 = vadd.f32 %v715, %v719
  %724 = vrot.lane.b32.xlu0 %v276, 32
  %v725 = vpop.permute.xlu0 %724
  %726 = vrot.lane.b32.xlu0 %v277, 32
  %v727 = vpop.permute.xlu0 %726
  %v730 = vmul.f32 %v252, %v725
  %v731 = vmul.f32 %v253, %v727
  %734 = vrot.lane.b32.xlu0 %v280, 96
  %v735 = vpop.permute.xlu0 %734
  %736 = vrot.lane.b32.xlu0 %v281, 96
  %v737 = vpop.permute.xlu0 %736
  %v740 = vmul.f32 %v262, %v735
  %v741 = vmul.f32 %v263, %v737
  %744 = vrot.lane.b32.xlu0 %v740, 32
  %v745 = vpop.permute.xlu0 %744
  %746 = vrot.lane.b32.xlu0 %v741, 32
  %v747 = vpop.permute.xlu0 %746
  %v750 = vadd.f32 %v730, %v745
  %v751 = vadd.f32 %v731, %v747
  %752 = vrot.lane.b32.xlu0 %v280, 32
  %v753 = vpop.permute.xlu0 %752
  %754 = vrot.lane.b32.xlu0 %v281, 32
  %v755 = vpop.permute.xlu0 %754
  %v758 = vmul.f32 %v272, %v753
  %v759 = vmul.f32 %v273, %v755
  %762 = vrot.lane.b32.xlu0 %v758, 64
  %v763 = vpop.permute.xlu0 %762
  %764 = vrot.lane.b32.xlu0 %v759, 64
  %v765 = vpop.permute.xlu0 %764
  %v768 = vadd.f32 %v750, %v763
  %v769 = vadd.f32 %v751, %v765
  %v770 = vadd.f32 %v312, %v471
  %v771 = vadd.f32 %v313, %v473
  %772 = vrot.lane.b32.xlu0 %v596, 64
  %v773 = vpop.permute.xlu0 %772
  %774 = vrot.lane.b32.xlu0 %v597, 64
  %v775 = vpop.permute.xlu0 %774
  %v778 = vadd.f32 %v770, %v773
  %v779 = vadd.f32 %v771, %v775
  %v780 = vmul.f32 %v252, %v641
  %v781 = vmul.f32 %v253, %v643
  %782 = vrot.lane.b32.xlu0 %v300, 32
  %v783 = vpop.permute.xlu0 %782
  %784 = vrot.lane.b32.xlu0 %v301, 32
  %v785 = vpop.permute.xlu0 %784
  %v788 = vmul.f32 %v262, %v783
  %v789 = vmul.f32 %v263, %v785
  %792 = vrot.lane.b32.xlu0 %v788, 32
  %v793 = vpop.permute.xlu0 %792
  %794 = vrot.lane.b32.xlu0 %v789, 32
  %v795 = vpop.permute.xlu0 %794
  %v798 = vadd.f32 %v780, %v793
  %v799 = vadd.f32 %v781, %v795
  %800 = vrot.lane.b32.xlu0 %v300, 96
  %v801 = vpop.permute.xlu0 %800
  %802 = vrot.lane.b32.xlu0 %v301, 96
  %v803 = vpop.permute.xlu0 %802
  %v806 = vmul.f32 %v272, %v801
  %v807 = vmul.f32 %v273, %v803
  %810 = vrot.lane.b32.xlu0 %v806, 64
  %v811 = vpop.permute.xlu0 %810
  %812 = vrot.lane.b32.xlu0 %v807, 64
  %v813 = vpop.permute.xlu0 %812
  %v816 = vadd.f32 %v798, %v811
  %v817 = vadd.f32 %v799, %v813
  %v818 = vmul.f32 %v252, %v689
  %v819 = vmul.f32 %v253, %v691
  %820 = vrot.lane.b32.xlu0 %v280, 64
  %v821 = vpop.permute.xlu0 %820
  %822 = vrot.lane.b32.xlu0 %v281, 64
  %v823 = vpop.permute.xlu0 %822
  %v826 = vmul.f32 %v274, %v821
  %v827 = vmul.f32 %v275, %v823
  %830 = vrot.lane.b32.xlu0 %v826, 96
  %v831 = vpop.permute.xlu0 %830
  %832 = vrot.lane.b32.xlu0 %v827, 96
  %v833 = vpop.permute.xlu0 %832
  %v836 = vadd.f32 %v818, %v831
  %v837 = vadd.f32 %v819, %v833
  %v838 = vmul.f32 %v272, %v821
  %v839 = vmul.f32 %v273, %v823
  %842 = vrot.lane.b32.xlu0 %v838, 64
  %v843 = vpop.permute.xlu0 %842
  %844 = vrot.lane.b32.xlu0 %v839, 64
  %v845 = vpop.permute.xlu0 %844
  %v848 = vadd.f32 %v836, %v843
  %v849 = vadd.f32 %v837, %v845
  %850 = vrot.lane.b32.xlu0 %v290, 96
  %v851 = vpop.permute.xlu0 %850
  %852 = vrot.lane.b32.xlu0 %v291, 96
  %v853 = vpop.permute.xlu0 %852
  %v856 = vmul.f32 %v274, %v851
  %v857 = vmul.f32 %v275, %v853
  %860 = vrot.lane.b32.xlu0 %v856, 96
  %v861 = vpop.permute.xlu0 %860
  %862 = vrot.lane.b32.xlu0 %v857, 96
  %v863 = vpop.permute.xlu0 %862
  %v866 = vadd.f32 %v730, %v861
  %v867 = vadd.f32 %v731, %v863
  %868 = vrot.lane.b32.xlu0 %v302, 32
  %v869 = vpop.permute.xlu0 %868
  %870 = vrot.lane.b32.xlu0 %v303, 32
  %v871 = vpop.permute.xlu0 %870
  %v874 = vmul.f32 %v272, %v869
  %v875 = vmul.f32 %v273, %v871
  %878 = vrot.lane.b32.xlu0 %v874, 64
  %v879 = vpop.permute.xlu0 %878
  %880 = vrot.lane.b32.xlu0 %v875, 64
  %v881 = vpop.permute.xlu0 %880
  %v884 = vadd.f32 %v866, %v879
  %v885 = vadd.f32 %v867, %v881
  %886 = vrot.lane.b32.xlu0 %v478, 96
  %v887 = vpop.permute.xlu0 %886
  %888 = vrot.lane.b32.xlu0 %v479, 96
  %v889 = vpop.permute.xlu0 %888
  %v892 = vadd.f32 %v312, %v887
  %v893 = vadd.f32 %v313, %v889
  %v894 = vadd.f32 %v892, %v613
  %v895 = vadd.f32 %v893, %v615
  %v896 = vadd.f32 %v330, %v636
  %v897 = vadd.f32 %v331, %v637
  %899 = vset.pattern.permute.xlu0 0
  %900 = vperm.xlu0 %899, %v308
  %v901 = vpop.permute.xlu0 %900
  %904 = vset.pattern.permute.xlu0 0
  %905 = vperm.xlu0 %904, %v309
  %v906 = vpop.permute.xlu0 %905
  %v908 = vmul.f32 %v901, %v896
  %v909 = vmul.f32 %v906, %v897
  %v910 = vadd.f32 %v380, %v686
  %v911 = vadd.f32 %v381, %v687
  %v912 = vmul.f32 %v901, %v910
  %v913 = vmul.f32 %v906, %v911
  %v914 = vadd.f32 %v416, %v722
  %v915 = vadd.f32 %v417, %v723
  %v916 = vmul.f32 %v901, %v914
  %v917 = vmul.f32 %v906, %v915
  %v918 = vadd.f32 %v462, %v768
  %v919 = vadd.f32 %v463, %v769
  %v920 = vmul.f32 %v901, %v918
  %v921 = vmul.f32 %v906, %v919
  %v922 = vadd.f32 %v488, %v778
  %v923 = vadd.f32 %v489, %v779
  %v924 = vmul.f32 %v901, %v922
  %v925 = vmul.f32 %v906, %v923
  %v926 = vadd.f32 %v526, %v816
  %v927 = vadd.f32 %v527, %v817
  %v928 = vmul.f32 %v901, %v926
  %v929 = vmul.f32 %v906, %v927
  %v930 = vadd.f32 %v558, %v848
  %v931 = vadd.f32 %v559, %v849
  %v932 = vmul.f32 %v901, %v930
  %v933 = vmul.f32 %v906, %v931
  %v934 = vadd.f32 %v594, %v884
  %v935 = vadd.f32 %v595, %v885
  %v936 = vmul.f32 %v901, %v934
  %v937 = vmul.f32 %v906, %v935
  %v938 = vadd.f32 %v618, %v894
  %v939 = vadd.f32 %v619, %v895
  %v940 = vmul.f32 %v901, %v938
  %v941 = vmul.f32 %v906, %v939
  %944 = vrot.lane.b32.xlu0 %v924, 96
  %v945 = vpop.permute.xlu0 %944
  %946 = vrot.lane.b32.xlu0 %v925, 96
  %v947 = vpop.permute.xlu0 %946
  %v950 = vadd.f32 %v908, %v945
  %v951 = vadd.f32 %v909, %v947
  %954 = vrot.lane.b32.xlu0 %v940, 64
  %v955 = vpop.permute.xlu0 %954
  %956 = vrot.lane.b32.xlu0 %v941, 64
  %v957 = vpop.permute.xlu0 %956
  %v960 = vadd.f32 %v950, %v955
  %v961 = vadd.f32 %v951, %v957
  %v962 = vmul.f32 %v960, 0.33333334
  %v963 = vmul.f32 %v961, 0.33333334
  %966 = vrot.lane.b32.xlu0 %v920, 96
  %v967 = vpop.permute.xlu0 %966
  %968 = vrot.lane.b32.xlu0 %v921, 96
  %v969 = vpop.permute.xlu0 %968
  %v972 = vsub.f32 %v912, %v967
  %v973 = vsub.f32 %v913, %v969
  %v974 = vmul.f32 %v972, 0.5
  %v975 = vmul.f32 %v973, 0.5
  %978 = vrot.lane.b32.xlu0 %v932, 64
  %v979 = vpop.permute.xlu0 %978
  %980 = vrot.lane.b32.xlu0 %v933, 64
  %v981 = vpop.permute.xlu0 %980
  %v984 = vsub.f32 %v916, %v979
  %v985 = vsub.f32 %v917, %v981
  %v986 = vmul.f32 %v984, 0.5
  %v987 = vmul.f32 %v985, 0.5
  %990 = vrot.lane.b32.xlu0 %v936, 96
  %v991 = vpop.permute.xlu0 %990
  %992 = vrot.lane.b32.xlu0 %v937, 96
  %v993 = vpop.permute.xlu0 %992
  %v996 = vsub.f32 %v928, %v991
  %v997 = vsub.f32 %v929, %v993
  %v998 = vmul.f32 %v996, 0.5
  %v999 = vmul.f32 %v997, 0.5
  %v1000 = vsub.f32 %v908, %v962
  %v1001 = vsub.f32 %v909, %v963
  %1004 = vrot.lane.b32.xlu0 %v962, 32
  %v1005 = vpop.permute.xlu0 %1004
  %1006 = vrot.lane.b32.xlu0 %v963, 32
  %v1007 = vpop.permute.xlu0 %1006
  %v1010 = vsub.f32 %v924, %v1005
  %v1011 = vsub.f32 %v925, %v1007
  %1012 = vrot.lane.b32.xlu0 %v962, 64
  %v1013 = vpop.permute.xlu0 %1012
  %1014 = vrot.lane.b32.xlu0 %v963, 64
  %v1015 = vpop.permute.xlu0 %1014
  %v1018 = vsub.f32 %v940, %v1013
  %v1019 = vsub.f32 %v941, %v1015
  %v1020 = vadd.f32 %v912, %v967
  %v1021 = vadd.f32 %v913, %v969
  %v1022 = vmul.f32 %v1020, 0.5
  %v1023 = vmul.f32 %v1021, 0.5
  %v1024 = vadd.f32 %v916, %v979
  %v1025 = vadd.f32 %v917, %v981
  %v1026 = vmul.f32 %v1024, 0.5
  %v1027 = vmul.f32 %v1025, 0.5
  %v1028 = vadd.f32 %v928, %v991
  %v1029 = vadd.f32 %v929, %v993
  %v1030 = vmul.f32 %v1028, 0.5
  %v1031 = vmul.f32 %v1029, 0.5
  %v1032 = vmul.f32 %v908, %v908
  %v1033 = vmul.f32 %v909, %v909
  %v1034 = vmul.f32 %v912, %v912
  %v1035 = vmul.f32 %v913, %v913
  %v1036 = vadd.f32 %v1032, %v1034
  %v1037 = vadd.f32 %v1033, %v1035
  %v1038 = vmul.f32 %v916, %v916
  %v1039 = vmul.f32 %v917, %v917
  %v1040 = vadd.f32 %v1036, %v1038
  %v1041 = vadd.f32 %v1037, %v1039
  %v1042 = vmul.f32 %v920, %v920
  %v1043 = vmul.f32 %v921, %v921
  %1046 = vrot.lane.b32.xlu0 %v1042, 96
  %v1047 = vpop.permute.xlu0 %1046
  %1048 = vrot.lane.b32.xlu0 %v1043, 96
  %v1049 = vpop.permute.xlu0 %1048
  %v1052 = vadd.f32 %v1040, %v1047
  %v1053 = vadd.f32 %v1041, %v1049
  %v1054 = vmul.f32 %v924, %v924
  %v1055 = vmul.f32 %v925, %v925
  %1058 = vrot.lane.b32.xlu0 %v1054, 96
  %v1059 = vpop.permute.xlu0 %1058
  %1060 = vrot.lane.b32.xlu0 %v1055, 96
  %v1061 = vpop.permute.xlu0 %1060
  %v1064 = vadd.f32 %v1052, %v1059
  %v1065 = vadd.f32 %v1053, %v1061
  %v1066 = vmul.f32 %v928, %v928
  %v1067 = vmul.f32 %v929, %v929
  %1070 = vrot.lane.b32.xlu0 %v1066, 96
  %v1071 = vpop.permute.xlu0 %1070
  %1072 = vrot.lane.b32.xlu0 %v1067, 96
  %v1073 = vpop.permute.xlu0 %1072
  %v1076 = vadd.f32 %v1064, %v1071
  %v1077 = vadd.f32 %v1065, %v1073
  %v1078 = vmul.f32 %v932, %v932
  %v1079 = vmul.f32 %v933, %v933
  %1082 = vrot.lane.b32.xlu0 %v1078, 64
  %v1083 = vpop.permute.xlu0 %1082
  %1084 = vrot.lane.b32.xlu0 %v1079, 64
  %v1085 = vpop.permute.xlu0 %1084
  %v1088 = vadd.f32 %v1076, %v1083
  %v1089 = vadd.f32 %v1077, %v1085
  %v1090 = vmul.f32 %v936, %v936
  %v1091 = vmul.f32 %v937, %v937
  %1094 = vrot.lane.b32.xlu0 %v1090, 64
  %v1095 = vpop.permute.xlu0 %1094
  %1096 = vrot.lane.b32.xlu0 %v1091, 64
  %v1097 = vpop.permute.xlu0 %1096
  %v1100 = vadd.f32 %v1088, %v1095
  %v1101 = vadd.f32 %v1089, %v1097
  %v1102 = vmul.f32 %v940, %v940
  %v1103 = vmul.f32 %v941, %v941
  %1106 = vrot.lane.b32.xlu0 %v1102, 64
  %v1107 = vpop.permute.xlu0 %1106
  %1108 = vrot.lane.b32.xlu0 %v1103, 64
  %v1109 = vpop.permute.xlu0 %1108
  %v1112 = vadd.f32 %v1100, %v1107
  %v1113 = vadd.f32 %v1101, %v1109
  %v1114 = vadd.f32 %v1112, 1.0
  %v1115 = vadd.f32 %v1113, 1.0
  %v1116 = vrcp.pop %v1114
  %v1117 = vmul.f32 1.0, %v1116
  %v1118 = vrcp.pop %v1115
  %v1119 = vmul.f32 1.0, %v1118
  %1122 = vrot.lane.b32.xlu0 %v1117, 32
  %v1123 = vpop.permute.xlu0 %1122
  %1124 = vrot.lane.b32.xlu0 %v1119, 32
  %v1125 = vpop.permute.xlu0 %1124
  %1128 = vrot.lane.b32.xlu0 %v1117, 64
  %v1129 = vpop.permute.xlu0 %1128
  %1130 = vrot.lane.b32.xlu0 %v1119, 64
  %v1131 = vpop.permute.xlu0 %1130
  %1134 = vrot.lane.b32.xlu0 %v1117, 96
  %v1135 = vpop.permute.xlu0 %1134
  %1136 = vrot.lane.b32.xlu0 %v1119, 96
  %v1137 = vpop.permute.xlu0 %1136
  %vm1140 = vcmask 261120
  %v1141 = vsel %vm1140, %v1117, %v1123
  %v1142 = vsel %vm1140, %v1119, %v1125
  %v1143 = vsel %vm87, %v1141, %v1129
  %v1144 = vsel %vm87, %v1142, %v1131
  %vm1145 = vcmask 785408
  %v1146 = vsel %vm1145, %v1143, %v1135
  %v1147 = vsel %vm1145, %v1144, %v1137
  %1150 = vrot.lane.b32.xlu0 %v974, 32
  %v1151 = vpop.permute.xlu0 %1150
  %1152 = vrot.lane.b32.xlu0 %v975, 32
  %v1153 = vpop.permute.xlu0 %1152
  %1158 = vrot.lane.b32.xlu0 %v986, 64
  %v1159 = vpop.permute.xlu0 %1158
  %1160 = vrot.lane.b32.xlu0 %v987, 64
  %v1161 = vpop.permute.xlu0 %1160
  %1166 = vrot.lane.b32.xlu0 %v998, 64
  %v1167 = vpop.permute.xlu0 %1166
  %1168 = vrot.lane.b32.xlu0 %v999, 64
  %v1169 = vpop.permute.xlu0 %1168
  %1174 = vrot.lane.b32.xlu0 %v1022, 32
  %v1175 = vpop.permute.xlu0 %1174
  %1176 = vrot.lane.b32.xlu0 %v1023, 32
  %v1177 = vpop.permute.xlu0 %1176
  %1182 = vrot.lane.b32.xlu0 %v1026, 64
  %v1183 = vpop.permute.xlu0 %1182
  %1184 = vrot.lane.b32.xlu0 %v1027, 64
  %v1185 = vpop.permute.xlu0 %1184
  %1190 = vrot.lane.b32.xlu0 %v1010, 64
  %v1191 = vpop.permute.xlu0 %1190
  %1192 = vrot.lane.b32.xlu0 %v1011, 64
  %v1193 = vpop.permute.xlu0 %1192
  %1198 = vrot.lane.b32.xlu0 %v1030, 96
  %v1199 = vpop.permute.xlu0 %1198
  %1200 = vrot.lane.b32.xlu0 %v1031, 96
  %v1201 = vpop.permute.xlu0 %1200
  %1206 = vrot.lane.b32.xlu0 %v1018, 96
  %v1207 = vpop.permute.xlu0 %1206
  %1208 = vrot.lane.b32.xlu0 %v1019, 96
  %v1209 = vpop.permute.xlu0 %1208
  %v1212 = vsel %vm1140, %v962, %v1151
  %v1213 = vsel %vm1140, %v963, %v1153
  %v1214 = vsel %vm87, %v1212, %v1159
  %v1215 = vsel %vm87, %v1213, %v1161
  %v1216 = vsel %vm1145, %v1214, %v1167
  %v1217 = vsel %vm1145, %v1215, %v1169
  %v1218 = vsel %vm1140, %v1000, %v1175
  %v1219 = vsel %vm1140, %v1001, %v1177
  %v1220 = vsel %vm87, %v1218, %v1183
  %v1221 = vsel %vm87, %v1219, %v1185
  %v1222 = vsel %vm1145, %v1220, %v1191
  %v1223 = vsel %vm1145, %v1221, %v1193
  %v1224 = vsel %vm1140, %v1199, %v1207
  %v1225 = vsel %vm1140, %v1201, %v1209
  %v1226 = vmul.f32 %v1216, %v1146
  %v1227 = vmul.f32 %v1222, %v1146
  %v1228 = vmul.f32 %v1224, %v1141
  %v1229 = vmul.f32 %v1217, %v1147
  %v1230 = vmul.f32 %v1223, %v1147
  %v1231 = vmul.f32 %v1225, %v1142
  %v1232 = vld [vmem:[%s5] sm:$0xff]
  %v1233 = vld [vmem:[%s5 + $0x8] sm:$0xff]
  %v1234 = vld [vmem:[%s5 + $0x10] sm:$0xff]
  %v1235 = vld [vmem:[%s5 + $0x18] sm:$0xff]
  %v1236 = vld [vmem:[%s5 + $0x20] sm:$0xff]
  %v1237 = vld [vmem:[%s5 + $0x28] sm:$0xff]
  %v1238 = vld [vmem:[%s5 + $0x30] sm:$0xff]
  %v1239 = vld [vmem:[%s5 + $0x38] sm:$0xff]
  %v1240 = vld [vmem:[%s5 + $0x40] sm:$0xff]
  %v1241 = vld [vmem:[%s5 + $0x48] sm:$0xff]
  %v1242 = vld [vmem:[%s5 + $0x50] sm:$0xff]
  %v1243 = vld [vmem:[%s5 + $0x58] sm:$0xff]
  %v1244 = vld [vmem:[%s5 + $0x60] sm:$0xff]
  %v1245 = vld [vmem:[%s5 + $0x68] sm:$0xff]
  %v1246 = vld [vmem:[%s5 + $0x70] sm:$0xff]
  %v1247 = vld [vmem:[%s5 + $0x78] sm:$0xff]
  %v1248 = vld [vmem:[%s5 + $0x80] sm:$0xff]
  %v1249 = vld [vmem:[%s5 + $0x88] sm:$0xff]
  %v1250 = vld [vmem:[%s5 + $0x90] sm:$0xff]
  %v1251 = vld [vmem:[%s5 + $0x98] sm:$0xff]
  %v1252 = vld [vmem:[%s5 + $0xa0] sm:$0xff]
  %v1253 = vld [vmem:[%s5 + $0xa8] sm:$0xff]
  %v1254 = vld [vmem:[%s5 + $0xb0] sm:$0xff]
  %v1255 = vld [vmem:[%s5 + $0xb8] sm:$0xff]
  %v1256 = vld [vmem:[%s5 + $0xc0] sm:$0xff]
  %v1257 = vld [vmem:[%s5 + $0xc8] sm:$0xff]
  %v1258 = vld [vmem:[%s5 + $0xd0] sm:$0xff]
  %v1259 = vld [vmem:[%s5 + $0xd8] sm:$0xff]
  %v1260 = vld [vmem:[%s5 + $0xe0] sm:$0xff]
  %v1261 = vld [vmem:[%s5 + $0xe8] sm:$0xff]
  %v1262 = vld [vmem:[%s5 + $0xf0] sm:$0xff]
  %v1263 = vld [vmem:[%s5 + $0xf8] sm:$0xff]
  %v1264 = vld [vmem:[%s5 + $0x100] sm:$0xff]
  %v1265 = vld [vmem:[%s5 + $0x108] sm:$0xff]
  %v1266 = vld [vmem:[%s5 + $0x110] sm:$0xff]
  %v1267 = vld [vmem:[%s5 + $0x118] sm:$0xff]
  %v1268 = vld [vmem:[%s5 + $0x120] sm:$0xff]
  %v1269 = vld [vmem:[%s5 + $0x128] sm:$0xff]
  %v1270 = vld [vmem:[%s5 + $0x130] sm:$0xff]
  %v1271 = vld [vmem:[%s5 + $0x138] sm:$0xff]
  %v1272 = vld [vmem:[%s5 + $0x140] sm:$0xff]
  %v1273 = vld [vmem:[%s5 + $0x148] sm:$0xff]
  %v1274 = vld [vmem:[%s5 + $0x150] sm:$0xff]
  %v1275 = vld [vmem:[%s5 + $0x158] sm:$0xff]
  %v1276 = vld [vmem:[%s5 + $0x160] sm:$0xff]
  %v1277 = vld [vmem:[%s5 + $0x168] sm:$0xff]
  %v1278 = vld [vmem:[%s5 + $0x170] sm:$0xff]
  %v1279 = vld [vmem:[%s5 + $0x178] sm:$0xff]
  %v1280 = vld [vmem:[%s5 + $0x180] sm:$0xff]
  %v1281 = vld [vmem:[%s5 + $0x188] sm:$0xff]
  %v1282 = vld [vmem:[%s5 + $0x190] sm:$0xff]
  %v1283 = vld [vmem:[%s5 + $0x198] sm:$0xff]
  %v1284 = vld [vmem:[%s5 + $0x1a0] sm:$0xff]
  %v1285 = vld [vmem:[%s5 + $0x1a8] sm:$0xff]
  %v1286 = vld [vmem:[%s5 + $0x1b0] sm:$0xff]
  %v1287 = vld [vmem:[%s5 + $0x1b8] sm:$0xff]
  %v1288 = vld [vmem:[%s5 + $0x1c0] sm:$0xff]
  %v1289 = vld [vmem:[%s5 + $0x1c8] sm:$0xff]
  %v1290 = vld [vmem:[%s5 + $0x1d0] sm:$0xff]
  %v1291 = vld [vmem:[%s5 + $0x1d8] sm:$0xff]
  %v1292 = vld [vmem:[%s5 + $0x1e0] sm:$0xff]
  %v1293 = vld [vmem:[%s5 + $0x1e8] sm:$0xff]
  %v1294 = vld [vmem:[%s5 + $0x1f0] sm:$0xff]
  %v1295 = vld [vmem:[%s5 + $0x1f8] sm:$0xff]
  %v1296 = vld [vmem:[%s5 + $0x200] sm:$0xff]
  %v1297 = vld [vmem:[%s5 + $0x208] sm:$0xff]
  %v1298 = vld [vmem:[%s5 + $0x210] sm:$0xff]
  %v1299 = vld [vmem:[%s5 + $0x218] sm:$0xff]
  %v1300 = vld [vmem:[%s5 + $0x220] sm:$0xff]
  %v1301 = vld [vmem:[%s5 + $0x228] sm:$0xff]
  %v1302 = vld [vmem:[%s5 + $0x230] sm:$0xff]
  %v1303 = vld [vmem:[%s5 + $0x238] sm:$0xff]
  %v1304 = vld [vmem:[%s5 + $0x240] sm:$0xff]
  %v1305 = vld [vmem:[%s5 + $0x248] sm:$0xff]
  %v1306 = vld [vmem:[%s5 + $0x250] sm:$0xff]
  %v1307 = vld [vmem:[%s5 + $0x258] sm:$0xff]
  %v1308 = vld [vmem:[%s5 + $0x260] sm:$0xff]
  %v1309 = vld [vmem:[%s5 + $0x268] sm:$0xff]
  %v1310 = vld [vmem:[%s5 + $0x270] sm:$0xff]
  %v1311 = vld [vmem:[%s5 + $0x278] sm:$0xff]
  %v1312 = vld [vmem:[%s5 + $0x280] sm:$0xff]
  %v1313 = vld [vmem:[%s5 + $0x288] sm:$0xff]
  %v1314 = vld [vmem:[%s5 + $0x290] sm:$0xff]
  %v1315 = vld [vmem:[%s5 + $0x298] sm:$0xff]
  %v1316 = vld [vmem:[%s5 + $0x2a0] sm:$0xff]
  %v1317 = vld [vmem:[%s5 + $0x2a8] sm:$0xff]
  %v1318 = vld [vmem:[%s5 + $0x2b0] sm:$0xff]
  %v1319 = vld [vmem:[%s5 + $0x2b8] sm:$0xff]
  %v1320 = vld [vmem:[%s5 + $0x2c0] sm:$0xff]
  %v1321 = vld [vmem:[%s5 + $0x2c8] sm:$0xff]
  %v1322 = vld [vmem:[%s5 + $0x2d0] sm:$0xff]
  %v1323 = vld [vmem:[%s5 + $0x2d8] sm:$0xff]
  %v1324 = vld [vmem:[%s5 + $0x2e0] sm:$0xff]
  %v1325 = vld [vmem:[%s5 + $0x2e8] sm:$0xff]
  %v1326 = vld [vmem:[%s5 + $0x2f0] sm:$0xff]
  %v1327 = vld [vmem:[%s5 + $0x2f8] sm:$0xff]
  %v1328 = vld [vmem:[%s5 + $0x300] sm:$0xff]
  %v1329 = vld [vmem:[%s5 + $0x308] sm:$0xff]
  %v1330 = vld [vmem:[%s5 + $0x310] sm:$0xff]
  %v1331 = vld [vmem:[%s5 + $0x318] sm:$0xff]
  %v1332 = vld [vmem:[%s5 + $0x320] sm:$0xff]
  %v1333 = vld [vmem:[%s5 + $0x328] sm:$0xff]
  %v1334 = vld [vmem:[%s5 + $0x330] sm:$0xff]
  %v1335 = vld [vmem:[%s5 + $0x338] sm:$0xff]
  %v1336 = vld [vmem:[%s5 + $0x340] sm:$0xff]
  %v1337 = vld [vmem:[%s5 + $0x348] sm:$0xff]
  %v1338 = vld [vmem:[%s5 + $0x350] sm:$0xff]
  %v1339 = vld [vmem:[%s5 + $0x358] sm:$0xff]
  %v1340 = vld [vmem:[%s5 + $0x360] sm:$0xff]
  %v1341 = vld [vmem:[%s5 + $0x368] sm:$0xff]
  %v1342 = vld [vmem:[%s5 + $0x370] sm:$0xff]
  %v1343 = vld [vmem:[%s5 + $0x378] sm:$0xff]
  %v1344 = vld [vmem:[%s5 + $0x380] sm:$0xff]
  %v1345 = vld [vmem:[%s5 + $0x388] sm:$0xff]
  %v1346 = vld [vmem:[%s5 + $0x390] sm:$0xff]
  %v1347 = vld [vmem:[%s5 + $0x398] sm:$0xff]
  %v1348 = vld [vmem:[%s5 + $0x3a0] sm:$0xff]
  %v1349 = vld [vmem:[%s5 + $0x3a8] sm:$0xff]
  %v1350 = vld [vmem:[%s5 + $0x3b0] sm:$0xff]
  %v1351 = vld [vmem:[%s5 + $0x3b8] sm:$0xff]
  %v1353 = vsel %vm87, %v1228, 0
  %v1356 = vsel %vm87, %v1231, 0
  %1358 = vmatprep.subr.mxu0 %v1233
  %1359 = vmatpush1.msra.mxu0 %v1232
  %1360 = vmatprep.subr.mxu0 %v1236
  %1361 = vmatpush1.msra.mxu0 %v1235
  %1362 = vmatprep.subr.mxu0 %v1239
  %1363 = vmatpush1.msra.mxu0 %v1238
  %1364 = vmatprep.subr.mxu0 %v1242
  %1365 = vmatpush1.msra.mxu0 %v1241
  %1366 = vmatprep.subr.mxu0 %v1245
  %1367 = vmatpush1.msra.mxu0 %v1244
  %1368 = vmatprep.subr.mxu0 %v1248
  %1369 = vmatpush1.msra.mxu0 %v1247
  %1370 = vmatprep.subr.mxu0 %v1251
  %1371 = vmatpush1.msra.mxu0 %v1250
  %1372 = vmatprep.subr.mxu0 %v1254
  %1373 = vmatpush1.msra.mxu0 %v1253
  %1374 = vmatprep.subr.mxu0 %v1257
  %1375 = vmatpush1.msra.mxu0 %v1256
  %1376 = vmatprep.subr.mxu0 %v1260
  %1377 = vmatpush1.msra.mxu0 %v1259
  %1378 = vmatprep.subr.mxu0 %v1263
  %1379 = vmatpush1.msra.mxu0 %v1262
  %1380 = vmatprep.subr.mxu0 %v1266
  %1381 = vmatpush1.msra.mxu0 %v1265
  %1382 = vmatprep.subr.mxu0 %v1269
  %1383 = vmatpush1.msra.mxu0 %v1268
  %1384 = vmatprep.subr.mxu0 %v1272
  %1385 = vmatpush1.msra.mxu0 %v1271
  %1386 = vmatprep.subr.mxu0 %v1275
  %1387 = vmatpush1.msra.mxu0 %v1274
  %1388 = vmatprep.subr.mxu0 %v1278
  %1389 = vmatpush1.msra.mxu0 %v1277
  %1390 = vmatprep.subr.mxu0 %v1281
  %1391 = vmatpush1.msra.mxu0 %v1280
  %1392 = vmatprep.subr.mxu0 %v1284
  %1393 = vmatpush1.msra.mxu0 %v1283
  %1394 = vmatprep.subr.mxu0 %v1287
  %1395 = vmatpush1.msra.mxu0 %v1286
  %1396 = vmatprep.subr.mxu0 %v1290
  %1397 = vmatpush1.msra.mxu0 %v1289
  %1398 = vmatprep.subr.mxu0 %v1293
  %1399 = vmatpush1.msra.mxu0 %v1292
  %1400 = vmatprep.subr.mxu0 %v1296
  %1401 = vmatpush1.msra.mxu0 %v1295
  %1402 = vmatprep.subr.mxu0 %v1299
  %1403 = vmatpush1.msra.mxu0 %v1298
  %1404 = vmatprep.subr.mxu0 %v1302
  %1405 = vmatpush1.msra.mxu0 %v1301
  %1406 = vmatprep.subr.mxu0 %v1305
  %1407 = vmatpush1.msra.mxu0 %v1304
  %1408 = vmatprep.subr.mxu0 %v1308
  %1409 = vmatpush1.msra.mxu0 %v1307
  %1410 = vmatprep.subr.mxu0 %v1311
  %1411 = vmatpush1.msra.mxu0 %v1310
  %1412 = vmatprep.subr.mxu0 %v1314
  %1413 = vmatpush1.msra.mxu0 %v1313
  %1414 = vmatprep.subr.mxu0 %v1317
  %1415 = vmatpush1.msra.mxu0 %v1316
  %1416 = vmatprep.subr.mxu0 %v1320
  %1417 = vmatpush1.msra.mxu0 %v1319
  %1418 = vmatprep.subr.mxu0 %v1323
  %1419 = vmatpush1.msra.mxu0 %v1322
  %1420 = vmatprep.subr.mxu0 %v1326
  %1421 = vmatpush1.msra.mxu0 %v1325
  %1422 = vmatprep.mubr.f32.mxu0 %v1227
  %1423 = vmatmul.mubr.f32.gmra.mrb[0].mxu0 %v1226
  %v1424 = vpop.f32.mrb[0].mxu0
  %v1425 = vadd.f32 0.0, %v1424
  %v1426 = vpop.f32.mrb[0].mxu0
  %v1427 = vadd.f32 0.0, %v1426
  %1428 = vmatprep.mubr.f32.mxu0 %v1230
  %1429 = vmatmul.mubr.f32.gmra.mrb[0].mxu0 %v1229
  %v1430 = vpop.f32.mrb[0].mxu0
  %v1431 = vadd.f32 0.0, %v1430
  %v1432 = vpop.f32.mrb[0].mxu0
  %v1433 = vadd.f32 0.0, %v1432
  %1434 = vdwg.mxu0
  %1435 = vmatprep.subr.mxu0 %v1329
  %1436 = vmatpush1.msra.mxu0 %v1328
  %1437 = vmatprep.subr.mxu0 %v1332
  %1438 = vmatpush1.msra.mxu0 %v1331
  %1439 = vmatprep.subr.mxu0 %v1335
  %1440 = vmatpush1.msra.mxu0 %v1334
  %1441 = vmatprep.subr.mxu0 %v1338
  %1442 = vmatpush1.msra.mxu0 %v1337
  %1443 = vmatprep.subr.mxu0 %v1341
  %1444 = vmatpush1.msra.mxu0 %v1340
  %1445 = vmatprep.subr.mxu0 %v1344
  %1446 = vmatpush1.msra.mxu0 %v1343
  %1447 = vmatprep.subr.mxu0 %v1347
  %1448 = vmatpush1.msra.mxu0 %v1346
  %1449 = vmatprep.subr.mxu0 %v1350
  %1450 = vmatpush1.msra.mxu0 %v1349
  %1451 = vmatprep.subr.mxu0 0.0
  %1452 = vmatpush1.msra.mxu0 0.0
  %1453 = vmatprep.subr.mxu0 0.0
  %1454 = vmatpush1.msra.mxu0 0.0
  %1455 = vmatprep.subr.mxu0 0.0
  %1456 = vmatpush1.msra.mxu0 0.0
  %1457 = vmatprep.subr.mxu0 0.0
  %1458 = vmatpush1.msra.mxu0 0.0
  %1459 = vmatprep.subr.mxu0 0.0
  %1460 = vmatpush1.msra.mxu0 0.0
  %1461 = vmatprep.subr.mxu0 0.0
  %1462 = vmatpush1.msra.mxu0 0.0
  %1463 = vmatprep.subr.mxu0 0.0
  %1464 = vmatpush1.msra.mxu0 0.0
  %1465 = vmatprep.subr.mxu0 0.0
  %1466 = vmatpush1.msra.mxu0 0.0
  %1467 = vmatprep.subr.mxu0 0.0
  %1468 = vmatpush1.msra.mxu0 0.0
  %1469 = vmatprep.subr.mxu0 0.0
  %1470 = vmatpush1.msra.mxu0 0.0
  %1471 = vmatprep.subr.mxu0 0.0
  %1472 = vmatpush1.msra.mxu0 0.0
  %1473 = vmatprep.subr.mxu0 0.0
  %1474 = vmatpush1.msra.mxu0 0.0
  %1475 = vmatprep.subr.mxu0 0.0
  %1476 = vmatpush1.msra.mxu0 0.0
  %1477 = vmatprep.subr.mxu0 0.0
  %1478 = vmatpush1.msra.mxu0 0.0
  %1479 = vmatprep.subr.mxu0 0.0
  %1480 = vmatpush1.msra.mxu0 0.0
  %1481 = vmatprep.subr.mxu0 0.0
  %1482 = vmatpush1.msra.mxu0 0.0
  %1483 = vmatprep.subr.mxu0 0.0
  %1484 = vmatpush1.msra.mxu0 0.0
  %1485 = vmatprep.subr.mxu0 0.0
  %1486 = vmatpush1.msra.mxu0 0.0
  %1487 = vmatprep.subr.mxu0 0.0
  %1488 = vmatpush1.msra.mxu0 0.0
  %1489 = vmatprep.subr.mxu0 0.0
  %1490 = vmatpush1.msra.mxu0 0.0
  %1491 = vmatprep.subr.mxu0 0.0
  %1492 = vmatpush1.msra.mxu0 0.0
  %1493 = vmatprep.subr.mxu0 0.0
  %1494 = vmatpush1.msra.mxu0 0.0
  %1495 = vmatprep.subr.mxu0 0.0
  %1496 = vmatpush1.msra.mxu0 0.0
  %1497 = vmatprep.subr.mxu0 0.0
  %1498 = vmatpush1.msra.mxu0 0.0
  %1499 = vmatprep.mubr.f32.mxu0 0.0
  %1500 = vmatmul.mubr.f32.gmra.mrb[0].mxu0 %v1353
  %v1501 = vpop.f32.mrb[0].mxu0
  %v1502 = vadd.f32 %v1425, %v1501
  %v1503 = vpop.f32.mrb[0].mxu0
  %v1504 = vadd.f32 %v1427, %v1503
  %1505 = vmatprep.mubr.f32.mxu0 0.0
  %1506 = vmatmul.mubr.f32.gmra.mrb[0].mxu0 %v1356
  %v1507 = vpop.f32.mrb[0].mxu0
  %v1508 = vadd.f32 %v1431, %v1507
  %v1509 = vpop.f32.mrb[0].mxu0
  %v1510 = vadd.f32 %v1433, %v1509
  %1511 = vdwg.mxu0
  %1512 = vmatprep.subr.mxu0 0.0
  %1513 = vmatpush1.msra.mxu0 %v1234
  %1514 = vmatprep.subr.mxu0 0.0
  %1515 = vmatpush1.msra.mxu0 %v1237
  %1516 = vmatprep.subr.mxu0 0.0
  %1517 = vmatpush1.msra.mxu0 %v1240
  %1518 = vmatprep.subr.mxu0 0.0
  %1519 = vmatpush1.msra.mxu0 %v1243
  %1520 = vmatprep.subr.mxu0 0.0
  %1521 = vmatpush1.msra.mxu0 %v1246
  %1522 = vmatprep.subr.mxu0 0.0
  %1523 = vmatpush1.msra.mxu0 %v1249
  %1524 = vmatprep.subr.mxu0 0.0
  %1525 = vmatpush1.msra.mxu0 %v1252
  %1526 = vmatprep.subr.mxu0 0.0
  %1527 = vmatpush1.msra.mxu0 %v1255
  %1528 = vmatprep.subr.mxu0 0.0
  %1529 = vmatpush1.msra.mxu0 %v1258
  %1530 = vmatprep.subr.mxu0 0.0
  %1531 = vmatpush1.msra.mxu0 %v1261
  %1532 = vmatprep.subr.mxu0 0.0
  %1533 = vmatpush1.msra.mxu0 %v1264
  %1534 = vmatprep.subr.mxu0 0.0
  %1535 = vmatpush1.msra.mxu0 %v1267
  %1536 = vmatprep.subr.mxu0 0.0
  %1537 = vmatpush1.msra.mxu0 %v1270
  %1538 = vmatprep.subr.mxu0 0.0
  %1539 = vmatpush1.msra.mxu0 %v1273
  %1540 = vmatprep.subr.mxu0 0.0
  %1541 = vmatpush1.msra.mxu0 %v1276
  %1542 = vmatprep.subr.mxu0 0.0
  %1543 = vmatpush1.msra.mxu0 %v1279
  %1544 = vmatprep.subr.mxu0 0.0
  %1545 = vmatpush1.msra.mxu0 %v1282
  %1546 = vmatprep.subr.mxu0 0.0
  %1547 = vmatpush1.msra.mxu0 %v1285
  %1548 = vmatprep.subr.mxu0 0.0
  %1549 = vmatpush1.msra.mxu0 %v1288
  %1550 = vmatprep.subr.mxu0 0.0
  %1551 = vmatpush1.msra.mxu0 %v1291
  %1552 = vmatprep.subr.mxu0 0.0
  %1553 = vmatpush1.msra.mxu0 %v1294
  %1554 = vmatprep.subr.mxu0 0.0
  %1555 = vmatpush1.msra.mxu0 %v1297
  %1556 = vmatprep.subr.mxu0 0.0
  %1557 = vmatpush1.msra.mxu0 %v1300
  %1558 = vmatprep.subr.mxu0 0.0
  %1559 = vmatpush1.msra.mxu0 %v1303
  %1560 = vmatprep.subr.mxu0 0.0
  %1561 = vmatpush1.msra.mxu0 %v1306
  %1562 = vmatprep.subr.mxu0 0.0
  %1563 = vmatpush1.msra.mxu0 %v1309
  %1564 = vmatprep.subr.mxu0 0.0
  %1565 = vmatpush1.msra.mxu0 %v1312
  %1566 = vmatprep.subr.mxu0 0.0
  %1567 = vmatpush1.msra.mxu0 %v1315
  %1568 = vmatprep.subr.mxu0 0.0
  %1569 = vmatpush1.msra.mxu0 %v1318
  %1570 = vmatprep.subr.mxu0 0.0
  %1571 = vmatpush1.msra.mxu0 %v1321
  %1572 = vmatprep.subr.mxu0 0.0
  %1573 = vmatpush1.msra.mxu0 %v1324
  %1574 = vmatprep.subr.mxu0 0.0
  %1575 = vmatpush1.msra.mxu0 %v1327
  %1576 = vmatprep.mubr.f32.mxu0 %v1227
  %1577 = vmatmul.mubr.f32.gmra.mrb[0].mxu0 %v1226
  %v1578 = vpop.f32.mrb[0].mxu0
  %v1579 = vadd.f32 0.0, %v1578
  %v1580 = vpop.f32.mrb[0].mxu0
  %1581 = vmatprep.mubr.f32.mxu0 %v1230
  %1582 = vmatmul.mubr.f32.gmra.mrb[0].mxu0 %v1229
  %v1583 = vpop.f32.mrb[0].mxu0
  %v1584 = vadd.f32 0.0, %v1583
  %v1585 = vpop.f32.mrb[0].mxu0
  %1586 = vdwg.mxu0
  %1587 = vmatprep.subr.mxu0 0.0
  %1588 = vmatpush1.msra.mxu0 %v1330
  %1589 = vmatprep.subr.mxu0 0.0
  %1590 = vmatpush1.msra.mxu0 %v1333
  %1591 = vmatprep.subr.mxu0 0.0
  %1592 = vmatpush1.msra.mxu0 %v1336
  %1593 = vmatprep.subr.mxu0 0.0
  %1594 = vmatpush1.msra.mxu0 %v1339
  %1595 = vmatprep.subr.mxu0 0.0
  %1596 = vmatpush1.msra.mxu0 %v1342
  %1597 = vmatprep.subr.mxu0 0.0
  %1598 = vmatpush1.msra.mxu0 %v1345
  %1599 = vmatprep.subr.mxu0 0.0
  %1600 = vmatpush1.msra.mxu0 %v1348
  %1601 = vmatprep.subr.mxu0 0.0
  %1602 = vmatpush1.msra.mxu0 %v1351
  %1603 = vmatprep.subr.mxu0 0.0
  %1604 = vmatpush1.msra.mxu0 0.0
  %1605 = vmatprep.subr.mxu0 0.0
  %1606 = vmatpush1.msra.mxu0 0.0
  %1607 = vmatprep.subr.mxu0 0.0
  %1608 = vmatpush1.msra.mxu0 0.0
  %1609 = vmatprep.subr.mxu0 0.0
  %1610 = vmatpush1.msra.mxu0 0.0
  %1611 = vmatprep.subr.mxu0 0.0
  %1612 = vmatpush1.msra.mxu0 0.0
  %1613 = vmatprep.subr.mxu0 0.0
  %1614 = vmatpush1.msra.mxu0 0.0
  %1615 = vmatprep.subr.mxu0 0.0
  %1616 = vmatpush1.msra.mxu0 0.0
  %1617 = vmatprep.subr.mxu0 0.0
  %1618 = vmatpush1.msra.mxu0 0.0
  %1619 = vmatprep.subr.mxu0 0.0
  %1620 = vmatpush1.msra.mxu0 0.0
  %1621 = vmatprep.subr.mxu0 0.0
  %1622 = vmatpush1.msra.mxu0 0.0
  %1623 = vmatprep.subr.mxu0 0.0
  %1624 = vmatpush1.msra.mxu0 0.0
  %1625 = vmatprep.subr.mxu0 0.0
  %1626 = vmatpush1.msra.mxu0 0.0
  %1627 = vmatprep.subr.mxu0 0.0
  %1628 = vmatpush1.msra.mxu0 0.0
  %1629 = vmatprep.subr.mxu0 0.0
  %1630 = vmatpush1.msra.mxu0 0.0
  %1631 = vmatprep.subr.mxu0 0.0
  %1632 = vmatpush1.msra.mxu0 0.0
  %1633 = vmatprep.subr.mxu0 0.0
  %1634 = vmatpush1.msra.mxu0 0.0
  %1635 = vmatprep.subr.mxu0 0.0
  %1636 = vmatpush1.msra.mxu0 0.0
  %1637 = vmatprep.subr.mxu0 0.0
  %1638 = vmatpush1.msra.mxu0 0.0
  %1639 = vmatprep.subr.mxu0 0.0
  %1640 = vmatpush1.msra.mxu0 0.0
  %1641 = vmatprep.subr.mxu0 0.0
  %1642 = vmatpush1.msra.mxu0 0.0
  %1643 = vmatprep.subr.mxu0 0.0
  %1644 = vmatpush1.msra.mxu0 0.0
  %1645 = vmatprep.subr.mxu0 0.0
  %1646 = vmatpush1.msra.mxu0 0.0
  %1647 = vmatprep.subr.mxu0 0.0
  %1648 = vmatpush1.msra.mxu0 0.0
  %1649 = vmatprep.subr.mxu0 0.0
  %1650 = vmatpush1.msra.mxu0 0.0
  %1651 = vmatprep.mubr.f32.mxu0 0.0
  %1652 = vmatmul.mubr.f32.gmra.mrb[0].mxu0 %v1353
  %v1653 = vpop.f32.mrb[0].mxu0
  %v1654 = vadd.f32 %v1579, %v1653
  %v1655 = vpop.f32.mrb[0].mxu0
  %1656 = vmatprep.mubr.f32.mxu0 0.0
  %1657 = vmatmul.mubr.f32.gmra.mrb[0].mxu0 %v1356
  %v1658 = vpop.f32.mrb[0].mxu0
  %v1659 = vadd.f32 %v1584, %v1658
  %v1660 = vpop.f32.mrb[0].mxu0
  %1661 = vdwg.mxu0
  %v1662 = vadd.f32 %v1502, %v1504
  %v1663 = vadd.f32 %v1508, %v1510
  %v1664 = vsub.f32 0.0, %v1502
  %v1665 = vsub.f32 0.0, %v1508
  %v1666 = vadd.f32 %v1664, %v1504
  %v1667 = vadd.f32 %v1665, %v1510
  %1670 = vrot.lane.b32.xlu0 %v1504, 32
  %v1671 = vpop.permute.xlu0 %1670
  %1672 = vrot.lane.b32.xlu0 %v1510, 32
  %v1673 = vpop.permute.xlu0 %1672
  %v1676 = vadd.f32 %v1502, %v1671
  %v1677 = vadd.f32 %v1508, %v1673
  %1680 = vrot.lane.b32.xlu0 %v1654, 96
  %v1681 = vpop.permute.xlu0 %1680
  %1682 = vrot.lane.b32.xlu0 %v1659, 96
  %v1683 = vpop.permute.xlu0 %1682
  %v1686 = vadd.f32 %v1502, %v1681
  %v1687 = vadd.f32 %v1508, %v1683
  %v1688 = vadd.f32 %v1664, %v1681
  %v1689 = vadd.f32 %v1665, %v1683
  %v1690 = vmul.f32 %v1662, %v1662
  %v1691 = vmul.f32 %v1663, %v1663
  %v1692 = vmul.f32 %v1662, %v1666
  %v1693 = vmul.f32 %v1663, %v1667
  %1696 = vrot.lane.b32.xlu0 %v1692, 96
  %v1697 = vpop.permute.xlu0 %1696
  %1698 = vrot.lane.b32.xlu0 %v1693, 96
  %v1699 = vpop.permute.xlu0 %1698
  %v1702 = vadd.f32 %v1690, %v1697
  %v1703 = vadd.f32 %v1691, %v1699
  %1704 = vrot.lane.b32.xlu0 %v1692, 64
  %v1705 = vpop.permute.xlu0 %1704
  %1706 = vrot.lane.b32.xlu0 %v1693, 64
  %v1707 = vpop.permute.xlu0 %1706
  %v1710 = vadd.f32 %v1702, %v1705
  %v1711 = vadd.f32 %v1703, %v1707
  %1714 = vrot.lane.b32.xlu0 %v1662, 96
  %v1715 = vpop.permute.xlu0 %1714
  %1716 = vrot.lane.b32.xlu0 %v1663, 96
  %v1717 = vpop.permute.xlu0 %1716
  %v1720 = vmul.f32 %v1662, %v1715
  %v1721 = vmul.f32 %v1663, %v1717
  %1724 = vrot.lane.b32.xlu0 %v1676, 32
  %v1725 = vpop.permute.xlu0 %1724
  %1726 = vrot.lane.b32.xlu0 %v1677, 32
  %v1727 = vpop.permute.xlu0 %1726
  %v1730 = vmul.f32 %v1662, %v1725
  %v1731 = vmul.f32 %v1663, %v1727
  %1734 = vrot.lane.b32.xlu0 %v1730, 96
  %v1735 = vpop.permute.xlu0 %1734
  %1736 = vrot.lane.b32.xlu0 %v1731, 96
  %v1737 = vpop.permute.xlu0 %1736
  %v1740 = vadd.f32 %v1720, %v1735
  %v1741 = vadd.f32 %v1721, %v1737
  %1744 = vrot.lane.b32.xlu0 %v1688, 96
  %v1745 = vpop.permute.xlu0 %1744
  %1746 = vrot.lane.b32.xlu0 %v1689, 96
  %v1747 = vpop.permute.xlu0 %1746
  %v1750 = vmul.f32 %v1662, %v1745
  %v1751 = vmul.f32 %v1663, %v1747
  %1754 = vrot.lane.b32.xlu0 %v1750, 64
  %v1755 = vpop.permute.xlu0 %1754
  %1756 = vrot.lane.b32.xlu0 %v1751, 64
  %v1757 = vpop.permute.xlu0 %1756
  %v1760 = vadd.f32 %v1740, %v1755
  %v1761 = vadd.f32 %v1741, %v1757
  %1762 = vrot.lane.b32.xlu0 %v1662, 64
  %v1763 = vpop.permute.xlu0 %1762
  %1764 = vrot.lane.b32.xlu0 %v1663, 64
  %v1765 = vpop.permute.xlu0 %1764
  %v1768 = vmul.f32 %v1662, %v1763
  %v1769 = vmul.f32 %v1663, %v1765
  %1772 = vrot.lane.b32.xlu0 %v1686, 64
  %v1773 = vpop.permute.xlu0 %1772
  %1774 = vrot.lane.b32.xlu0 %v1687, 64
  %v1775 = vpop.permute.xlu0 %1774
  %v1778 = vmul.f32 %v1662, %v1773
  %v1779 = vmul.f32 %v1663, %v1775
  %1782 = vrot.lane.b32.xlu0 %v1778, 96
  %v1783 = vpop.permute.xlu0 %1782
  %1784 = vrot.lane.b32.xlu0 %v1779, 96
  %v1785 = vpop.permute.xlu0 %1784
  %v1788 = vadd.f32 %v1768, %v1783
  %v1789 = vadd.f32 %v1769, %v1785
  %1790 = vrot.lane.b32.xlu0 %v1778, 64
  %v1791 = vpop.permute.xlu0 %1790
  %1792 = vrot.lane.b32.xlu0 %v1779, 64
  %v1793 = vpop.permute.xlu0 %1792
  %v1796 = vadd.f32 %v1788, %v1791
  %v1797 = vadd.f32 %v1789, %v1793
  %1798 = vrot.lane.b32.xlu0 %v1662, 32
  %v1799 = vpop.permute.xlu0 %1798
  %1800 = vrot.lane.b32.xlu0 %v1663, 32
  %v1801 = vpop.permute.xlu0 %1800
  %v1804 = vmul.f32 %v1666, %v1799
  %v1805 = vmul.f32 %v1667, %v1801
  %1808 = vrot.lane.b32.xlu0 %v1666, 96
  %v1809 = vpop.permute.xlu0 %1808
  %1810 = vrot.lane.b32.xlu0 %v1667, 96
  %v1811 = vpop.permute.xlu0 %1810
  %v1814 = vmul.f32 %v1676, %v1809
  %v1815 = vmul.f32 %v1677, %v1811
  %1818 = vrot.lane.b32.xlu0 %v1814, 32
  %v1819 = vpop.permute.xlu0 %1818
  %1820 = vrot.lane.b32.xlu0 %v1815, 32
  %v1821 = vpop.permute.xlu0 %1820
  %v1824 = vadd.f32 %v1804, %v1819
  %v1825 = vadd.f32 %v1805, %v1821
  %1826 = vrot.lane.b32.xlu0 %v1666, 32
  %v1827 = vpop.permute.xlu0 %1826
  %1828 = vrot.lane.b32.xlu0 %v1667, 32
  %v1829 = vpop.permute.xlu0 %1828
  %v1832 = vmul.f32 %v1686, %v1827
  %v1833 = vmul.f32 %v1687, %v1829
  %1836 = vrot.lane.b32.xlu0 %v1832, 64
  %v1837 = vpop.permute.xlu0 %1836
  %1838 = vrot.lane.b32.xlu0 %v1833, 64
  %v1839 = vpop.permute.xlu0 %1838
  %v1842 = vadd.f32 %v1824, %v1837
  %v1843 = vadd.f32 %v1825, %v1839
  %v1844 = vmul.f32 %v1676, %v1676
  %v1845 = vmul.f32 %v1677, %v1677
  %1848 = vrot.lane.b32.xlu0 %v1844, 32
  %v1849 = vpop.permute.xlu0 %1848
  %1850 = vrot.lane.b32.xlu0 %v1845, 32
  %v1851 = vpop.permute.xlu0 %1850
  %v1854 = vadd.f32 %v1692, %v1849
  %v1855 = vadd.f32 %v1693, %v1851
  %v1856 = vmul.f32 %v1686, %v1688
  %v1857 = vmul.f32 %v1687, %v1689
  %1860 = vrot.lane.b32.xlu0 %v1856, 64
  %v1861 = vpop.permute.xlu0 %1860
  %1862 = vrot.lane.b32.xlu0 %v1857, 64
  %v1863 = vpop.permute.xlu0 %1862
  %v1866 = vadd.f32 %v1854, %v1861
  %v1867 = vadd.f32 %v1855, %v1863
  %v1868 = vmul.f32 %v1666, %v1715
  %v1869 = vmul.f32 %v1667, %v1717
  %1870 = vrot.lane.b32.xlu0 %v1686, 32
  %v1871 = vpop.permute.xlu0 %1870
  %1872 = vrot.lane.b32.xlu0 %v1687, 32
  %v1873 = vpop.permute.xlu0 %1872
  %v1876 = vmul.f32 %v1676, %v1871
  %v1877 = vmul.f32 %v1677, %v1873
  %1880 = vrot.lane.b32.xlu0 %v1876, 32
  %v1881 = vpop.permute.xlu0 %1880
  %1882 = vrot.lane.b32.xlu0 %v1877, 32
  %v1883 = vpop.permute.xlu0 %1882
  %v1886 = vadd.f32 %v1868, %v1881
  %v1887 = vadd.f32 %v1869, %v1883
  %1888 = vrot.lane.b32.xlu0 %v1686, 96
  %v1889 = vpop.permute.xlu0 %1888
  %1890 = vrot.lane.b32.xlu0 %v1687, 96
  %v1891 = vpop.permute.xlu0 %1890
  %v1894 = vmul.f32 %v1686, %v1889
  %v1895 = vmul.f32 %v1687, %v1891
  %1898 = vrot.lane.b32.xlu0 %v1894, 64
  %v1899 = vpop.permute.xlu0 %1898
  %1900 = vrot.lane.b32.xlu0 %v1895, 64
  %v1901 = vpop.permute.xlu0 %1900
  %v1904 = vadd.f32 %v1886, %v1899
  %v1905 = vadd.f32 %v1887, %v1901
  %v1906 = vmul.f32 %v1666, %v1763
  %v1907 = vmul.f32 %v1667, %v1765
  %1908 = vrot.lane.b32.xlu0 %v1666, 64
  %v1909 = vpop.permute.xlu0 %1908
  %1910 = vrot.lane.b32.xlu0 %v1667, 64
  %v1911 = vpop.permute.xlu0 %1910
  %v1914 = vmul.f32 %v1688, %v1909
  %v1915 = vmul.f32 %v1689, %v1911
  %1918 = vrot.lane.b32.xlu0 %v1914, 96
  %v1919 = vpop.permute.xlu0 %1918
  %1920 = vrot.lane.b32.xlu0 %v1915, 96
  %v1921 = vpop.permute.xlu0 %1920
  %v1924 = vadd.f32 %v1906, %v1919
  %v1925 = vadd.f32 %v1907, %v1921
  %v1926 = vmul.f32 %v1686, %v1909
  %v1927 = vmul.f32 %v1687, %v1911
  %1930 = vrot.lane.b32.xlu0 %v1926, 64
  %v1931 = vpop.permute.xlu0 %1930
  %1932 = vrot.lane.b32.xlu0 %v1927, 64
  %v1933 = vpop.permute.xlu0 %1932
  %v1936 = vadd.f32 %v1924, %v1931
  %v1937 = vadd.f32 %v1925, %v1933
  %1938 = vrot.lane.b32.xlu0 %v1676, 96
  %v1939 = vpop.permute.xlu0 %1938
  %1940 = vrot.lane.b32.xlu0 %v1677, 96
  %v1941 = vpop.permute.xlu0 %1940
  %v1944 = vmul.f32 %v1688, %v1939
  %v1945 = vmul.f32 %v1689, %v1941
  %1948 = vrot.lane.b32.xlu0 %v1944, 96
  %v1949 = vpop.permute.xlu0 %1948
  %1950 = vrot.lane.b32.xlu0 %v1945, 96
  %v1951 = vpop.permute.xlu0 %1950
  %v1954 = vadd.f32 %v1804, %v1949
  %v1955 = vadd.f32 %v1805, %v1951
  %1956 = vrot.lane.b32.xlu0 %v1688, 32
  %v1957 = vpop.permute.xlu0 %1956
  %1958 = vrot.lane.b32.xlu0 %v1689, 32
  %v1959 = vpop.permute.xlu0 %1958
  %v1962 = vmul.f32 %v1686, %v1957
  %v1963 = vmul.f32 %v1687, %v1959
  %1966 = vrot.lane.b32.xlu0 %v1962, 64
  %v1967 = vpop.permute.xlu0 %1966
  %1968 = vrot.lane.b32.xlu0 %v1963, 64
  %v1969 = vpop.permute.xlu0 %1968
  %v1972 = vadd.f32 %v1954, %v1967
  %v1973 = vadd.f32 %v1955, %v1969
  %1974 = vrot.lane.b32.xlu0 %v1856, 96
  %v1975 = vpop.permute.xlu0 %1974
  %1976 = vrot.lane.b32.xlu0 %v1857, 96
  %v1977 = vpop.permute.xlu0 %1976
  %v1980 = vadd.f32 %v1692, %v1975
  %v1981 = vadd.f32 %v1693, %v1977
  %v1982 = vmul.f32 %v1686, %v1686
  %v1983 = vmul.f32 %v1687, %v1687
  %1986 = vrot.lane.b32.xlu0 %v1982, 64
  %v1987 = vpop.permute.xlu0 %1986
  %1988 = vrot.lane.b32.xlu0 %v1983, 64
  %v1989 = vpop.permute.xlu0 %1988
  %v1992 = vadd.f32 %v1980, %v1987
  %v1993 = vadd.f32 %v1981, %v1989
  %v1994 = vmul.f32 %v23, %v245
  %v1995 = vmul.f32 %v26, %v247
  %1998 = vrot.lane.b32.xlu0 %v245, 32
  %v1999 = vpop.permute.xlu0 %1998
  %2000 = vrot.lane.b32.xlu0 %v247, 32
  %v2001 = vpop.permute.xlu0 %2000
  %v2004 = vmul.f32 %v23, %v1999
  %v2005 = vmul.f32 %v26, %v2001
  %2006 = vrot.lane.b32.xlu0 %v245, 64
  %v2007 = vpop.permute.xlu0 %2006
  %2008 = vrot.lane.b32.xlu0 %v247, 64
  %v2009 = vpop.permute.xlu0 %2008
  %v2012 = vmul.f32 %v23, %v2007
  %v2013 = vmul.f32 %v26, %v2009
  %2014 = vrot.lane.b32.xlu0 %v245, 96
  %v2015 = vpop.permute.xlu0 %2014
  %2016 = vrot.lane.b32.xlu0 %v247, 96
  %v2017 = vpop.permute.xlu0 %2016
  %v2020 = vmul.f32 %v23, %v2015
  %v2021 = vmul.f32 %v26, %v2017
  %v2022 = vmul.f32 %v24, %v245
  %v2023 = vmul.f32 %v27, %v247
  %v2024 = vmul.f32 %v24, %v1999
  %v2025 = vmul.f32 %v27, %v2001
  %v2026 = vmul.f32 %v24, %v2007
  %v2027 = vmul.f32 %v27, %v2009
  %v2028 = vmul.f32 %v24, %v2015
  %v2029 = vmul.f32 %v27, %v2017
  %v2030 = vmul.f32 %v25, %v245
  %v2031 = vmul.f32 %v28, %v247
  %v2032 = vmul.f32 %v25, %v1999
  %v2033 = vmul.f32 %v28, %v2001
  %v2034 = vadd.f32 %v1994, %v2022
  %v2035 = vadd.f32 %v1995, %v2023
  %v2036 = vadd.f32 %v2004, %v2024
  %v2037 = vadd.f32 %v2005, %v2025
  %v2038 = vadd.f32 %v2012, %v2026
  %v2039 = vadd.f32 %v2013, %v2027
  %v2040 = vsub.f32 0.0, %v2004
  %v2041 = vsub.f32 0.0, %v2005
  %v2042 = vadd.f32 %v2040, %v2024
  %v2043 = vadd.f32 %v2041, %v2025
  %2046 = vrot.lane.b32.xlu0 %v2028, 32
  %v2047 = vpop.permute.xlu0 %2046
  %2048 = vrot.lane.b32.xlu0 %v2029, 32
  %v2049 = vpop.permute.xlu0 %2048
  %v2052 = vadd.f32 %v1994, %v2047
  %v2053 = vadd.f32 %v1995, %v2049
  %2056 = vrot.lane.b32.xlu0 %v2030, 96
  %v2057 = vpop.permute.xlu0 %2056
  %2058 = vrot.lane.b32.xlu0 %v2031, 96
  %v2059 = vpop.permute.xlu0 %2058
  %v2062 = vadd.f32 %v2020, %v2057
  %v2063 = vadd.f32 %v2021, %v2059
  %v2064 = vsub.f32 0.0, %v2012
  %v2065 = vsub.f32 0.0, %v2013
  %v2066 = vadd.f32 %v2064, %v2026
  %v2067 = vadd.f32 %v2065, %v2027
  %v2068 = vsub.f32 0.0, %v2020
  %v2069 = vsub.f32 0.0, %v2021
  %v2070 = vadd.f32 %v2068, %v2057
  %v2071 = vadd.f32 %v2069, %v2059
  %2074 = vrot.lane.b32.xlu0 %v2032, 96
  %v2075 = vpop.permute.xlu0 %2074
  %2076 = vrot.lane.b32.xlu0 %v2033, 96
  %v2077 = vpop.permute.xlu0 %2076
  %v2080 = vadd.f32 %v1994, %v2075
  %v2081 = vadd.f32 %v1995, %v2077
  %v2082 = vadd.f32 %v2034, %v1662
  %v2083 = vadd.f32 %v2035, %v1663
  %v2084 = vmul.f32 %v901, %v1710
  %v2085 = vmul.f32 %v906, %v1711
  %v2086 = vadd.f32 %v2082, %v2084
  %v2087 = vadd.f32 %v2083, %v2085
  %v2088 = vadd.f32 %v2036, %v1662
  %v2089 = vadd.f32 %v2037, %v1663
  %v2090 = vmul.f32 %v901, %v1760
  %v2091 = vmul.f32 %v906, %v1761
  %2094 = vrot.lane.b32.xlu0 %v2090, 32
  %v2095 = vpop.permute.xlu0 %2094
  %2096 = vrot.lane.b32.xlu0 %v2091, 32
  %v2097 = vpop.permute.xlu0 %2096
  %v2100 = vadd.f32 %v2088, %v2095
  %v2101 = vadd.f32 %v2089, %v2097
  %v2102 = vadd.f32 %v2038, %v1662
  %v2103 = vadd.f32 %v2039, %v1663
  %v2104 = vmul.f32 %v901, %v1796
  %v2105 = vmul.f32 %v906, %v1797
  %2108 = vrot.lane.b32.xlu0 %v2104, 64
  %v2109 = vpop.permute.xlu0 %2108
  %2110 = vrot.lane.b32.xlu0 %v2105, 64
  %v2111 = vpop.permute.xlu0 %2110
  %v2114 = vadd.f32 %v2102, %v2109
  %v2115 = vadd.f32 %v2103, %v2111
  %v2116 = vadd.f32 %v2042, %v1666
  %v2117 = vadd.f32 %v2043, %v1667
  %v2118 = vmul.f32 %v901, %v1842
  %v2119 = vmul.f32 %v906, %v1843
  %v2120 = vadd.f32 %v2116, %v2118
  %v2121 = vadd.f32 %v2117, %v2119
  %v2122 = vadd.f32 %v2052, %v1676
  %v2123 = vadd.f32 %v2053, %v1677
  %v2124 = vmul.f32 %v901, %v1866
  %v2125 = vmul.f32 %v906, %v1867
  %2128 = vrot.lane.b32.xlu0 %v2124, 96
  %v2129 = vpop.permute.xlu0 %2128
  %2130 = vrot.lane.b32.xlu0 %v2125, 96
  %v2131 = vpop.permute.xlu0 %2130
  %v2134 = vadd.f32 %v2122, %v2129
  %v2135 = vadd.f32 %v2123, %v2131
  %v2136 = vadd.f32 %v2062, %v1686
  %v2137 = vadd.f32 %v2063, %v1687
  %v2138 = vmul.f32 %v901, %v1904
  %v2139 = vmul.f32 %v906, %v1905
  %2142 = vrot.lane.b32.xlu0 %v2138, 64
  %v2143 = vpop.permute.xlu0 %2142
  %2144 = vrot.lane.b32.xlu0 %v2139, 64
  %v2145 = vpop.permute.xlu0 %2144
  %v2148 = vadd.f32 %v2136, %v2143
  %v2149 = vadd.f32 %v2137, %v2145
  %v2150 = vadd.f32 %v2066, %v1666
  %v2151 = vadd.f32 %v2067, %v1667
  %v2152 = vmul.f32 %v901, %v1936
  %v2153 = vmul.f32 %v906, %v1937
  %v2154 = vadd.f32 %v2150, %v2152
  %v2155 = vadd.f32 %v2151, %v2153
  %v2156 = vadd.f32 %v2070, %v1688
  %v2157 = vadd.f32 %v2071, %v1689
  %v2158 = vmul.f32 %v901, %v1972
  %v2159 = vmul.f32 %v906, %v1973
  %2162 = vrot.lane.b32.xlu0 %v2158, 32
  %v2163 = vpop.permute.xlu0 %2162
  %2164 = vrot.lane.b32.xlu0 %v2159, 32
  %v2165 = vpop.permute.xlu0 %2164
  %v2168 = vadd.f32 %v2156, %v2163
  %v2169 = vadd.f32 %v2157, %v2165
  %v2170 = vadd.f32 %v2080, %v1686
  %v2171 = vadd.f32 %v2081, %v1687
  %v2172 = vmul.f32 %v901, %v1992
  %v2173 = vmul.f32 %v906, %v1993
  %2176 = vrot.lane.b32.xlu0 %v2172, 64
  %v2177 = vpop.permute.xlu0 %2176
  %2178 = vrot.lane.b32.xlu0 %v2173, 64
  %v2179 = vpop.permute.xlu0 %2178
  %v2182 = vadd.f32 %v2170, %v2177
  %v2183 = vadd.f32 %v2171, %v2179
  %v2184 = vadd.f32 %v2086, %v2134
  %v2185 = vadd.f32 %v2087, %v2135
  %v2186 = vadd.f32 %v2184, %v2182
  %v2187 = vadd.f32 %v2185, %v2183
  %v2188 = vmul.f32 %v2186, 0.33333334
  %v2189 = vmul.f32 %v2187, 0.33333334
  %v2190 = vsub.f32 %v2100, %v2120
  %v2191 = vsub.f32 %v2101, %v2121
  %v2192 = vmul.f32 %v2190, 0.5
  %v2193 = vmul.f32 %v2191, 0.5
  %v2194 = vsub.f32 %v2114, %v2154
  %v2195 = vsub.f32 %v2115, %v2155
  %v2196 = vmul.f32 %v2194, 0.5
  %v2197 = vmul.f32 %v2195, 0.5
  %v2198 = vsub.f32 %v2148, %v2168
  %v2199 = vsub.f32 %v2149, %v2169
  %v2200 = vmul.f32 %v2198, 0.5
  %v2201 = vmul.f32 %v2199, 0.5
  %v2202 = vsub.f32 %v2086, %v2188
  %v2203 = vsub.f32 %v2087, %v2189
  %v2204 = vsub.f32 %v2134, %v2188
  %v2205 = vsub.f32 %v2135, %v2189
  %v2206 = vsub.f32 %v2182, %v2188
  %v2207 = vsub.f32 %v2183, %v2189
  %v2208 = vadd.f32 %v2100, %v2120
  %v2209 = vadd.f32 %v2101, %v2121
  %v2210 = vmul.f32 %v2208, 0.5
  %v2211 = vmul.f32 %v2209, 0.5
  %v2212 = vadd.f32 %v2114, %v2154
  %v2213 = vadd.f32 %v2115, %v2155
  %v2214 = vmul.f32 %v2212, 0.5
  %v2215 = vmul.f32 %v2213, 0.5
  %v2216 = vadd.f32 %v2148, %v2168
  %v2217 = vadd.f32 %v2149, %v2169
  %v2218 = vmul.f32 %v2216, 0.5
  %v2219 = vmul.f32 %v2217, 0.5
  %2222 = vrot.lane.b32.xlu0 %v2204, 96
  %v2223 = vpop.permute.xlu0 %2222
  %2224 = vrot.lane.b32.xlu0 %v2205, 96
  %v2225 = vpop.permute.xlu0 %2224
  %2230 = vrot.lane.b32.xlu0 %v2218, 32
  %v2231 = vpop.permute.xlu0 %2230
  %2232 = vrot.lane.b32.xlu0 %v2219, 32
  %v2233 = vpop.permute.xlu0 %2232
  %2238 = vrot.lane.b32.xlu0 %v2206, 32
  %v2239 = vpop.permute.xlu0 %2238
  %2240 = vrot.lane.b32.xlu0 %v2207, 32
  %v2241 = vpop.permute.xlu0 %2240
  %v2244 = vsel %vm1140, %v2188, %v2192
  %v2245 = vsel %vm1140, %v2189, %v2193
  %v2246 = vsel %vm87, %v2244, %v2196
  %v2247 = vsel %vm87, %v2245, %v2197
  %v2248 = vsel %vm1145, %v2246, %v2200
  %v2249 = vsel %vm1145, %v2247, %v2201
  %v2250 = vsel %vm1140, %v2202, %v2210
  %v2251 = vsel %vm1140, %v2203, %v2211
  %v2252 = vsel %vm87, %v2250, %v2214
  %v2253 = vsel %vm87, %v2251, %v2215
  %v2254 = vsel %vm1145, %v2252, %v2223
  %v2255 = vsel %vm1145, %v2253, %v2225
  %v2256 = vsel %vm1140, %v2231, %v2239
  %v2257 = vsel %vm1140, %v2233, %v2241
  %2258 = vst [vmem:[%s6] sm:$0xff] %v2248
  %2259 = vst [vmem:[%s6 + $0x8] sm:$0xff] %v2254
  %2260 = vst.msk [vmem:[%s6 + $0x10] sm:$0xff] %vm87, %v2256
  %2261 = vst [vmem:[%s6 + $0x18] sm:$0xff] %v2249
  %2262 = vst [vmem:[%s6 + $0x20] sm:$0xff] %v2255
  %2263 = vst.msk [vmem:[%s6 + $0x28] sm:$0xff] %vm87, %v2257
  // Predicated region
  $region26: #{tensornet_forward.12} parent=0 // pred_check
    _
  $region27: #{tensornet_forward.12} parent=0 // pred_check_branch
    %2265 = sbr.rel (0) target = $region29
  $region28: #{tensornet_forward.12} parent=0 // pred_region
    _
  $region29: #{tensornet_forward.12} parent=0 // pred_fallthru
    _
  // Predicated region
  $region30: #{tensornet_forward.12} parent=0 // pred_check
    _
  $region31: #{tensornet_forward.12} parent=0 // pred_check_branch
    %2267 = sbr.rel (0) target = $region33
  $region32: #{tensornet_forward.12} parent=0 // pred_region
    _
  $region33: #{tensornet_forward.12} parent=0 // pred_fallthru
    _

</llo_original>
